<compile_context>
chip_gen: v5e
topology: v5e:2x2
jax: 0.10.0
libtpu: 0.0.40
codegen_flags: <defaults>
</compile_context>

<pallas_src>
import functools

import jax
import jax.numpy as jnp
from jax.experimental import pallas as pl
from jax.experimental.pallas import tpu as pltpu

VMEM_LIMIT = 32 * 1024 * 1024     # explicit scoped-VMEM limit (safe on v5e/v6e/v7x)
TM_SA = 256                       # pixel-row tile for the fused scale-attention kernel

C_IN = 3
ENC = (8, 16, 32, 64)             # encoder x1..x4 channels (stride 1,2,4,8)
DEC = (32, 16, 8)                 # decoder d1,d2,d3 channels (per branch)
CC = DEC[2]                       # scale-attention common channels (per branch)
N_OUT = (2, 2, 5)                 # np, hv, nc output channels
N_OUT_TOTAL = sum(N_OUT)
NB = 3                            # number of branches (np / hv / nc)


# ----------------------------------------------------------------------------
# Pallas kernel 1: fused 3x3 conv + bias + ReLU
#   grid = (batch, row); halo via three row-offset views of the padded input;
#   9 shifted bf16 dots accumulate in f32.  No im2col in HBM.
# ----------------------------------------------------------------------------
def _conv3x3_kernel(xt_ref, xm_ref, xb_ref, w_ref, b_ref, o_ref, *, act):
    # xt/xm/xb: (W+2, Cin) bf16  -- padded rows r, r+1, r+2 (dy = -1, 0, +1)
    # w_ref   : (9, Cin, Cout)   bf16
    # b_ref   : (1, Cout)        f32
    # o_ref   : (W, Cout)        bf16
    W, cout = o_ref.shape
    rows = (xt_ref, xm_ref, xb_ref)
    acc = jnp.zeros((W, cout), jnp.float32)
    for dy in range(3):
        xrow = rows[dy][...]                              # (W+2, Cin) bf16
        for dx in range(3):
            acc = acc + jnp.dot(xrow[dx:dx + W, :], w_ref[dy * 3 + dx],
                                preferred_element_type=jnp.float32)
    acc = acc + b_ref[...]
    if act == "relu":
        acc = jnp.maximum(acc, 0.0)
    o_ref[...] = acc.astype(o_ref.dtype)


def conv3x3(x, w, b, act="relu"):
    """x: (N,H,W,Cin) bf16, w: (3,3,Cin,Cout) bf16, b: (Cout,) f32 -> (N,H,W,Cout) bf16."""
    N, H, W, Cin = x.shape
    Cout = w.shape[-1]
    Wp = W + 2
    xp = jnp.pad(x, ((0, 0), (1, 1), (1, 1), (0, 0)))
    w9 = w.reshape(9, Cin, Cout)
    b2 = b.reshape(1, Cout).astype(jnp.float32)

    def row_spec(off):
        # same padded array, shifted by `off` rows (block size 1 -> element row index)
        return pl.BlockSpec((None, None, Wp, Cin),
                            lambda n, r: (n, r + off, 0, 0))

    flops = 2 * N * H * W * 9 * Cin * Cout
    bytes_accessed = (3 * N * (H + 2) * Wp * Cin + 9 * Cin * Cout
                      + N * H * W * Cout) * 2 + Cout * 4

    return pl.pallas_call(
        functools.partial(_conv3x3_kernel, act=act),
        out_shape=jax.ShapeDtypeStruct((N, H, W, Cout), jnp.bfloat16),
        grid=(N, H),
        in_specs=[
            row_spec(0), row_spec(1), row_spec(2),
            pl.BlockSpec((9, Cin, Cout), lambda n, r: (0, 0, 0)),
            pl.BlockSpec((1, Cout), lambda n, r: (0, 0)),
        ],
        out_specs=pl.BlockSpec((None, None, W, Cout), lambda n, r: (n, r, 0, 0)),
        compiler_params=pltpu.CompilerParams(
            dimension_semantics=("parallel", "parallel"),
            vmem_limit_bytes=VMEM_LIMIT),
        cost_estimate=pl.CostEstimate(flops=flops, transcendentals=0,
                                      bytes_accessed=bytes_accessed),
    )(xp, xp, xp, w9, b2)


# ----------------------------------------------------------------------------
# Pallas kernel 2: fused scale-attention tail (all three branches at once)
#   f_i = relu(u_i @ Wp_i + bp_i)          (1x1 "p" convs)
#   a_i = f_i @ Wa_i + ba_i                (1x1 "a" convs)
#   w_i = softmax over scales i of a_i     (stable, EUP reciprocal)
#   out = (sum_i w_i * f_i) @ Wout + bout  (output 1x1 conv)
#   Branch independence is encoded by block-diagonal Wp/Wa/Wout.
# ----------------------------------------------------------------------------
def _scale_attention_kernel(u1_ref, u2_ref, u3_ref,
                            wp1_ref, wp2_ref, wp3_ref, bp_ref,
                            wa_ref, ba_ref, wout_ref, bout_ref, o_ref):
    def pconv(u_ref, wp_ref, i):
        f = jnp.dot(u_ref[...], wp_ref[...], preferred_element_type=jnp.float32)
        return jnp.maximum(f + bp_ref[i], 0.0)

    f1 = pconv(u1_ref, wp1_ref, 0)
    f2 = pconv(u2_ref, wp2_ref, 1)
    f3 = pconv(u3_ref, wp3_ref, 2)

    def aconv(f, i):
        return jnp.dot(f.astype(jnp.bfloat16), wa_ref[i],
                       preferred_element_type=jnp.float32) + ba_ref[i]

    a1 = aconv(f1, 0)
    a2 = aconv(f2, 1)
    a3 = aconv(f3, 2)

    m = jnp.maximum(jnp.maximum(a1, a2), a3)
    e1 = jnp.exp(a1 - m)
    e2 = jnp.exp(a2 - m)
    e3 = jnp.exp(a3 - m)
    inv = pl.reciprocal(e1 + e2 + e3, approx=True)
    fused = (f1 * e1 + f2 * e2 + f3 * e3) * inv

    out = jnp.dot(fused.astype(jnp.bfloat16), wout_ref[...],
                  preferred_element_type=jnp.float32) + bout_ref[...]
    o_ref[...] = out.astype(o_ref.dtype)


def scale_attention_fused(u1, u2, u3, p):
    """u1:(N,H,W,96) u2:(N,H,W,48) u3:(N,H,W,24) bf16 -> (N,H,W,9) f32 (np|hv|nc)."""
    N, H, W, C1 = u1.shape
    C2 = u2.shape[-1]
    C3 = u3.shape[-1]
    CC3 = p["sa_wp1"].shape[-1]
    NO = p["sa_wout"].shape[-1]
    M = N * H * W
    tm = TM_SA
    Mp = pl.cdiv(M, tm) * tm

    def flat(u, c):
        u2d = u.reshape(M, c)
        if Mp != M:
            u2d = jnp.pad(u2d, ((0, Mp - M), (0, 0)))
        return u2d

    def full(arr):
        shp = arr.shape
        return pl.BlockSpec(shp, lambda i, shp=shp: (0,) * len(shp))

    flops = 2 * Mp * (C1 * CC3 + C2 * CC3 + C3 * CC3 + 3 * CC3 * CC3 + CC3 * NO)
    bytes_accessed = 2 * Mp * (C1 + C2 + C3) + 4 * Mp * NO

    out2d = pl.pallas_call(
        _scale_attention_kernel,
        out_shape=jax.ShapeDtypeStruct((Mp, NO), jnp.float32),
        grid=(Mp // tm,),
        in_specs=[
            pl.BlockSpec((tm, C1), lambda i: (i, 0)),
            pl.BlockSpec((tm, C2), lambda i: (i, 0)),
            pl.BlockSpec((tm, C3), lambda i: (i, 0)),
            full(p["sa_wp1"]), full(p["sa_wp2"]), full(p["sa_wp3"]),
            full(p["sa_bp"]), full(p["sa_wa"]), full(p["sa_ba"]),
            full(p["sa_wout"]), full(p["sa_bout"]),
        ],
        out_specs=pl.BlockSpec((tm, NO), lambda i: (i, 0)),
        compiler_params=pltpu.CompilerParams(
            dimension_semantics=("parallel",),
            vmem_limit_bytes=VMEM_LIMIT),
        cost_estimate=pl.CostEstimate(flops=flops, transcendentals=4 * CC3 * Mp,
                                      bytes_accessed=bytes_accessed),
    )(flat(u1, C1), flat(u2, C2), flat(u3, C3),
      p["sa_wp1"], p["sa_wp2"], p["sa_wp3"], p["sa_bp"],
      p["sa_wa"], p["sa_ba"], p["sa_wout"], p["sa_bout"])

    return out2d[:M].reshape(N, H, W, NO)


# ----------------------------------------------------------------------------
# XLA glue: pooling / nearest-neighbor upsample
# ----------------------------------------------------------------------------
def maxpool2(x):
    N, H, W, C = x.shape
    return x.reshape(N, H // 2, 2, W // 2, 2, C).max(axis=(2, 4))


def upsample(x, f):
    if f == 1:
        return x
    x = jnp.repeat(x, f, axis=1)
    return jnp.repeat(x, f, axis=2)


# ----------------------------------------------------------------------------
# Parameters (deterministic, scaled-down channels, fused-branch layout)
# ----------------------------------------------------------------------------
def init_params(key):
    keys = iter(jax.random.split(key, 64))

    def rnd(shape, scale=0.05):
        return jax.random.normal(next(keys), shape, jnp.float32) * scale

    def bd2(mats):
        """Block-diagonal stack of 2-D matrices (encodes branch independence)."""
        K = sum(m.shape[0] for m in mats)
        N = sum(m.shape[1] for m in mats)
        out = jnp.zeros((K, N), jnp.float32)
        ko = no = 0
        for m in mats:
            out = out.at[ko:ko + m.shape[0], no:no + m.shape[1]].set(m)
            ko += m.shape[0]
            no += m.shape[1]
        return out

    P = {}

    # encoder (plain conv stages; TODO(synk): original ResNet encoder not provided)
    enc_in = (C_IN,) + ENC[:-1]
    for i in range(4):
        P[f"enc_c{i+1}_w"] = rnd((3, 3, enc_in[i], ENC[i])).astype(jnp.bfloat16)
        P[f"enc_c{i+1}_b"] = jnp.zeros((ENC[i],), jnp.float32)

    # fused 3-branch decoder, stage 1: input concat(up(x4), x3) shared by all branches
    k1 = ENC[3] + ENC[2]
    P["d1_w"] = jnp.concatenate([rnd((3, 3, k1, DEC[0])) for _ in range(NB)],
                                axis=-1).astype(jnp.bfloat16)              # (3,3,96,96)
    P["d1_b"] = jnp.zeros((NB * DEC[0],), jnp.float32)

    # stage 2: input = [d1_np | d1_hv | d1_nc | x2]; branch b sees only its own d1 slice
    k2 = NB * DEC[0] + ENC[1]
    w2 = jnp.zeros((3, 3, k2, NB * DEC[1]), jnp.float32)
    for b in range(NB):
        wb = rnd((3, 3, DEC[0] + ENC[1], DEC[1]))
        w2 = w2.at[:, :, b * DEC[0]:(b + 1) * DEC[0],
                   b * DEC[1]:(b + 1) * DEC[1]].set(wb[:, :, :DEC[0], :])
        w2 = w2.at[:, :, NB * DEC[0]:,
                   b * DEC[1]:(b + 1) * DEC[1]].set(wb[:, :, DEC[0]:, :])
    P["d2_w"] = w2.astype(jnp.bfloat16)                                    # (3,3,112,48)
    P["d2_b"] = jnp.zeros((NB * DEC[1],), jnp.float32)

    # stage 3: input = [d2_np | d2_hv | d2_nc | x1]
    k3 = NB * DEC[1] + ENC[0]
    w3 = jnp.zeros((3, 3, k3, NB * DEC[2]), jnp.float32)
    for b in range(NB):
        wb = rnd((3, 3, DEC[1] + ENC[0], DEC[2]))
        w3 = w3.at[:, :, b * DEC[1]:(b + 1) * DEC[1],
                   b * DEC[2]:(b + 1) * DEC[2]].set(wb[:, :, :DEC[1], :])
        w3 = w3.at[:, :, NB * DEC[1]:,
                   b * DEC[2]:(b + 1) * DEC[2]].set(wb[:, :, DEC[1]:, :])
    P["d3_w"] = w3.astype(jnp.bfloat16)                                    # (3,3,56,24)
    P["d3_b"] = jnp.zeros((NB * DEC[2],), jnp.float32)

    # fused 3-branch scale attention (1x1 convs -> block-diagonal matrices)
    P["sa_wp1"] = bd2([rnd((DEC[0], CC)) for _ in range(NB)]).astype(jnp.bfloat16)
    P["sa_wp2"] = bd2([rnd((DEC[1], CC)) for _ in range(NB)]).astype(jnp.bfloat16)
    P["sa_wp3"] = bd2([rnd((DEC[2], CC)) for _ in range(NB)]).astype(jnp.bfloat16)
    P["sa_bp"] = jnp.zeros((3, 1, NB * CC), jnp.float32)
    P["sa_wa"] = jnp.stack([bd2([rnd((CC, CC)) for _ in range(NB)])
                            for _ in range(3)]).astype(jnp.bfloat16)       # (3,24,24)
    P["sa_ba"] = jnp.zeros((3, 1, NB * CC), jnp.float32)
    P["sa_wout"] = bd2([rnd((CC, n)) for n in N_OUT]).astype(jnp.bfloat16)  # (24,9)
    P["sa_bout"] = jnp.zeros((1, N_OUT_TOTAL), jnp.float32)
    return P


# ----------------------------------------------------------------------------
# Forward pass
# ----------------------------------------------------------------------------
def hovernet_fwd(params, x):
    x = x.astype(jnp.bfloat16)

    # encoder
    x1 = conv3x3(x, params["enc_c1_w"], params["enc_c1_b"])
    x2 = conv3x3(maxpool2(x1), params["enc_c2_w"], params["enc_c2_b"])
    x3 = conv3x3(maxpool2(x2), params["enc_c3_w"], params["enc_c3_b"])
    x4 = conv3x3(maxpool2(x3), params["enc_c4_w"], params["enc_c4_b"])

    # fused 3-branch decoder (block-structured weights keep branches independent)
    u = jnp.concatenate([upsample(x4, 2), x3], axis=-1)
    d1 = conv3x3(u, params["d1_w"], params["d1_b"])      # (N, H/4, W/4, 96)
    u = jnp.concatenate([upsample(d1, 2), x2], axis=-1)
    d2 = conv3x3(u, params["d2_w"], params["d2_b"])      # (N, H/2, W/2, 48)
    u = jnp.concatenate([upsample(d2, 2), x1], axis=-1)
    d3 = conv3x3(u, params["d3_w"], params["d3_b"])      # (N, H,   W,   24)

    # fused 3-branch scale-attention head
    H = d3.shape[1]
    u1 = upsample(d1, H // d1.shape[1])
    u2 = upsample(d2, H // d2.shape[1])
    out9 = scale_attention_fused(u1, u2, d3, params)     # (N, H, W, 9) f32

    out_np = out9[..., 0:2]
    out_hv = out9[..., 2:4]
    out_nc = out9[..., 4:9]
    return out_np, out_hv, out_nc


# ----------------------------------------------------------------------------
if __name__ == "__main__":
    key = jax.random.PRNGKey(0)
    pkey, xkey = jax.random.split(key)
    params = init_params(pkey)

    # layout: NHWC (torch reference would be NCHW = (2, 3, 16, 16))
    x = jax.random.normal(xkey, (2, 16, 16, C_IN), jnp.float32)

    fwd = jax.jit(hovernet_fwd)
    out_np, out_hv, out_nc = fwd(params, x)
    jax.block_until_ready((out_np, out_hv, out_nc))

    assert out_np.shape == (2, 16, 16, 2)
    assert out_hv.shape == (2, 16, 16, 2)
    assert out_nc.shape == (2, 16, 16, 5)
    assert all(bool(jnp.all(jnp.isfinite(o))) for o in (out_np, out_hv, out_nc))

    print("KERNEL_OK")
</pallas_src>

<mosaic_0001>
module attributes {stable_mosaic.version = 11 : i64} {
  func.func @_conv3x3_kernel(%arg0: i32, %arg1: i32, %arg2: memref<1x1x18x3xbf16, #tpu.memory_space<vmem>>, %arg3: memref<1x1x18x3xbf16, #tpu.memory_space<vmem>>, %arg4: memref<1x1x18x3xbf16, #tpu.memory_space<vmem>>, %arg5: memref<9x3x8xbf16, #tpu.memory_space<vmem>>, %arg6: memref<1x8xf32, #tpu.memory_space<vmem>>, %arg7: memref<1x1x16x8xbf16, #tpu.memory_space<vmem>>) attributes {dimension_semantics = [#tpu.dimension_semantics<parallel>, #tpu.dimension_semantics<parallel>], iteration_bounds = array<i64: 2, 16>, scalar_prefetch = 0 : i64, scratch_operands = 0 : i64, tpu.core_type = #tpu.core_type<tc>, window_params = [{transform_indices = @transform_0, window_bounds = array<i64: 1, 1, 18, 3>}, {transform_indices = @transform_1, window_bounds = array<i64: 1, 1, 18, 3>}, {transform_indices = @transform_2, window_bounds = array<i64: 1, 1, 18, 3>}, {pipeline_mode = #tpu.pipeline_mode<synchronous>, transform_indices = @transform_3, window_bounds = array<i64: 9, 3, 8>}, {pipeline_mode = #tpu.pipeline_mode<synchronous>, transform_indices = @transform_4, window_bounds = array<i64: 1, 8>}, {transform_indices = @transform_5, window_bounds = array<i64: 1, 1, 16, 8>}]} {
    %cst = arith.constant 0.000000e+00 : f32
    %0 = vector.broadcast %cst : f32 to vector<16x8xf32>
    %c0 = arith.constant 0 : index
    %c0_0 = arith.constant 0 : index
    %c0_1 = arith.constant 0 : index
    %c0_2 = arith.constant 0 : index
    %1 = vector.load %arg2[%c0, %c0_0, %c0_1, %c0_2] : memref<1x1x18x3xbf16, #tpu.memory_space<vmem>>, vector<1x1x18x3xbf16>
    %2 = vector.shape_cast %1 : vector<1x1x18x3xbf16> to vector<18x3xbf16>
    %3 = vector.extract_strided_slice %2 {offsets = [0, 0], sizes = [16, 3], strides = [1, 1]} : vector<18x3xbf16> to vector<16x3xbf16>
    %c0_3 = arith.constant 0 : index
    %c0_4 = arith.constant 0 : index
    %c0_5 = arith.constant 0 : index
    %4 = vector.load %arg5[%c0_3, %c0_4, %c0_5] : memref<9x3x8xbf16, #tpu.memory_space<vmem>>, vector<1x3x8xbf16>
    %5 = vector.shape_cast %4 : vector<1x3x8xbf16> to vector<3x8xbf16>
    %cst_6 = arith.constant dense<0.000000e+00> : vector<16x8xf32>
    %6 = tpu.matmul %3, %5, %cst_6 {dimension_numbers = #tpu.dot_dimension_numbers<[1], [0], [0], [1], [0, 0, 1, 1], [], []>} : vector<16x3xbf16>, vector<3x8xbf16>, vector<16x8xf32> -> vector<16x8xf32>
    %7 = arith.addf %0, %6 : vector<16x8xf32>
    %8 = vector.extract_strided_slice %2 {offsets = [1, 0], sizes = [16, 3], strides = [1, 1]} : vector<18x3xbf16> to vector<16x3xbf16>
    %c1 = arith.constant 1 : index
    %c0_7 = arith.constant 0 : index
    %c0_8 = arith.constant 0 : index
    %9 = vector.load %arg5[%c1, %c0_7, %c0_8] : memref<9x3x8xbf16, #tpu.memory_space<vmem>>, vector<1x3x8xbf16>
    %10 = vector.shape_cast %9 : vector<1x3x8xbf16> to vector<3x8xbf16>
    %cst_9 = arith.constant dense<0.000000e+00> : vector<16x8xf32>
    %11 = tpu.matmul %8, %10, %cst_9 {dimension_numbers = #tpu.dot_dimension_numbers<[1], [0], [0], [1], [0, 0, 1, 1], [], []>} : vector<16x3xbf16>, vector<3x8xbf16>, vector<16x8xf32> -> vector<16x8xf32>
    %12 = arith.addf %7, %11 : vector<16x8xf32>
    %13 = vector.extract_strided_slice %2 {offsets = [2, 0], sizes = [16, 3], strides = [1, 1]} : vector<18x3xbf16> to vector<16x3xbf16>
    %c2 = arith.constant 2 : index
    %c0_10 = arith.constant 0 : index
    %c0_11 = arith.constant 0 : index
    %14 = vector.load %arg5[%c2, %c0_10, %c0_11] : memref<9x3x8xbf16, #tpu.memory_space<vmem>>, vector<1x3x8xbf16>
    %15 = vector.shape_cast %14 : vector<1x3x8xbf16> to vector<3x8xbf16>
    %cst_12 = arith.constant dense<0.000000e+00> : vector<16x8xf32>
    %16 = tpu.matmul %13, %15, %cst_12 {dimension_numbers = #tpu.dot_dimension_numbers<[1], [0], [0], [1], [0, 0, 1, 1], [], []>} : vector<16x3xbf16>, vector<3x8xbf16>, vector<16x8xf32> -> vector<16x8xf32>
    %17 = arith.addf %12, %16 : vector<16x8xf32>
    %c0_13 = arith.constant 0 : index
    %c0_14 = arith.constant 0 : index
    %c0_15 = arith.constant 0 : index
    %c0_16 = arith.constant 0 : index
    %18 = vector.load %arg3[%c0_13, %c0_14, %c0_15, %c0_16] : memref<1x1x18x3xbf16, #tpu.memory_space<vmem>>, vector<1x1x18x3xbf16>
    %19 = vector.shape_cast %18 : vector<1x1x18x3xbf16> to vector<18x3xbf16>
    %20 = vector.extract_strided_slice %19 {offsets = [0, 0], sizes = [16, 3], strides = [1, 1]} : vector<18x3xbf16> to vector<16x3xbf16>
    %c3 = arith.constant 3 : index
    %c0_17 = arith.constant 0 : index
    %c0_18 = arith.constant 0 : index
    %21 = vector.load %arg5[%c3, %c0_17, %c0_18] : memref<9x3x8xbf16, #tpu.memory_space<vmem>>, vector<1x3x8xbf16>
    %22 = vector.shape_cast %21 : vector<1x3x8xbf16> to vector<3x8xbf16>
    %cst_19 = arith.constant dense<0.000000e+00> : vector<16x8xf32>
    %23 = tpu.matmul %20, %22, %cst_19 {dimension_numbers = #tpu.dot_dimension_numbers<[1], [0], [0], [1], [0, 0, 1, 1], [], []>} : vector<16x3xbf16>, vector<3x8xbf16>, vector<16x8xf32> -> vector<16x8xf32>
    %24 = arith.addf %17, %23 : vector<16x8xf32>
    %25 = vector.extract_strided_slice %19 {offsets = [1, 0], sizes = [16, 3], strides = [1, 1]} : vector<18x3xbf16> to vector<16x3xbf16>
    %c4 = arith.constant 4 : index
    %c0_20 = arith.constant 0 : index
    %c0_21 = arith.constant 0 : index
    %26 = vector.load %arg5[%c4, %c0_20, %c0_21] : memref<9x3x8xbf16, #tpu.memory_space<vmem>>, vector<1x3x8xbf16>
    %27 = vector.shape_cast %26 : vector<1x3x8xbf16> to vector<3x8xbf16>
    %cst_22 = arith.constant dense<0.000000e+00> : vector<16x8xf32>
    %28 = tpu.matmul %25, %27, %cst_22 {dimension_numbers = #tpu.dot_dimension_numbers<[1], [0], [0], [1], [0, 0, 1, 1], [], []>} : vector<16x3xbf16>, vector<3x8xbf16>, vector<16x8xf32> -> vector<16x8xf32>
    %29 = arith.addf %24, %28 : vector<16x8xf32>
    %30 = vector.extract_strided_slice %19 {offsets = [2, 0], sizes = [16, 3], strides = [1, 1]} : vector<18x3xbf16> to vector<16x3xbf16>
    %c5 = arith.constant 5 : index
    %c0_23 = arith.constant 0 : index
    %c0_24 = arith.constant 0 : index
    %31 = vector.load %arg5[%c5, %c0_23, %c0_24] : memref<9x3x8xbf16, #tpu.memory_space<vmem>>, vector<1x3x8xbf16>
    %32 = vector.shape_cast %31 : vector<1x3x8xbf16> to vector<3x8xbf16>
    %cst_25 = arith.constant dense<0.000000e+00> : vector<16x8xf32>
    %33 = tpu.matmul %30, %32, %cst_25 {dimension_numbers = #tpu.dot_dimension_numbers<[1], [0], [0], [1], [0, 0, 1, 1], [], []>} : vector<16x3xbf16>, vector<3x8xbf16>, vector<16x8xf32> -> vector<16x8xf32>
    %34 = arith.addf %29, %33 : vector<16x8xf32>
    %c0_26 = arith.constant 0 : index
    %c0_27 = arith.constant 0 : index
    %c0_28 = arith.constant 0 : index
    %c0_29 = arith.constant 0 : index
    %35 = vector.load %arg4[%c0_26, %c0_27, %c0_28, %c0_29] : memref<1x1x18x3xbf16, #tpu.memory_space<vmem>>, vector<1x1x18x3xbf16>
    %36 = vector.shape_cast %35 : vector<1x1x18x3xbf16> to vector<18x3xbf16>
    %37 = vector.extract_strided_slice %36 {offsets = [0, 0], sizes = [16, 3], strides = [1, 1]} : vector<18x3xbf16> to vector<16x3xbf16>
    %c6 = arith.constant 6 : index
    %c0_30 = arith.constant 0 : index
    %c0_31 = arith.constant 0 : index
    %38 = vector.load %arg5[%c6, %c0_30, %c0_31] : memref<9x3x8xbf16, #tpu.memory_space<vmem>>, vector<1x3x8xbf16>
    %39 = vector.shape_cast %38 : vector<1x3x8xbf16> to vector<3x8xbf16>
    %cst_32 = arith.constant dense<0.000000e+00> : vector<16x8xf32>
    %40 = tpu.matmul %37, %39, %cst_32 {dimension_numbers = #tpu.dot_dimension_numbers<[1], [0], [0], [1], [0, 0, 1, 1], [], []>} : vector<16x3xbf16>, vector<3x8xbf16>, vector<16x8xf32> -> vector<16x8xf32>
    %41 = arith.addf %34, %40 : vector<16x8xf32>
    %42 = vector.extract_strided_slice %36 {offsets = [1, 0], sizes = [16, 3], strides = [1, 1]} : vector<18x3xbf16> to vector<16x3xbf16>
    %c7 = arith.constant 7 : index
    %c0_33 = arith.constant 0 : index
    %c0_34 = arith.constant 0 : index
    %43 = vector.load %arg5[%c7, %c0_33, %c0_34] : memref<9x3x8xbf16, #tpu.memory_space<vmem>>, vector<1x3x8xbf16>
    %44 = vector.shape_cast %43 : vector<1x3x8xbf16> to vector<3x8xbf16>
    %cst_35 = arith.constant dense<0.000000e+00> : vector<16x8xf32>
    %45 = tpu.matmul %42, %44, %cst_35 {dimension_numbers = #tpu.dot_dimension_numbers<[1], [0], [0], [1], [0, 0, 1, 1], [], []>} : vector<16x3xbf16>, vector<3x8xbf16>, vector<16x8xf32> -> vector<16x8xf32>
    %46 = arith.addf %41, %45 : vector<16x8xf32>
    %47 = vector.extract_strided_slice %36 {offsets = [2, 0], sizes = [16, 3], strides = [1, 1]} : vector<18x3xbf16> to vector<16x3xbf16>
    %c8 = arith.constant 8 : index
    %c0_36 = arith.constant 0 : index
    %c0_37 = arith.constant 0 : index
    %48 = vector.load %arg5[%c8, %c0_36, %c0_37] : memref<9x3x8xbf16, #tpu.memory_space<vmem>>, vector<1x3x8xbf16>
    %49 = vector.shape_cast %48 : vector<1x3x8xbf16> to vector<3x8xbf16>
    %cst_38 = arith.constant dense<0.000000e+00> : vector<16x8xf32>
    %50 = tpu.matmul %47, %49, %cst_38 {dimension_numbers = #tpu.dot_dimension_numbers<[1], [0], [0], [1], [0, 0, 1, 1], [], []>} : vector<16x3xbf16>, vector<3x8xbf16>, vector<16x8xf32> -> vector<16x8xf32>
    %51 = arith.addf %46, %50 : vector<16x8xf32>
    %c0_39 = arith.constant 0 : index
    %c0_40 = arith.constant 0 : index
    %52 = vector.load %arg6[%c0_39, %c0_40] : memref<1x8xf32, #tpu.memory_space<vmem>>, vector<1x8xf32>
    %53 = vector.broadcast %52 : vector<1x8xf32> to vector<16x8xf32>
    %54 = arith.addf %51, %53 : vector<16x8xf32>
    %cst_41 = arith.constant 0.000000e+00 : f32
    %55 = vector.broadcast %cst_41 : f32 to vector<16x8xf32>
    %56 = arith.maximumf %54, %55 : vector<16x8xf32>
    %57 = arith.truncf %56 : vector<16x8xf32> to vector<16x8xbf16>
    %c0_42 = arith.constant 0 : index
    %c0_43 = arith.constant 0 : index
    %c0_44 = arith.constant 0 : index
    %c0_45 = arith.constant 0 : index
    %58 = vector.load %arg7[%c0_42, %c0_43, %c0_44, %c0_45] : memref<1x1x16x8xbf16, #tpu.memory_space<vmem>>, vector<1x1x16x8xbf16>
    %59 = vector.shape_cast %58 : vector<1x1x16x8xbf16> to vector<16x8xbf16>
    %60 = vector.shape_cast %57 : vector<16x8xbf16> to vector<1x1x16x8xbf16>
    tpu.vector_store %arg7[%c0_42, %c0_43, %c0_44, %c0_45], %60 {strides = array<i32>} : memref<1x1x16x8xbf16, #tpu.memory_space<vmem>>, vector<1x1x16x8xbf16>,
    return
  }
  func.func @transform_0(%arg0: i32, %arg1: i32) -> (i32, i32, i32, i32) {
    %c0_i32 = arith.constant 0 : i32
    %0 = arith.addi %arg1, %c0_i32 : i32
    %c0_i32_0 = arith.constant 0 : i32
    %c0_i32_1 = arith.constant 0 : i32
    %c0_i32_2 = arith.constant 0 : i32
    return %arg0, %0, %c0_i32_0, %c0_i32_1 : i32, i32, i32, i32
  }
  func.func @transform_1(%arg0: i32, %arg1: i32) -> (i32, i32, i32, i32) {
    %c1_i32 = arith.constant 1 : i32
    %0 = arith.addi %arg1, %c1_i32 : i32
    %c0_i32 = arith.constant 0 : i32
    %c0_i32_0 = arith.constant 0 : i32
    %c0_i32_1 = arith.constant 0 : i32
    return %arg0, %0, %c0_i32, %c0_i32_0 : i32, i32, i32, i32
  }
  func.func @transform_2(%arg0: i32, %arg1: i32) -> (i32, i32, i32, i32) {
    %c2_i32 = arith.constant 2 : i32
    %0 = arith.addi %arg1, %c2_i32 : i32
    %c0_i32 = arith.constant 0 : i32
    %c0_i32_0 = arith.constant 0 : i32
    %c0_i32_1 = arith.constant 0 : i32
    return %arg0, %0, %c0_i32, %c0_i32_0 : i32, i32, i32, i32
  }
  func.func @transform_3(%arg0: i32, %arg1: i32) -> (i32, i32, i32) {
    %c0_i32 = arith.constant 0 : i32
    %c0_i32_0 = arith.constant 0 : i32
    %c0_i32_1 = arith.constant 0 : i32
    %c0_i32_2 = arith.constant 0 : i32
    return %c0_i32, %c0_i32_0, %c0_i32_1 : i32, i32, i32
  }
  func.func @transform_4(%arg0: i32, %arg1: i32) -> (i32, i32) {
    %c0_i32 = arith.constant 0 : i32
    %c0_i32_0 = arith.constant 0 : i32
    %c0_i32_1 = arith.constant 0 : i32
    return %c0_i32, %c0_i32_0 : i32, i32
  }
  func.func @transform_5(%arg0: i32, %arg1: i32) -> (i32, i32, i32, i32) {
    %c0_i32 = arith.constant 0 : i32
    %c0_i32_0 = arith.constant 0 : i32
    %c0_i32_1 = arith.constant 0 : i32
    return %arg0, %arg1, %c0_i32, %c0_i32_0 : i32, i32, i32, i32
  }
}

module attributes {stable_mosaic.version = 11 : i64} {
  func.func @_conv3x3_kernel(%arg0: i32, %arg1: i32, %arg2: memref<1x1x10x8xbf16, #tpu.memory_space<vmem>>, %arg3: memref<1x1x10x8xbf16, #tpu.memory_space<vmem>>, %arg4: memref<1x1x10x8xbf16, #tpu.memory_space<vmem>>, %arg5: memref<9x8x16xbf16, #tpu.memory_space<vmem>>, %arg6: memref<1x16xf32, #tpu.memory_space<vmem>>, %arg7: memref<1x1x8x16xbf16, #tpu.memory_space<vmem>>) attributes {dimension_semantics = [#tpu.dimension_semantics<parallel>, #tpu.dimension_semantics<parallel>], iteration_bounds = array<i64: 2, 8>, scalar_prefetch = 0 : i64, scratch_operands = 0 : i64, tpu.core_type = #tpu.core_type<tc>, window_params = [{transform_indices = @transform_0, window_bounds = array<i64: 1, 1, 10, 8>}, {transform_indices = @transform_1, window_bounds = array<i64: 1, 1, 10, 8>}, {transform_indices = @transform_2, window_bounds = array<i64: 1, 1, 10, 8>}, {pipeline_mode = #tpu.pipeline_mode<synchronous>, transform_indices = @transform_3, window_bounds = array<i64: 9, 8, 16>}, {pipeline_mode = #tpu.pipeline_mode<synchronous>, transform_indices = @transform_4, window_bounds = array<i64: 1, 16>}, {transform_indices = @transform_5, window_bounds = array<i64: 1, 1, 8, 16>}]} {
    %cst = arith.constant 0.000000e+00 : f32
    %0 = vector.broadcast %cst : f32 to vector<8x16xf32>
    %c0 = arith.constant 0 : index
    %c0_0 = arith.constant 0 : index
    %c0_1 = arith.constant 0 : index
    %c0_2 = arith.constant 0 : index
    %1 = vector.load %arg2[%c0, %c0_0, %c0_1, %c0_2] : memref<1x1x10x8xbf16, #tpu.memory_space<vmem>>, vector<1x1x10x8xbf16>
    %2 = vector.shape_cast %1 : vector<1x1x10x8xbf16> to vector<10x8xbf16>
    %3 = vector.extract_strided_slice %2 {offsets = [0, 0], sizes = [8, 8], strides = [1, 1]} : vector<10x8xbf16> to vector<8x8xbf16>
    %c0_3 = arith.constant 0 : index
    %c0_4 = arith.constant 0 : index
    %c0_5 = arith.constant 0 : index
    %4 = vector.load %arg5[%c0_3, %c0_4, %c0_5] : memref<9x8x16xbf16, #tpu.memory_space<vmem>>, vector<1x8x16xbf16>
    %5 = vector.shape_cast %4 : vector<1x8x16xbf16> to vector<8x16xbf16>
    %cst_6 = arith.constant dense<0.000000e+00> : vector<8x16xf32>
    %6 = tpu.matmul %3, %5, %cst_6 {dimension_numbers = #tpu.dot_dimension_numbers<[1], [0], [0], [1], [0, 0, 1, 1], [], []>} : vector<8x8xbf16>, vector<8x16xbf16>, vector<8x16xf32> -> vector<8x16xf32>
    %7 = arith.addf %0, %6 : vector<8x16xf32>
    %8 = vector.extract_strided_slice %2 {offsets = [1, 0], sizes = [8, 8], strides = [1, 1]} : vector<10x8xbf16> to vector<8x8xbf16>
    %c1 = arith.constant 1 : index
    %c0_7 = arith.constant 0 : index
    %c0_8 = arith.constant 0 : index
    %9 = vector.load %arg5[%c1, %c0_7, %c0_8] : memref<9x8x16xbf16, #tpu.memory_space<vmem>>, vector<1x8x16xbf16>
    %10 = vector.shape_cast %9 : vector<1x8x16xbf16> to vector<8x16xbf16>
    %cst_9 = arith.constant dense<0.000000e+00> : vector<8x16xf32>
    %11 = tpu.matmul %8, %10, %cst_9 {dimension_numbers = #tpu.dot_dimension_numbers<[1], [0], [0], [1], [0, 0, 1, 1], [], []>} : vector<8x8xbf16>, vector<8x16xbf16>, vector<8x16xf32> -> vector<8x16xf32>
    %12 = arith.addf %7, %11 : vector<8x16xf32>
    %13 = vector.extract_strided_slice %2 {offsets = [2, 0], sizes = [8, 8], strides = [1, 1]} : vector<10x8xbf16> to vector<8x8xbf16>
    %c2 = arith.constant 2 : index
    %c0_10 = arith.constant 0 : index
    %c0_11 = arith.constant 0 : index
    %14 = vector.load %arg5[%c2, %c0_10, %c0_11] : memref<9x8x16xbf16, #tpu.memory_space<vmem>>, vector<1x8x16xbf16>
    %15 = vector.shape_cast %14 : vector<1x8x16xbf16> to vector<8x16xbf16>
    %cst_12 = arith.constant dense<0.000000e+00> : vector<8x16xf32>
    %16 = tpu.matmul %13, %15, %cst_12 {dimension_numbers = #tpu.dot_dimension_numbers<[1], [0], [0], [1], [0, 0, 1, 1], [], []>} : vector<8x8xbf16>, vector<8x16xbf16>, vector<8x16xf32> -> vector<8x16xf32>
    %17 = arith.addf %12, %16 : vector<8x16xf32>
    %c0_13 = arith.constant 0 : index
    %c0_14 = arith.constant 0 : index
    %c0_15 = arith.constant 0 : index
    %c0_16 = arith.constant 0 : index
    %18 = vector.load %arg3[%c0_13, %c0_14, %c0_15, %c0_16] : memref<1x1x10x8xbf16, #tpu.memory_space<vmem>>, vector<1x1x10x8xbf16>
    %19 = vector.shape_cast %18 : vector<1x1x10x8xbf16> to vector<10x8xbf16>
    %20 = vector.extract_strided_slice %19 {offsets = [0, 0], sizes = [8, 8], strides = [1, 1]} : vector<10x8xbf16> to vector<8x8xbf16>
    %c3 = arith.constant 3 : index
    %c0_17 = arith.constant 0 : index
    %c0_18 = arith.constant 0 : index
    %21 = vector.load %arg5[%c3, %c0_17, %c0_18] : memref<9x8x16xbf16, #tpu.memory_space<vmem>>, vector<1x8x16xbf16>
    %22 = vector.shape_cast %21 : vector<1x8x16xbf16> to vector<8x16xbf16>
    %cst_19 = arith.constant dense<0.000000e+00> : vector<8x16xf32>
    %23 = tpu.matmul %20, %22, %cst_19 {dimension_numbers = #tpu.dot_dimension_numbers<[1], [0], [0], [1], [0, 0, 1, 1], [], []>} : vector<8x8xbf16>, vector<8x16xbf16>, vector<8x16xf32> -> vector<8x16xf32>
    %24 = arith.addf %17, %23 : vector<8x16xf32>
    %25 = vector.extract_strided_slice %19 {offsets = [1, 0], sizes = [8, 8], strides = [1, 1]} : vector<10x8xbf16> to vector<8x8xbf16>
    %c4 = arith.constant 4 : index
    %c0_20 = arith.constant 0 : index
    %c0_21 = arith.constant 0 : index
    %26 = vector.load %arg5[%c4, %c0_20, %c0_21] : memref<9x8x16xbf16, #tpu.memory_space<vmem>>, vector<1x8x16xbf16>
    %27 = vector.shape_cast %26 : vector<1x8x16xbf16> to vector<8x16xbf16>
    %cst_22 = arith.constant dense<0.000000e+00> : vector<8x16xf32>
    %28 = tpu.matmul %25, %27, %cst_22 {dimension_numbers = #tpu.dot_dimension_numbers<[1], [0], [0], [1], [0, 0, 1, 1], [], []>} : vector<8x8xbf16>, vector<8x16xbf16>, vector<8x16xf32> -> vector<8x16xf32>
    %29 = arith.addf %24, %28 : vector<8x16xf32>
    %30 = vector.extract_strided_slice %19 {offsets = [2, 0], sizes = [8, 8], strides = [1, 1]} : vector<10x8xbf16> to vector<8x8xbf16>
    %c5 = arith.constant 5 : index
    %c0_23 = arith.constant 0 : index
    %c0_24 = arith.constant 0 : index
    %31 = vector.load %arg5[%c5, %c0_23, %c0_24] : memref<9x8x16xbf16, #tpu.memory_space<vmem>>, vector<1x8x16xbf16>
    %32 = vector.shape_cast %31 : vector<1x8x16xbf16> to vector<8x16xbf16>
    %cst_25 = arith.constant dense<0.000000e+00> : vector<8x16xf32>
    %33 = tpu.matmul %30, %32, %cst_25 {dimension_numbers = #tpu.dot_dimension_numbers<[1], [0], [0], [1], [0, 0, 1, 1], [], []>} : vector<8x8xbf16>, vector<8x16xbf16>, vector<8x16xf32> -> vector<8x16xf32>
    %34 = arith.addf %29, %33 : vector<8x16xf32>
    %c0_26 = arith.constant 0 : index
    %c0_27 = arith.constant 0 : index
    %c0_28 = arith.constant 0 : index
    %c0_29 = arith.constant 0 : index
    %35 = vector.load %arg4[%c0_26, %c0_27, %c0_28, %c0_29] : memref<1x1x10x8xbf16, #tpu.memory_space<vmem>>, vector<1x1x10x8xbf16>
    %36 = vector.shape_cast %35 : vector<1x1x10x8xbf16> to vector<10x8xbf16>
    %37 = vector.extract_strided_slice %36 {offsets = [0, 0], sizes = [8, 8], strides = [1, 1]} : vector<10x8xbf16> to vector<8x8xbf16>
    %c6 = arith.constant 6 : index
    %c0_30 = arith.constant 0 : index
    %c0_31 = arith.constant 0 : index
    %38 = vector.load %arg5[%c6, %c0_30, %c0_31] : memref<9x8x16xbf16, #tpu.memory_space<vmem>>, vector<1x8x16xbf16>
    %39 = vector.shape_cast %38 : vector<1x8x16xbf16> to vector<8x16xbf16>
    %cst_32 = arith.constant dense<0.000000e+00> : vector<8x16xf32>
    %40 = tpu.matmul %37, %39, %cst_32 {dimension_numbers = #tpu.dot_dimension_numbers<[1], [0], [0], [1], [0, 0, 1, 1], [], []>} : vector<8x8xbf16>, vector<8x16xbf16>, vector<8x16xf32> -> vector<8x16xf32>
    %41 = arith.addf %34, %40 : vector<8x16xf32>
    %42 = vector.extract_strided_slice %36 {offsets = [1, 0], sizes = [8, 8], strides = [1, 1]} : vector<10x8xbf16> to vector<8x8xbf16>
    %c7 = arith.constant 7 : index
    %c0_33 = arith.constant 0 : index
    %c0_34 = arith.constant 0 : index
    %43 = vector.load %arg5[%c7, %c0_33, %c0_34] : memref<9x8x16xbf16, #tpu.memory_space<vmem>>, vector<1x8x16xbf16>
    %44 = vector.shape_cast %43 : vector<1x8x16xbf16> to vector<8x16xbf16>
    %cst_35 = arith.constant dense<0.000000e+00> : vector<8x16xf32>
    %45 = tpu.matmul %42, %44, %cst_35 {dimension_numbers = #tpu.dot_dimension_numbers<[1], [0], [0], [1], [0, 0, 1, 1], [], []>} : vector<8x8xbf16>, vector<8x16xbf16>, vector<8x16xf32> -> vector<8x16xf32>
    %46 = arith.addf %41, %45 : vector<8x16xf32>
    %47 = vector.extract_strided_slice %36 {offsets = [2, 0], sizes = [8, 8], strides = [1, 1]} : vector<10x8xbf16> to vector<8x8xbf16>
    %c8 = arith.constant 8 : index
    %c0_36 = arith.constant 0 : index
    %c0_37 = arith.constant 0 : index
    %48 = vector.load %arg5[%c8, %c0_36, %c0_37] : memref<9x8x16xbf16, #tpu.memory_space<vmem>>, vector<1x8x16xbf16>
    %49 = vector.shape_cast %48 : vector<1x8x16xbf16> to vector<8x16xbf16>
    %cst_38 = arith.constant dense<0.000000e+00> : vector<8x16xf32>
    %50 = tpu.matmul %47, %49, %cst_38 {dimension_numbers = #tpu.dot_dimension_numbers<[1], [0], [0], [1], [0, 0, 1, 1], [], []>} : vector<8x8xbf16>, vector<8x16xbf16>, vector<8x16xf32> -> vector<8x16xf32>
    %51 = arith.addf %46, %50 : vector<8x16xf32>
    %c0_39 = arith.constant 0 : index
    %c0_40 = arith.constant 0 : index
    %52 = vector.load %arg6[%c0_39, %c0_40] : memref<1x16xf32, #tpu.memory_space<vmem>>, vector<1x16xf32>
    %53 = vector.broadcast %52 : vector<1x16xf32> to vector<8x16xf32>
    %54 = arith.addf %51, %53 : vector<8x16xf32>
    %cst_41 = arith.constant 0.000000e+00 : f32
    %55 = vector.broadcast %cst_41 : f32 to vector<8x16xf32>
    %56 = arith.maximumf %54, %55 : vector<8x16xf32>
    %57 = arith.truncf %56 : vector<8x16xf32> to vector<8x16xbf16>
    %c0_42 = arith.constant 0 : index
    %c0_43 = arith.constant 0 : index
    %c0_44 = arith.constant 0 : index
    %c0_45 = arith.constant 0 : index
    %58 = vector.load %arg7[%c0_42, %c0_43, %c0_44, %c0_45] : memref<1x1x8x16xbf16, #tpu.memory_space<vmem>>, vector<1x1x8x16xbf16>
    %59 = vector.shape_cast %58 : vector<1x1x8x16xbf16> to vector<8x16xbf16>
    %60 = vector.shape_cast %57 : vector<8x16xbf16> to vector<1x1x8x16xbf16>
    tpu.vector_store %arg7[%c0_42, %c0_43, %c0_44, %c0_45], %60 {strides = array<i32>} : memref<1x1x8x16xbf16, #tpu.memory_space<vmem>>, vector<1x1x8x16xbf16>,
    return
  }
  func.func @transform_0(%arg0: i32, %arg1: i32) -> (i32, i32, i32, i32) {
    %c0_i32 = arith.constant 0 : i32
    %0 = arith.addi %arg1, %c0_i32 : i32
    %c0_i32_0 = arith.constant 0 : i32
    %c0_i32_1 = arith.constant 0 : i32
    %c0_i32_2 = arith.constant 0 : i32
    return %arg0, %0, %c0_i32_0, %c0_i32_1 : i32, i32, i32, i32
  }
  func.func @transform_1(%arg0: i32, %arg1: i32) -> (i32, i32, i32, i32) {
    %c1_i32 = arith.constant 1 : i32
    %0 = arith.addi %arg1, %c1_i32 : i32
    %c0_i32 = arith.constant 0 : i32
    %c0_i32_0 = arith.constant 0 : i32
    %c0_i32_1 = arith.constant 0 : i32
    return %arg0, %0, %c0_i32, %c0_i32_0 : i32, i32, i32, i32
  }
  func.func @transform_2(%arg0: i32, %arg1: i32) -> (i32, i32, i32, i32) {
    %c2_i32 = arith.constant 2 : i32
    %0 = arith.addi %arg1, %c2_i32 : i32
    %c0_i32 = arith.constant 0 : i32
    %c0_i32_0 = arith.constant 0 : i32
    %c0_i32_1 = arith.constant 0 : i32
    return %arg0, %0, %c0_i32, %c0_i32_0 : i32, i32, i32, i32
  }
  func.func @transform_3(%arg0: i32, %arg1: i32) -> (i32, i32, i32) {
    %c0_i32 = arith.constant 0 : i32
    %c0_i32_0 = arith.constant 0 : i32
    %c0_i32_1 = arith.constant 0 : i32
    %c0_i32_2 = arith.constant 0 : i32
    return %c0_i32, %c0_i32_0, %c0_i32_1 : i32, i32, i32
  }
  func.func @transform_4(%arg0: i32, %arg1: i32) -> (i32, i32) {
    %c0_i32 = arith.constant 0 : i32
    %c0_i32_0 = arith.constant 0 : i32
    %c0_i32_1 = arith.constant 0 : i32
    return %c0_i32, %c0_i32_0 : i32, i32
  }
  func.func @transform_5(%arg0: i32, %arg1: i32) -> (i32, i32, i32, i32) {
    %c0_i32 = arith.constant 0 : i32
    %c0_i32_0 = arith.constant 0 : i32
    %c0_i32_1 = arith.constant 0 : i32
    return %arg0, %arg1, %c0_i32, %c0_i32_0 : i32, i32, i32, i32
  }
}

module attributes {stable_mosaic.version = 11 : i64} {
  func.func @_conv3x3_kernel(%arg0: i32, %arg1: i32, %arg2: memref<1x1x6x16xbf16, #tpu.memory_space<vmem>>, %arg3: memref<1x1x6x16xbf16, #tpu.memory_space<vmem>>, %arg4: memref<1x1x6x16xbf16, #tpu.memory_space<vmem>>, %arg5: memref<9x16x32xbf16, #tpu.memory_space<vmem>>, %arg6: memref<1x32xf32, #tpu.memory_space<vmem>>, %arg7: memref<1x1x4x32xbf16, #tpu.memory_space<vmem>>) attributes {dimension_semantics = [#tpu.dimension_semantics<parallel>, #tpu.dimension_semantics<parallel>], iteration_bounds = array<i64: 2, 4>, scalar_prefetch = 0 : i64, scratch_operands = 0 : i64, tpu.core_type = #tpu.core_type<tc>, window_params = [{transform_indices = @transform_0, window_bounds = array<i64: 1, 1, 6, 16>}, {transform_indices = @transform_1, window_bounds = array<i64: 1, 1, 6, 16>}, {transform_indices = @transform_2, window_bounds = array<i64: 1, 1, 6, 16>}, {pipeline_mode = #tpu.pipeline_mode<synchronous>, transform_indices = @transform_3, window_bounds = array<i64: 9, 16, 32>}, {pipeline_mode = #tpu.pipeline_mode<synchronous>, transform_indices = @transform_4, window_bounds = array<i64: 1, 32>}, {transform_indices = @transform_5, window_bounds = array<i64: 1, 1, 4, 32>}]} {
    %cst = arith.constant 0.000000e+00 : f32
    %0 = vector.broadcast %cst : f32 to vector<4x32xf32>
    %c0 = arith.constant 0 : index
    %c0_0 = arith.constant 0 : index
    %c0_1 = arith.constant 0 : index
    %c0_2 = arith.constant 0 : index
    %1 = vector.load %arg2[%c0, %c0_0, %c0_1, %c0_2] : memref<1x1x6x16xbf16, #tpu.memory_space<vmem>>, vector<1x1x6x16xbf16>
    %2 = vector.shape_cast %1 : vector<1x1x6x16xbf16> to vector<6x16xbf16>
    %3 = vector.extract_strided_slice %2 {offsets = [0, 0], sizes = [4, 16], strides = [1, 1]} : vector<6x16xbf16> to vector<4x16xbf16>
    %c0_3 = arith.constant 0 : index
    %c0_4 = arith.constant 0 : index
    %c0_5 = arith.constant 0 : index
    %4 = vector.load %arg5[%c0_3, %c0_4, %c0_5] : memref<9x16x32xbf16, #tpu.memory_space<vmem>>, vector<1x16x32xbf16>
    %5 = vector.shape_cast %4 : vector<1x16x32xbf16> to vector<16x32xbf16>
    %cst_6 = arith.constant dense<0.000000e+00> : vector<4x32xf32>
    %6 = tpu.matmul %3, %5, %cst_6 {dimension_numbers = #tpu.dot_dimension_numbers<[1], [0], [0], [1], [0, 0, 1, 1], [], []>} : vector<4x16xbf16>, vector<16x32xbf16>, vector<4x32xf32> -> vector<4x32xf32>
    %7 = arith.addf %0, %6 : vector<4x32xf32>
    %8 = vector.extract_strided_slice %2 {offsets = [1, 0], sizes = [4, 16], strides = [1, 1]} : vector<6x16xbf16> to vector<4x16xbf16>
    %c1 = arith.constant 1 : index
    %c0_7 = arith.constant 0 : index
    %c0_8 = arith.constant 0 : index
    %9 = vector.load %arg5[%c1, %c0_7, %c0_8] : memref<9x16x32xbf16, #tpu.memory_space<vmem>>, vector<1x16x32xbf16>
    %10 = vector.shape_cast %9 : vector<1x16x32xbf16> to vector<16x32xbf16>
    %cst_9 = arith.constant dense<0.000000e+00> : vector<4x32xf32>
    %11 = tpu.matmul %8, %10, %cst_9 {dimension_numbers = #tpu.dot_dimension_numbers<[1], [0], [0], [1], [0, 0, 1, 1], [], []>} : vector<4x16xbf16>, vector<16x32xbf16>, vector<4x32xf32> -> vector<4x32xf32>
    %12 = arith.addf %7, %11 : vector<4x32xf32>
    %13 = vector.extract_strided_slice %2 {offsets = [2, 0], sizes = [4, 16], strides = [1, 1]} : vector<6x16xbf16> to vector<4x16xbf16>
    %c2 = arith.constant 2 : index
    %c0_10 = arith.constant 0 : index
    %c0_11 = arith.constant 0 : index
    %14 = vector.load %arg5[%c2, %c0_10, %c0_11] : memref<9x16x32xbf16, #tpu.memory_space<vmem>>, vector<1x16x32xbf16>
    %15 = vector.shape_cast %14 : vector<1x16x32xbf16> to vector<16x32xbf16>
    %cst_12 = arith.constant dense<0.000000e+00> : vector<4x32xf32>
    %16 = tpu.matmul %13, %15, %cst_12 {dimension_numbers = #tpu.dot_dimension_numbers<[1], [0], [0], [1], [0, 0, 1, 1], [], []>} : vector<4x16xbf16>, vector<16x32xbf16>, vector<4x32xf32> -> vector<4x32xf32>
    %17 = arith.addf %12, %16 : vector<4x32xf32>
    %c0_13 = arith.constant 0 : index
    %c0_14 = arith.constant 0 : index
    %c0_15 = arith.constant 0 : index
    %c0_16 = arith.constant 0 : index
    %18 = vector.load %arg3[%c0_13, %c0_14, %c0_15, %c0_16] : memref<1x1x6x16xbf16, #tpu.memory_space<vmem>>, vector<1x1x6x16xbf16>
    %19 = vector.shape_cast %18 : vector<1x1x6x16xbf16> to vector<6x16xbf16>
    %20 = vector.extract_strided_slice %19 {offsets = [0, 0], sizes = [4, 16], strides = [1, 1]} : vector<6x16xbf16> to vector<4x16xbf16>
    %c3 = arith.constant 3 : index
    %c0_17 = arith.constant 0 : index
    %c0_18 = arith.constant 0 : index
    %21 = vector.load %arg5[%c3, %c0_17, %c0_18] : memref<9x16x32xbf16, #tpu.memory_space<vmem>>, vector<1x16x32xbf16>
    %22 = vector.shape_cast %21 : vector<1x16x32xbf16> to vector<16x32xbf16>
    %cst_19 = arith.constant dense<0.000000e+00> : vector<4x32xf32>
    %23 = tpu.matmul %20, %22, %cst_19 {dimension_numbers = #tpu.dot_dimension_numbers<[1], [0], [0], [1], [0, 0, 1, 1], [], []>} : vector<4x16xbf16>, vector<16x32xbf16>, vector<4x32xf32> -> vector<4x32xf32>
    %24 = arith.addf %17, %23 : vector<4x32xf32>
    %25 = vector.extract_strided_slice %19 {offsets = [1, 0], sizes = [4, 16], strides = [1, 1]} : vector<6x16xbf16> to vector<4x16xbf16>
    %c4 = arith.constant 4 : index
    %c0_20 = arith.constant 0 : index
    %c0_21 = arith.constant 0 : index
    %26 = vector.load %arg5[%c4, %c0_20, %c0_21] : memref<9x16x32xbf16, #tpu.memory_space<vmem>>, vector<1x16x32xbf16>
    %27 = vector.shape_cast %26 : vector<1x16x32xbf16> to vector<16x32xbf16>
    %cst_22 = arith.constant dense<0.000000e+00> : vector<4x32xf32>
    %28 = tpu.matmul %25, %27, %cst_22 {dimension_numbers = #tpu.dot_dimension_numbers<[1], [0], [0], [1], [0, 0, 1, 1], [], []>} : vector<4x16xbf16>, vector<16x32xbf16>, vector<4x32xf32> -> vector<4x32xf32>
    %29 = arith.addf %24, %28 : vector<4x32xf32>
    %30 = vector.extract_strided_slice %19 {offsets = [2, 0], sizes = [4, 16], strides = [1, 1]} : vector<6x16xbf16> to vector<4x16xbf16>
    %c5 = arith.constant 5 : index
    %c0_23 = arith.constant 0 : index
    %c0_24 = arith.constant 0 : index
    %31 = vector.load %arg5[%c5, %c0_23, %c0_24] : memref<9x16x32xbf16, #tpu.memory_space<vmem>>, vector<1x16x32xbf16>
    %32 = vector.shape_cast %31 : vector<1x16x32xbf16> to vector<16x32xbf16>
    %cst_25 = arith.constant dense<0.000000e+00> : vector<4x32xf32>
    %33 = tpu.matmul %30, %32, %cst_25 {dimension_numbers = #tpu.dot_dimension_numbers<[1], [0], [0], [1], [0, 0, 1, 1], [], []>} : vector<4x16xbf16>, vector<16x32xbf16>, vector<4x32xf32> -> vector<4x32xf32>
    %34 = arith.addf %29, %33 : vector<4x32xf32>
    %c0_26 = arith.constant 0 : index
    %c0_27 = arith.constant 0 : index
    %c0_28 = arith.constant 0 : index
    %c0_29 = arith.constant 0 : index
    %35 = vector.load %arg4[%c0_26, %c0_27, %c0_28, %c0_29] : memref<1x1x6x16xbf16, #tpu.memory_space<vmem>>, vector<1x1x6x16xbf16>
    %36 = vector.shape_cast %35 : vector<1x1x6x16xbf16> to vector<6x16xbf16>
    %37 = vector.extract_strided_slice %36 {offsets = [0, 0], sizes = [4, 16], strides = [1, 1]} : vector<6x16xbf16> to vector<4x16xbf16>
    %c6 = arith.constant 6 : index
    %c0_30 = arith.constant 0 : index
    %c0_31 = arith.constant 0 : index
    %38 = vector.load %arg5[%c6, %c0_30, %c0_31] : memref<9x16x32xbf16, #tpu.memory_space<vmem>>, vector<1x16x32xbf16>
    %39 = vector.shape_cast %38 : vector<1x16x32xbf16> to vector<16x32xbf16>
    %cst_32 = arith.constant dense<0.000000e+00> : vector<4x32xf32>
    %40 = tpu.matmul %37, %39, %cst_32 {dimension_numbers = #tpu.dot_dimension_numbers<[1], [0], [0], [1], [0, 0, 1, 1], [], []>} : vector<4x16xbf16>, vector<16x32xbf16>, vector<4x32xf32> -> vector<4x32xf32>
    %41 = arith.addf %34, %40 : vector<4x32xf32>
    %42 = vector.extract_strided_slice %36 {offsets = [1, 0], sizes = [4, 16], strides = [1, 1]} : vector<6x16xbf16> to vector<4x16xbf16>
    %c7 = arith.constant 7 : index
    %c0_33 = arith.constant 0 : index
    %c0_34 = arith.constant 0 : index
    %43 = vector.load %arg5[%c7, %c0_33, %c0_34] : memref<9x16x32xbf16, #tpu.memory_space<vmem>>, vector<1x16x32xbf16>
    %44 = vector.shape_cast %43 : vector<1x16x32xbf16> to vector<16x32xbf16>
    %cst_35 = arith.constant dense<0.000000e+00> : vector<4x32xf32>
    %45 = tpu.matmul %42, %44, %cst_35 {dimension_numbers = #tpu.dot_dimension_numbers<[1], [0], [0], [1], [0, 0, 1, 1], [], []>} : vector<4x16xbf16>, vector<16x32xbf16>, vector<4x32xf32> -> vector<4x32xf32>
    %46 = arith.addf %41, %45 : vector<4x32xf32>
    %47 = vector.extract_strided_slice %36 {offsets = [2, 0], sizes = [4, 16], strides = [1, 1]} : vector<6x16xbf16> to vector<4x16xbf16>
    %c8 = arith.constant 8 : index
    %c0_36 = arith.constant 0 : index
    %c0_37 = arith.constant 0 : index
    %48 = vector.load %arg5[%c8, %c0_36, %c0_37] : memref<9x16x32xbf16, #tpu.memory_space<vmem>>, vector<1x16x32xbf16>
    %49 = vector.shape_cast %48 : vector<1x16x32xbf16> to vector<16x32xbf16>
    %cst_38 = arith.constant dense<0.000000e+00> : vector<4x32xf32>
    %50 = tpu.matmul %47, %49, %cst_38 {dimension_numbers = #tpu.dot_dimension_numbers<[1], [0], [0], [1], [0, 0, 1, 1], [], []>} : vector<4x16xbf16>, vector<16x32xbf16>, vector<4x32xf32> -> vector<4x32xf32>
    %51 = arith.addf %46, %50 : vector<4x32xf32>
    %c0_39 = arith.constant 0 : index
    %c0_40 = arith.constant 0 : index
    %52 = vector.load %arg6[%c0_39, %c0_40] : memref<1x32xf32, #tpu.memory_space<vmem>>, vector<1x32xf32>
    %53 = vector.broadcast %52 : vector<1x32xf32> to vector<4x32xf32>
    %54 = arith.addf %51, %53 : vector<4x32xf32>
    %cst_41 = arith.constant 0.000000e+00 : f32
    %55 = vector.broadcast %cst_41 : f32 to vector<4x32xf32>
    %56 = arith.maximumf %54, %55 : vector<4x32xf32>
    %57 = arith.truncf %56 : vector<4x32xf32> to vector<4x32xbf16>
    %c0_42 = arith.constant 0 : index
    %c0_43 = arith.constant 0 : index
    %c0_44 = arith.constant 0 : index
    %c0_45 = arith.constant 0 : index
    %58 = vector.load %arg7[%c0_42, %c0_43, %c0_44, %c0_45] : memref<1x1x4x32xbf16, #tpu.memory_space<vmem>>, vector<1x1x4x32xbf16>
    %59 = vector.shape_cast %58 : vector<1x1x4x32xbf16> to vector<4x32xbf16>
    %60 = vector.shape_cast %57 : vector<4x32xbf16> to vector<1x1x4x32xbf16>
    tpu.vector_store %arg7[%c0_42, %c0_43, %c0_44, %c0_45], %60 {strides = array<i32>} : memref<1x1x4x32xbf16, #tpu.memory_space<vmem>>, vector<1x1x4x32xbf16>,
    return
  }
  func.func @transform_0(%arg0: i32, %arg1: i32) -> (i32, i32, i32, i32) {
    %c0_i32 = arith.constant 0 : i32
    %0 = arith.addi %arg1, %c0_i32 : i32
    %c0_i32_0 = arith.constant 0 : i32
    %c0_i32_1 = arith.constant 0 : i32
    %c0_i32_2 = arith.constant 0 : i32
    return %arg0, %0, %c0_i32_0, %c0_i32_1 : i32, i32, i32, i32
  }
  func.func @transform_1(%arg0: i32, %arg1: i32) -> (i32, i32, i32, i32) {
    %c1_i32 = arith.constant 1 : i32
    %0 = arith.addi %arg1, %c1_i32 : i32
    %c0_i32 = arith.constant 0 : i32
    %c0_i32_0 = arith.constant 0 : i32
    %c0_i32_1 = arith.constant 0 : i32
    return %arg0, %0, %c0_i32, %c0_i32_0 : i32, i32, i32, i32
  }
  func.func @transform_2(%arg0: i32, %arg1: i32) -> (i32, i32, i32, i32) {
    %c2_i32 = arith.constant 2 : i32
    %0 = arith.addi %arg1, %c2_i32 : i32
    %c0_i32 = arith.constant 0 : i32
    %c0_i32_0 = arith.constant 0 : i32
    %c0_i32_1 = arith.constant 0 : i32
    return %arg0, %0, %c0_i32, %c0_i32_0 : i32, i32, i32, i32
  }
  func.func @transform_3(%arg0: i32, %arg1: i32) -> (i32, i32, i32) {
    %c0_i32 = arith.constant 0 : i32
    %c0_i32_0 = arith.constant 0 : i32
    %c0_i32_1 = arith.constant 0 : i32
    %c0_i32_2 = arith.constant 0 : i32
    return %c0_i32, %c0_i32_0, %c0_i32_1 : i32, i32, i32
  }
  func.func @transform_4(%arg0: i32, %arg1: i32) -> (i32, i32) {
    %c0_i32 = arith.constant 0 : i32
    %c0_i32_0 = arith.constant 0 : i32
    %c0_i32_1 = arith.constant 0 : i32
    return %c0_i32, %c0_i32_0 : i32, i32
  }
  func.func @transform_5(%arg0: i32, %arg1: i32) -> (i32, i32, i32, i32) {
    %c0_i32 = arith.constant 0 : i32
    %c0_i32_0 = arith.constant 0 : i32
    %c0_i32_1 = arith.constant 0 : i32
    return %arg0, %arg1, %c0_i32, %c0_i32_0 : i32, i32, i32, i32
  }
}

module attributes {stable_mosaic.version = 11 : i64} {
  func.func @_conv3x3_kernel(%arg0: i32, %arg1: i32, %arg2: memref<1x1x4x32xbf16, #tpu.memory_space<vmem>>, %arg3: memref<1x1x4x32xbf16, #tpu.memory_space<vmem>>, %arg4: memref<1x1x4x32xbf16, #tpu.memory_space<vmem>>, %arg5: memref<9x32x64xbf16, #tpu.memory_space<vmem>>, %arg6: memref<1x64xf32, #tpu.memory_space<vmem>>, %arg7: memref<1x1x2x64xbf16, #tpu.memory_space<vmem>>) attributes {dimension_semantics = [#tpu.dimension_semantics<parallel>, #tpu.dimension_semantics<parallel>], iteration_bounds = array<i64: 2, 2>, scalar_prefetch = 0 : i64, scratch_operands = 0 : i64, tpu.core_type = #tpu.core_type<tc>, window_params = [{transform_indices = @transform_0, window_bounds = array<i64: 1, 1, 4, 32>}, {transform_indices = @transform_1, window_bounds = array<i64: 1, 1, 4, 32>}, {transform_indices = @transform_2, window_bounds = array<i64: 1, 1, 4, 32>}, {pipeline_mode = #tpu.pipeline_mode<synchronous>, transform_indices = @transform_3, window_bounds = array<i64: 9, 32, 64>}, {pipeline_mode = #tpu.pipeline_mode<synchronous>, transform_indices = @transform_4, window_bounds = array<i64: 1, 64>}, {transform_indices = @transform_5, window_bounds = array<i64: 1, 1, 2, 64>}]} {
    %cst = arith.constant 0.000000e+00 : f32
    %0 = vector.broadcast %cst : f32 to vector<2x64xf32>
    %c0 = arith.constant 0 : index
    %c0_0 = arith.constant 0 : index
    %c0_1 = arith.constant 0 : index
    %c0_2 = arith.constant 0 : index
    %1 = vector.load %arg2[%c0, %c0_0, %c0_1, %c0_2] : memref<1x1x4x32xbf16, #tpu.memory_space<vmem>>, vector<1x1x4x32xbf16>
    %2 = vector.shape_cast %1 : vector<1x1x4x32xbf16> to vector<4x32xbf16>
    %3 = vector.extract_strided_slice %2 {offsets = [0, 0], sizes = [2, 32], strides = [1, 1]} : vector<4x32xbf16> to vector<2x32xbf16>
    %c0_3 = arith.constant 0 : index
    %c0_4 = arith.constant 0 : index
    %c0_5 = arith.constant 0 : index
    %4 = vector.load %arg5[%c0_3, %c0_4, %c0_5] : memref<9x32x64xbf16, #tpu.memory_space<vmem>>, vector<1x32x64xbf16>
    %5 = vector.shape_cast %4 : vector<1x32x64xbf16> to vector<32x64xbf16>
    %cst_6 = arith.constant dense<0.000000e+00> : vector<2x64xf32>
    %6 = tpu.matmul %3, %5, %cst_6 {dimension_numbers = #tpu.dot_dimension_numbers<[1], [0], [0], [1], [0, 0, 1, 1], [], []>} : vector<2x32xbf16>, vector<32x64xbf16>, vector<2x64xf32> -> vector<2x64xf32>
    %7 = arith.addf %0, %6 : vector<2x64xf32>
    %8 = vector.extract_strided_slice %2 {offsets = [1, 0], sizes = [2, 32], strides = [1, 1]} : vector<4x32xbf16> to vector<2x32xbf16>
    %c1 = arith.constant 1 : index
    %c0_7 = arith.constant 0 : index
    %c0_8 = arith.constant 0 : index
    %9 = vector.load %arg5[%c1, %c0_7, %c0_8] : memref<9x32x64xbf16, #tpu.memory_space<vmem>>, vector<1x32x64xbf16>
    %10 = vector.shape_cast %9 : vector<1x32x64xbf16> to vector<32x64xbf16>
    %cst_9 = arith.constant dense<0.000000e+00> : vector<2x64xf32>
    %11 = tpu.matmul %8, %10, %cst_9 {dimension_numbers = #tpu.dot_dimension_numbers<[1], [0], [0], [1], [0, 0, 1, 1], [], []>} : vector<2x32xbf16>, vector<32x64xbf16>, vector<2x64xf32> -> vector<2x64xf32>
    %12 = arith.addf %7, %11 : vector<2x64xf32>
    %13 = vector.extract_strided_slice %2 {offsets = [2, 0], sizes = [2, 32], strides = [1, 1]} : vector<4x32xbf16> to vector<2x32xbf16>
    %c2 = arith.constant 2 : index
    %c0_10 = arith.constant 0 : index
    %c0_11 = arith.constant 0 : index
    %14 = vector.load %arg5[%c2, %c0_10, %c0_11] : memref<9x32x64xbf16, #tpu.memory_space<vmem>>, vector<1x32x64xbf16>
    %15 = vector.shape_cast %14 : vector<1x32x64xbf16> to vector<32x64xbf16>
    %cst_12 = arith.constant dense<0.000000e+00> : vector<2x64xf32>
    %16 = tpu.matmul %13, %15, %cst_12 {dimension_numbers = #tpu.dot_dimension_numbers<[1], [0], [0], [1], [0, 0, 1, 1], [], []>} : vector<2x32xbf16>, vector<32x64xbf16>, vector<2x64xf32> -> vector<2x64xf32>
    %17 = arith.addf %12, %16 : vector<2x64xf32>
    %c0_13 = arith.constant 0 : index
    %c0_14 = arith.constant 0 : index
    %c0_15 = arith.constant 0 : index
    %c0_16 = arith.constant 0 : index
    %18 = vector.load %arg3[%c0_13, %c0_14, %c0_15, %c0_16] : memref<1x1x4x32xbf16, #tpu.memory_space<vmem>>, vector<1x1x4x32xbf16>
    %19 = vector.shape_cast %18 : vector<1x1x4x32xbf16> to vector<4x32xbf16>
    %20 = vector.extract_strided_slice %19 {offsets = [0, 0], sizes = [2, 32], strides = [1, 1]} : vector<4x32xbf16> to vector<2x32xbf16>
    %c3 = arith.constant 3 : index
    %c0_17 = arith.constant 0 : index
    %c0_18 = arith.constant 0 : index
    %21 = vector.load %arg5[%c3, %c0_17, %c0_18] : memref<9x32x64xbf16, #tpu.memory_space<vmem>>, vector<1x32x64xbf16>
    %22 = vector.shape_cast %21 : vector<1x32x64xbf16> to vector<32x64xbf16>
    %cst_19 = arith.constant dense<0.000000e+00> : vector<2x64xf32>
    %23 = tpu.matmul %20, %22, %cst_19 {dimension_numbers = #tpu.dot_dimension_numbers<[1], [0], [0], [1], [0, 0, 1, 1], [], []>} : vector<2x32xbf16>, vector<32x64xbf16>, vector<2x64xf32> -> vector<2x64xf32>
    %24 = arith.addf %17, %23 : vector<2x64xf32>
    %25 = vector.extract_strided_slice %19 {offsets = [1, 0], sizes = [2, 32], strides = [1, 1]} : vector<4x32xbf16> to vector<2x32xbf16>
    %c4 = arith.constant 4 : index
    %c0_20 = arith.constant 0 : index
    %c0_21 = arith.constant 0 : index
    %26 = vector.load %arg5[%c4, %c0_20, %c0_21] : memref<9x32x64xbf16, #tpu.memory_space<vmem>>, vector<1x32x64xbf16>
    %27 = vector.shape_cast %26 : vector<1x32x64xbf16> to vector<32x64xbf16>
    %cst_22 = arith.constant dense<0.000000e+00> : vector<2x64xf32>
    %28 = tpu.matmul %25, %27, %cst_22 {dimension_numbers = #tpu.dot_dimension_numbers<[1], [0], [0], [1], [0, 0, 1, 1], [], []>} : vector<2x32xbf16>, vector<32x64xbf16>, vector<2x64xf32> -> vector<2x64xf32>
    %29 = arith.addf %24, %28 : vector<2x64xf32>
    %30 = vector.extract_strided_slice %19 {offsets = [2, 0], sizes = [2, 32], strides = [1, 1]} : vector<4x32xbf16> to vector<2x32xbf16>
    %c5 = arith.constant 5 : index
    %c0_23 = arith.constant 0 : index
    %c0_24 = arith.constant 0 : index
    %31 = vector.load %arg5[%c5, %c0_23, %c0_24] : memref<9x32x64xbf16, #tpu.memory_space<vmem>>, vector<1x32x64xbf16>
    %32 = vector.shape_cast %31 : vector<1x32x64xbf16> to vector<32x64xbf16>
    %cst_25 = arith.constant dense<0.000000e+00> : vector<2x64xf32>
    %33 = tpu.matmul %30, %32, %cst_25 {dimension_numbers = #tpu.dot_dimension_numbers<[1], [0], [0], [1], [0, 0, 1, 1], [], []>} : vector<2x32xbf16>, vector<32x64xbf16>, vector<2x64xf32> -> vector<2x64xf32>
    %34 = arith.addf %29, %33 : vector<2x64xf32>
    %c0_26 = arith.constant 0 : index
    %c0_27 = arith.constant 0 : index
    %c0_28 = arith.constant 0 : index
    %c0_29 = arith.constant 0 : index
    %35 = vector.load %arg4[%c0_26, %c0_27, %c0_28, %c0_29] : memref<1x1x4x32xbf16, #tpu.memory_space<vmem>>, vector<1x1x4x32xbf16>
    %36 = vector.shape_cast %35 : vector<1x1x4x32xbf16> to vector<4x32xbf16>
    %37 = vector.extract_strided_slice %36 {offsets = [0, 0], sizes = [2, 32], strides = [1, 1]} : vector<4x32xbf16> to vector<2x32xbf16>
    %c6 = arith.constant 6 : index
    %c0_30 = arith.constant 0 : index
    %c0_31 = arith.constant 0 : index
    %38 = vector.load %arg5[%c6, %c0_30, %c0_31] : memref<9x32x64xbf16, #tpu.memory_space<vmem>>, vector<1x32x64xbf16>
    %39 = vector.shape_cast %38 : vector<1x32x64xbf16> to vector<32x64xbf16>
    %cst_32 = arith.constant dense<0.000000e+00> : vector<2x64xf32>
    %40 = tpu.matmul %37, %39, %cst_32 {dimension_numbers = #tpu.dot_dimension_numbers<[1], [0], [0], [1], [0, 0, 1, 1], [], []>} : vector<2x32xbf16>, vector<32x64xbf16>, vector<2x64xf32> -> vector<2x64xf32>
    %41 = arith.addf %34, %40 : vector<2x64xf32>
    %42 = vector.extract_strided_slice %36 {offsets = [1, 0], sizes = [2, 32], strides = [1, 1]} : vector<4x32xbf16> to vector<2x32xbf16>
    %c7 = arith.constant 7 : index
    %c0_33 = arith.constant 0 : index
    %c0_34 = arith.constant 0 : index
    %43 = vector.load %arg5[%c7, %c0_33, %c0_34] : memref<9x32x64xbf16, #tpu.memory_space<vmem>>, vector<1x32x64xbf16>
    %44 = vector.shape_cast %43 : vector<1x32x64xbf16> to vector<32x64xbf16>
    %cst_35 = arith.constant dense<0.000000e+00> : vector<2x64xf32>
    %45 = tpu.matmul %42, %44, %cst_35 {dimension_numbers = #tpu.dot_dimension_numbers<[1], [0], [0], [1], [0, 0, 1, 1], [], []>} : vector<2x32xbf16>, vector<32x64xbf16>, vector<2x64xf32> -> vector<2x64xf32>
    %46 = arith.addf %41, %45 : vector<2x64xf32>
    %47 = vector.extract_strided_slice %36 {offsets = [2, 0], sizes = [2, 32], strides = [1, 1]} : vector<4x32xbf16> to vector<2x32xbf16>
    %c8 = arith.constant 8 : index
    %c0_36 = arith.constant 0 : index
    %c0_37 = arith.constant 0 : index
    %48 = vector.load %arg5[%c8, %c0_36, %c0_37] : memref<9x32x64xbf16, #tpu.memory_space<vmem>>, vector<1x32x64xbf16>
    %49 = vector.shape_cast %48 : vector<1x32x64xbf16> to vector<32x64xbf16>
    %cst_38 = arith.constant dense<0.000000e+00> : vector<2x64xf32>
    %50 = tpu.matmul %47, %49, %cst_38 {dimension_numbers = #tpu.dot_dimension_numbers<[1], [0], [0], [1], [0, 0, 1, 1], [], []>} : vector<2x32xbf16>, vector<32x64xbf16>, vector<2x64xf32> -> vector<2x64xf32>
    %51 = arith.addf %46, %50 : vector<2x64xf32>
    %c0_39 = arith.constant 0 : index
    %c0_40 = arith.constant 0 : index
    %52 = vector.load %arg6[%c0_39, %c0_40] : memref<1x64xf32, #tpu.memory_space<vmem>>, vector<1x64xf32>
    %53 = vector.broadcast %52 : vector<1x64xf32> to vector<2x64xf32>
    %54 = arith.addf %51, %53 : vector<2x64xf32>
    %cst_41 = arith.constant 0.000000e+00 : f32
    %55 = vector.broadcast %cst_41 : f32 to vector<2x64xf32>
    %56 = arith.maximumf %54, %55 : vector<2x64xf32>
    %57 = arith.truncf %56 : vector<2x64xf32> to vector<2x64xbf16>
    %c0_42 = arith.constant 0 : index
    %c0_43 = arith.constant 0 : index
    %c0_44 = arith.constant 0 : index
    %c0_45 = arith.constant 0 : index
    %58 = vector.load %arg7[%c0_42, %c0_43, %c0_44, %c0_45] : memref<1x1x2x64xbf16, #tpu.memory_space<vmem>>, vector<1x1x2x64xbf16>
    %59 = vector.shape_cast %58 : vector<1x1x2x64xbf16> to vector<2x64xbf16>
    %60 = vector.shape_cast %57 : vector<2x64xbf16> to vector<1x1x2x64xbf16>
    tpu.vector_store %arg7[%c0_42, %c0_43, %c0_44, %c0_45], %60 {strides = array<i32>} : memref<1x1x2x64xbf16, #tpu.memory_space<vmem>>, vector<1x1x2x64xbf16>,
    return
  }
  func.func @transform_0(%arg0: i32, %arg1: i32) -> (i32, i32, i32, i32) {
    %c0_i32 = arith.constant 0 : i32
    %0 = arith.addi %arg1, %c0_i32 : i32
    %c0_i32_0 = arith.constant 0 : i32
    %c0_i32_1 = arith.constant 0 : i32
    %c0_i32_2 = arith.constant 0 : i32
    return %arg0, %0, %c0_i32_0, %c0_i32_1 : i32, i32, i32, i32
  }
  func.func @transform_1(%arg0: i32, %arg1: i32) -> (i32, i32, i32, i32) {
    %c1_i32 = arith.constant 1 : i32
    %0 = arith.addi %arg1, %c1_i32 : i32
    %c0_i32 = arith.constant 0 : i32
    %c0_i32_0 = arith.constant 0 : i32
    %c0_i32_1 = arith.constant 0 : i32
    return %arg0, %0, %c0_i32, %c0_i32_0 : i32, i32, i32, i32
  }
  func.func @transform_2(%arg0: i32, %arg1: i32) -> (i32, i32, i32, i32) {
    %c2_i32 = arith.constant 2 : i32
    %0 = arith.addi %arg1, %c2_i32 : i32
    %c0_i32 = arith.constant 0 : i32
    %c0_i32_0 = arith.constant 0 : i32
    %c0_i32_1 = arith.constant 0 : i32
    return %arg0, %0, %c0_i32, %c0_i32_0 : i32, i32, i32, i32
  }
  func.func @transform_3(%arg0: i32, %arg1: i32) -> (i32, i32, i32) {
    %c0_i32 = arith.constant 0 : i32
    %c0_i32_0 = arith.constant 0 : i32
    %c0_i32_1 = arith.constant 0 : i32
    %c0_i32_2 = arith.constant 0 : i32
    return %c0_i32, %c0_i32_0, %c0_i32_1 : i32, i32, i32
  }
  func.func @transform_4(%arg0: i32, %arg1: i32) -> (i32, i32) {
    %c0_i32 = arith.constant 0 : i32
    %c0_i32_0 = arith.constant 0 : i32
    %c0_i32_1 = arith.constant 0 : i32
    return %c0_i32, %c0_i32_0 : i32, i32
  }
  func.func @transform_5(%arg0: i32, %arg1: i32) -> (i32, i32, i32, i32) {
    %c0_i32 = arith.constant 0 : i32
    %c0_i32_0 = arith.constant 0 : i32
    %c0_i32_1 = arith.constant 0 : i32
    return %arg0, %arg1, %c0_i32, %c0_i32_0 : i32, i32, i32, i32
  }
}

module attributes {stable_mosaic.version = 11 : i64} {
  func.func @_conv3x3_kernel(%arg0: i32, %arg1: i32, %arg2: memref<1x1x6x96xbf16, #tpu.memory_space<vmem>>, %arg3: memref<1x1x6x96xbf16, #tpu.memory_space<vmem>>, %arg4: memref<1x1x6x96xbf16, #tpu.memory_space<vmem>>, %arg5: memref<9x96x96xbf16, #tpu.memory_space<vmem>>, %arg6: memref<1x96xf32, #tpu.memory_space<vmem>>, %arg7: memref<1x1x4x96xbf16, #tpu.memory_space<vmem>>) attributes {dimension_semantics = [#tpu.dimension_semantics<parallel>, #tpu.dimension_semantics<parallel>], iteration_bounds = array<i64: 2, 4>, scalar_prefetch = 0 : i64, scratch_operands = 0 : i64, tpu.core_type = #tpu.core_type<tc>, window_params = [{transform_indices = @transform_0, window_bounds = array<i64: 1, 1, 6, 96>}, {transform_indices = @transform_1, window_bounds = array<i64: 1, 1, 6, 96>}, {transform_indices = @transform_2, window_bounds = array<i64: 1, 1, 6, 96>}, {pipeline_mode = #tpu.pipeline_mode<synchronous>, transform_indices = @transform_3, window_bounds = array<i64: 9, 96, 96>}, {pipeline_mode = #tpu.pipeline_mode<synchronous>, transform_indices = @transform_4, window_bounds = array<i64: 1, 96>}, {transform_indices = @transform_5, window_bounds = array<i64: 1, 1, 4, 96>}]} {
    %cst = arith.constant 0.000000e+00 : f32
    %0 = vector.broadcast %cst : f32 to vector<4x96xf32>
    %c0 = arith.constant 0 : index
    %c0_0 = arith.constant 0 : index
    %c0_1 = arith.constant 0 : index
    %c0_2 = arith.constant 0 : index
    %1 = vector.load %arg2[%c0, %c0_0, %c0_1, %c0_2] : memref<1x1x6x96xbf16, #tpu.memory_space<vmem>>, vector<1x1x6x96xbf16>
    %2 = vector.shape_cast %1 : vector<1x1x6x96xbf16> to vector<6x96xbf16>
    %3 = vector.extract_strided_slice %2 {offsets = [0, 0], sizes = [4, 96], strides = [1, 1]} : vector<6x96xbf16> to vector<4x96xbf16>
    %c0_3 = arith.constant 0 : index
    %c0_4 = arith.constant 0 : index
    %c0_5 = arith.constant 0 : index
    %4 = vector.load %arg5[%c0_3, %c0_4, %c0_5] : memref<9x96x96xbf16, #tpu.memory_space<vmem>>, vector<1x96x96xbf16>
    %5 = vector.shape_cast %4 : vector<1x96x96xbf16> to vector<96x96xbf16>
    %cst_6 = arith.constant dense<0.000000e+00> : vector<4x96xf32>
    %6 = tpu.matmul %3, %5, %cst_6 {dimension_numbers = #tpu.dot_dimension_numbers<[1], [0], [0], [1], [0, 0, 1, 1], [], []>} : vector<4x96xbf16>, vector<96x96xbf16>, vector<4x96xf32> -> vector<4x96xf32>
    %7 = arith.addf %0, %6 : vector<4x96xf32>
    %8 = vector.extract_strided_slice %2 {offsets = [1, 0], sizes = [4, 96], strides = [1, 1]} : vector<6x96xbf16> to vector<4x96xbf16>
    %c1 = arith.constant 1 : index
    %c0_7 = arith.constant 0 : index
    %c0_8 = arith.constant 0 : index
    %9 = vector.load %arg5[%c1, %c0_7, %c0_8] : memref<9x96x96xbf16, #tpu.memory_space<vmem>>, vector<1x96x96xbf16>
    %10 = vector.shape_cast %9 : vector<1x96x96xbf16> to vector<96x96xbf16>
    %cst_9 = arith.constant dense<0.000000e+00> : vector<4x96xf32>
    %11 = tpu.matmul %8, %10, %cst_9 {dimension_numbers = #tpu.dot_dimension_numbers<[1], [0], [0], [1], [0, 0, 1, 1], [], []>} : vector<4x96xbf16>, vector<96x96xbf16>, vector<4x96xf32> -> vector<4x96xf32>
    %12 = arith.addf %7, %11 : vector<4x96xf32>
    %13 = vector.extract_strided_slice %2 {offsets = [2, 0], sizes = [4, 96], strides = [1, 1]} : vector<6x96xbf16> to vector<4x96xbf16>
    %c2 = arith.constant 2 : index
    %c0_10 = arith.constant 0 : index
    %c0_11 = arith.constant 0 : index
    %14 = vector.load %arg5[%c2, %c0_10, %c0_11] : memref<9x96x96xbf16, #tpu.memory_space<vmem>>, vector<1x96x96xbf16>
    %15 = vector.shape_cast %14 : vector<1x96x96xbf16> to vector<96x96xbf16>
    %cst_12 = arith.constant dense<0.000000e+00> : vector<4x96xf32>
    %16 = tpu.matmul %13, %15, %cst_12 {dimension_numbers = #tpu.dot_dimension_numbers<[1], [0], [0], [1], [0, 0, 1, 1], [], []>} : vector<4x96xbf16>, vector<96x96xbf16>, vector<4x96xf32> -> vector<4x96xf32>
    %17 = arith.addf %12, %16 : vector<4x96xf32>
    %c0_13 = arith.constant 0 : index
    %c0_14 = arith.constant 0 : index
    %c0_15 = arith.constant 0 : index
    %c0_16 = arith.constant 0 : index
    %18 = vector.load %arg3[%c0_13, %c0_14, %c0_15, %c0_16] : memref<1x1x6x96xbf16, #tpu.memory_space<vmem>>, vector<1x1x6x96xbf16>
    %19 = vector.shape_cast %18 : vector<1x1x6x96xbf16> to vector<6x96xbf16>
    %20 = vector.extract_strided_slice %19 {offsets = [0, 0], sizes = [4, 96], strides = [1, 1]} : vector<6x96xbf16> to vector<4x96xbf16>
    %c3 = arith.constant 3 : index
    %c0_17 = arith.constant 0 : index
    %c0_18 = arith.constant 0 : index
    %21 = vector.load %arg5[%c3, %c0_17, %c0_18] : memref<9x96x96xbf16, #tpu.memory_space<vmem>>, vector<1x96x96xbf16>
    %22 = vector.shape_cast %21 : vector<1x96x96xbf16> to vector<96x96xbf16>
    %cst_19 = arith.constant dense<0.000000e+00> : vector<4x96xf32>
    %23 = tpu.matmul %20, %22, %cst_19 {dimension_numbers = #tpu.dot_dimension_numbers<[1], [0], [0], [1], [0, 0, 1, 1], [], []>} : vector<4x96xbf16>, vector<96x96xbf16>, vector<4x96xf32> -> vector<4x96xf32>
    %24 = arith.addf %17, %23 : vector<4x96xf32>
    %25 = vector.extract_strided_slice %19 {offsets = [1, 0], sizes = [4, 96], strides = [1, 1]} : vector<6x96xbf16> to vector<4x96xbf16>
    %c4 = arith.constant 4 : index
    %c0_20 = arith.constant 0 : index
    %c0_21 = arith.constant 0 : index
    %26 = vector.load %arg5[%c4, %c0_20, %c0_21] : memref<9x96x96xbf16, #tpu.memory_space<vmem>>, vector<1x96x96xbf16>
    %27 = vector.shape_cast %26 : vector<1x96x96xbf16> to vector<96x96xbf16>
    %cst_22 = arith.constant dense<0.000000e+00> : vector<4x96xf32>
    %28 = tpu.matmul %25, %27, %cst_22 {dimension_numbers = #tpu.dot_dimension_numbers<[1], [0], [0], [1], [0, 0, 1, 1], [], []>} : vector<4x96xbf16>, vector<96x96xbf16>, vector<4x96xf32> -> vector<4x96xf32>
    %29 = arith.addf %24, %28 : vector<4x96xf32>
    %30 = vector.extract_strided_slice %19 {offsets = [2, 0], sizes = [4, 96], strides = [1, 1]} : vector<6x96xbf16> to vector<4x96xbf16>
    %c5 = arith.constant 5 : index
    %c0_23 = arith.constant 0 : index
    %c0_24 = arith.constant 0 : index
    %31 = vector.load %arg5[%c5, %c0_23, %c0_24] : memref<9x96x96xbf16, #tpu.memory_space<vmem>>, vector<1x96x96xbf16>
    %32 = vector.shape_cast %31 : vector<1x96x96xbf16> to vector<96x96xbf16>
    %cst_25 = arith.constant dense<0.000000e+00> : vector<4x96xf32>
    %33 = tpu.matmul %30, %32, %cst_25 {dimension_numbers = #tpu.dot_dimension_numbers<[1], [0], [0], [1], [0, 0, 1, 1], [], []>} : vector<4x96xbf16>, vector<96x96xbf16>, vector<4x96xf32> -> vector<4x96xf32>
    %34 = arith.addf %29, %33 : vector<4x96xf32>
    %c0_26 = arith.constant 0 : index
    %c0_27 = arith.constant 0 : index
    %c0_28 = arith.constant 0 : index
    %c0_29 = arith.constant 0 : index
    %35 = vector.load %arg4[%c0_26, %c0_27, %c0_28, %c0_29] : memref<1x1x6x96xbf16, #tpu.memory_space<vmem>>, vector<1x1x6x96xbf16>
    %36 = vector.shape_cast %35 : vector<1x1x6x96xbf16> to vector<6x96xbf16>
    %37 = vector.extract_strided_slice %36 {offsets = [0, 0], sizes = [4, 96], strides = [1, 1]} : vector<6x96xbf16> to vector<4x96xbf16>
    %c6 = arith.constant 6 : index
    %c0_30 = arith.constant 0 : index
    %c0_31 = arith.constant 0 : index
    %38 = vector.load %arg5[%c6, %c0_30, %c0_31] : memref<9x96x96xbf16, #tpu.memory_space<vmem>>, vector<1x96x96xbf16>
    %39 = vector.shape_cast %38 : vector<1x96x96xbf16> to vector<96x96xbf16>
    %cst_32 = arith.constant dense<0.000000e+00> : vector<4x96xf32>
    %40 = tpu.matmul %37, %39, %cst_32 {dimension_numbers = #tpu.dot_dimension_numbers<[1], [0], [0], [1], [0, 0, 1, 1], [], []>} : vector<4x96xbf16>, vector<96x96xbf16>, vector<4x96xf32> -> vector<4x96xf32>
    %41 = arith.addf %34, %40 : vector<4x96xf32>
    %42 = vector.extract_strided_slice %36 {offsets = [1, 0], sizes = [4, 96], strides = [1, 1]} : vector<6x96xbf16> to vector<4x96xbf16>
    %c7 = arith.constant 7 : index
    %c0_33 = arith.constant 0 : index
    %c0_34 = arith.constant 0 : index
    %43 = vector.load %arg5[%c7, %c0_33, %c0_34] : memref<9x96x96xbf16, #tpu.memory_space<vmem>>, vector<1x96x96xbf16>
    %44 = vector.shape_cast %43 : vector<1x96x96xbf16> to vector<96x96xbf16>
    %cst_35 = arith.constant dense<0.000000e+00> : vector<4x96xf32>
    %45 = tpu.matmul %42, %44, %cst_35 {dimension_numbers = #tpu.dot_dimension_numbers<[1], [0], [0], [1], [0, 0, 1, 1], [], []>} : vector<4x96xbf16>, vector<96x96xbf16>, vector<4x96xf32> -> vector<4x96xf32>
    %46 = arith.addf %41, %45 : vector<4x96xf32>
    %47 = vector.extract_strided_slice %36 {offsets = [2, 0], sizes = [4, 96], strides = [1, 1]} : vector<6x96xbf16> to vector<4x96xbf16>
    %c8 = arith.constant 8 : index
    %c0_36 = arith.constant 0 : index
    %c0_37 = arith.constant 0 : index
    %48 = vector.load %arg5[%c8, %c0_36, %c0_37] : memref<9x96x96xbf16, #tpu.memory_space<vmem>>, vector<1x96x96xbf16>
    %49 = vector.shape_cast %48 : vector<1x96x96xbf16> to vector<96x96xbf16>
    %cst_38 = arith.constant dense<0.000000e+00> : vector<4x96xf32>
    %50 = tpu.matmul %47, %49, %cst_38 {dimension_numbers = #tpu.dot_dimension_numbers<[1], [0], [0], [1], [0, 0, 1, 1], [], []>} : vector<4x96xbf16>, vector<96x96xbf16>, vector<4x96xf32> -> vector<4x96xf32>
    %51 = arith.addf %46, %50 : vector<4x96xf32>
    %c0_39 = arith.constant 0 : index
    %c0_40 = arith.constant 0 : index
    %52 = vector.load %arg6[%c0_39, %c0_40] : memref<1x96xf32, #tpu.memory_space<vmem>>, vector<1x96xf32>
    %53 = vector.broadcast %52 : vector<1x96xf32> to vector<4x96xf32>
    %54 = arith.addf %51, %53 : vector<4x96xf32>
    %cst_41 = arith.constant 0.000000e+00 : f32
    %55 = vector.broadcast %cst_41 : f32 to vector<4x96xf32>
    %56 = arith.maximumf %54, %55 : vector<4x96xf32>
    %57 = arith.truncf %56 : vector<4x96xf32> to vector<4x96xbf16>
    %c0_42 = arith.constant 0 : index
    %c0_43 = arith.constant 0 : index
    %c0_44 = arith.constant 0 : index
    %c0_45 = arith.constant 0 : index
    %58 = vector.load %arg7[%c0_42, %c0_43, %c0_44, %c0_45] : memref<1x1x4x96xbf16, #tpu.memory_space<vmem>>, vector<1x1x4x96xbf16>
    %59 = vector.shape_cast %58 : vector<1x1x4x96xbf16> to vector<4x96xbf16>
    %60 = vector.shape_cast %57 : vector<4x96xbf16> to vector<1x1x4x96xbf16>
    tpu.vector_store %arg7[%c0_42, %c0_43, %c0_44, %c0_45], %60 {strides = array<i32>} : memref<1x1x4x96xbf16, #tpu.memory_space<vmem>>, vector<1x1x4x96xbf16>,
    return
  }
  func.func @transform_0(%arg0: i32, %arg1: i32) -> (i32, i32, i32, i32) {
    %c0_i32 = arith.constant 0 : i32
    %0 = arith.addi %arg1, %c0_i32 : i32
    %c0_i32_0 = arith.constant 0 : i32
    %c0_i32_1 = arith.constant 0 : i32
    %c0_i32_2 = arith.constant 0 : i32
    return %arg0, %0, %c0_i32_0, %c0_i32_1 : i32, i32, i32, i32
  }
  func.func @transform_1(%arg0: i32, %arg1: i32) -> (i32, i32, i32, i32) {
    %c1_i32 = arith.constant 1 : i32
    %0 = arith.addi %arg1, %c1_i32 : i32
    %c0_i32 = arith.constant 0 : i32
    %c0_i32_0 = arith.constant 0 : i32
    %c0_i32_1 = arith.constant 0 : i32
    return %arg0, %0, %c0_i32, %c0_i32_0 : i32, i32, i32, i32
  }
  func.func @transform_2(%arg0: i32, %arg1: i32) -> (i32, i32, i32, i32) {
    %c2_i32 = arith.constant 2 : i32
    %0 = arith.addi %arg1, %c2_i32 : i32
    %c0_i32 = arith.constant 0 : i32
    %c0_i32_0 = arith.constant 0 : i32
    %c0_i32_1 = arith.constant 0 : i32
    return %arg0, %0, %c0_i32, %c0_i32_0 : i32, i32, i32, i32
  }
  func.func @transform_3(%arg0: i32, %arg1: i32) -> (i32, i32, i32) {
    %c0_i32 = arith.constant 0 : i32
    %c0_i32_0 = arith.constant 0 : i32
    %c0_i32_1 = arith.constant 0 : i32
    %c0_i32_2 = arith.constant 0 : i32
    return %c0_i32, %c0_i32_0, %c0_i32_1 : i32, i32, i32
  }
  func.func @transform_4(%arg0: i32, %arg1: i32) -> (i32, i32) {
    %c0_i32 = arith.constant 0 : i32
    %c0_i32_0 = arith.constant 0 : i32
    %c0_i32_1 = arith.constant 0 : i32
    return %c0_i32, %c0_i32_0 : i32, i32
  }
  func.func @transform_5(%arg0: i32, %arg1: i32) -> (i32, i32, i32, i32) {
    %c0_i32 = arith.constant 0 : i32
    %c0_i32_0 = arith.constant 0 : i32
    %c0_i32_1 = arith.constant 0 : i32
    return %arg0, %arg1, %c0_i32, %c0_i32_0 : i32, i32, i32, i32
  }
}

module attributes {stable_mosaic.version = 11 : i64} {
  func.func @_conv3x3_kernel(%arg0: i32, %arg1: i32, %arg2: memref<1x1x10x112xbf16, #tpu.memory_space<vmem>>, %arg3: memref<1x1x10x112xbf16, #tpu.memory_space<vmem>>, %arg4: memref<1x1x10x112xbf16, #tpu.memory_space<vmem>>, %arg5: memref<9x112x48xbf16, #tpu.memory_space<vmem>>, %arg6: memref<1x48xf32, #tpu.memory_space<vmem>>, %arg7: memref<1x1x8x48xbf16, #tpu.memory_space<vmem>>) attributes {dimension_semantics = [#tpu.dimension_semantics<parallel>, #tpu.dimension_semantics<parallel>], iteration_bounds = array<i64: 2, 8>, scalar_prefetch = 0 : i64, scratch_operands = 0 : i64, tpu.core_type = #tpu.core_type<tc>, window_params = [{transform_indices = @transform_0, window_bounds = array<i64: 1, 1, 10, 112>}, {transform_indices = @transform_1, window_bounds = array<i64: 1, 1, 10, 112>}, {transform_indices = @transform_2, window_bounds = array<i64: 1, 1, 10, 112>}, {pipeline_mode = #tpu.pipeline_mode<synchronous>, transform_indices = @transform_3, window_bounds = array<i64: 9, 112, 48>}, {pipeline_mode = #tpu.pipeline_mode<synchronous>, transform_indices = @transform_4, window_bounds = array<i64: 1, 48>}, {transform_indices = @transform_5, window_bounds = array<i64: 1, 1, 8, 48>}]} {
    %cst = arith.constant 0.000000e+00 : f32
    %0 = vector.broadcast %cst : f32 to vector<8x48xf32>
    %c0 = arith.constant 0 : index
    %c0_0 = arith.constant 0 : index
    %c0_1 = arith.constant 0 : index
    %c0_2 = arith.constant 0 : index
    %1 = vector.load %arg2[%c0, %c0_0, %c0_1, %c0_2] : memref<1x1x10x112xbf16, #tpu.memory_space<vmem>>, vector<1x1x10x112xbf16>
    %2 = vector.shape_cast %1 : vector<1x1x10x112xbf16> to vector<10x112xbf16>
    %3 = vector.extract_strided_slice %2 {offsets = [0, 0], sizes = [8, 112], strides = [1, 1]} : vector<10x112xbf16> to vector<8x112xbf16>
    %c0_3 = arith.constant 0 : index
    %c0_4 = arith.constant 0 : index
    %c0_5 = arith.constant 0 : index
    %4 = vector.load %arg5[%c0_3, %c0_4, %c0_5] : memref<9x112x48xbf16, #tpu.memory_space<vmem>>, vector<1x112x48xbf16>
    %5 = vector.shape_cast %4 : vector<1x112x48xbf16> to vector<112x48xbf16>
    %cst_6 = arith.constant dense<0.000000e+00> : vector<8x48xf32>
    %6 = tpu.matmul %3, %5, %cst_6 {dimension_numbers = #tpu.dot_dimension_numbers<[1], [0], [0], [1], [0, 0, 1, 1], [], []>} : vector<8x112xbf16>, vector<112x48xbf16>, vector<8x48xf32> -> vector<8x48xf32>
    %7 = arith.addf %0, %6 : vector<8x48xf32>
    %8 = vector.extract_strided_slice %2 {offsets = [1, 0], sizes = [8, 112], strides = [1, 1]} : vector<10x112xbf16> to vector<8x112xbf16>
    %c1 = arith.constant 1 : index
    %c0_7 = arith.constant 0 : index
    %c0_8 = arith.constant 0 : index
    %9 = vector.load %arg5[%c1, %c0_7, %c0_8] : memref<9x112x48xbf16, #tpu.memory_space<vmem>>, vector<1x112x48xbf16>
    %10 = vector.shape_cast %9 : vector<1x112x48xbf16> to vector<112x48xbf16>
    %cst_9 = arith.constant dense<0.000000e+00> : vector<8x48xf32>
    %11 = tpu.matmul %8, %10, %cst_9 {dimension_numbers = #tpu.dot_dimension_numbers<[1], [0], [0], [1], [0, 0, 1, 1], [], []>} : vector<8x112xbf16>, vector<112x48xbf16>, vector<8x48xf32> -> vector<8x48xf32>
    %12 = arith.addf %7, %11 : vector<8x48xf32>
    %13 = vector.extract_strided_slice %2 {offsets = [2, 0], sizes = [8, 112], strides = [1, 1]} : vector<10x112xbf16> to vector<8x112xbf16>
    %c2 = arith.constant 2 : index
    %c0_10 = arith.constant 0 : index
    %c0_11 = arith.constant 0 : index
    %14 = vector.load %arg5[%c2, %c0_10, %c0_11] : memref<9x112x48xbf16, #tpu.memory_space<vmem>>, vector<1x112x48xbf16>
    %15 = vector.shape_cast %14 : vector<1x112x48xbf16> to vector<112x48xbf16>
    %cst_12 = arith.constant dense<0.000000e+00> : vector<8x48xf32>
    %16 = tpu.matmul %13, %15, %cst_12 {dimension_numbers = #tpu.dot_dimension_numbers<[1], [0], [0], [1], [0, 0, 1, 1], [], []>} : vector<8x112xbf16>, vector<112x48xbf16>, vector<8x48xf32> -> vector<8x48xf32>
    %17 = arith.addf %12, %16 : vector<8x48xf32>
    %c0_13 = arith.constant 0 : index
    %c0_14 = arith.constant 0 : index
    %c0_15 = arith.constant 0 : index
    %c0_16 = arith.constant 0 : index
    %18 = vector.load %arg3[%c0_13, %c0_14, %c0_15, %c0_16] : memref<1x1x10x112xbf16, #tpu.memory_space<vmem>>, vector<1x1x10x112xbf16>
    %19 = vector.shape_cast %18 : vector<1x1x10x112xbf16> to vector<10x112xbf16>
    %20 = vector.extract_strided_slice %19 {offsets = [0, 0], sizes = [8, 112], strides = [1, 1]} : vector<10x112xbf16> to vector<8x112xbf16>
    %c3 = arith.constant 3 : index
    %c0_17 = arith.constant 0 : index
    %c0_18 = arith.constant 0 : index
    %21 = vector.load %arg5[%c3, %c0_17, %c0_18] : memref<9x112x48xbf16, #tpu.memory_space<vmem>>, vector<1x112x48xbf16>
    %22 = vector.shape_cast %21 : vector<1x112x48xbf16> to vector<112x48xbf16>
    %cst_19 = arith.constant dense<0.000000e+00> : vector<8x48xf32>
    %23 = tpu.matmul %20, %22, %cst_19 {dimension_numbers = #tpu.dot_dimension_numbers<[1], [0], [0], [1], [0, 0, 1, 1], [], []>} : vector<8x112xbf16>, vector<112x48xbf16>, vector<8x48xf32> -> vector<8x48xf32>
    %24 = arith.addf %17, %23 : vector<8x48xf32>
    %25 = vector.extract_strided_slice %19 {offsets = [1, 0], sizes = [8, 112], strides = [1, 1]} : vector<10x112xbf16> to vector<8x112xbf16>
    %c4 = arith.constant 4 : index
    %c0_20 = arith.constant 0 : index
    %c0_21 = arith.constant 0 : index
    %26 = vector.load %arg5[%c4, %c0_20, %c0_21] : memref<9x112x48xbf16, #tpu.memory_space<vmem>>, vector<1x112x48xbf16>
    %27 = vector.shape_cast %26 : vector<1x112x48xbf16> to vector<112x48xbf16>
    %cst_22 = arith.constant dense<0.000000e+00> : vector<8x48xf32>
    %28 = tpu.matmul %25, %27, %cst_22 {dimension_numbers = #tpu.dot_dimension_numbers<[1], [0], [0], [1], [0, 0, 1, 1], [], []>} : vector<8x112xbf16>, vector<112x48xbf16>, vector<8x48xf32> -> vector<8x48xf32>
    %29 = arith.addf %24, %28 : vector<8x48xf32>
    %30 = vector.extract_strided_slice %19 {offsets = [2, 0], sizes = [8, 112], strides = [1, 1]} : vector<10x112xbf16> to vector<8x112xbf16>
    %c5 = arith.constant 5 : index
    %c0_23 = arith.constant 0 : index
    %c0_24 = arith.constant 0 : index
    %31 = vector.load %arg5[%c5, %c0_23, %c0_24] : memref<9x112x48xbf16, #tpu.memory_space<vmem>>, vector<1x112x48xbf16>
    %32 = vector.shape_cast %31 : vector<1x112x48xbf16> to vector<112x48xbf16>
    %cst_25 = arith.constant dense<0.000000e+00> : vector<8x48xf32>
    %33 = tpu.matmul %30, %32, %cst_25 {dimension_numbers = #tpu.dot_dimension_numbers<[1], [0], [0], [1], [0, 0, 1, 1], [], []>} : vector<8x112xbf16>, vector<112x48xbf16>, vector<8x48xf32> -> vector<8x48xf32>
    %34 = arith.addf %29, %33 : vector<8x48xf32>
    %c0_26 = arith.constant 0 : index
    %c0_27 = arith.constant 0 : index
    %c0_28 = arith.constant 0 : index
    %c0_29 = arith.constant 0 : index
    %35 = vector.load %arg4[%c0_26, %c0_27, %c0_28, %c0_29] : memref<1x1x10x112xbf16, #tpu.memory_space<vmem>>, vector<1x1x10x112xbf16>
    %36 = vector.shape_cast %35 : vector<1x1x10x112xbf16> to vector<10x112xbf16>
    %37 = vector.extract_strided_slice %36 {offsets = [0, 0], sizes = [8, 112], strides = [1, 1]} : vector<10x112xbf16> to vector<8x112xbf16>
    %c6 = arith.constant 6 : index
    %c0_30 = arith.constant 0 : index
    %c0_31 = arith.constant 0 : index
    %38 = vector.load %arg5[%c6, %c0_30, %c0_31] : memref<9x112x48xbf16, #tpu.memory_space<vmem>>, vector<1x112x48xbf16>
    %39 = vector.shape_cast %38 : vector<1x112x48xbf16> to vector<112x48xbf16>
    %cst_32 = arith.constant dense<0.000000e+00> : vector<8x48xf32>
    %40 = tpu.matmul %37, %39, %cst_32 {dimension_numbers = #tpu.dot_dimension_numbers<[1], [0], [0], [1], [0, 0, 1, 1], [], []>} : vector<8x112xbf16>, vector<112x48xbf16>, vector<8x48xf32> -> vector<8x48xf32>
    %41 = arith.addf %34, %40 : vector<8x48xf32>
    %42 = vector.extract_strided_slice %36 {offsets = [1, 0], sizes = [8, 112], strides = [1, 1]} : vector<10x112xbf16> to vector<8x112xbf16>
    %c7 = arith.constant 7 : index
    %c0_33 = arith.constant 0 : index
    %c0_34 = arith.constant 0 : index
    %43 = vector.load %arg5[%c7, %c0_33, %c0_34] : memref<9x112x48xbf16, #tpu.memory_space<vmem>>, vector<1x112x48xbf16>
    %44 = vector.shape_cast %43 : vector<1x112x48xbf16> to vector<112x48xbf16>
    %cst_35 = arith.constant dense<0.000000e+00> : vector<8x48xf32>
    %45 = tpu.matmul %42, %44, %cst_35 {dimension_numbers = #tpu.dot_dimension_numbers<[1], [0], [0], [1], [0, 0, 1, 1], [], []>} : vector<8x112xbf16>, vector<112x48xbf16>, vector<8x48xf32> -> vector<8x48xf32>
    %46 = arith.addf %41, %45 : vector<8x48xf32>
    %47 = vector.extract_strided_slice %36 {offsets = [2, 0], sizes = [8, 112], strides = [1, 1]} : vector<10x112xbf16> to vector<8x112xbf16>
    %c8 = arith.constant 8 : index
    %c0_36 = arith.constant 0 : index
    %c0_37 = arith.constant 0 : index
    %48 = vector.load %arg5[%c8, %c0_36, %c0_37] : memref<9x112x48xbf16, #tpu.memory_space<vmem>>, vector<1x112x48xbf16>
    %49 = vector.shape_cast %48 : vector<1x112x48xbf16> to vector<112x48xbf16>
    %cst_38 = arith.constant dense<0.000000e+00> : vector<8x48xf32>
    %50 = tpu.matmul %47, %49, %cst_38 {dimension_numbers = #tpu.dot_dimension_numbers<[1], [0], [0], [1], [0, 0, 1, 1], [], []>} : vector<8x112xbf16>, vector<112x48xbf16>, vector<8x48xf32> -> vector<8x48xf32>
    %51 = arith.addf %46, %50 : vector<8x48xf32>
    %c0_39 = arith.constant 0 : index
    %c0_40 = arith.constant 0 : index
    %52 = vector.load %arg6[%c0_39, %c0_40] : memref<1x48xf32, #tpu.memory_space<vmem>>, vector<1x48xf32>
    %53 = vector.broadcast %52 : vector<1x48xf32> to vector<8x48xf32>
    %54 = arith.addf %51, %53 : vector<8x48xf32>
    %cst_41 = arith.constant 0.000000e+00 : f32
    %55 = vector.broadcast %cst_41 : f32 to vector<8x48xf32>
    %56 = arith.maximumf %54, %55 : vector<8x48xf32>
    %57 = arith.truncf %56 : vector<8x48xf32> to vector<8x48xbf16>
    %c0_42 = arith.constant 0 : index
    %c0_43 = arith.constant 0 : index
    %c0_44 = arith.constant 0 : index
    %c0_45 = arith.constant 0 : index
    %58 = vector.load %arg7[%c0_42, %c0_43, %c0_44, %c0_45] : memref<1x1x8x48xbf16, #tpu.memory_space<vmem>>, vector<1x1x8x48xbf16>
    %59 = vector.shape_cast %58 : vector<1x1x8x48xbf16> to vector<8x48xbf16>
    %60 = vector.shape_cast %57 : vector<8x48xbf16> to vector<1x1x8x48xbf16>
    tpu.vector_store %arg7[%c0_42, %c0_43, %c0_44, %c0_45], %60 {strides = array<i32>} : memref<1x1x8x48xbf16, #tpu.memory_space<vmem>>, vector<1x1x8x48xbf16>,
    return
  }
  func.func @transform_0(%arg0: i32, %arg1: i32) -> (i32, i32, i32, i32) {
    %c0_i32 = arith.constant 0 : i32
    %0 = arith.addi %arg1, %c0_i32 : i32
    %c0_i32_0 = arith.constant 0 : i32
    %c0_i32_1 = arith.constant 0 : i32
    %c0_i32_2 = arith.constant 0 : i32
    return %arg0, %0, %c0_i32_0, %c0_i32_1 : i32, i32, i32, i32
  }
  func.func @transform_1(%arg0: i32, %arg1: i32) -> (i32, i32, i32, i32) {
    %c1_i32 = arith.constant 1 : i32
    %0 = arith.addi %arg1, %c1_i32 : i32
    %c0_i32 = arith.constant 0 : i32
    %c0_i32_0 = arith.constant 0 : i32
    %c0_i32_1 = arith.constant 0 : i32
    return %arg0, %0, %c0_i32, %c0_i32_0 : i32, i32, i32, i32
  }
  func.func @transform_2(%arg0: i32, %arg1: i32) -> (i32, i32, i32, i32) {
    %c2_i32 = arith.constant 2 : i32
    %0 = arith.addi %arg1, %c2_i32 : i32
    %c0_i32 = arith.constant 0 : i32
    %c0_i32_0 = arith.constant 0 : i32
    %c0_i32_1 = arith.constant 0 : i32
    return %arg0, %0, %c0_i32, %c0_i32_0 : i32, i32, i32, i32
  }
  func.func @transform_3(%arg0: i32, %arg1: i32) -> (i32, i32, i32) {
    %c0_i32 = arith.constant 0 : i32
    %c0_i32_0 = arith.constant 0 : i32
    %c0_i32_1 = arith.constant 0 : i32
    %c0_i32_2 = arith.constant 0 : i32
    return %c0_i32, %c0_i32_0, %c0_i32_1 : i32, i32, i32
  }
  func.func @transform_4(%arg0: i32, %arg1: i32) -> (i32, i32) {
    %c0_i32 = arith.constant 0 : i32
    %c0_i32_0 = arith.constant 0 : i32
    %c0_i32_1 = arith.constant 0 : i32
    return %c0_i32, %c0_i32_0 : i32, i32
  }
  func.func @transform_5(%arg0: i32, %arg1: i32) -> (i32, i32, i32, i32) {
    %c0_i32 = arith.constant 0 : i32
    %c0_i32_0 = arith.constant 0 : i32
    %c0_i32_1 = arith.constant 0 : i32
    return %arg0, %arg1, %c0_i32, %c0_i32_0 : i32, i32, i32, i32
  }
}

module attributes {stable_mosaic.version = 11 : i64} {
  func.func @_conv3x3_kernel(%arg0: i32, %arg1: i32, %arg2: memref<1x1x18x56xbf16, #tpu.memory_space<vmem>>, %arg3: memref<1x1x18x56xbf16, #tpu.memory_space<vmem>>, %arg4: memref<1x1x18x56xbf16, #tpu.memory_space<vmem>>, %arg5: memref<9x56x24xbf16, #tpu.memory_space<vmem>>, %arg6: memref<1x24xf32, #tpu.memory_space<vmem>>, %arg7: memref<1x1x16x24xbf16, #tpu.memory_space<vmem>>) attributes {dimension_semantics = [#tpu.dimension_semantics<parallel>, #tpu.dimension_semantics<parallel>], iteration_bounds = array<i64: 2, 16>, scalar_prefetch = 0 : i64, scratch_operands = 0 : i64, tpu.core_type = #tpu.core_type<tc>, window_params = [{transform_indices = @transform_0, window_bounds = array<i64: 1, 1, 18, 56>}, {transform_indices = @transform_1, window_bounds = array<i64: 1, 1, 18, 56>}, {transform_indices = @transform_2, window_bounds = array<i64: 1, 1, 18, 56>}, {pipeline_mode = #tpu.pipeline_mode<synchronous>, transform_indices = @transform_3, window_bounds = array<i64: 9, 56, 24>}, {pipeline_mode = #tpu.pipeline_mode<synchronous>, transform_indices = @transform_4, window_bounds = array<i64: 1, 24>}, {transform_indices = @transform_5, window_bounds = array<i64: 1, 1, 16, 24>}]} {
    %cst = arith.constant 0.000000e+00 : f32
    %0 = vector.broadcast %cst : f32 to vector<16x24xf32>
    %c0 = arith.constant 0 : index
    %c0_0 = arith.constant 0 : index
    %c0_1 = arith.constant 0 : index
    %c0_2 = arith.constant 0 : index
    %1 = vector.load %arg2[%c0, %c0_0, %c0_1, %c0_2] : memref<1x1x18x56xbf16, #tpu.memory_space<vmem>>, vector<1x1x18x56xbf16>
    %2 = vector.shape_cast %1 : vector<1x1x18x56xbf16> to vector<18x56xbf16>
    %3 = vector.extract_strided_slice %2 {offsets = [0, 0], sizes = [16, 56], strides = [1, 1]} : vector<18x56xbf16> to vector<16x56xbf16>
    %c0_3 = arith.constant 0 : index
    %c0_4 = arith.constant 0 : index
    %c0_5 = arith.constant 0 : index
    %4 = vector.load %arg5[%c0_3, %c0_4, %c0_5] : memref<9x56x24xbf16, #tpu.memory_space<vmem>>, vector<1x56x24xbf16>
    %5 = vector.shape_cast %4 : vector<1x56x24xbf16> to vector<56x24xbf16>
    %cst_6 = arith.constant dense<0.000000e+00> : vector<16x24xf32>
    %6 = tpu.matmul %3, %5, %cst_6 {dimension_numbers = #tpu.dot_dimension_numbers<[1], [0], [0], [1], [0, 0, 1, 1], [], []>} : vector<16x56xbf16>, vector<56x24xbf16>, vector<16x24xf32> -> vector<16x24xf32>
    %7 = arith.addf %0, %6 : vector<16x24xf32>
    %8 = vector.extract_strided_slice %2 {offsets = [1, 0], sizes = [16, 56], strides = [1, 1]} : vector<18x56xbf16> to vector<16x56xbf16>
    %c1 = arith.constant 1 : index
    %c0_7 = arith.constant 0 : index
    %c0_8 = arith.constant 0 : index
    %9 = vector.load %arg5[%c1, %c0_7, %c0_8] : memref<9x56x24xbf16, #tpu.memory_space<vmem>>, vector<1x56x24xbf16>
    %10 = vector.shape_cast %9 : vector<1x56x24xbf16> to vector<56x24xbf16>
    %cst_9 = arith.constant dense<0.000000e+00> : vector<16x24xf32>
    %11 = tpu.matmul %8, %10, %cst_9 {dimension_numbers = #tpu.dot_dimension_numbers<[1], [0], [0], [1], [0, 0, 1, 1], [], []>} : vector<16x56xbf16>, vector<56x24xbf16>, vector<16x24xf32> -> vector<16x24xf32>
    %12 = arith.addf %7, %11 : vector<16x24xf32>
    %13 = vector.extract_strided_slice %2 {offsets = [2, 0], sizes = [16, 56], strides = [1, 1]} : vector<18x56xbf16> to vector<16x56xbf16>
    %c2 = arith.constant 2 : index
    %c0_10 = arith.constant 0 : index
    %c0_11 = arith.constant 0 : index
    %14 = vector.load %arg5[%c2, %c0_10, %c0_11] : memref<9x56x24xbf16, #tpu.memory_space<vmem>>, vector<1x56x24xbf16>
    %15 = vector.shape_cast %14 : vector<1x56x24xbf16> to vector<56x24xbf16>
    %cst_12 = arith.constant dense<0.000000e+00> : vector<16x24xf32>
    %16 = tpu.matmul %13, %15, %cst_12 {dimension_numbers = #tpu.dot_dimension_numbers<[1], [0], [0], [1], [0, 0, 1, 1], [], []>} : vector<16x56xbf16>, vector<56x24xbf16>, vector<16x24xf32> -> vector<16x24xf32>
    %17 = arith.addf %12, %16 : vector<16x24xf32>
    %c0_13 = arith.constant 0 : index
    %c0_14 = arith.constant 0 : index
    %c0_15 = arith.constant 0 : index
    %c0_16 = arith.constant 0 : index
    %18 = vector.load %arg3[%c0_13, %c0_14, %c0_15, %c0_16] : memref<1x1x18x56xbf16, #tpu.memory_space<vmem>>, vector<1x1x18x56xbf16>
    %19 = vector.shape_cast %18 : vector<1x1x18x56xbf16> to vector<18x56xbf16>
    %20 = vector.extract_strided_slice %19 {offsets = [0, 0], sizes = [16, 56], strides = [1, 1]} : vector<18x56xbf16> to vector<16x56xbf16>
    %c3 = arith.constant 3 : index
    %c0_17 = arith.constant 0 : index
    %c0_18 = arith.constant 0 : index
    %21 = vector.load %arg5[%c3, %c0_17, %c0_18] : memref<9x56x24xbf16, #tpu.memory_space<vmem>>, vector<1x56x24xbf16>
    %22 = vector.shape_cast %21 : vector<1x56x24xbf16> to vector<56x24xbf16>
    %cst_19 = arith.constant dense<0.000000e+00> : vector<16x24xf32>
    %23 = tpu.matmul %20, %22, %cst_19 {dimension_numbers = #tpu.dot_dimension_numbers<[1], [0], [0], [1], [0, 0, 1, 1], [], []>} : vector<16x56xbf16>, vector<56x24xbf16>, vector<16x24xf32> -> vector<16x24xf32>
    %24 = arith.addf %17, %23 : vector<16x24xf32>
    %25 = vector.extract_strided_slice %19 {offsets = [1, 0], sizes = [16, 56], strides = [1, 1]} : vector<18x56xbf16> to vector<16x56xbf16>
    %c4 = arith.constant 4 : index
    %c0_20 = arith.constant 0 : index
    %c0_21 = arith.constant 0 : index
    %26 = vector.load %arg5[%c4, %c0_20, %c0_21] : memref<9x56x24xbf16, #tpu.memory_space<vmem>>, vector<1x56x24xbf16>
    %27 = vector.shape_cast %26 : vector<1x56x24xbf16> to vector<56x24xbf16>
    %cst_22 = arith.constant dense<0.000000e+00> : vector<16x24xf32>
    %28 = tpu.matmul %25, %27, %cst_22 {dimension_numbers = #tpu.dot_dimension_numbers<[1], [0], [0], [1], [0, 0, 1, 1], [], []>} : vector<16x56xbf16>, vector<56x24xbf16>, vector<16x24xf32> -> vector<16x24xf32>
    %29 = arith.addf %24, %28 : vector<16x24xf32>
    %30 = vector.extract_strided_slice %19 {offsets = [2, 0], sizes = [16, 56], strides = [1, 1]} : vector<18x56xbf16> to vector<16x56xbf16>
    %c5 = arith.constant 5 : index
    %c0_23 = arith.constant 0 : index
    %c0_24 = arith.constant 0 : index
    %31 = vector.load %arg5[%c5, %c0_23, %c0_24] : memref<9x56x24xbf16, #tpu.memory_space<vmem>>, vector<1x56x24xbf16>
    %32 = vector.shape_cast %31 : vector<1x56x24xbf16> to vector<56x24xbf16>
    %cst_25 = arith.constant dense<0.000000e+00> : vector<16x24xf32>
    %33 = tpu.matmul %30, %32, %cst_25 {dimension_numbers = #tpu.dot_dimension_numbers<[1], [0], [0], [1], [0, 0, 1, 1], [], []>} : vector<16x56xbf16>, vector<56x24xbf16>, vector<16x24xf32> -> vector<16x24xf32>
    %34 = arith.addf %29, %33 : vector<16x24xf32>
    %c0_26 = arith.constant 0 : index
    %c0_27 = arith.constant 0 : index
    %c0_28 = arith.constant 0 : index
    %c0_29 = arith.constant 0 : index
    %35 = vector.load %arg4[%c0_26, %c0_27, %c0_28, %c0_29] : memref<1x1x18x56xbf16, #tpu.memory_space<vmem>>, vector<1x1x18x56xbf16>
    %36 = vector.shape_cast %35 : vector<1x1x18x56xbf16> to vector<18x56xbf16>
    %37 = vector.extract_strided_slice %36 {offsets = [0, 0], sizes = [16, 56], strides = [1, 1]} : vector<18x56xbf16> to vector<16x56xbf16>
    %c6 = arith.constant 6 : index
    %c0_30 = arith.constant 0 : index
    %c0_31 = arith.constant 0 : index
    %38 = vector.load %arg5[%c6, %c0_30, %c0_31] : memref<9x56x24xbf16, #tpu.memory_space<vmem>>, vector<1x56x24xbf16>
    %39 = vector.shape_cast %38 : vector<1x56x24xbf16> to vector<56x24xbf16>
    %cst_32 = arith.constant dense<0.000000e+00> : vector<16x24xf32>
    %40 = tpu.matmul %37, %39, %cst_32 {dimension_numbers = #tpu.dot_dimension_numbers<[1], [0], [0], [1], [0, 0, 1, 1], [], []>} : vector<16x56xbf16>, vector<56x24xbf16>, vector<16x24xf32> -> vector<16x24xf32>
    %41 = arith.addf %34, %40 : vector<16x24xf32>
    %42 = vector.extract_strided_slice %36 {offsets = [1, 0], sizes = [16, 56], strides = [1, 1]} : vector<18x56xbf16> to vector<16x56xbf16>
    %c7 = arith.constant 7 : index
    %c0_33 = arith.constant 0 : index
    %c0_34 = arith.constant 0 : index
    %43 = vector.load %arg5[%c7, %c0_33, %c0_34] : memref<9x56x24xbf16, #tpu.memory_space<vmem>>, vector<1x56x24xbf16>
    %44 = vector.shape_cast %43 : vector<1x56x24xbf16> to vector<56x24xbf16>
    %cst_35 = arith.constant dense<0.000000e+00> : vector<16x24xf32>
    %45 = tpu.matmul %42, %44, %cst_35 {dimension_numbers = #tpu.dot_dimension_numbers<[1], [0], [0], [1], [0, 0, 1, 1], [], []>} : vector<16x56xbf16>, vector<56x24xbf16>, vector<16x24xf32> -> vector<16x24xf32>
    %46 = arith.addf %41, %45 : vector<16x24xf32>
    %47 = vector.extract_strided_slice %36 {offsets = [2, 0], sizes = [16, 56], strides = [1, 1]} : vector<18x56xbf16> to vector<16x56xbf16>
    %c8 = arith.constant 8 : index
    %c0_36 = arith.constant 0 : index
    %c0_37 = arith.constant 0 : index
    %48 = vector.load %arg5[%c8, %c0_36, %c0_37] : memref<9x56x24xbf16, #tpu.memory_space<vmem>>, vector<1x56x24xbf16>
    %49 = vector.shape_cast %48 : vector<1x56x24xbf16> to vector<56x24xbf16>
    %cst_38 = arith.constant dense<0.000000e+00> : vector<16x24xf32>
    %50 = tpu.matmul %47, %49, %cst_38 {dimension_numbers = #tpu.dot_dimension_numbers<[1], [0], [0], [1], [0, 0, 1, 1], [], []>} : vector<16x56xbf16>, vector<56x24xbf16>, vector<16x24xf32> -> vector<16x24xf32>
    %51 = arith.addf %46, %50 : vector<16x24xf32>
    %c0_39 = arith.constant 0 : index
    %c0_40 = arith.constant 0 : index
    %52 = vector.load %arg6[%c0_39, %c0_40] : memref<1x24xf32, #tpu.memory_space<vmem>>, vector<1x24xf32>
    %53 = vector.broadcast %52 : vector<1x24xf32> to vector<16x24xf32>
    %54 = arith.addf %51, %53 : vector<16x24xf32>
    %cst_41 = arith.constant 0.000000e+00 : f32
    %55 = vector.broadcast %cst_41 : f32 to vector<16x24xf32>
    %56 = arith.maximumf %54, %55 : vector<16x24xf32>
    %57 = arith.truncf %56 : vector<16x24xf32> to vector<16x24xbf16>
    %c0_42 = arith.constant 0 : index
    %c0_43 = arith.constant 0 : index
    %c0_44 = arith.constant 0 : index
    %c0_45 = arith.constant 0 : index
    %58 = vector.load %arg7[%c0_42, %c0_43, %c0_44, %c0_45] : memref<1x1x16x24xbf16, #tpu.memory_space<vmem>>, vector<1x1x16x24xbf16>
    %59 = vector.shape_cast %58 : vector<1x1x16x24xbf16> to vector<16x24xbf16>
    %60 = vector.shape_cast %57 : vector<16x24xbf16> to vector<1x1x16x24xbf16>
    tpu.vector_store %arg7[%c0_42, %c0_43, %c0_44, %c0_45], %60 {strides = array<i32>} : memref<1x1x16x24xbf16, #tpu.memory_space<vmem>>, vector<1x1x16x24xbf16>,
    return
  }
  func.func @transform_0(%arg0: i32, %arg1: i32) -> (i32, i32, i32, i32) {
    %c0_i32 = arith.constant 0 : i32
    %0 = arith.addi %arg1, %c0_i32 : i32
    %c0_i32_0 = arith.constant 0 : i32
    %c0_i32_1 = arith.constant 0 : i32
    %c0_i32_2 = arith.constant 0 : i32
    return %arg0, %0, %c0_i32_0, %c0_i32_1 : i32, i32, i32, i32
  }
  func.func @transform_1(%arg0: i32, %arg1: i32) -> (i32, i32, i32, i32) {
    %c1_i32 = arith.constant 1 : i32
    %0 = arith.addi %arg1, %c1_i32 : i32
    %c0_i32 = arith.constant 0 : i32
    %c0_i32_0 = arith.constant 0 : i32
    %c0_i32_1 = arith.constant 0 : i32
    return %arg0, %0, %c0_i32, %c0_i32_0 : i32, i32, i32, i32
  }
  func.func @transform_2(%arg0: i32, %arg1: i32) -> (i32, i32, i32, i32) {
    %c2_i32 = arith.constant 2 : i32
    %0 = arith.addi %arg1, %c2_i32 : i32
    %c0_i32 = arith.constant 0 : i32
    %c0_i32_0 = arith.constant 0 : i32
    %c0_i32_1 = arith.constant 0 : i32
    return %arg0, %0, %c0_i32, %c0_i32_0 : i32, i32, i32, i32
  }
  func.func @transform_3(%arg0: i32, %arg1: i32) -> (i32, i32, i32) {
    %c0_i32 = arith.constant 0 : i32
    %c0_i32_0 = arith.constant 0 : i32
    %c0_i32_1 = arith.constant 0 : i32
    %c0_i32_2 = arith.constant 0 : i32
    return %c0_i32, %c0_i32_0, %c0_i32_1 : i32, i32, i32
  }
  func.func @transform_4(%arg0: i32, %arg1: i32) -> (i32, i32) {
    %c0_i32 = arith.constant 0 : i32
    %c0_i32_0 = arith.constant 0 : i32
    %c0_i32_1 = arith.constant 0 : i32
    return %c0_i32, %c0_i32_0 : i32, i32
  }
  func.func @transform_5(%arg0: i32, %arg1: i32) -> (i32, i32, i32, i32) {
    %c0_i32 = arith.constant 0 : i32
    %c0_i32_0 = arith.constant 0 : i32
    %c0_i32_1 = arith.constant 0 : i32
    return %arg0, %arg1, %c0_i32, %c0_i32_0 : i32, i32, i32, i32
  }
}

module attributes {stable_mosaic.version = 11 : i64} {
  func.func @_scale_attention_kernel(%arg0: i32, %arg1: memref<256x96xbf16, #tpu.memory_space<vmem>>, %arg2: memref<256x48xbf16, #tpu.memory_space<vmem>>, %arg3: memref<256x24xbf16, #tpu.memory_space<vmem>>, %arg4: memref<96x24xbf16, #tpu.memory_space<vmem>>, %arg5: memref<48x24xbf16, #tpu.memory_space<vmem>>, %arg6: memref<24x24xbf16, #tpu.memory_space<vmem>>, %arg7: memref<3x1x24xf32, #tpu.memory_space<vmem>>, %arg8: memref<3x24x24xbf16, #tpu.memory_space<vmem>>, %arg9: memref<3x1x24xf32, #tpu.memory_space<vmem>>, %arg10: memref<24x9xbf16, #tpu.memory_space<vmem>>, %arg11: memref<1x9xf32, #tpu.memory_space<vmem>>, %arg12: memref<256x9xf32, #tpu.memory_space<vmem>>) attributes {dimension_semantics = [#tpu.dimension_semantics<parallel>], iteration_bounds = array<i64: 2>, scalar_prefetch = 0 : i64, scratch_operands = 0 : i64, tpu.core_type = #tpu.core_type<tc>, window_params = [{transform_indices = @transform_0, window_bounds = array<i64: 256, 96>}, {transform_indices = @transform_1, window_bounds = array<i64: 256, 48>}, {transform_indices = @transform_2, window_bounds = array<i64: 256, 24>}, {pipeline_mode = #tpu.pipeline_mode<synchronous>, transform_indices = @transform_3, window_bounds = array<i64: 96, 24>}, {pipeline_mode = #tpu.pipeline_mode<synchronous>, transform_indices = @transform_4, window_bounds = array<i64: 48, 24>}, {pipeline_mode = #tpu.pipeline_mode<synchronous>, transform_indices = @transform_5, window_bounds = array<i64: 24, 24>}, {pipeline_mode = #tpu.pipeline_mode<synchronous>, transform_indices = @transform_6, window_bounds = array<i64: 3, 1, 24>}, {pipeline_mode = #tpu.pipeline_mode<synchronous>, transform_indices = @transform_7, window_bounds = array<i64: 3, 24, 24>}, {pipeline_mode = #tpu.pipeline_mode<synchronous>, transform_indices = @transform_8, window_bounds = array<i64: 3, 1, 24>}, {pipeline_mode = #tpu.pipeline_mode<synchronous>, transform_indices = @transform_9, window_bounds = array<i64: 24, 9>}, {pipeline_mode = #tpu.pipeline_mode<synchronous>, transform_indices = @transform_10, window_bounds = array<i64: 1, 9>}, {transform_indices = @transform_11, window_bounds = array<i64: 256, 9>}]} {
    %c0 = arith.constant 0 : index
    %c0_0 = arith.constant 0 : index
    %0 = vector.load %arg1[%c0, %c0_0] : memref<256x96xbf16, #tpu.memory_space<vmem>>, vector<256x96xbf16>
    %c0_1 = arith.constant 0 : index
    %c0_2 = arith.constant 0 : index
    %1 = vector.load %arg4[%c0_1, %c0_2] : memref<96x24xbf16, #tpu.memory_space<vmem>>, vector<96x24xbf16>
    %cst = arith.constant dense<0.000000e+00> : vector<256x24xf32>
    %2 = tpu.matmul %0, %1, %cst {dimension_numbers = #tpu.dot_dimension_numbers<[1], [0], [0], [1], [0, 0, 1, 1], [], []>} : vector<256x96xbf16>, vector<96x24xbf16>, vector<256x24xf32> -> vector<256x24xf32>
    %c0_3 = arith.constant 0 : index
    %c0_4 = arith.constant 0 : index
    %c0_5 = arith.constant 0 : index
    %3 = vector.load %arg7[%c0_3, %c0_4, %c0_5] : memref<3x1x24xf32, #tpu.memory_space<vmem>>, vector<1x1x24xf32>
    %4 = vector.shape_cast %3 : vector<1x1x24xf32> to vector<1x24xf32>
    %5 = vector.broadcast %4 : vector<1x24xf32> to vector<256x24xf32>
    %6 = arith.addf %2, %5 : vector<256x24xf32>
    %cst_6 = arith.constant 0.000000e+00 : f32
    %7 = vector.broadcast %cst_6 : f32 to vector<256x24xf32>
    %8 = arith.maximumf %6, %7 : vector<256x24xf32>
    %c0_7 = arith.constant 0 : index
    %c0_8 = arith.constant 0 : index
    %9 = vector.load %arg2[%c0_7, %c0_8] : memref<256x48xbf16, #tpu.memory_space<vmem>>, vector<256x48xbf16>
    %c0_9 = arith.constant 0 : index
    %c0_10 = arith.constant 0 : index
    %10 = vector.load %arg5[%c0_9, %c0_10] : memref<48x24xbf16, #tpu.memory_space<vmem>>, vector<48x24xbf16>
    %cst_11 = arith.constant dense<0.000000e+00> : vector<256x24xf32>
    %11 = tpu.matmul %9, %10, %cst_11 {dimension_numbers = #tpu.dot_dimension_numbers<[1], [0], [0], [1], [0, 0, 1, 1], [], []>} : vector<256x48xbf16>, vector<48x24xbf16>, vector<256x24xf32> -> vector<256x24xf32>
    %c1 = arith.constant 1 : index
    %c0_12 = arith.constant 0 : index
    %c0_13 = arith.constant 0 : index
    %12 = vector.load %arg7[%c1, %c0_12, %c0_13] : memref<3x1x24xf32, #tpu.memory_space<vmem>>, vector<1x1x24xf32>
    %13 = vector.shape_cast %12 : vector<1x1x24xf32> to vector<1x24xf32>
    %14 = vector.broadcast %13 : vector<1x24xf32> to vector<256x24xf32>
    %15 = arith.addf %11, %14 : vector<256x24xf32>
    %cst_14 = arith.constant 0.000000e+00 : f32
    %16 = vector.broadcast %cst_14 : f32 to vector<256x24xf32>
    %17 = arith.maximumf %15, %16 : vector<256x24xf32>
    %c0_15 = arith.constant 0 : index
    %c0_16 = arith.constant 0 : index
    %18 = vector.load %arg3[%c0_15, %c0_16] : memref<256x24xbf16, #tpu.memory_space<vmem>>, vector<256x24xbf16>
    %c0_17 = arith.constant 0 : index
    %c0_18 = arith.constant 0 : index
    %19 = vector.load %arg6[%c0_17, %c0_18] : memref<24x24xbf16, #tpu.memory_space<vmem>>, vector<24x24xbf16>
    %cst_19 = arith.constant dense<0.000000e+00> : vector<256x24xf32>
    %20 = tpu.matmul %18, %19, %cst_19 {dimension_numbers = #tpu.dot_dimension_numbers<[1], [0], [0], [1], [0, 0, 1, 1], [], []>} : vector<256x24xbf16>, vector<24x24xbf16>, vector<256x24xf32> -> vector<256x24xf32>
    %c2 = arith.constant 2 : index
    %c0_20 = arith.constant 0 : index
    %c0_21 = arith.constant 0 : index
    %21 = vector.load %arg7[%c2, %c0_20, %c0_21] : memref<3x1x24xf32, #tpu.memory_space<vmem>>, vector<1x1x24xf32>
    %22 = vector.shape_cast %21 : vector<1x1x24xf32> to vector<1x24xf32>
    %23 = vector.broadcast %22 : vector<1x24xf32> to vector<256x24xf32>
    %24 = arith.addf %20, %23 : vector<256x24xf32>
    %cst_22 = arith.constant 0.000000e+00 : f32
    %25 = vector.broadcast %cst_22 : f32 to vector<256x24xf32>
    %26 = arith.maximumf %24, %25 : vector<256x24xf32>
    %27 = arith.truncf %8 : vector<256x24xf32> to vector<256x24xbf16>
    %c0_23 = arith.constant 0 : index
    %c0_24 = arith.constant 0 : index
    %c0_25 = arith.constant 0 : index
    %28 = vector.load %arg8[%c0_23, %c0_24, %c0_25] : memref<3x24x24xbf16, #tpu.memory_space<vmem>>, vector<1x24x24xbf16>
    %29 = vector.shape_cast %28 : vector<1x24x24xbf16> to vector<24x24xbf16>
    %cst_26 = arith.constant dense<0.000000e+00> : vector<256x24xf32>
    %30 = tpu.matmul %27, %29, %cst_26 {dimension_numbers = #tpu.dot_dimension_numbers<[1], [0], [0], [1], [0, 0, 1, 1], [], []>} : vector<256x24xbf16>, vector<24x24xbf16>, vector<256x24xf32> -> vector<256x24xf32>
    %c0_27 = arith.constant 0 : index
    %c0_28 = arith.constant 0 : index
    %c0_29 = arith.constant 0 : index
    %31 = vector.load %arg9[%c0_27, %c0_28, %c0_29] : memref<3x1x24xf32, #tpu.memory_space<vmem>>, vector<1x1x24xf32>
    %32 = vector.shape_cast %31 : vector<1x1x24xf32> to vector<1x24xf32>
    %33 = vector.broadcast %32 : vector<1x24xf32> to vector<256x24xf32>
    %34 = arith.addf %30, %33 : vector<256x24xf32>
    %35 = arith.truncf %17 : vector<256x24xf32> to vector<256x24xbf16>
    %c1_30 = arith.constant 1 : index
    %c0_31 = arith.constant 0 : index
    %c0_32 = arith.constant 0 : index
    %36 = vector.load %arg8[%c1_30, %c0_31, %c0_32] : memref<3x24x24xbf16, #tpu.memory_space<vmem>>, vector<1x24x24xbf16>
    %37 = vector.shape_cast %36 : vector<1x24x24xbf16> to vector<24x24xbf16>
    %cst_33 = arith.constant dense<0.000000e+00> : vector<256x24xf32>
    %38 = tpu.matmul %35, %37, %cst_33 {dimension_numbers = #tpu.dot_dimension_numbers<[1], [0], [0], [1], [0, 0, 1, 1], [], []>} : vector<256x24xbf16>, vector<24x24xbf16>, vector<256x24xf32> -> vector<256x24xf32>
    %c1_34 = arith.constant 1 : index
    %c0_35 = arith.constant 0 : index
    %c0_36 = arith.constant 0 : index
    %39 = vector.load %arg9[%c1_34, %c0_35, %c0_36] : memref<3x1x24xf32, #tpu.memory_space<vmem>>, vector<1x1x24xf32>
    %40 = vector.shape_cast %39 : vector<1x1x24xf32> to vector<1x24xf32>
    %41 = vector.broadcast %40 : vector<1x24xf32> to vector<256x24xf32>
    %42 = arith.addf %38, %41 : vector<256x24xf32>
    %43 = arith.truncf %26 : vector<256x24xf32> to vector<256x24xbf16>
    %c2_37 = arith.constant 2 : index
    %c0_38 = arith.constant 0 : index
    %c0_39 = arith.constant 0 : index
    %44 = vector.load %arg8[%c2_37, %c0_38, %c0_39] : memref<3x24x24xbf16, #tpu.memory_space<vmem>>, vector<1x24x24xbf16>
    %45 = vector.shape_cast %44 : vector<1x24x24xbf16> to vector<24x24xbf16>
    %cst_40 = arith.constant dense<0.000000e+00> : vector<256x24xf32>
    %46 = tpu.matmul %43, %45, %cst_40 {dimension_numbers = #tpu.dot_dimension_numbers<[1], [0], [0], [1], [0, 0, 1, 1], [], []>} : vector<256x24xbf16>, vector<24x24xbf16>, vector<256x24xf32> -> vector<256x24xf32>
    %c2_41 = arith.constant 2 : index
    %c0_42 = arith.constant 0 : index
    %c0_43 = arith.constant 0 : index
    %47 = vector.load %arg9[%c2_41, %c0_42, %c0_43] : memref<3x1x24xf32, #tpu.memory_space<vmem>>, vector<1x1x24xf32>
    %48 = vector.shape_cast %47 : vector<1x1x24xf32> to vector<1x24xf32>
    %49 = vector.broadcast %48 : vector<1x24xf32> to vector<256x24xf32>
    %50 = arith.addf %46, %49 : vector<256x24xf32>
    %51 = arith.maximumf %34, %42 : vector<256x24xf32>
    %52 = arith.maximumf %51, %50 : vector<256x24xf32>
    %53 = arith.subf %34, %52 : vector<256x24xf32>
    %54 = math.exp %53 : vector<256x24xf32>
    %55 = arith.subf %42, %52 : vector<256x24xf32>
    %56 = math.exp %55 : vector<256x24xf32>
    %57 = arith.subf %50, %52 : vector<256x24xf32>
    %58 = math.exp %57 : vector<256x24xf32>
    %59 = arith.addf %54, %56 : vector<256x24xf32>
    %60 = arith.addf %59, %58 : vector<256x24xf32>
    %61 = tpu.reciprocal %60 {approx = true} : vector<256x24xf32> -> vector<256x24xf32>
    %62 = arith.mulf %8, %54 : vector<256x24xf32>
    %63 = arith.mulf %17, %56 : vector<256x24xf32>
    %64 = arith.addf %62, %63 : vector<256x24xf32>
    %65 = arith.mulf %26, %58 : vector<256x24xf32>
    %66 = arith.addf %64, %65 : vector<256x24xf32>
    %67 = arith.mulf %66, %61 : vector<256x24xf32>
    %68 = arith.truncf %67 : vector<256x24xf32> to vector<256x24xbf16>
    %c0_44 = arith.constant 0 : index
    %c0_45 = arith.constant 0 : index
    %69 = vector.load %arg10[%c0_44, %c0_45] : memref<24x9xbf16, #tpu.memory_space<vmem>>, vector<24x9xbf16>
    %cst_46 = arith.constant dense<0.000000e+00> : vector<256x9xf32>
    %70 = tpu.matmul %68, %69, %cst_46 {dimension_numbers = #tpu.dot_dimension_numbers<[1], [0], [0], [1], [0, 0, 1, 1], [], []>} : vector<256x24xbf16>, vector<24x9xbf16>, vector<256x9xf32> -> vector<256x9xf32>
    %c0_47 = arith.constant 0 : index
    %c0_48 = arith.constant 0 : index
    %71 = vector.load %arg11[%c0_47, %c0_48] : memref<1x9xf32, #tpu.memory_space<vmem>>, vector<1x9xf32>
    %72 = vector.broadcast %71 : vector<1x9xf32> to vector<256x9xf32>
    %73 = arith.addf %70, %72 : vector<256x9xf32>
    %c0_49 = arith.constant 0 : index
    %c0_50 = arith.constant 0 : index
    %74 = vector.load %arg12[%c0_49, %c0_50] : memref<256x9xf32, #tpu.memory_space<vmem>>, vector<256x9xf32>
    tpu.vector_store %arg12[%c0_49, %c0_50], %73 {strides = array<i32>} : memref<256x9xf32, #tpu.memory_space<vmem>>, vector<256x9xf32>,
    return
  }
  func.func @transform_0(%arg0: i32) -> (i32, i32) {
    %c0_i32 = arith.constant 0 : i32
    %c0_i32_0 = arith.constant 0 : i32
    return %arg0, %c0_i32 : i32, i32
  }
  func.func @transform_1(%arg0: i32) -> (i32, i32) {
    %c0_i32 = arith.constant 0 : i32
    %c0_i32_0 = arith.constant 0 : i32
    return %arg0, %c0_i32 : i32, i32
  }
  func.func @transform_2(%arg0: i32) -> (i32, i32) {
    %c0_i32 = arith.constant 0 : i32
    %c0_i32_0 = arith.constant 0 : i32
    return %arg0, %c0_i32 : i32, i32
  }
  func.func @transform_3(%arg0: i32) -> (i32, i32) {
    %c0_i32 = arith.constant 0 : i32
    %c0_i32_0 = arith.constant 0 : i32
    %c0_i32_1 = arith.constant 0 : i32
    return %c0_i32, %c0_i32_0 : i32, i32
  }
  func.func @transform_4(%arg0: i32) -> (i32, i32) {
    %c0_i32 = arith.constant 0 : i32
    %c0_i32_0 = arith.constant 0 : i32
    %c0_i32_1 = arith.constant 0 : i32
    return %c0_i32, %c0_i32_0 : i32, i32
  }
  func.func @transform_5(%arg0: i32) -> (i32, i32) {
    %c0_i32 = arith.constant 0 : i32
    %c0_i32_0 = arith.constant 0 : i32
    %c0_i32_1 = arith.constant 0 : i32
    return %c0_i32, %c0_i32_0 : i32, i32
  }
  func.func @transform_6(%arg0: i32) -> (i32, i32, i32) {
    %c0_i32 = arith.constant 0 : i32
    %c0_i32_0 = arith.constant 0 : i32
    %c0_i32_1 = arith.constant 0 : i32
    %c0_i32_2 = arith.constant 0 : i32
    return %c0_i32, %c0_i32_0, %c0_i32_1 : i32, i32, i32
  }
  func.func @transform_7(%arg0: i32) -> (i32, i32, i32) {
    %c0_i32 = arith.constant 0 : i32
    %c0_i32_0 = arith.constant 0 : i32
    %c0_i32_1 = arith.constant 0 : i32
    %c0_i32_2 = arith.constant 0 : i32
    return %c0_i32, %c0_i32_0, %c0_i32_1 : i32, i32, i32
  }
  func.func @transform_8(%arg0: i32) -> (i32, i32, i32) {
    %c0_i32 = arith.constant 0 : i32
    %c0_i32_0 = arith.constant 0 : i32
    %c0_i32_1 = arith.constant 0 : i32
    %c0_i32_2 = arith.constant 0 : i32
    return %c0_i32, %c0_i32_0, %c0_i32_1 : i32, i32, i32
  }
  func.func @transform_9(%arg0: i32) -> (i32, i32) {
    %c0_i32 = arith.constant 0 : i32
    %c0_i32_0 = arith.constant 0 : i32
    %c0_i32_1 = arith.constant 0 : i32
    return %c0_i32, %c0_i32_0 : i32, i32
  }
  func.func @transform_10(%arg0: i32) -> (i32, i32) {
    %c0_i32 = arith.constant 0 : i32
    %c0_i32_0 = arith.constant 0 : i32
    %c0_i32_1 = arith.constant 0 : i32
    return %c0_i32, %c0_i32_0 : i32, i32
  }
  func.func @transform_11(%arg0: i32) -> (i32, i32) {
    %c0_i32 = arith.constant 0 : i32
    %c0_i32_0 = arith.constant 0 : i32
    return %arg0, %c0_i32 : i32, i32
  }
}

</mosaic_0001>

<llo_original>
// kernel: hovernet_fwd.8
$region0: #{hovernet_fwd.8}
  #allocation0 [shape = 'u32[]', space=smem, size = 0x4, offset = 0x4, fixed_abs, tag = 'smem constant byte address 0x4 - core index']
  #allocation1 [shape = 'u32[72,128]{1,0:T(1,128)}', space=vmem, size = 0x9000, scoped, tag = 'internal scratch']
  %s0 = inlined_call_operand.vmem [shape: bf16[2,18,18,3], index: 0, kind: input, shape index: {}, may-alias: {0,1,2}]
  %s1 = inlined_call_operand.vmem [shape: bf16[2,18,18,3], index: 1, kind: input, shape index: {}, may-alias: {0,1,2}]
  %s2 = inlined_call_operand.vmem [shape: bf16[2,18,18,3], index: 2, kind: input, shape index: {}, may-alias: {0,1,2}]
  %s3 = inlined_call_operand.vmem [shape: bf16[9,3,8], index: 3, kind: input, shape index: {}]
  %s4 = inlined_call_operand.vmem [shape: f32[1,8], index: 4, kind: input, shape index: {}]
  %s5 = inlined_call_operand.vmem [shape: bf16[2,16,16,8], index: 5, kind: output, shape index: {}]
  %s6 = sld [smem:[#allocation0]]
  $region53: #{hovernet_fwd.8} parent=0
    _
  %s8 = ssub.s32 1, %s6
  %s9 = scalar_select 0, %s8, %s6
  loop: start=0, step=1, limit=34
  $region2: #{hovernet_fwd.8} parent=0 // loop_pre_header
    _
  $region3: #{hovernet_fwd.8} parent=0 // loop_header
    %s11 = sphi 0, %s15
    %p12 = scmp.ge.s32.totalorder %s11, 34
    %s18 = sphi 0, %s30
    %s19 = sphi 0, %s26
    %s20 = sphi 0, %s18
    %s21 = sphi 0, %s19
    %s22 = sphi 0, %s20
    %s23 = sphi 0, %s21
    %s35 = sphi 0, %s37
    %s38 = sphi 0, %s35
    %s39 = sphi 0, %s38
    %s55 = sphi 0, %s39
    %s65 = sphi 0, %s67
    %s68 = sphi 0, %s65
    %s69 = sphi 0, %s68
    %s85 = sphi 0, %s69
    %s95 = sphi 0, %s97
    %s98 = sphi 0, %s95
    %s99 = sphi 0, %s98
    %s115 = sphi 0, %s99
    %s119 = sphi 0, %s119
    %s121 = sphi 0, %s119
    %s122 = sphi 0, %s121
    %s136 = sphi 0, %s122
    %s140 = sphi 0, %s140
    %s142 = sphi 0, %s140
    %s143 = sphi 0, %s142
    %s157 = sphi 0, %s143
    %s165 = sphi 0, %s167
    %s168 = sphi 0, %s165
    %s169 = sphi 0, %s168
    %s185 = sphi 0, %s169
  $region4: #{hovernet_fwd.8} parent=0 // loop_header_branch
    %14 = sbr.rel (%p12) target = $region8
  $region5: #{hovernet_fwd.8} parent=0 // loop_body
    %s16 = ssub.s32 %s11, 1
    %s17 = ssub.s32 %s11, 2
    %s24 = sadd.s32 1, %s19
    %p25 = scmp.ge.s32.totalorder %s24, 16
    %s26 = scalar_select %p25, 0, %s24
    %s27 = sadd.s32 1, %s18
    %s28 = scalar_select %p25, %s27, %s18
    %p29 = scmp.ge.s32.totalorder %s28, 2
    %s30 = scalar_select %p29, 0, %s28
    %s31 = ssub.s32 %s18, %s30
    %s32 = ssub.s32 %s19, %s26
    %s33 = sor.u32 %s31, %s32
    %p34 = scmp.eq.s32.totalorder %s33, 0
    %s36 = sadd.s32 %s35, 1
    %s37 = scalar_select %p34, %s35, %s36
    %p40 = pneg %p34
    %p41 = scmp.eq.s32.totalorder %s11, 31
    %p42 = por %p40, %p41
    %p43 = scmp.ne.s32.totalorder %s35, %s38
    %p44 = scmp.eq.s32.totalorder %s11, 0
    %p45 = por %p43, %p44
    %p46 = scmp.ne.s32.totalorder %s35, %s38
    %p47 = scmp.eq.s32.totalorder %s16, 31
    %p48 = por %p46, %p47
    %p49 = scmp.ne.s32.totalorder %s38, %s39
    %p50 = scmp.eq.s32.totalorder %s16, 0
    %p51 = por %p49, %p50
    %p52 = scmp.ne.s32.totalorder %s38, %s39
    %p53 = scmp.eq.s32.totalorder %s17, 31
    %p54 = por %p52, %p53
    %p56 = scmp.ne.s32.totalorder %s39, %s55
    %p57 = scmp.eq.s32.totalorder %s17, 0
    %p58 = por %p56, %p57
    %s59 = sadd.s32 %s19, 1
    %s60 = sadd.s32 %s26, 1
    %s61 = ssub.s32 %s18, %s30
    %s62 = ssub.s32 %s59, %s60
    %s63 = sor.u32 %s61, %s62
    %p64 = scmp.eq.s32.totalorder %s63, 0
    %s66 = sadd.s32 %s65, 1
    %s67 = scalar_select %p64, %s65, %s66
    %p70 = pneg %p64
    %p71 = scmp.eq.s32.totalorder %s11, 31
    %p72 = por %p70, %p71
    %p73 = scmp.ne.s32.totalorder %s65, %s68
    %p74 = scmp.eq.s32.totalorder %s11, 0
    %p75 = por %p73, %p74
    %p76 = scmp.ne.s32.totalorder %s65, %s68
    %p77 = scmp.eq.s32.totalorder %s16, 31
    %p78 = por %p76, %p77
    %p79 = scmp.ne.s32.totalorder %s68, %s69
    %p80 = scmp.eq.s32.totalorder %s16, 0
    %p81 = por %p79, %p80
    %p82 = scmp.ne.s32.totalorder %s68, %s69
    %p83 = scmp.eq.s32.totalorder %s17, 31
    %p84 = por %p82, %p83
    %p86 = scmp.ne.s32.totalorder %s69, %s85
    %p87 = scmp.eq.s32.totalorder %s17, 0
    %p88 = por %p86, %p87
    %s89 = sadd.s32 %s19, 2
    %s90 = sadd.s32 %s26, 2
    %s91 = ssub.s32 %s18, %s30
    %s92 = ssub.s32 %s89, %s90
    %s93 = sor.u32 %s91, %s92
    %p94 = scmp.eq.s32.totalorder %s93, 0
    %s96 = sadd.s32 %s95, 1
    %s97 = scalar_select %p94, %s95, %s96
    %p100 = pneg %p94
    %p101 = scmp.eq.s32.totalorder %s11, 31
    %p102 = por %p100, %p101
    %p103 = scmp.ne.s32.totalorder %s95, %s98
    %p104 = scmp.eq.s32.totalorder %s11, 0
    %p105 = por %p103, %p104
    %p106 = scmp.ne.s32.totalorder %s95, %s98
    %p107 = scmp.eq.s32.totalorder %s16, 31
    %p108 = por %p106, %p107
    %p109 = scmp.ne.s32.totalorder %s98, %s99
    %p110 = scmp.eq.s32.totalorder %s16, 0
    %p111 = por %p109, %p110
    %p112 = scmp.ne.s32.totalorder %s98, %s99
    %p113 = scmp.eq.s32.totalorder %s17, 31
    %p114 = por %p112, %p113
    %p116 = scmp.ne.s32.totalorder %s99, %s115
    %p117 = scmp.eq.s32.totalorder %s17, 0
    %p118 = por %p116, %p117
    %s120 = sadd.s32 %s119, 1
    %p123 = scmp.eq.s32.totalorder %s11, 31
    %p124 = scmp.ne.s32.totalorder %s119, %s121
    %p125 = scmp.eq.s32.totalorder %s11, 0
    %p126 = por %p124, %p125
    %p127 = scmp.ne.s32.totalorder %s119, %s121
    %p128 = scmp.eq.s32.totalorder %s16, 31
    %p129 = por %p127, %p128
    %p130 = scmp.ne.s32.totalorder %s121, %s122
    %p131 = scmp.eq.s32.totalorder %s16, 0
    %p132 = por %p130, %p131
    %p133 = scmp.ne.s32.totalorder %s121, %s122
    %p134 = scmp.eq.s32.totalorder %s17, 31
    %p135 = por %p133, %p134
    %p137 = scmp.ne.s32.totalorder %s122, %s136
    %p138 = scmp.eq.s32.totalorder %s17, 0
    %p139 = por %p137, %p138
    %s141 = sadd.s32 %s140, 1
    %p144 = scmp.eq.s32.totalorder %s11, 31
    %p145 = scmp.ne.s32.totalorder %s140, %s142
    %p146 = scmp.eq.s32.totalorder %s11, 0
    %p147 = por %p145, %p146
    %p148 = scmp.ne.s32.totalorder %s140, %s142
    %p149 = scmp.eq.s32.totalorder %s16, 31
    %p150 = por %p148, %p149
    %p151 = scmp.ne.s32.totalorder %s142, %s143
    %p152 = scmp.eq.s32.totalorder %s16, 0
    %p153 = por %p151, %p152
    %p154 = scmp.ne.s32.totalorder %s142, %s143
    %p155 = scmp.eq.s32.totalorder %s17, 31
    %p156 = por %p154, %p155
    %p158 = scmp.ne.s32.totalorder %s143, %s157
    %p159 = scmp.eq.s32.totalorder %s17, 0
    %p160 = por %p158, %p159
    %s161 = ssub.s32 %s18, %s30
    %s162 = ssub.s32 %s19, %s26
    %s163 = sor.u32 %s161, %s162
    %p164 = scmp.eq.s32.totalorder %s163, 0
    %s166 = sadd.s32 %s165, 1
    %s167 = scalar_select %p164, %s165, %s166
    %p170 = pneg %p164
    %p171 = scmp.eq.s32.totalorder %s11, 31
    %p172 = por %p170, %p171
    %p173 = scmp.ne.s32.totalorder %s165, %s168
    %p174 = scmp.eq.s32.totalorder %s11, 0
    %p175 = por %p173, %p174
    %p176 = scmp.ne.s32.totalorder %s165, %s168
    %p177 = scmp.eq.s32.totalorder %s16, 31
    %p178 = por %p176, %p177
    %p179 = scmp.ne.s32.totalorder %s168, %s169
    %p180 = scmp.eq.s32.totalorder %s16, 0
    %p181 = por %p179, %p180
    %p182 = scmp.ne.s32.totalorder %s168, %s169
    %p183 = scmp.eq.s32.totalorder %s17, 31
    %p184 = por %p182, %p183
    %p186 = scmp.ne.s32.totalorder %s169, %s185
    %p187 = scmp.eq.s32.totalorder %s17, 0
    %p188 = por %p186, %p187
    %p189 = scmp.le.s32.totalorder 1, %s11
    %p190 = scmp.lt.s32.totalorder %s11, 33
    %p191 = pnand %p189, %p190
    %p192 = pneg %p191
    // Predicated region
    $region9: #{hovernet_fwd.8} parent=5 // pred_check
      _
    $region10: #{hovernet_fwd.8} parent=5 // pred_check_branch
      %194 = sbr.rel (%p191) target = $region12
    $region11: #{hovernet_fwd.8} parent=5 // pred_region
      %s195 = ssub.s32 %s11, 1
      // Predicated region
      $region13: #{hovernet_fwd.8} parent=11 // pred_check
        %p196 = pneg %p132
      $region14: #{hovernet_fwd.8} parent=11 // pred_check_branch
        %198 = sbr.rel (%p196) target = $region16
      $region15: #{hovernet_fwd.8} parent=11 // pred_region
        _
      $region16: #{hovernet_fwd.8} parent=11 // pred_fallthru
        _
      // Predicated region
      $region17: #{hovernet_fwd.8} parent=11 // pred_check
        %p199 = pneg %p153
      $region18: #{hovernet_fwd.8} parent=11 // pred_check_branch
        %201 = sbr.rel (%p199) target = $region20
      $region19: #{hovernet_fwd.8} parent=11 // pred_region
        _
      $region20: #{hovernet_fwd.8} parent=11 // pred_fallthru
        _
    $region12: #{hovernet_fwd.8} parent=5 // pred_fallthru
      _
    %p202 = scmp.lt.s32.totalorder %s11, 32
    // Predicated region
    $region21: #{hovernet_fwd.8} parent=5 // pred_check
      %p203 = pneg %p202
    $region22: #{hovernet_fwd.8} parent=5 // pred_check_branch
      %205 = sbr.rel (%p203) target = $region24
    $region23: #{hovernet_fwd.8} parent=5 // pred_region
      // Predicated region
      $region25: #{hovernet_fwd.8} parent=23 // pred_check
        %p206 = pneg %p45
      $region26: #{hovernet_fwd.8} parent=23 // pred_check_branch
        %208 = sbr.rel (%p206) target = $region28
      $region27: #{hovernet_fwd.8} parent=23 // pred_region
        %p209 = scmp.lt.s32.totalorder %s18, 1
        %s210 = scalar_select %p209, %s18, 1
        %p211 = scmp.lt.s32.totalorder %s19, 17
        %s212 = scalar_select %p211, %s19, 17
        %s213 = smul.addr %s212, 3
        %s214 = smul.addr %s210, 54
        %s215 = sadd.s32 %s213, %s214
        %s216 = smul.addr %s215, 4
        %s217 = scalar_lea.vmem %s0, %s216
      $region28: #{hovernet_fwd.8} parent=23 // pred_fallthru
        _
      // Predicated region
      $region29: #{hovernet_fwd.8} parent=23 // pred_check
        %p218 = pneg %p75
      $region30: #{hovernet_fwd.8} parent=23 // pred_check_branch
        %220 = sbr.rel (%p218) target = $region32
      $region31: #{hovernet_fwd.8} parent=23 // pred_region
        %s221 = sadd.s32 %s19, 1
        %p222 = scmp.lt.s32.totalorder %s18, 1
        %s223 = scalar_select %p222, %s18, 1
        %p224 = scmp.lt.s32.totalorder %s221, 17
        %s225 = scalar_select %p224, %s221, 17
        %s226 = smul.addr %s225, 3
        %s227 = smul.addr %s223, 54
        %s228 = sadd.s32 %s226, %s227
        %s229 = smul.addr %s228, 4
        %s230 = scalar_lea.vmem %s1, %s229
        %s231 = sadd.s32 %s19, 1
      $region32: #{hovernet_fwd.8} parent=23 // pred_fallthru
        _
      // Predicated region
      $region33: #{hovernet_fwd.8} parent=23 // pred_check
        %p232 = pneg %p105
      $region34: #{hovernet_fwd.8} parent=23 // pred_check_branch
        %234 = sbr.rel (%p232) target = $region36
      $region35: #{hovernet_fwd.8} parent=23 // pred_region
        %s235 = sadd.s32 %s19, 2
        %p236 = scmp.lt.s32.totalorder %s18, 1
        %s237 = scalar_select %p236, %s18, 1
        %p238 = scmp.lt.s32.totalorder %s235, 17
        %s239 = scalar_select %p238, %s235, 17
        %s240 = smul.addr %s239, 3
        %s241 = smul.addr %s237, 54
        %s242 = sadd.s32 %s240, %s241
        %s243 = smul.addr %s242, 4
        %s244 = scalar_lea.vmem %s2, %s243
        %s245 = sadd.s32 %s19, 2
      $region36: #{hovernet_fwd.8} parent=23 // pred_fallthru
        _
    $region24: #{hovernet_fwd.8} parent=5 // pred_fallthru
      _
    %p246 = scmp.le.s32.totalorder 1, %s11
    %p247 = scmp.lt.s32.totalorder %s11, 33
    %p248 = pnand %p246, %p247
    %p249 = pneg %p248
    // Predicated region
    $region37: #{hovernet_fwd.8} parent=5 // pred_check
      _
    $region38: #{hovernet_fwd.8} parent=5 // pred_check_branch
      %251 = sbr.rel (%p248) target = $region40
    $region39: #{hovernet_fwd.8} parent=5 // pred_region
      %s252 = ssub.s32 %s11, 1
      %p253 = scmp.lt.s32.totalorder %s20, 1
      %s254 = scalar_select %p253, %s20, 1
      %p255 = scmp.lt.s32.totalorder %s21, 17
      %s256 = scalar_select %p255, %s21, 17
      %s257 = smul.addr %s256, 3
      %s258 = smul.addr %s254, 54
      %s259 = sadd.s32 %s257, %s258
      %s260 = smul.addr %s259, 4
      %s261 = scalar_lea.vmem %s0, %s260
      %p262 = pneg %p51
      %p263 = pneg %p48
      %s264 = sadd.s32 %s21, 1
      %p265 = scmp.lt.s32.totalorder %s20, 1
      %s266 = scalar_select %p265, %s20, 1
      %p267 = scmp.lt.s32.totalorder %s264, 17
      %s268 = scalar_select %p267, %s264, 17
      %s269 = smul.addr %s268, 3
      %s270 = smul.addr %s266, 54
      %s271 = sadd.s32 %s269, %s270
      %s272 = smul.addr %s271, 4
      %s273 = scalar_lea.vmem %s1, %s272
      %p274 = pneg %p81
      %p275 = pneg %p78
      %s276 = sadd.s32 %s21, 2
      %p277 = scmp.lt.s32.totalorder %s20, 1
      %s278 = scalar_select %p277, %s20, 1
      %p279 = scmp.lt.s32.totalorder %s276, 17
      %s280 = scalar_select %p279, %s276, 17
      %s281 = smul.addr %s280, 3
      %s282 = smul.addr %s278, 54
      %s283 = sadd.s32 %s281, %s282
      %s284 = smul.addr %s283, 4
      %s285 = scalar_lea.vmem %s2, %s284
      %p286 = pneg %p111
      %p287 = pneg %p108
      %p288 = pneg %p132
      %p289 = pneg %p129
      %p290 = pneg %p153
      %p291 = pneg %p150
      %p292 = pneg %p181
      %p293 = pneg %p178
      %p294 = scmp.lt.s32.totalorder %s20, 1
      %s295 = scalar_select %p294, %s20, 1
      %p296 = scmp.lt.s32.totalorder %s21, 15
      %s297 = scalar_select %p296, %s21, 15
      %s298 = smul.addr %s297, 2
      %s299 = smul.addr %s295, 32
      %s300 = sadd.s32 %s298, %s299
      %s301 = smul.addr %s300, 4
      %s302 = scalar_lea.vmem %s5, %s301
      %p303 = scmp.lt.s32.totalorder %s20, 1
      %s304 = scalar_select %p303, %s20, 1
      %p305 = scmp.lt.s32.totalorder %s21, 17
      %s306 = scalar_select %p305, %s21, 17
      %s307 = smul.addr %s306, 3
      %s308 = smul.addr %s304, 54
      %s309 = sadd.s32 %s307, %s308
      %s310 = smul.addr %s309, 4
      %s311 = scalar_lea.vmem %s0, %s310
      %s312 = sadd.s32 %s21, 1
      %p313 = scmp.lt.s32.totalorder %s20, 1
      %s314 = scalar_select %p313, %s20, 1
      %p315 = scmp.lt.s32.totalorder %s312, 17
      %s316 = scalar_select %p315, %s312, 17
      %s317 = smul.addr %s316, 3
      %s318 = smul.addr %s314, 54
      %s319 = sadd.s32 %s317, %s318
      %s320 = smul.addr %s319, 4
      %s321 = scalar_lea.vmem %s1, %s320
      %s322 = sadd.s32 %s21, 1
      %s323 = sadd.s32 %s21, 2
      %p324 = scmp.lt.s32.totalorder %s20, 1
      %s325 = scalar_select %p324, %s20, 1
      %p326 = scmp.lt.s32.totalorder %s323, 17
      %s327 = scalar_select %p326, %s323, 17
      %s328 = smul.addr %s327, 3
      %s329 = smul.addr %s325, 54
      %s330 = sadd.s32 %s328, %s329
      %s331 = smul.addr %s330, 4
      %s332 = scalar_lea.vmem %s2, %s331
      %s333 = sadd.s32 %s21, 2
      %p334 = scmp.lt.s32.totalorder %s20, 1
      %s335 = scalar_select %p334, %s20, 1
      %p336 = scmp.lt.s32.totalorder %s21, 15
      %s337 = scalar_select %p336, %s21, 15
      %s338 = smul.addr %s337, 2
      %s339 = smul.addr %s335, 32
      %s340 = sadd.s32 %s338, %s339
      %s341 = smul.addr %s340, 4
      %s342 = scalar_lea.vmem %s5, %s341
      %v344 = vld [vmem:[%s311] sm:$0xf]
      %v345 = vld [vmem:[%s311 + $0x4] sm:$0xf]
      %v346 = vld [vmem:[%s311 + $0x8] sm:$0x1]
      %v347 = vld [vmem:[%s3] sm:$0x3]
      %s348 = scalar_lea.vmem %s3, 2
      %v349 = vld [vmem:[%s348] sm:$0x3]
      %v353 = vunpack.c.l.b16 %v344
      %v354 = vunpack.c.l.b16 %v345
      %v355 = vunpack.c.l.b16 %v346
      %v356 = vpack.c.b16 %v354, %v353
      %v357 = vpack.c.b16 %v355, %v355
      %vm358 = vsmask.f32 7424
      %v360 = vshrl.u32 %v356, 16
      %v362 = vshll.u32 %v356, 16
      %v364 = vrot.slane %v362, 1
      %v365 = vor.u32 %v360, %v364
      %v367 = vshll.u32 %v357, 16
      %v369 = vrot.slane %v367, 1
      %v370 = vsel %vm358, %v365, %v369
      %vm371 = vcmask 23552
      %v373 = vsel %vm371, %v370, 0
      %vm375 = vcmask 1040384
      %vm376 = vcmask 1041408
      %v377 = vsel %vm375, 4294967295, 65535
      %v378 = vsel %vm376, %v377, 0
      %v380 = vand.u32 %v349, %v378
      %382 = vmatpush.bf16.msra.mxu0 0
      %383 = vmatpush.bf16.msra.mxu0 0
      %384 = vmatpush.bf16.msra.mxu0 0
      %385 = vmatpush.bf16.msra.mxu0 0
      %386 = vmatpush.bf16.msra.mxu0 0
      %387 = vmatpush.bf16.msra.mxu0 0
      %388 = vmatpush.bf16.msra.mxu0 0
      %389 = vmatpush.bf16.msra.mxu0 %v380
      %390 = vmatmul.bf16.gmra.mxu0 %v373
      %v391 = vpop.f32.mrf.mxu0
      %v392 = vadd.f32 0.0, %v391
      %v393 = vpop.f32.mrf.mxu0
      %v394 = vadd.f32 0.0, %v393
      %395 = vdwg.mxu0
      %v396 = vsel %vm371, %v356, 0
      %v399 = vand.u32 %v347, %v378
      %401 = vmatpush.bf16.msra.mxu0 0
      %402 = vmatpush.bf16.msra.mxu0 0
      %403 = vmatpush.bf16.msra.mxu0 0
      %404 = vmatpush.bf16.msra.mxu0 0
      %405 = vmatpush.bf16.msra.mxu0 0
      %406 = vmatpush.bf16.msra.mxu0 0
      %407 = vmatpush.bf16.msra.mxu0 0
      %408 = vmatpush.bf16.msra.mxu0 %v399
      %409 = vmatmul.bf16.gmra.mxu0 %v396
      %v410 = vpop.f32.mrf.mxu0
      %v411 = vadd.f32 %v392, %v410
      %v412 = vpop.f32.mrf.mxu0
      %v413 = vadd.f32 %v394, %v412
      %414 = vdwg.mxu0
      %s415 = scalar_lea.vmem %s3, 4
      %v416 = vld [vmem:[%s415] sm:$0x3]
      %vm417 = vcmask 1046528
      %v418 = vrot.slane %v356, 1
      %v419 = vrot.slane %v357, 1
      %v420 = vsel %vm417, %v418, %v419
      %v422 = vsel %vm371, %v420, 0
      %v425 = vand.u32 %v416, %v378
      %427 = vmatpush.bf16.msra.mxu0 0
      %428 = vmatpush.bf16.msra.mxu0 0
      %429 = vmatpush.bf16.msra.mxu0 0
      %430 = vmatpush.bf16.msra.mxu0 0
      %431 = vmatpush.bf16.msra.mxu0 0
      %432 = vmatpush.bf16.msra.mxu0 0
      %433 = vmatpush.bf16.msra.mxu0 0
      %434 = vmatpush.bf16.msra.mxu0 %v425
      %435 = vmatmul.bf16.gmra.mxu0 %v422
      %v436 = vpop.f32.mrf.mxu0
      %v437 = vadd.f32 0.0, %v436
      %v438 = vpop.f32.mrf.mxu0
      %v439 = vadd.f32 0.0, %v438
      %440 = vdwg.mxu0
      %v441 = vadd.f32 %v411, %v437
      %v442 = vadd.f32 %v413, %v439
      %v443 = vld [vmem:[%s321] sm:$0xf]
      %v444 = vld [vmem:[%s321 + $0x4] sm:$0xf]
      %v445 = vld [vmem:[%s321 + $0x8] sm:$0x1]
      %s446 = scalar_lea.vmem %s3, 6
      %v447 = vld [vmem:[%s446] sm:$0x3]
      %v450 = vunpack.c.l.b16 %v443
      %v451 = vunpack.c.l.b16 %v444
      %v452 = vpack.c.b16 %v451, %v450
      %v454 = vsel %vm371, %v452, 0
      %v457 = vand.u32 %v447, %v378
      %459 = vmatpush.bf16.msra.mxu0 0
      %460 = vmatpush.bf16.msra.mxu0 0
      %461 = vmatpush.bf16.msra.mxu0 0
      %462 = vmatpush.bf16.msra.mxu0 0
      %463 = vmatpush.bf16.msra.mxu0 0
      %464 = vmatpush.bf16.msra.mxu0 0
      %465 = vmatpush.bf16.msra.mxu0 0
      %466 = vmatpush.bf16.msra.mxu0 %v457
      %467 = vmatmul.bf16.gmra.mxu0 %v454
      %v468 = vpop.f32.mrf.mxu0
      %v469 = vadd.f32 0.0, %v468
      %v470 = vpop.f32.mrf.mxu0
      %v471 = vadd.f32 0.0, %v470
      %472 = vdwg.mxu0
      %v473 = vadd.f32 %v441, %v469
      %v474 = vadd.f32 %v442, %v471
      %s475 = scalar_lea.vmem %s3, 8
      %v476 = vld [vmem:[%s475] sm:$0x3]
      %v478 = vunpack.c.l.b16 %v445
      %v479 = vpack.c.b16 %v478, %v478
      %v480 = vshrl.u32 %v452, 16
      %v482 = vshll.u32 %v452, 16
      %v484 = vrot.slane %v482, 1
      %v485 = vor.u32 %v480, %v484
      %v487 = vshll.u32 %v479, 16
      %v489 = vrot.slane %v487, 1
      %v490 = vsel %vm358, %v485, %v489
      %v492 = vsel %vm371, %v490, 0
      %v495 = vand.u32 %v476, %v378
      %497 = vmatpush.bf16.msra.mxu0 0
      %498 = vmatpush.bf16.msra.mxu0 0
      %499 = vmatpush.bf16.msra.mxu0 0
      %500 = vmatpush.bf16.msra.mxu0 0
      %501 = vmatpush.bf16.msra.mxu0 0
      %502 = vmatpush.bf16.msra.mxu0 0
      %503 = vmatpush.bf16.msra.mxu0 0
      %504 = vmatpush.bf16.msra.mxu0 %v495
      %505 = vmatmul.bf16.gmra.mxu0 %v492
      %v506 = vpop.f32.mrf.mxu0
      %v507 = vadd.f32 0.0, %v506
      %v508 = vpop.f32.mrf.mxu0
      %v509 = vadd.f32 0.0, %v508
      %510 = vdwg.mxu0
      %v511 = vadd.f32 %v473, %v507
      %v512 = vadd.f32 %v474, %v509
      %s513 = scalar_lea.vmem %s3, 10
      %v514 = vld [vmem:[%s513] sm:$0x3]
      %v515 = vrot.slane %v452, 1
      %v516 = vrot.slane %v479, 1
      %v517 = vsel %vm417, %v515, %v516
      %v519 = vsel %vm371, %v517, 0
      %v522 = vand.u32 %v514, %v378
      %524 = vmatpush.bf16.msra.mxu0 0
      %525 = vmatpush.bf16.msra.mxu0 0
      %526 = vmatpush.bf16.msra.mxu0 0
      %527 = vmatpush.bf16.msra.mxu0 0
      %528 = vmatpush.bf16.msra.mxu0 0
      %529 = vmatpush.bf16.msra.mxu0 0
      %530 = vmatpush.bf16.msra.mxu0 0
      %531 = vmatpush.bf16.msra.mxu0 %v522
      %532 = vmatmul.bf16.gmra.mxu0 %v519
      %v533 = vpop.f32.mrf.mxu0
      %v534 = vadd.f32 0.0, %v533
      %v535 = vpop.f32.mrf.mxu0
      %v536 = vadd.f32 0.0, %v535
      %537 = vdwg.mxu0
      %v538 = vadd.f32 %v511, %v534
      %v539 = vadd.f32 %v512, %v536
      %v540 = vld [vmem:[%s332] sm:$0xf]
      %v541 = vld [vmem:[%s332 + $0x4] sm:$0xf]
      %v542 = vld [vmem:[%s332 + $0x8] sm:$0x1]
      %s543 = scalar_lea.vmem %s3, 12
      %v544 = vld [vmem:[%s543] sm:$0x3]
      %v547 = vunpack.c.l.b16 %v540
      %v548 = vunpack.c.l.b16 %v541
      %v549 = vpack.c.b16 %v548, %v547
      %v551 = vsel %vm371, %v549, 0
      %v554 = vand.u32 %v544, %v378
      %556 = vmatpush.bf16.msra.mxu0 0
      %557 = vmatpush.bf16.msra.mxu0 0
      %558 = vmatpush.bf16.msra.mxu0 0
      %559 = vmatpush.bf16.msra.mxu0 0
      %560 = vmatpush.bf16.msra.mxu0 0
      %561 = vmatpush.bf16.msra.mxu0 0
      %562 = vmatpush.bf16.msra.mxu0 0
      %563 = vmatpush.bf16.msra.mxu0 %v554
      %564 = vmatmul.bf16.gmra.mxu0 %v551
      %v565 = vpop.f32.mrf.mxu0
      %v566 = vadd.f32 0.0, %v565
      %v567 = vpop.f32.mrf.mxu0
      %v568 = vadd.f32 0.0, %v567
      %569 = vdwg.mxu0
      %v570 = vadd.f32 %v538, %v566
      %v571 = vadd.f32 %v539, %v568
      %s572 = scalar_lea.vmem %s3, 14
      %v573 = vld [vmem:[%s572] sm:$0x3]
      %v575 = vunpack.c.l.b16 %v542
      %v576 = vpack.c.b16 %v575, %v575
      %v577 = vshrl.u32 %v549, 16
      %v579 = vshll.u32 %v549, 16
      %v581 = vrot.slane %v579, 1
      %v582 = vor.u32 %v577, %v581
      %v584 = vshll.u32 %v576, 16
      %v586 = vrot.slane %v584, 1
      %v587 = vsel %vm358, %v582, %v586
      %v589 = vsel %vm371, %v587, 0
      %v592 = vand.u32 %v573, %v378
      %594 = vmatpush.bf16.msra.mxu0 0
      %595 = vmatpush.bf16.msra.mxu0 0
      %596 = vmatpush.bf16.msra.mxu0 0
      %597 = vmatpush.bf16.msra.mxu0 0
      %598 = vmatpush.bf16.msra.mxu0 0
      %599 = vmatpush.bf16.msra.mxu0 0
      %600 = vmatpush.bf16.msra.mxu0 0
      %601 = vmatpush.bf16.msra.mxu0 %v592
      %602 = vmatmul.bf16.gmra.mxu0 %v589
      %v603 = vpop.f32.mrf.mxu0
      %v604 = vadd.f32 0.0, %v603
      %v605 = vpop.f32.mrf.mxu0
      %v606 = vadd.f32 0.0, %v605
      %607 = vdwg.mxu0
      %v608 = vadd.f32 %v570, %v604
      %v609 = vadd.f32 %v571, %v606
      %s610 = scalar_lea.vmem %s3, 16
      %v611 = vld [vmem:[%s610] sm:$0x3]
      %v612 = vrot.slane %v549, 1
      %v613 = vrot.slane %v576, 1
      %v614 = vsel %vm417, %v612, %v613
      %v616 = vsel %vm371, %v614, 0
      %v619 = vand.u32 %v611, %v378
      %621 = vmatpush.bf16.msra.mxu0 0
      %622 = vmatpush.bf16.msra.mxu0 0
      %623 = vmatpush.bf16.msra.mxu0 0
      %624 = vmatpush.bf16.msra.mxu0 0
      %625 = vmatpush.bf16.msra.mxu0 0
      %626 = vmatpush.bf16.msra.mxu0 0
      %627 = vmatpush.bf16.msra.mxu0 0
      %628 = vmatpush.bf16.msra.mxu0 %v619
      %629 = vmatmul.bf16.gmra.mxu0 %v616
      %v630 = vpop.f32.mrf.mxu0
      %v631 = vadd.f32 0.0, %v630
      %v632 = vpop.f32.mrf.mxu0
      %v633 = vadd.f32 0.0, %v632
      %634 = vdwg.mxu0
      %v635 = vadd.f32 %v608, %v631
      %v636 = vadd.f32 %v609, %v633
      %v637 = vld [vmem:[%s4] sm:$0x1]
      %v639 = vperm.slane %v637, 0
      %v641 = vadd.f32 %v635, %v639
      %v642 = vadd.f32 %v636, %v639
      %v643 = vmax.f32 %v641, 0.0
      %v644 = vmax.f32 %v642, 0.0
      %v645 = vpack.c.bf16 %v643, %v643
      %v646 = vpack.c.bf16 %v644, %v644
      %vm647 = vcmask 60416
      %648 = vst.msk [vmem:[%s342] sm:$0xf] %vm647, %v645
      %649 = vst.msk [vmem:[%s342 + $0x4] sm:$0xf] %vm647, %v646
      %p650 = scmp.lt.s32.totalorder %s20, 1
      %s651 = scalar_select %p650, %s20, 1
      %p652 = scmp.lt.s32.totalorder %s21, 15
      %s653 = scalar_select %p652, %s21, 15
      %s654 = smul.addr %s653, 2
      %s655 = smul.addr %s651, 32
      %s656 = sadd.s32 %s654, %s655
      %s657 = smul.addr %s656, 4
      %s658 = scalar_lea.vmem %s5, %s657
      // Predicated region
      $region41: #{hovernet_fwd.8} parent=39 // pred_check
        %p659 = pneg %p178
      $region42: #{hovernet_fwd.8} parent=39 // pred_check_branch
        %661 = sbr.rel (%p659) target = $region44
      $region43: #{hovernet_fwd.8} parent=39 // pred_region
        _
      $region44: #{hovernet_fwd.8} parent=39 // pred_fallthru
        _
    $region40: #{hovernet_fwd.8} parent=5 // pred_fallthru
      _
    %p662 = scmp.le.s32.totalorder 2, %s11
    // Predicated region
    $region45: #{hovernet_fwd.8} parent=5 // pred_check
      %p663 = pneg %p662
    $region46: #{hovernet_fwd.8} parent=5 // pred_check_branch
      %665 = sbr.rel (%p663) target = $region48
    $region47: #{hovernet_fwd.8} parent=5 // pred_region
      %s666 = ssub.s32 %s11, 2
      // Predicated region
      $region49: #{hovernet_fwd.8} parent=47 // pred_check
        %p667 = pneg %p184
      $region50: #{hovernet_fwd.8} parent=47 // pred_check_branch
        %669 = sbr.rel (%p667) target = $region52
      $region51: #{hovernet_fwd.8} parent=47 // pred_region
        %p670 = scmp.lt.s32.totalorder %s22, 1
        %s671 = scalar_select %p670, %s22, 1
        %p672 = scmp.lt.s32.totalorder %s23, 15
        %s673 = scalar_select %p672, %s23, 15
        %s674 = smul.addr %s673, 2
        %s675 = smul.addr %s671, 32
        %s676 = sadd.s32 %s674, %s675
        %s677 = smul.addr %s676, 4
        %s678 = scalar_lea.vmem %s5, %s677
      $region52: #{hovernet_fwd.8} parent=47 // pred_fallthru
        _
    $region48: #{hovernet_fwd.8} parent=5 // pred_fallthru
      _
  $region6: #{hovernet_fwd.8} parent=0 // loop_footer
    %s15 = sadd.s32 1, %s11
  $region7: #{hovernet_fwd.8} parent=0 // loop_footer_branch
    %10 = sbr.rel target = $region3
  $region8: #{hovernet_fwd.8} parent=0 // loop_exit
    _

// kernel: hovernet_fwd.9
$region0: #{hovernet_fwd.9}
  #allocation0 [shape = 'u32[]', space=smem, size = 0x4, offset = 0x4, fixed_abs, tag = 'smem constant byte address 0x4 - core index']
  #allocation1 [shape = 'u32[72,128]{1,0:T(1,128)}', space=vmem, size = 0x9000, scoped, tag = 'internal scratch']
  %s0 = inlined_call_operand.vmem [shape: bf16[2,10,10,8], index: 0, kind: input, shape index: {}, may-alias: {0,1,2}]
  %s1 = inlined_call_operand.vmem [shape: bf16[2,10,10,8], index: 1, kind: input, shape index: {}, may-alias: {0,1,2}]
  %s2 = inlined_call_operand.vmem [shape: bf16[2,10,10,8], index: 2, kind: input, shape index: {}, may-alias: {0,1,2}]
  %s3 = inlined_call_operand.vmem [shape: bf16[9,8,16], index: 3, kind: input, shape index: {}]
  %s4 = inlined_call_operand.vmem [shape: f32[1,16], index: 4, kind: input, shape index: {}]
  %s5 = inlined_call_operand.vmem [shape: bf16[2,8,8,16], index: 5, kind: output, shape index: {}]
  %s6 = sld [smem:[#allocation0]]
  $region53: #{hovernet_fwd.9} parent=0
    _
  %s8 = ssub.s32 1, %s6
  %s9 = scalar_select 0, %s8, %s6
  loop: start=0, step=1, limit=18
  $region2: #{hovernet_fwd.9} parent=0 // loop_pre_header
    _
  $region3: #{hovernet_fwd.9} parent=0 // loop_header
    %s11 = sphi 0, %s15
    %p12 = scmp.ge.s32.totalorder %s11, 18
    %s18 = sphi 0, %s30
    %s19 = sphi 0, %s26
    %s20 = sphi 0, %s18
    %s21 = sphi 0, %s19
    %s22 = sphi 0, %s20
    %s23 = sphi 0, %s21
    %s35 = sphi 0, %s37
    %s38 = sphi 0, %s35
    %s39 = sphi 0, %s38
    %s55 = sphi 0, %s39
    %s65 = sphi 0, %s67
    %s68 = sphi 0, %s65
    %s69 = sphi 0, %s68
    %s85 = sphi 0, %s69
    %s95 = sphi 0, %s97
    %s98 = sphi 0, %s95
    %s99 = sphi 0, %s98
    %s115 = sphi 0, %s99
    %s119 = sphi 0, %s119
    %s121 = sphi 0, %s119
    %s122 = sphi 0, %s121
    %s136 = sphi 0, %s122
    %s140 = sphi 0, %s140
    %s142 = sphi 0, %s140
    %s143 = sphi 0, %s142
    %s157 = sphi 0, %s143
    %s165 = sphi 0, %s167
    %s168 = sphi 0, %s165
    %s169 = sphi 0, %s168
    %s185 = sphi 0, %s169
  $region4: #{hovernet_fwd.9} parent=0 // loop_header_branch
    %14 = sbr.rel (%p12) target = $region8
  $region5: #{hovernet_fwd.9} parent=0 // loop_body
    %s16 = ssub.s32 %s11, 1
    %s17 = ssub.s32 %s11, 2
    %s24 = sadd.s32 1, %s19
    %p25 = scmp.ge.s32.totalorder %s24, 8
    %s26 = scalar_select %p25, 0, %s24
    %s27 = sadd.s32 1, %s18
    %s28 = scalar_select %p25, %s27, %s18
    %p29 = scmp.ge.s32.totalorder %s28, 2
    %s30 = scalar_select %p29, 0, %s28
    %s31 = ssub.s32 %s18, %s30
    %s32 = ssub.s32 %s19, %s26
    %s33 = sor.u32 %s31, %s32
    %p34 = scmp.eq.s32.totalorder %s33, 0
    %s36 = sadd.s32 %s35, 1
    %s37 = scalar_select %p34, %s35, %s36
    %p40 = pneg %p34
    %p41 = scmp.eq.s32.totalorder %s11, 15
    %p42 = por %p40, %p41
    %p43 = scmp.ne.s32.totalorder %s35, %s38
    %p44 = scmp.eq.s32.totalorder %s11, 0
    %p45 = por %p43, %p44
    %p46 = scmp.ne.s32.totalorder %s35, %s38
    %p47 = scmp.eq.s32.totalorder %s16, 15
    %p48 = por %p46, %p47
    %p49 = scmp.ne.s32.totalorder %s38, %s39
    %p50 = scmp.eq.s32.totalorder %s16, 0
    %p51 = por %p49, %p50
    %p52 = scmp.ne.s32.totalorder %s38, %s39
    %p53 = scmp.eq.s32.totalorder %s17, 15
    %p54 = por %p52, %p53
    %p56 = scmp.ne.s32.totalorder %s39, %s55
    %p57 = scmp.eq.s32.totalorder %s17, 0
    %p58 = por %p56, %p57
    %s59 = sadd.s32 %s19, 1
    %s60 = sadd.s32 %s26, 1
    %s61 = ssub.s32 %s18, %s30
    %s62 = ssub.s32 %s59, %s60
    %s63 = sor.u32 %s61, %s62
    %p64 = scmp.eq.s32.totalorder %s63, 0
    %s66 = sadd.s32 %s65, 1
    %s67 = scalar_select %p64, %s65, %s66
    %p70 = pneg %p64
    %p71 = scmp.eq.s32.totalorder %s11, 15
    %p72 = por %p70, %p71
    %p73 = scmp.ne.s32.totalorder %s65, %s68
    %p74 = scmp.eq.s32.totalorder %s11, 0
    %p75 = por %p73, %p74
    %p76 = scmp.ne.s32.totalorder %s65, %s68
    %p77 = scmp.eq.s32.totalorder %s16, 15
    %p78 = por %p76, %p77
    %p79 = scmp.ne.s32.totalorder %s68, %s69
    %p80 = scmp.eq.s32.totalorder %s16, 0
    %p81 = por %p79, %p80
    %p82 = scmp.ne.s32.totalorder %s68, %s69
    %p83 = scmp.eq.s32.totalorder %s17, 15
    %p84 = por %p82, %p83
    %p86 = scmp.ne.s32.totalorder %s69, %s85
    %p87 = scmp.eq.s32.totalorder %s17, 0
    %p88 = por %p86, %p87
    %s89 = sadd.s32 %s19, 2
    %s90 = sadd.s32 %s26, 2
    %s91 = ssub.s32 %s18, %s30
    %s92 = ssub.s32 %s89, %s90
    %s93 = sor.u32 %s91, %s92
    %p94 = scmp.eq.s32.totalorder %s93, 0
    %s96 = sadd.s32 %s95, 1
    %s97 = scalar_select %p94, %s95, %s96
    %p100 = pneg %p94
    %p101 = scmp.eq.s32.totalorder %s11, 15
    %p102 = por %p100, %p101
    %p103 = scmp.ne.s32.totalorder %s95, %s98
    %p104 = scmp.eq.s32.totalorder %s11, 0
    %p105 = por %p103, %p104
    %p106 = scmp.ne.s32.totalorder %s95, %s98
    %p107 = scmp.eq.s32.totalorder %s16, 15
    %p108 = por %p106, %p107
    %p109 = scmp.ne.s32.totalorder %s98, %s99
    %p110 = scmp.eq.s32.totalorder %s16, 0
    %p111 = por %p109, %p110
    %p112 = scmp.ne.s32.totalorder %s98, %s99
    %p113 = scmp.eq.s32.totalorder %s17, 15
    %p114 = por %p112, %p113
    %p116 = scmp.ne.s32.totalorder %s99, %s115
    %p117 = scmp.eq.s32.totalorder %s17, 0
    %p118 = por %p116, %p117
    %s120 = sadd.s32 %s119, 1
    %p123 = scmp.eq.s32.totalorder %s11, 15
    %p124 = scmp.ne.s32.totalorder %s119, %s121
    %p125 = scmp.eq.s32.totalorder %s11, 0
    %p126 = por %p124, %p125
    %p127 = scmp.ne.s32.totalorder %s119, %s121
    %p128 = scmp.eq.s32.totalorder %s16, 15
    %p129 = por %p127, %p128
    %p130 = scmp.ne.s32.totalorder %s121, %s122
    %p131 = scmp.eq.s32.totalorder %s16, 0
    %p132 = por %p130, %p131
    %p133 = scmp.ne.s32.totalorder %s121, %s122
    %p134 = scmp.eq.s32.totalorder %s17, 15
    %p135 = por %p133, %p134
    %p137 = scmp.ne.s32.totalorder %s122, %s136
    %p138 = scmp.eq.s32.totalorder %s17, 0
    %p139 = por %p137, %p138
    %s141 = sadd.s32 %s140, 1
    %p144 = scmp.eq.s32.totalorder %s11, 15
    %p145 = scmp.ne.s32.totalorder %s140, %s142
    %p146 = scmp.eq.s32.totalorder %s11, 0
    %p147 = por %p145, %p146
    %p148 = scmp.ne.s32.totalorder %s140, %s142
    %p149 = scmp.eq.s32.totalorder %s16, 15
    %p150 = por %p148, %p149
    %p151 = scmp.ne.s32.totalorder %s142, %s143
    %p152 = scmp.eq.s32.totalorder %s16, 0
    %p153 = por %p151, %p152
    %p154 = scmp.ne.s32.totalorder %s142, %s143
    %p155 = scmp.eq.s32.totalorder %s17, 15
    %p156 = por %p154, %p155
    %p158 = scmp.ne.s32.totalorder %s143, %s157
    %p159 = scmp.eq.s32.totalorder %s17, 0
    %p160 = por %p158, %p159
    %s161 = ssub.s32 %s18, %s30
    %s162 = ssub.s32 %s19, %s26
    %s163 = sor.u32 %s161, %s162
    %p164 = scmp.eq.s32.totalorder %s163, 0
    %s166 = sadd.s32 %s165, 1
    %s167 = scalar_select %p164, %s165, %s166
    %p170 = pneg %p164
    %p171 = scmp.eq.s32.totalorder %s11, 15
    %p172 = por %p170, %p171
    %p173 = scmp.ne.s32.totalorder %s165, %s168
    %p174 = scmp.eq.s32.totalorder %s11, 0
    %p175 = por %p173, %p174
    %p176 = scmp.ne.s32.totalorder %s165, %s168
    %p177 = scmp.eq.s32.totalorder %s16, 15
    %p178 = por %p176, %p177
    %p179 = scmp.ne.s32.totalorder %s168, %s169
    %p180 = scmp.eq.s32.totalorder %s16, 0
    %p181 = por %p179, %p180
    %p182 = scmp.ne.s32.totalorder %s168, %s169
    %p183 = scmp.eq.s32.totalorder %s17, 15
    %p184 = por %p182, %p183
    %p186 = scmp.ne.s32.totalorder %s169, %s185
    %p187 = scmp.eq.s32.totalorder %s17, 0
    %p188 = por %p186, %p187
    %p189 = scmp.le.s32.totalorder 1, %s11
    %p190 = scmp.lt.s32.totalorder %s11, 17
    %p191 = pnand %p189, %p190
    %p192 = pneg %p191
    // Predicated region
    $region9: #{hovernet_fwd.9} parent=5 // pred_check
      _
    $region10: #{hovernet_fwd.9} parent=5 // pred_check_branch
      %194 = sbr.rel (%p191) target = $region12
    $region11: #{hovernet_fwd.9} parent=5 // pred_region
      %s195 = ssub.s32 %s11, 1
      // Predicated region
      $region13: #{hovernet_fwd.9} parent=11 // pred_check
        %p196 = pneg %p132
      $region14: #{hovernet_fwd.9} parent=11 // pred_check_branch
        %198 = sbr.rel (%p196) target = $region16
      $region15: #{hovernet_fwd.9} parent=11 // pred_region
        _
      $region16: #{hovernet_fwd.9} parent=11 // pred_fallthru
        _
      // Predicated region
      $region17: #{hovernet_fwd.9} parent=11 // pred_check
        %p199 = pneg %p153
      $region18: #{hovernet_fwd.9} parent=11 // pred_check_branch
        %201 = sbr.rel (%p199) target = $region20
      $region19: #{hovernet_fwd.9} parent=11 // pred_region
        _
      $region20: #{hovernet_fwd.9} parent=11 // pred_fallthru
        _
    $region12: #{hovernet_fwd.9} parent=5 // pred_fallthru
      _
    %p202 = scmp.lt.s32.totalorder %s11, 16
    // Predicated region
    $region21: #{hovernet_fwd.9} parent=5 // pred_check
      %p203 = pneg %p202
    $region22: #{hovernet_fwd.9} parent=5 // pred_check_branch
      %205 = sbr.rel (%p203) target = $region24
    $region23: #{hovernet_fwd.9} parent=5 // pred_region
      // Predicated region
      $region25: #{hovernet_fwd.9} parent=23 // pred_check
        %p206 = pneg %p45
      $region26: #{hovernet_fwd.9} parent=23 // pred_check_branch
        %208 = sbr.rel (%p206) target = $region28
      $region27: #{hovernet_fwd.9} parent=23 // pred_region
        %p209 = scmp.lt.s32.totalorder %s18, 1
        %s210 = scalar_select %p209, %s18, 1
        %p211 = scmp.lt.s32.totalorder %s19, 9
        %s212 = scalar_select %p211, %s19, 9
        %s213 = smul.addr %s212, 2
        %s214 = smul.addr %s210, 20
        %s215 = sadd.s32 %s213, %s214
        %s216 = smul.addr %s215, 4
        %s217 = scalar_lea.vmem %s0, %s216
      $region28: #{hovernet_fwd.9} parent=23 // pred_fallthru
        _
      // Predicated region
      $region29: #{hovernet_fwd.9} parent=23 // pred_check
        %p218 = pneg %p75
      $region30: #{hovernet_fwd.9} parent=23 // pred_check_branch
        %220 = sbr.rel (%p218) target = $region32
      $region31: #{hovernet_fwd.9} parent=23 // pred_region
        %s221 = sadd.s32 %s19, 1
        %p222 = scmp.lt.s32.totalorder %s18, 1
        %s223 = scalar_select %p222, %s18, 1
        %p224 = scmp.lt.s32.totalorder %s221, 9
        %s225 = scalar_select %p224, %s221, 9
        %s226 = smul.addr %s225, 2
        %s227 = smul.addr %s223, 20
        %s228 = sadd.s32 %s226, %s227
        %s229 = smul.addr %s228, 4
        %s230 = scalar_lea.vmem %s1, %s229
        %s231 = sadd.s32 %s19, 1
      $region32: #{hovernet_fwd.9} parent=23 // pred_fallthru
        _
      // Predicated region
      $region33: #{hovernet_fwd.9} parent=23 // pred_check
        %p232 = pneg %p105
      $region34: #{hovernet_fwd.9} parent=23 // pred_check_branch
        %234 = sbr.rel (%p232) target = $region36
      $region35: #{hovernet_fwd.9} parent=23 // pred_region
        %s235 = sadd.s32 %s19, 2
        %p236 = scmp.lt.s32.totalorder %s18, 1
        %s237 = scalar_select %p236, %s18, 1
        %p238 = scmp.lt.s32.totalorder %s235, 9
        %s239 = scalar_select %p238, %s235, 9
        %s240 = smul.addr %s239, 2
        %s241 = smul.addr %s237, 20
        %s242 = sadd.s32 %s240, %s241
        %s243 = smul.addr %s242, 4
        %s244 = scalar_lea.vmem %s2, %s243
        %s245 = sadd.s32 %s19, 2
      $region36: #{hovernet_fwd.9} parent=23 // pred_fallthru
        _
    $region24: #{hovernet_fwd.9} parent=5 // pred_fallthru
      _
    %p246 = scmp.le.s32.totalorder 1, %s11
    %p247 = scmp.lt.s32.totalorder %s11, 17
    %p248 = pnand %p246, %p247
    %p249 = pneg %p248
    // Predicated region
    $region37: #{hovernet_fwd.9} parent=5 // pred_check
      _
    $region38: #{hovernet_fwd.9} parent=5 // pred_check_branch
      %251 = sbr.rel (%p248) target = $region40
    $region39: #{hovernet_fwd.9} parent=5 // pred_region
      %s252 = ssub.s32 %s11, 1
      %p253 = scmp.lt.s32.totalorder %s20, 1
      %s254 = scalar_select %p253, %s20, 1
      %p255 = scmp.lt.s32.totalorder %s21, 9
      %s256 = scalar_select %p255, %s21, 9
      %s257 = smul.addr %s256, 2
      %s258 = smul.addr %s254, 20
      %s259 = sadd.s32 %s257, %s258
      %s260 = smul.addr %s259, 4
      %s261 = scalar_lea.vmem %s0, %s260
      %p262 = pneg %p51
      %p263 = pneg %p48
      %s264 = sadd.s32 %s21, 1
      %p265 = scmp.lt.s32.totalorder %s20, 1
      %s266 = scalar_select %p265, %s20, 1
      %p267 = scmp.lt.s32.totalorder %s264, 9
      %s268 = scalar_select %p267, %s264, 9
      %s269 = smul.addr %s268, 2
      %s270 = smul.addr %s266, 20
      %s271 = sadd.s32 %s269, %s270
      %s272 = smul.addr %s271, 4
      %s273 = scalar_lea.vmem %s1, %s272
      %p274 = pneg %p81
      %p275 = pneg %p78
      %s276 = sadd.s32 %s21, 2
      %p277 = scmp.lt.s32.totalorder %s20, 1
      %s278 = scalar_select %p277, %s20, 1
      %p279 = scmp.lt.s32.totalorder %s276, 9
      %s280 = scalar_select %p279, %s276, 9
      %s281 = smul.addr %s280, 2
      %s282 = smul.addr %s278, 20
      %s283 = sadd.s32 %s281, %s282
      %s284 = smul.addr %s283, 4
      %s285 = scalar_lea.vmem %s2, %s284
      %p286 = pneg %p111
      %p287 = pneg %p108
      %p288 = pneg %p132
      %p289 = pneg %p129
      %p290 = pneg %p153
      %p291 = pneg %p150
      %p292 = pneg %p181
      %p293 = pneg %p178
      %p294 = scmp.lt.s32.totalorder %s20, 1
      %s295 = scalar_select %p294, %s20, 1
      %p296 = scmp.lt.s32.totalorder %s21, 7
      %s297 = scalar_select %p296, %s21, 7
      %s298 = smul.addr %s295, 8
      %s299 = sadd.s32 %s297, %s298
      %s300 = smul.addr %s299, 4
      %s301 = scalar_lea.vmem %s5, %s300
      %p302 = scmp.lt.s32.totalorder %s20, 1
      %s303 = scalar_select %p302, %s20, 1
      %p304 = scmp.lt.s32.totalorder %s21, 9
      %s305 = scalar_select %p304, %s21, 9
      %s306 = smul.addr %s305, 2
      %s307 = smul.addr %s303, 20
      %s308 = sadd.s32 %s306, %s307
      %s309 = smul.addr %s308, 4
      %s310 = scalar_lea.vmem %s0, %s309
      %s311 = sadd.s32 %s21, 1
      %p312 = scmp.lt.s32.totalorder %s20, 1
      %s313 = scalar_select %p312, %s20, 1
      %p314 = scmp.lt.s32.totalorder %s311, 9
      %s315 = scalar_select %p314, %s311, 9
      %s316 = smul.addr %s315, 2
      %s317 = smul.addr %s313, 20
      %s318 = sadd.s32 %s316, %s317
      %s319 = smul.addr %s318, 4
      %s320 = scalar_lea.vmem %s1, %s319
      %s321 = sadd.s32 %s21, 1
      %s322 = sadd.s32 %s21, 2
      %p323 = scmp.lt.s32.totalorder %s20, 1
      %s324 = scalar_select %p323, %s20, 1
      %p325 = scmp.lt.s32.totalorder %s322, 9
      %s326 = scalar_select %p325, %s322, 9
      %s327 = smul.addr %s326, 2
      %s328 = smul.addr %s324, 20
      %s329 = sadd.s32 %s327, %s328
      %s330 = smul.addr %s329, 4
      %s331 = scalar_lea.vmem %s2, %s330
      %s332 = sadd.s32 %s21, 2
      %p333 = scmp.lt.s32.totalorder %s20, 1
      %s334 = scalar_select %p333, %s20, 1
      %p335 = scmp.lt.s32.totalorder %s21, 7
      %s336 = scalar_select %p335, %s21, 7
      %s337 = smul.addr %s334, 8
      %s338 = sadd.s32 %s336, %s337
      %s339 = smul.addr %s338, 4
      %s340 = scalar_lea.vmem %s5, %s339
      %v342 = vld [vmem:[%s310] sm:$0xf]
      %v343 = vld [vmem:[%s310 + $0x4] sm:$0x1]
      %v344 = vld [vmem:[%s3] sm:$0xf]
      %s345 = scalar_lea.vmem %s3, 4
      %v346 = vld [vmem:[%s345] sm:$0xf]
      %v349 = vunpack.c.l.b16 %v342
      %v350 = vunpack.c.l.b16 %v343
      %v351 = vpack.c.b16 %v350, %v349
      %v353 = vshrl.u32 %v351, 16
      %v355 = vshll.u32 %v351, 16
      %v357 = vrot.slane %v355, 1
      %v358 = vor.u32 %v353, %v357
      %vm359 = vcmask 64512
      %v361 = vsel %vm359, %v358, 0
      %vm363 = vcmask 1043456
      %v365 = vsel %vm363, %v346, 0
      %367 = vmatpush.bf16.msra.mxu0 0
      %368 = vmatpush.bf16.msra.mxu0 0
      %369 = vmatpush.bf16.msra.mxu0 0
      %370 = vmatpush.bf16.msra.mxu0 0
      %371 = vmatpush.bf16.msra.mxu0 0
      %372 = vmatpush.bf16.msra.mxu0 0
      %373 = vmatpush.bf16.msra.mxu0 0
      %374 = vmatpush.bf16.msra.mxu0 %v365
      %375 = vmatmul.bf16.gmra.mxu0 %v361
      %v376 = vpop.f32.mrf.mxu0
      %v377 = vadd.f32 0.0, %v376
      %v378 = vpop.f32.mrf.mxu0
      %379 = vdwg.mxu0
      %v381 = vsel %vm359, %v342, 0
      %v384 = vsel %vm363, %v344, 0
      %386 = vmatpush.bf16.msra.mxu0 0
      %387 = vmatpush.bf16.msra.mxu0 0
      %388 = vmatpush.bf16.msra.mxu0 0
      %389 = vmatpush.bf16.msra.mxu0 0
      %390 = vmatpush.bf16.msra.mxu0 0
      %391 = vmatpush.bf16.msra.mxu0 0
      %392 = vmatpush.bf16.msra.mxu0 0
      %393 = vmatpush.bf16.msra.mxu0 %v384
      %394 = vmatmul.bf16.gmra.mxu0 %v381
      %v395 = vpop.f32.mrf.mxu0
      %v396 = vadd.f32 %v377, %v395
      %v397 = vpop.f32.mrf.mxu0
      %398 = vdwg.mxu0
      %s399 = scalar_lea.vmem %s3, 8
      %v400 = vld [vmem:[%s399] sm:$0xf]
      %v401 = vrot.slane %v351, 1
      %v403 = vsel %vm359, %v401, 0
      %v406 = vsel %vm363, %v400, 0
      %408 = vmatpush.bf16.msra.mxu0 0
      %409 = vmatpush.bf16.msra.mxu0 0
      %410 = vmatpush.bf16.msra.mxu0 0
      %411 = vmatpush.bf16.msra.mxu0 0
      %412 = vmatpush.bf16.msra.mxu0 0
      %413 = vmatpush.bf16.msra.mxu0 0
      %414 = vmatpush.bf16.msra.mxu0 0
      %415 = vmatpush.bf16.msra.mxu0 %v406
      %416 = vmatmul.bf16.gmra.mxu0 %v403
      %v417 = vpop.f32.mrf.mxu0
      %v418 = vadd.f32 0.0, %v417
      %v419 = vpop.f32.mrf.mxu0
      %420 = vdwg.mxu0
      %v421 = vadd.f32 %v396, %v418
      %v422 = vld [vmem:[%s320] sm:$0xf]
      %v423 = vld [vmem:[%s320 + $0x4] sm:$0x1]
      %s424 = scalar_lea.vmem %s3, 12
      %v425 = vld [vmem:[%s424] sm:$0xf]
      %v427 = vsel %vm359, %v422, 0
      %v430 = vsel %vm363, %v425, 0
      %432 = vmatpush.bf16.msra.mxu0 0
      %433 = vmatpush.bf16.msra.mxu0 0
      %434 = vmatpush.bf16.msra.mxu0 0
      %435 = vmatpush.bf16.msra.mxu0 0
      %436 = vmatpush.bf16.msra.mxu0 0
      %437 = vmatpush.bf16.msra.mxu0 0
      %438 = vmatpush.bf16.msra.mxu0 0
      %439 = vmatpush.bf16.msra.mxu0 %v430
      %440 = vmatmul.bf16.gmra.mxu0 %v427
      %v441 = vpop.f32.mrf.mxu0
      %v442 = vadd.f32 0.0, %v441
      %v443 = vpop.f32.mrf.mxu0
      %444 = vdwg.mxu0
      %v445 = vadd.f32 %v421, %v442
      %s446 = scalar_lea.vmem %s3, 16
      %v447 = vld [vmem:[%s446] sm:$0xf]
      %v450 = vunpack.c.l.b16 %v422
      %v451 = vunpack.c.l.b16 %v423
      %v452 = vpack.c.b16 %v451, %v450
      %v454 = vshrl.u32 %v452, 16
      %v456 = vshll.u32 %v452, 16
      %v458 = vrot.slane %v456, 1
      %v459 = vor.u32 %v454, %v458
      %v461 = vsel %vm359, %v459, 0
      %v464 = vsel %vm363, %v447, 0
      %466 = vmatpush.bf16.msra.mxu0 0
      %467 = vmatpush.bf16.msra.mxu0 0
      %468 = vmatpush.bf16.msra.mxu0 0
      %469 = vmatpush.bf16.msra.mxu0 0
      %470 = vmatpush.bf16.msra.mxu0 0
      %471 = vmatpush.bf16.msra.mxu0 0
      %472 = vmatpush.bf16.msra.mxu0 0
      %473 = vmatpush.bf16.msra.mxu0 %v464
      %474 = vmatmul.bf16.gmra.mxu0 %v461
      %v475 = vpop.f32.mrf.mxu0
      %v476 = vadd.f32 0.0, %v475
      %v477 = vpop.f32.mrf.mxu0
      %478 = vdwg.mxu0
      %v479 = vadd.f32 %v445, %v476
      %s480 = scalar_lea.vmem %s3, 20
      %v481 = vld [vmem:[%s480] sm:$0xf]
      %v482 = vrot.slane %v452, 1
      %v484 = vsel %vm359, %v482, 0
      %v487 = vsel %vm363, %v481, 0
      %489 = vmatpush.bf16.msra.mxu0 0
      %490 = vmatpush.bf16.msra.mxu0 0
      %491 = vmatpush.bf16.msra.mxu0 0
      %492 = vmatpush.bf16.msra.mxu0 0
      %493 = vmatpush.bf16.msra.mxu0 0
      %494 = vmatpush.bf16.msra.mxu0 0
      %495 = vmatpush.bf16.msra.mxu0 0
      %496 = vmatpush.bf16.msra.mxu0 %v487
      %497 = vmatmul.bf16.gmra.mxu0 %v484
      %v498 = vpop.f32.mrf.mxu0
      %v499 = vadd.f32 0.0, %v498
      %v500 = vpop.f32.mrf.mxu0
      %501 = vdwg.mxu0
      %v502 = vadd.f32 %v479, %v499
      %v503 = vld [vmem:[%s331] sm:$0xf]
      %v504 = vld [vmem:[%s331 + $0x4] sm:$0x1]
      %s505 = scalar_lea.vmem %s3, 24
      %v506 = vld [vmem:[%s505] sm:$0xf]
      %v508 = vsel %vm359, %v503, 0
      %v511 = vsel %vm363, %v506, 0
      %513 = vmatpush.bf16.msra.mxu0 0
      %514 = vmatpush.bf16.msra.mxu0 0
      %515 = vmatpush.bf16.msra.mxu0 0
      %516 = vmatpush.bf16.msra.mxu0 0
      %517 = vmatpush.bf16.msra.mxu0 0
      %518 = vmatpush.bf16.msra.mxu0 0
      %519 = vmatpush.bf16.msra.mxu0 0
      %520 = vmatpush.bf16.msra.mxu0 %v511
      %521 = vmatmul.bf16.gmra.mxu0 %v508
      %v522 = vpop.f32.mrf.mxu0
      %v523 = vadd.f32 0.0, %v522
      %v524 = vpop.f32.mrf.mxu0
      %525 = vdwg.mxu0
      %v526 = vadd.f32 %v502, %v523
      %s527 = scalar_lea.vmem %s3, 28
      %v528 = vld [vmem:[%s527] sm:$0xf]
      %v531 = vunpack.c.l.b16 %v503
      %v532 = vunpack.c.l.b16 %v504
      %v533 = vpack.c.b16 %v532, %v531
      %v535 = vshrl.u32 %v533, 16
      %v537 = vshll.u32 %v533, 16
      %v539 = vrot.slane %v537, 1
      %v540 = vor.u32 %v535, %v539
      %v542 = vsel %vm359, %v540, 0
      %v545 = vsel %vm363, %v528, 0
      %547 = vmatpush.bf16.msra.mxu0 0
      %548 = vmatpush.bf16.msra.mxu0 0
      %549 = vmatpush.bf16.msra.mxu0 0
      %550 = vmatpush.bf16.msra.mxu0 0
      %551 = vmatpush.bf16.msra.mxu0 0
      %552 = vmatpush.bf16.msra.mxu0 0
      %553 = vmatpush.bf16.msra.mxu0 0
      %554 = vmatpush.bf16.msra.mxu0 %v545
      %555 = vmatmul.bf16.gmra.mxu0 %v542
      %v556 = vpop.f32.mrf.mxu0
      %v557 = vadd.f32 0.0, %v556
      %v558 = vpop.f32.mrf.mxu0
      %559 = vdwg.mxu0
      %v560 = vadd.f32 %v526, %v557
      %s561 = scalar_lea.vmem %s3, 32
      %v562 = vld [vmem:[%s561] sm:$0xf]
      %v563 = vrot.slane %v533, 1
      %v565 = vsel %vm359, %v563, 0
      %v568 = vsel %vm363, %v562, 0
      %570 = vmatpush.bf16.msra.mxu0 0
      %571 = vmatpush.bf16.msra.mxu0 0
      %572 = vmatpush.bf16.msra.mxu0 0
      %573 = vmatpush.bf16.msra.mxu0 0
      %574 = vmatpush.bf16.msra.mxu0 0
      %575 = vmatpush.bf16.msra.mxu0 0
      %576 = vmatpush.bf16.msra.mxu0 0
      %577 = vmatpush.bf16.msra.mxu0 %v568
      %578 = vmatmul.bf16.gmra.mxu0 %v565
      %v579 = vpop.f32.mrf.mxu0
      %v580 = vadd.f32 0.0, %v579
      %v581 = vpop.f32.mrf.mxu0
      %582 = vdwg.mxu0
      %v583 = vadd.f32 %v560, %v580
      %v584 = vld [vmem:[%s4] sm:$0x1]
      %v586 = vperm.slane %v584, 0
      %v588 = vadd.f32 %v583, %v586
      %v589 = vmax.f32 %v588, 0.0
      %v590 = vpack.c.bf16 %v589, %v589
      %vm591 = vcmask 125952
      %592 = vst.msk [vmem:[%s340] sm:$0xf] %vm591, %v590
      %p593 = scmp.lt.s32.totalorder %s20, 1
      %s594 = scalar_select %p593, %s20, 1
      %p595 = scmp.lt.s32.totalorder %s21, 7
      %s596 = scalar_select %p595, %s21, 7
      %s597 = smul.addr %s594, 8
      %s598 = sadd.s32 %s596, %s597
      %s599 = smul.addr %s598, 4
      %s600 = scalar_lea.vmem %s5, %s599
      // Predicated region
      $region41: #{hovernet_fwd.9} parent=39 // pred_check
        %p601 = pneg %p178
      $region42: #{hovernet_fwd.9} parent=39 // pred_check_branch
        %603 = sbr.rel (%p601) target = $region44
      $region43: #{hovernet_fwd.9} parent=39 // pred_region
        _
      $region44: #{hovernet_fwd.9} parent=39 // pred_fallthru
        _
    $region40: #{hovernet_fwd.9} parent=5 // pred_fallthru
      _
    %p604 = scmp.le.s32.totalorder 2, %s11
    // Predicated region
    $region45: #{hovernet_fwd.9} parent=5 // pred_check
      %p605 = pneg %p604
    $region46: #{hovernet_fwd.9} parent=5 // pred_check_branch
      %607 = sbr.rel (%p605) target = $region48
    $region47: #{hovernet_fwd.9} parent=5 // pred_region
      %s608 = ssub.s32 %s11, 2
      // Predicated region
      $region49: #{hovernet_fwd.9} parent=47 // pred_check
        %p609 = pneg %p184
      $region50: #{hovernet_fwd.9} parent=47 // pred_check_branch
        %611 = sbr.rel (%p609) target = $region52
      $region51: #{hovernet_fwd.9} parent=47 // pred_region
        %p612 = scmp.lt.s32.totalorder %s22, 1
        %s613 = scalar_select %p612, %s22, 1
        %p614 = scmp.lt.s32.totalorder %s23, 7
        %s615 = scalar_select %p614, %s23, 7
        %s616 = smul.addr %s613, 8
        %s617 = sadd.s32 %s615, %s616
        %s618 = smul.addr %s617, 4
        %s619 = scalar_lea.vmem %s5, %s618
      $region52: #{hovernet_fwd.9} parent=47 // pred_fallthru
        _
    $region48: #{hovernet_fwd.9} parent=5 // pred_fallthru
      _
  $region6: #{hovernet_fwd.9} parent=0 // loop_footer
    %s15 = sadd.s32 1, %s11
  $region7: #{hovernet_fwd.9} parent=0 // loop_footer_branch
    %10 = sbr.rel target = $region3
  $region8: #{hovernet_fwd.9} parent=0 // loop_exit
    _

// kernel: hovernet_fwd.10
$region0: #{hovernet_fwd.10}
  #allocation0 [shape = 'u32[]', space=smem, size = 0x4, offset = 0x4, fixed_abs, tag = 'smem constant byte address 0x4 - core index']
  #allocation1 [shape = 'u32[72,128]{1,0:T(1,128)}', space=vmem, size = 0x9000, scoped, tag = 'internal scratch']
  %s0 = inlined_call_operand.vmem [shape: bf16[2,6,6,16], index: 0, kind: input, shape index: {}, may-alias: {0,1,2}]
  %s1 = inlined_call_operand.vmem [shape: bf16[2,6,6,16], index: 1, kind: input, shape index: {}, may-alias: {0,1,2}]
  %s2 = inlined_call_operand.vmem [shape: bf16[2,6,6,16], index: 2, kind: input, shape index: {}, may-alias: {0,1,2}]
  %s3 = inlined_call_operand.vmem [shape: bf16[9,16,32], index: 3, kind: input, shape index: {}]
  %s4 = inlined_call_operand.vmem [shape: f32[1,32], index: 4, kind: input, shape index: {}]
  %s5 = inlined_call_operand.vmem [shape: bf16[2,4,4,32], index: 5, kind: output, shape index: {}]
  %s6 = sld [smem:[#allocation0]]
  $region53: #{hovernet_fwd.10} parent=0
    _
  %s8 = ssub.s32 1, %s6
  %s9 = scalar_select 0, %s8, %s6
  loop: start=0, step=1, limit=10
  $region2: #{hovernet_fwd.10} parent=0 // loop_pre_header
    _
  $region3: #{hovernet_fwd.10} parent=0 // loop_header
    %s11 = sphi 0, %s15
    %p12 = scmp.ge.s32.totalorder %s11, 10
    %s18 = sphi 0, %s30
    %s19 = sphi 0, %s26
    %s20 = sphi 0, %s18
    %s21 = sphi 0, %s19
    %s22 = sphi 0, %s20
    %s23 = sphi 0, %s21
    %s35 = sphi 0, %s37
    %s38 = sphi 0, %s35
    %s39 = sphi 0, %s38
    %s55 = sphi 0, %s39
    %s65 = sphi 0, %s67
    %s68 = sphi 0, %s65
    %s69 = sphi 0, %s68
    %s85 = sphi 0, %s69
    %s95 = sphi 0, %s97
    %s98 = sphi 0, %s95
    %s99 = sphi 0, %s98
    %s115 = sphi 0, %s99
    %s119 = sphi 0, %s119
    %s121 = sphi 0, %s119
    %s122 = sphi 0, %s121
    %s136 = sphi 0, %s122
    %s140 = sphi 0, %s140
    %s142 = sphi 0, %s140
    %s143 = sphi 0, %s142
    %s157 = sphi 0, %s143
    %s165 = sphi 0, %s167
    %s168 = sphi 0, %s165
    %s169 = sphi 0, %s168
    %s185 = sphi 0, %s169
  $region4: #{hovernet_fwd.10} parent=0 // loop_header_branch
    %14 = sbr.rel (%p12) target = $region8
  $region5: #{hovernet_fwd.10} parent=0 // loop_body
    %s16 = ssub.s32 %s11, 1
    %s17 = ssub.s32 %s11, 2
    %s24 = sadd.s32 1, %s19
    %p25 = scmp.ge.s32.totalorder %s24, 4
    %s26 = scalar_select %p25, 0, %s24
    %s27 = sadd.s32 1, %s18
    %s28 = scalar_select %p25, %s27, %s18
    %p29 = scmp.ge.s32.totalorder %s28, 2
    %s30 = scalar_select %p29, 0, %s28
    %s31 = ssub.s32 %s18, %s30
    %s32 = ssub.s32 %s19, %s26
    %s33 = sor.u32 %s31, %s32
    %p34 = scmp.eq.s32.totalorder %s33, 0
    %s36 = sadd.s32 %s35, 1
    %s37 = scalar_select %p34, %s35, %s36
    %p40 = pneg %p34
    %p41 = scmp.eq.s32.totalorder %s11, 7
    %p42 = por %p40, %p41
    %p43 = scmp.ne.s32.totalorder %s35, %s38
    %p44 = scmp.eq.s32.totalorder %s11, 0
    %p45 = por %p43, %p44
    %p46 = scmp.ne.s32.totalorder %s35, %s38
    %p47 = scmp.eq.s32.totalorder %s16, 7
    %p48 = por %p46, %p47
    %p49 = scmp.ne.s32.totalorder %s38, %s39
    %p50 = scmp.eq.s32.totalorder %s16, 0
    %p51 = por %p49, %p50
    %p52 = scmp.ne.s32.totalorder %s38, %s39
    %p53 = scmp.eq.s32.totalorder %s17, 7
    %p54 = por %p52, %p53
    %p56 = scmp.ne.s32.totalorder %s39, %s55
    %p57 = scmp.eq.s32.totalorder %s17, 0
    %p58 = por %p56, %p57
    %s59 = sadd.s32 %s19, 1
    %s60 = sadd.s32 %s26, 1
    %s61 = ssub.s32 %s18, %s30
    %s62 = ssub.s32 %s59, %s60
    %s63 = sor.u32 %s61, %s62
    %p64 = scmp.eq.s32.totalorder %s63, 0
    %s66 = sadd.s32 %s65, 1
    %s67 = scalar_select %p64, %s65, %s66
    %p70 = pneg %p64
    %p71 = scmp.eq.s32.totalorder %s11, 7
    %p72 = por %p70, %p71
    %p73 = scmp.ne.s32.totalorder %s65, %s68
    %p74 = scmp.eq.s32.totalorder %s11, 0
    %p75 = por %p73, %p74
    %p76 = scmp.ne.s32.totalorder %s65, %s68
    %p77 = scmp.eq.s32.totalorder %s16, 7
    %p78 = por %p76, %p77
    %p79 = scmp.ne.s32.totalorder %s68, %s69
    %p80 = scmp.eq.s32.totalorder %s16, 0
    %p81 = por %p79, %p80
    %p82 = scmp.ne.s32.totalorder %s68, %s69
    %p83 = scmp.eq.s32.totalorder %s17, 7
    %p84 = por %p82, %p83
    %p86 = scmp.ne.s32.totalorder %s69, %s85
    %p87 = scmp.eq.s32.totalorder %s17, 0
    %p88 = por %p86, %p87
    %s89 = sadd.s32 %s19, 2
    %s90 = sadd.s32 %s26, 2
    %s91 = ssub.s32 %s18, %s30
    %s92 = ssub.s32 %s89, %s90
    %s93 = sor.u32 %s91, %s92
    %p94 = scmp.eq.s32.totalorder %s93, 0
    %s96 = sadd.s32 %s95, 1
    %s97 = scalar_select %p94, %s95, %s96
    %p100 = pneg %p94
    %p101 = scmp.eq.s32.totalorder %s11, 7
    %p102 = por %p100, %p101
    %p103 = scmp.ne.s32.totalorder %s95, %s98
    %p104 = scmp.eq.s32.totalorder %s11, 0
    %p105 = por %p103, %p104
    %p106 = scmp.ne.s32.totalorder %s95, %s98
    %p107 = scmp.eq.s32.totalorder %s16, 7
    %p108 = por %p106, %p107
    %p109 = scmp.ne.s32.totalorder %s98, %s99
    %p110 = scmp.eq.s32.totalorder %s16, 0
    %p111 = por %p109, %p110
    %p112 = scmp.ne.s32.totalorder %s98, %s99
    %p113 = scmp.eq.s32.totalorder %s17, 7
    %p114 = por %p112, %p113
    %p116 = scmp.ne.s32.totalorder %s99, %s115
    %p117 = scmp.eq.s32.totalorder %s17, 0
    %p118 = por %p116, %p117
    %s120 = sadd.s32 %s119, 1
    %p123 = scmp.eq.s32.totalorder %s11, 7
    %p124 = scmp.ne.s32.totalorder %s119, %s121
    %p125 = scmp.eq.s32.totalorder %s11, 0
    %p126 = por %p124, %p125
    %p127 = scmp.ne.s32.totalorder %s119, %s121
    %p128 = scmp.eq.s32.totalorder %s16, 7
    %p129 = por %p127, %p128
    %p130 = scmp.ne.s32.totalorder %s121, %s122
    %p131 = scmp.eq.s32.totalorder %s16, 0
    %p132 = por %p130, %p131
    %p133 = scmp.ne.s32.totalorder %s121, %s122
    %p134 = scmp.eq.s32.totalorder %s17, 7
    %p135 = por %p133, %p134
    %p137 = scmp.ne.s32.totalorder %s122, %s136
    %p138 = scmp.eq.s32.totalorder %s17, 0
    %p139 = por %p137, %p138
    %s141 = sadd.s32 %s140, 1
    %p144 = scmp.eq.s32.totalorder %s11, 7
    %p145 = scmp.ne.s32.totalorder %s140, %s142
    %p146 = scmp.eq.s32.totalorder %s11, 0
    %p147 = por %p145, %p146
    %p148 = scmp.ne.s32.totalorder %s140, %s142
    %p149 = scmp.eq.s32.totalorder %s16, 7
    %p150 = por %p148, %p149
    %p151 = scmp.ne.s32.totalorder %s142, %s143
    %p152 = scmp.eq.s32.totalorder %s16, 0
    %p153 = por %p151, %p152
    %p154 = scmp.ne.s32.totalorder %s142, %s143
    %p155 = scmp.eq.s32.totalorder %s17, 7
    %p156 = por %p154, %p155
    %p158 = scmp.ne.s32.totalorder %s143, %s157
    %p159 = scmp.eq.s32.totalorder %s17, 0
    %p160 = por %p158, %p159
    %s161 = ssub.s32 %s18, %s30
    %s162 = ssub.s32 %s19, %s26
    %s163 = sor.u32 %s161, %s162
    %p164 = scmp.eq.s32.totalorder %s163, 0
    %s166 = sadd.s32 %s165, 1
    %s167 = scalar_select %p164, %s165, %s166
    %p170 = pneg %p164
    %p171 = scmp.eq.s32.totalorder %s11, 7
    %p172 = por %p170, %p171
    %p173 = scmp.ne.s32.totalorder %s165, %s168
    %p174 = scmp.eq.s32.totalorder %s11, 0
    %p175 = por %p173, %p174
    %p176 = scmp.ne.s32.totalorder %s165, %s168
    %p177 = scmp.eq.s32.totalorder %s16, 7
    %p178 = por %p176, %p177
    %p179 = scmp.ne.s32.totalorder %s168, %s169
    %p180 = scmp.eq.s32.totalorder %s16, 0
    %p181 = por %p179, %p180
    %p182 = scmp.ne.s32.totalorder %s168, %s169
    %p183 = scmp.eq.s32.totalorder %s17, 7
    %p184 = por %p182, %p183
    %p186 = scmp.ne.s32.totalorder %s169, %s185
    %p187 = scmp.eq.s32.totalorder %s17, 0
    %p188 = por %p186, %p187
    %p189 = scmp.le.s32.totalorder 1, %s11
    %p190 = scmp.lt.s32.totalorder %s11, 9
    %p191 = pnand %p189, %p190
    %p192 = pneg %p191
    // Predicated region
    $region9: #{hovernet_fwd.10} parent=5 // pred_check
      _
    $region10: #{hovernet_fwd.10} parent=5 // pred_check_branch
      %194 = sbr.rel (%p191) target = $region12
    $region11: #{hovernet_fwd.10} parent=5 // pred_region
      %s195 = ssub.s32 %s11, 1
      // Predicated region
      $region13: #{hovernet_fwd.10} parent=11 // pred_check
        %p196 = pneg %p132
      $region14: #{hovernet_fwd.10} parent=11 // pred_check_branch
        %198 = sbr.rel (%p196) target = $region16
      $region15: #{hovernet_fwd.10} parent=11 // pred_region
        _
      $region16: #{hovernet_fwd.10} parent=11 // pred_fallthru
        _
      // Predicated region
      $region17: #{hovernet_fwd.10} parent=11 // pred_check
        %p199 = pneg %p153
      $region18: #{hovernet_fwd.10} parent=11 // pred_check_branch
        %201 = sbr.rel (%p199) target = $region20
      $region19: #{hovernet_fwd.10} parent=11 // pred_region
        _
      $region20: #{hovernet_fwd.10} parent=11 // pred_fallthru
        _
    $region12: #{hovernet_fwd.10} parent=5 // pred_fallthru
      _
    %p202 = scmp.lt.s32.totalorder %s11, 8
    // Predicated region
    $region21: #{hovernet_fwd.10} parent=5 // pred_check
      %p203 = pneg %p202
    $region22: #{hovernet_fwd.10} parent=5 // pred_check_branch
      %205 = sbr.rel (%p203) target = $region24
    $region23: #{hovernet_fwd.10} parent=5 // pred_region
      // Predicated region
      $region25: #{hovernet_fwd.10} parent=23 // pred_check
        %p206 = pneg %p45
      $region26: #{hovernet_fwd.10} parent=23 // pred_check_branch
        %208 = sbr.rel (%p206) target = $region28
      $region27: #{hovernet_fwd.10} parent=23 // pred_region
        %p209 = scmp.lt.s32.totalorder %s18, 1
        %s210 = scalar_select %p209, %s18, 1
        %p211 = scmp.lt.s32.totalorder %s19, 5
        %s212 = scalar_select %p211, %s19, 5
        %s213 = smul.addr %s210, 6
        %s214 = sadd.s32 %s212, %s213
        %s215 = smul.addr %s214, 4
        %s216 = scalar_lea.vmem %s0, %s215
      $region28: #{hovernet_fwd.10} parent=23 // pred_fallthru
        _
      // Predicated region
      $region29: #{hovernet_fwd.10} parent=23 // pred_check
        %p217 = pneg %p75
      $region30: #{hovernet_fwd.10} parent=23 // pred_check_branch
        %219 = sbr.rel (%p217) target = $region32
      $region31: #{hovernet_fwd.10} parent=23 // pred_region
        %s220 = sadd.s32 %s19, 1
        %p221 = scmp.lt.s32.totalorder %s18, 1
        %s222 = scalar_select %p221, %s18, 1
        %p223 = scmp.lt.s32.totalorder %s220, 5
        %s224 = scalar_select %p223, %s220, 5
        %s225 = smul.addr %s222, 6
        %s226 = sadd.s32 %s224, %s225
        %s227 = smul.addr %s226, 4
        %s228 = scalar_lea.vmem %s1, %s227
        %s229 = sadd.s32 %s19, 1
      $region32: #{hovernet_fwd.10} parent=23 // pred_fallthru
        _
      // Predicated region
      $region33: #{hovernet_fwd.10} parent=23 // pred_check
        %p230 = pneg %p105
      $region34: #{hovernet_fwd.10} parent=23 // pred_check_branch
        %232 = sbr.rel (%p230) target = $region36
      $region35: #{hovernet_fwd.10} parent=23 // pred_region
        %s233 = sadd.s32 %s19, 2
        %p234 = scmp.lt.s32.totalorder %s18, 1
        %s235 = scalar_select %p234, %s18, 1
        %p236 = scmp.lt.s32.totalorder %s233, 5
        %s237 = scalar_select %p236, %s233, 5
        %s238 = smul.addr %s235, 6
        %s239 = sadd.s32 %s237, %s238
        %s240 = smul.addr %s239, 4
        %s241 = scalar_lea.vmem %s2, %s240
        %s242 = sadd.s32 %s19, 2
      $region36: #{hovernet_fwd.10} parent=23 // pred_fallthru
        _
    $region24: #{hovernet_fwd.10} parent=5 // pred_fallthru
      _
    %p243 = scmp.le.s32.totalorder 1, %s11
    %p244 = scmp.lt.s32.totalorder %s11, 9
    %p245 = pnand %p243, %p244
    %p246 = pneg %p245
    // Predicated region
    $region37: #{hovernet_fwd.10} parent=5 // pred_check
      _
    $region38: #{hovernet_fwd.10} parent=5 // pred_check_branch
      %248 = sbr.rel (%p245) target = $region40
    $region39: #{hovernet_fwd.10} parent=5 // pred_region
      %s249 = ssub.s32 %s11, 1
      %p250 = scmp.lt.s32.totalorder %s20, 1
      %s251 = scalar_select %p250, %s20, 1
      %p252 = scmp.lt.s32.totalorder %s21, 5
      %s253 = scalar_select %p252, %s21, 5
      %s254 = smul.addr %s251, 6
      %s255 = sadd.s32 %s253, %s254
      %s256 = smul.addr %s255, 4
      %s257 = scalar_lea.vmem %s0, %s256
      %p258 = pneg %p51
      %p259 = pneg %p48
      %s260 = sadd.s32 %s21, 1
      %p261 = scmp.lt.s32.totalorder %s20, 1
      %s262 = scalar_select %p261, %s20, 1
      %p263 = scmp.lt.s32.totalorder %s260, 5
      %s264 = scalar_select %p263, %s260, 5
      %s265 = smul.addr %s262, 6
      %s266 = sadd.s32 %s264, %s265
      %s267 = smul.addr %s266, 4
      %s268 = scalar_lea.vmem %s1, %s267
      %p269 = pneg %p81
      %p270 = pneg %p78
      %s271 = sadd.s32 %s21, 2
      %p272 = scmp.lt.s32.totalorder %s20, 1
      %s273 = scalar_select %p272, %s20, 1
      %p274 = scmp.lt.s32.totalorder %s271, 5
      %s275 = scalar_select %p274, %s271, 5
      %s276 = smul.addr %s273, 6
      %s277 = sadd.s32 %s275, %s276
      %s278 = smul.addr %s277, 4
      %s279 = scalar_lea.vmem %s2, %s278
      %p280 = pneg %p111
      %p281 = pneg %p108
      %p282 = pneg %p132
      %p283 = pneg %p129
      %p284 = pneg %p153
      %p285 = pneg %p150
      %p286 = pneg %p181
      %p287 = pneg %p178
      %p288 = scmp.lt.s32.totalorder %s20, 1
      %s289 = scalar_select %p288, %s20, 1
      %p290 = scmp.lt.s32.totalorder %s21, 3
      %s291 = scalar_select %p290, %s21, 3
      %s292 = smul.addr %s289, 4
      %s293 = sadd.s32 %s291, %s292
      %s294 = smul.addr %s293, 2
      %s295 = scalar_lea.vmem %s5, %s294
      %p296 = scmp.lt.s32.totalorder %s20, 1
      %s297 = scalar_select %p296, %s20, 1
      %p298 = scmp.lt.s32.totalorder %s21, 5
      %s299 = scalar_select %p298, %s21, 5
      %s300 = smul.addr %s297, 6
      %s301 = sadd.s32 %s299, %s300
      %s302 = smul.addr %s301, 4
      %s303 = scalar_lea.vmem %s0, %s302
      %s304 = sadd.s32 %s21, 1
      %p305 = scmp.lt.s32.totalorder %s20, 1
      %s306 = scalar_select %p305, %s20, 1
      %p307 = scmp.lt.s32.totalorder %s304, 5
      %s308 = scalar_select %p307, %s304, 5
      %s309 = smul.addr %s306, 6
      %s310 = sadd.s32 %s308, %s309
      %s311 = smul.addr %s310, 4
      %s312 = scalar_lea.vmem %s1, %s311
      %s313 = sadd.s32 %s21, 1
      %s314 = sadd.s32 %s21, 2
      %p315 = scmp.lt.s32.totalorder %s20, 1
      %s316 = scalar_select %p315, %s20, 1
      %p317 = scmp.lt.s32.totalorder %s314, 5
      %s318 = scalar_select %p317, %s314, 5
      %s319 = smul.addr %s316, 6
      %s320 = sadd.s32 %s318, %s319
      %s321 = smul.addr %s320, 4
      %s322 = scalar_lea.vmem %s2, %s321
      %s323 = sadd.s32 %s21, 2
      %p324 = scmp.lt.s32.totalorder %s20, 1
      %s325 = scalar_select %p324, %s20, 1
      %p326 = scmp.lt.s32.totalorder %s21, 3
      %s327 = scalar_select %p326, %s21, 3
      %s328 = smul.addr %s325, 4
      %s329 = sadd.s32 %s327, %s328
      %s330 = smul.addr %s329, 2
      %s331 = scalar_lea.vmem %s5, %s330
      %v333 = vld [vmem:[%s303] sm:$0x7]
      %v334 = vld [vmem:[%s3] sm:$0xf]
      %v335 = vld [vmem:[%s3 + $0x4] sm:$0xf]
      %s336 = scalar_lea.vmem %s3, 8
      %v337 = vld [vmem:[%s336] sm:$0xf]
      %v338 = vld [vmem:[%s336 + $0x4] sm:$0xf]
      %v340 = vunpack.c.l.b16 %v333
      %v341 = vpack.c.b16 %v340, %v340
      %v343 = vshrl.u32 %v341, 16
      %v345 = vshll.u32 %v341, 16
      %v347 = vrot.slane %v345, 1
      %v348 = vor.u32 %v343, %v347
      %v351 = vunpack.c.l.b16 %v337
      %v352 = vunpack.c.l.b16 %v338
      %v353 = vpack.c.b16 %v352, %v351
      %vm355 = vcmask 130048
      %v357 = vsel %vm355, %v348, 0
      %359 = vmatpush.bf16.msra.mxu0 0
      %360 = vmatpush.bf16.msra.mxu0 0
      %361 = vmatpush.bf16.msra.mxu0 0
      %362 = vmatpush.bf16.msra.mxu0 0
      %363 = vmatpush.bf16.msra.mxu0 0
      %364 = vmatpush.bf16.msra.mxu0 0
      %365 = vmatpush.bf16.msra.mxu0 0
      %366 = vmatpush.bf16.msra.mxu0 %v353
      %367 = vmatmul.bf16.gmra.mxu0 %v357
      %v368 = vpop.f32.mrf.mxu0
      %v369 = vadd.f32 0.0, %v368
      %v370 = vpop.f32.mrf.mxu0
      %371 = vdwg.mxu0
      %v374 = vunpack.c.l.b16 %v334
      %v375 = vunpack.c.l.b16 %v335
      %v376 = vpack.c.b16 %v375, %v374
      %v379 = vsel %vm355, %v333, 0
      %381 = vmatpush.bf16.msra.mxu0 0
      %382 = vmatpush.bf16.msra.mxu0 0
      %383 = vmatpush.bf16.msra.mxu0 0
      %384 = vmatpush.bf16.msra.mxu0 0
      %385 = vmatpush.bf16.msra.mxu0 0
      %386 = vmatpush.bf16.msra.mxu0 0
      %387 = vmatpush.bf16.msra.mxu0 0
      %388 = vmatpush.bf16.msra.mxu0 %v376
      %389 = vmatmul.bf16.gmra.mxu0 %v379
      %v390 = vpop.f32.mrf.mxu0
      %v391 = vadd.f32 %v369, %v390
      %v392 = vpop.f32.mrf.mxu0
      %393 = vdwg.mxu0
      %s394 = scalar_lea.vmem %s3, 16
      %v395 = vld [vmem:[%s394] sm:$0xf]
      %v396 = vld [vmem:[%s394 + $0x4] sm:$0xf]
      %v397 = vrot.slane %v341, 1
      %v400 = vunpack.c.l.b16 %v395
      %v401 = vunpack.c.l.b16 %v396
      %v402 = vpack.c.b16 %v401, %v400
      %v405 = vsel %vm355, %v397, 0
      %407 = vmatpush.bf16.msra.mxu0 0
      %408 = vmatpush.bf16.msra.mxu0 0
      %409 = vmatpush.bf16.msra.mxu0 0
      %410 = vmatpush.bf16.msra.mxu0 0
      %411 = vmatpush.bf16.msra.mxu0 0
      %412 = vmatpush.bf16.msra.mxu0 0
      %413 = vmatpush.bf16.msra.mxu0 0
      %414 = vmatpush.bf16.msra.mxu0 %v402
      %415 = vmatmul.bf16.gmra.mxu0 %v405
      %v416 = vpop.f32.mrf.mxu0
      %v417 = vadd.f32 0.0, %v416
      %v418 = vpop.f32.mrf.mxu0
      %419 = vdwg.mxu0
      %v420 = vadd.f32 %v391, %v417
      %v421 = vld [vmem:[%s312] sm:$0x7]
      %s422 = scalar_lea.vmem %s3, 24
      %v423 = vld [vmem:[%s422] sm:$0xf]
      %v424 = vld [vmem:[%s422 + $0x4] sm:$0xf]
      %v427 = vunpack.c.l.b16 %v423
      %v428 = vunpack.c.l.b16 %v424
      %v429 = vpack.c.b16 %v428, %v427
      %v432 = vsel %vm355, %v421, 0
      %434 = vmatpush.bf16.msra.mxu0 0
      %435 = vmatpush.bf16.msra.mxu0 0
      %436 = vmatpush.bf16.msra.mxu0 0
      %437 = vmatpush.bf16.msra.mxu0 0
      %438 = vmatpush.bf16.msra.mxu0 0
      %439 = vmatpush.bf16.msra.mxu0 0
      %440 = vmatpush.bf16.msra.mxu0 0
      %441 = vmatpush.bf16.msra.mxu0 %v429
      %442 = vmatmul.bf16.gmra.mxu0 %v432
      %v443 = vpop.f32.mrf.mxu0
      %v444 = vadd.f32 0.0, %v443
      %v445 = vpop.f32.mrf.mxu0
      %446 = vdwg.mxu0
      %v447 = vadd.f32 %v420, %v444
      %s448 = scalar_lea.vmem %s3, 32
      %v449 = vld [vmem:[%s448] sm:$0xf]
      %v450 = vld [vmem:[%s448 + $0x4] sm:$0xf]
      %v452 = vunpack.c.l.b16 %v421
      %v453 = vpack.c.b16 %v452, %v452
      %v455 = vshrl.u32 %v453, 16
      %v457 = vshll.u32 %v453, 16
      %v459 = vrot.slane %v457, 1
      %v460 = vor.u32 %v455, %v459
      %v463 = vunpack.c.l.b16 %v449
      %v464 = vunpack.c.l.b16 %v450
      %v465 = vpack.c.b16 %v464, %v463
      %v468 = vsel %vm355, %v460, 0
      %470 = vmatpush.bf16.msra.mxu0 0
      %471 = vmatpush.bf16.msra.mxu0 0
      %472 = vmatpush.bf16.msra.mxu0 0
      %473 = vmatpush.bf16.msra.mxu0 0
      %474 = vmatpush.bf16.msra.mxu0 0
      %475 = vmatpush.bf16.msra.mxu0 0
      %476 = vmatpush.bf16.msra.mxu0 0
      %477 = vmatpush.bf16.msra.mxu0 %v465
      %478 = vmatmul.bf16.gmra.mxu0 %v468
      %v479 = vpop.f32.mrf.mxu0
      %v480 = vadd.f32 0.0, %v479
      %v481 = vpop.f32.mrf.mxu0
      %482 = vdwg.mxu0
      %v483 = vadd.f32 %v447, %v480
      %s484 = scalar_lea.vmem %s3, 40
      %v485 = vld [vmem:[%s484] sm:$0xf]
      %v486 = vld [vmem:[%s484 + $0x4] sm:$0xf]
      %v487 = vrot.slane %v453, 1
      %v490 = vunpack.c.l.b16 %v485
      %v491 = vunpack.c.l.b16 %v486
      %v492 = vpack.c.b16 %v491, %v490
      %v495 = vsel %vm355, %v487, 0
      %497 = vmatpush.bf16.msra.mxu0 0
      %498 = vmatpush.bf16.msra.mxu0 0
      %499 = vmatpush.bf16.msra.mxu0 0
      %500 = vmatpush.bf16.msra.mxu0 0
      %501 = vmatpush.bf16.msra.mxu0 0
      %502 = vmatpush.bf16.msra.mxu0 0
      %503 = vmatpush.bf16.msra.mxu0 0
      %504 = vmatpush.bf16.msra.mxu0 %v492
      %505 = vmatmul.bf16.gmra.mxu0 %v495
      %v506 = vpop.f32.mrf.mxu0
      %v507 = vadd.f32 0.0, %v506
      %v508 = vpop.f32.mrf.mxu0
      %509 = vdwg.mxu0
      %v510 = vadd.f32 %v483, %v507
      %v511 = vld [vmem:[%s322] sm:$0x7]
      %s512 = scalar_lea.vmem %s3, 48
      %v513 = vld [vmem:[%s512] sm:$0xf]
      %v514 = vld [vmem:[%s512 + $0x4] sm:$0xf]
      %v517 = vunpack.c.l.b16 %v513
      %v518 = vunpack.c.l.b16 %v514
      %v519 = vpack.c.b16 %v518, %v517
      %v522 = vsel %vm355, %v511, 0
      %524 = vmatpush.bf16.msra.mxu0 0
      %525 = vmatpush.bf16.msra.mxu0 0
      %526 = vmatpush.bf16.msra.mxu0 0
      %527 = vmatpush.bf16.msra.mxu0 0
      %528 = vmatpush.bf16.msra.mxu0 0
      %529 = vmatpush.bf16.msra.mxu0 0
      %530 = vmatpush.bf16.msra.mxu0 0
      %531 = vmatpush.bf16.msra.mxu0 %v519
      %532 = vmatmul.bf16.gmra.mxu0 %v522
      %v533 = vpop.f32.mrf.mxu0
      %v534 = vadd.f32 0.0, %v533
      %v535 = vpop.f32.mrf.mxu0
      %536 = vdwg.mxu0
      %v537 = vadd.f32 %v510, %v534
      %s538 = scalar_lea.vmem %s3, 56
      %v539 = vld [vmem:[%s538] sm:$0xf]
      %v540 = vld [vmem:[%s538 + $0x4] sm:$0xf]
      %v542 = vunpack.c.l.b16 %v511
      %v543 = vpack.c.b16 %v542, %v542
      %v545 = vshrl.u32 %v543, 16
      %v547 = vshll.u32 %v543, 16
      %v549 = vrot.slane %v547, 1
      %v550 = vor.u32 %v545, %v549
      %v553 = vunpack.c.l.b16 %v539
      %v554 = vunpack.c.l.b16 %v540
      %v555 = vpack.c.b16 %v554, %v553
      %v558 = vsel %vm355, %v550, 0
      %560 = vmatpush.bf16.msra.mxu0 0
      %561 = vmatpush.bf16.msra.mxu0 0
      %562 = vmatpush.bf16.msra.mxu0 0
      %563 = vmatpush.bf16.msra.mxu0 0
      %564 = vmatpush.bf16.msra.mxu0 0
      %565 = vmatpush.bf16.msra.mxu0 0
      %566 = vmatpush.bf16.msra.mxu0 0
      %567 = vmatpush.bf16.msra.mxu0 %v555
      %568 = vmatmul.bf16.gmra.mxu0 %v558
      %v569 = vpop.f32.mrf.mxu0
      %v570 = vadd.f32 0.0, %v569
      %v571 = vpop.f32.mrf.mxu0
      %572 = vdwg.mxu0
      %v573 = vadd.f32 %v537, %v570
      %s574 = scalar_lea.vmem %s3, 64
      %v575 = vld [vmem:[%s574] sm:$0xf]
      %v576 = vld [vmem:[%s574 + $0x4] sm:$0xf]
      %v577 = vrot.slane %v543, 1
      %v580 = vunpack.c.l.b16 %v575
      %v581 = vunpack.c.l.b16 %v576
      %v582 = vpack.c.b16 %v581, %v580
      %v585 = vsel %vm355, %v577, 0
      %587 = vmatpush.bf16.msra.mxu0 0
      %588 = vmatpush.bf16.msra.mxu0 0
      %589 = vmatpush.bf16.msra.mxu0 0
      %590 = vmatpush.bf16.msra.mxu0 0
      %591 = vmatpush.bf16.msra.mxu0 0
      %592 = vmatpush.bf16.msra.mxu0 0
      %593 = vmatpush.bf16.msra.mxu0 0
      %594 = vmatpush.bf16.msra.mxu0 %v582
      %595 = vmatmul.bf16.gmra.mxu0 %v585
      %v596 = vpop.f32.mrf.mxu0
      %v597 = vadd.f32 0.0, %v596
      %v598 = vpop.f32.mrf.mxu0
      %599 = vdwg.mxu0
      %v600 = vadd.f32 %v573, %v597
      %v601 = vld [vmem:[%s4] sm:$0x1]
      %v603 = vperm.slane %v601, 0
      %v605 = vadd.f32 %v600, %v603
      %v606 = vmax.f32 %v605, 0.0
      %v607 = vpack.c.bf16 %v606, %v606
      %vm608 = vcmask 254976
      %609 = vst.msk [vmem:[%s331] sm:$0x3] %vm608, %v607
      %p610 = scmp.lt.s32.totalorder %s20, 1
      %s611 = scalar_select %p610, %s20, 1
      %p612 = scmp.lt.s32.totalorder %s21, 3
      %s613 = scalar_select %p612, %s21, 3
      %s614 = smul.addr %s611, 4
      %s615 = sadd.s32 %s613, %s614
      %s616 = smul.addr %s615, 2
      %s617 = scalar_lea.vmem %s5, %s616
      // Predicated region
      $region41: #{hovernet_fwd.10} parent=39 // pred_check
        %p618 = pneg %p178
      $region42: #{hovernet_fwd.10} parent=39 // pred_check_branch
        %620 = sbr.rel (%p618) target = $region44
      $region43: #{hovernet_fwd.10} parent=39 // pred_region
        _
      $region44: #{hovernet_fwd.10} parent=39 // pred_fallthru
        _
    $region40: #{hovernet_fwd.10} parent=5 // pred_fallthru
      _
    %p621 = scmp.le.s32.totalorder 2, %s11
    // Predicated region
    $region45: #{hovernet_fwd.10} parent=5 // pred_check
      %p622 = pneg %p621
    $region46: #{hovernet_fwd.10} parent=5 // pred_check_branch
      %624 = sbr.rel (%p622) target = $region48
    $region47: #{hovernet_fwd.10} parent=5 // pred_region
      %s625 = ssub.s32 %s11, 2
      // Predicated region
      $region49: #{hovernet_fwd.10} parent=47 // pred_check
        %p626 = pneg %p184
      $region50: #{hovernet_fwd.10} parent=47 // pred_check_branch
        %628 = sbr.rel (%p626) target = $region52
      $region51: #{hovernet_fwd.10} parent=47 // pred_region
        %p629 = scmp.lt.s32.totalorder %s22, 1
        %s630 = scalar_select %p629, %s22, 1
        %p631 = scmp.lt.s32.totalorder %s23, 3
        %s632 = scalar_select %p631, %s23, 3
        %s633 = smul.addr %s630, 4
        %s634 = sadd.s32 %s632, %s633
        %s635 = smul.addr %s634, 2
        %s636 = scalar_lea.vmem %s5, %s635
      $region52: #{hovernet_fwd.10} parent=47 // pred_fallthru
        _
    $region48: #{hovernet_fwd.10} parent=5 // pred_fallthru
      _
  $region6: #{hovernet_fwd.10} parent=0 // loop_footer
    %s15 = sadd.s32 1, %s11
  $region7: #{hovernet_fwd.10} parent=0 // loop_footer_branch
    %10 = sbr.rel target = $region3
  $region8: #{hovernet_fwd.10} parent=0 // loop_exit
    _

// kernel: hovernet_fwd.11
$region0: #{hovernet_fwd.11}
  #allocation0 [shape = 'u32[]', space=smem, size = 0x4, offset = 0x4, fixed_abs, tag = 'smem constant byte address 0x4 - core index']
  #allocation1 [shape = 'u32[72,128]{1,0:T(1,128)}', space=vmem, size = 0x9000, scoped, tag = 'internal scratch']
  %s0 = inlined_call_operand.vmem [shape: bf16[2,4,4,32], index: 0, kind: input, shape index: {}, may-alias: {0,1,2}]
  %s1 = inlined_call_operand.vmem [shape: bf16[2,4,4,32], index: 1, kind: input, shape index: {}, may-alias: {0,1,2}]
  %s2 = inlined_call_operand.vmem [shape: bf16[2,4,4,32], index: 2, kind: input, shape index: {}, may-alias: {0,1,2}]
  %s3 = inlined_call_operand.vmem [shape: bf16[9,32,64], index: 3, kind: input, shape index: {}]
  %s4 = inlined_call_operand.vmem [shape: f32[1,64], index: 4, kind: input, shape index: {}]
  %s5 = inlined_call_operand.vmem [shape: bf16[2,2,2,64], index: 5, kind: output, shape index: {}]
  %s6 = sld [smem:[#allocation0]]
  $region53: #{hovernet_fwd.11} parent=0
    _
  %s8 = ssub.s32 1, %s6
  %s9 = scalar_select 0, %s8, %s6
  loop: start=0, step=1, limit=6
  $region2: #{hovernet_fwd.11} parent=0 // loop_pre_header
    _
  $region3: #{hovernet_fwd.11} parent=0 // loop_header
    %s11 = sphi 0, %s15
    %p12 = scmp.ge.s32.totalorder %s11, 6
    %s18 = sphi 0, %s30
    %s19 = sphi 0, %s26
    %s20 = sphi 0, %s18
    %s21 = sphi 0, %s19
    %s22 = sphi 0, %s20
    %s23 = sphi 0, %s21
    %s35 = sphi 0, %s37
    %s38 = sphi 0, %s35
    %s39 = sphi 0, %s38
    %s55 = sphi 0, %s39
    %s65 = sphi 0, %s67
    %s68 = sphi 0, %s65
    %s69 = sphi 0, %s68
    %s85 = sphi 0, %s69
    %s95 = sphi 0, %s97
    %s98 = sphi 0, %s95
    %s99 = sphi 0, %s98
    %s115 = sphi 0, %s99
    %s119 = sphi 0, %s119
    %s121 = sphi 0, %s119
    %s122 = sphi 0, %s121
    %s136 = sphi 0, %s122
    %s140 = sphi 0, %s140
    %s142 = sphi 0, %s140
    %s143 = sphi 0, %s142
    %s157 = sphi 0, %s143
    %s165 = sphi 0, %s167
    %s168 = sphi 0, %s165
    %s169 = sphi 0, %s168
    %s185 = sphi 0, %s169
  $region4: #{hovernet_fwd.11} parent=0 // loop_header_branch
    %14 = sbr.rel (%p12) target = $region8
  $region5: #{hovernet_fwd.11} parent=0 // loop_body
    %s16 = ssub.s32 %s11, 1
    %s17 = ssub.s32 %s11, 2
    %s24 = sadd.s32 1, %s19
    %p25 = scmp.ge.s32.totalorder %s24, 2
    %s26 = scalar_select %p25, 0, %s24
    %s27 = sadd.s32 1, %s18
    %s28 = scalar_select %p25, %s27, %s18
    %p29 = scmp.ge.s32.totalorder %s28, 2
    %s30 = scalar_select %p29, 0, %s28
    %s31 = ssub.s32 %s18, %s30
    %s32 = ssub.s32 %s19, %s26
    %s33 = sor.u32 %s31, %s32
    %p34 = scmp.eq.s32.totalorder %s33, 0
    %s36 = sadd.s32 %s35, 1
    %s37 = scalar_select %p34, %s35, %s36
    %p40 = pneg %p34
    %p41 = scmp.eq.s32.totalorder %s11, 3
    %p42 = por %p40, %p41
    %p43 = scmp.ne.s32.totalorder %s35, %s38
    %p44 = scmp.eq.s32.totalorder %s11, 0
    %p45 = por %p43, %p44
    %p46 = scmp.ne.s32.totalorder %s35, %s38
    %p47 = scmp.eq.s32.totalorder %s16, 3
    %p48 = por %p46, %p47
    %p49 = scmp.ne.s32.totalorder %s38, %s39
    %p50 = scmp.eq.s32.totalorder %s16, 0
    %p51 = por %p49, %p50
    %p52 = scmp.ne.s32.totalorder %s38, %s39
    %p53 = scmp.eq.s32.totalorder %s17, 3
    %p54 = por %p52, %p53
    %p56 = scmp.ne.s32.totalorder %s39, %s55
    %p57 = scmp.eq.s32.totalorder %s17, 0
    %p58 = por %p56, %p57
    %s59 = sadd.s32 %s19, 1
    %s60 = sadd.s32 %s26, 1
    %s61 = ssub.s32 %s18, %s30
    %s62 = ssub.s32 %s59, %s60
    %s63 = sor.u32 %s61, %s62
    %p64 = scmp.eq.s32.totalorder %s63, 0
    %s66 = sadd.s32 %s65, 1
    %s67 = scalar_select %p64, %s65, %s66
    %p70 = pneg %p64
    %p71 = scmp.eq.s32.totalorder %s11, 3
    %p72 = por %p70, %p71
    %p73 = scmp.ne.s32.totalorder %s65, %s68
    %p74 = scmp.eq.s32.totalorder %s11, 0
    %p75 = por %p73, %p74
    %p76 = scmp.ne.s32.totalorder %s65, %s68
    %p77 = scmp.eq.s32.totalorder %s16, 3
    %p78 = por %p76, %p77
    %p79 = scmp.ne.s32.totalorder %s68, %s69
    %p80 = scmp.eq.s32.totalorder %s16, 0
    %p81 = por %p79, %p80
    %p82 = scmp.ne.s32.totalorder %s68, %s69
    %p83 = scmp.eq.s32.totalorder %s17, 3
    %p84 = por %p82, %p83
    %p86 = scmp.ne.s32.totalorder %s69, %s85
    %p87 = scmp.eq.s32.totalorder %s17, 0
    %p88 = por %p86, %p87
    %s89 = sadd.s32 %s19, 2
    %s90 = sadd.s32 %s26, 2
    %s91 = ssub.s32 %s18, %s30
    %s92 = ssub.s32 %s89, %s90
    %s93 = sor.u32 %s91, %s92
    %p94 = scmp.eq.s32.totalorder %s93, 0
    %s96 = sadd.s32 %s95, 1
    %s97 = scalar_select %p94, %s95, %s96
    %p100 = pneg %p94
    %p101 = scmp.eq.s32.totalorder %s11, 3
    %p102 = por %p100, %p101
    %p103 = scmp.ne.s32.totalorder %s95, %s98
    %p104 = scmp.eq.s32.totalorder %s11, 0
    %p105 = por %p103, %p104
    %p106 = scmp.ne.s32.totalorder %s95, %s98
    %p107 = scmp.eq.s32.totalorder %s16, 3
    %p108 = por %p106, %p107
    %p109 = scmp.ne.s32.totalorder %s98, %s99
    %p110 = scmp.eq.s32.totalorder %s16, 0
    %p111 = por %p109, %p110
    %p112 = scmp.ne.s32.totalorder %s98, %s99
    %p113 = scmp.eq.s32.totalorder %s17, 3
    %p114 = por %p112, %p113
    %p116 = scmp.ne.s32.totalorder %s99, %s115
    %p117 = scmp.eq.s32.totalorder %s17, 0
    %p118 = por %p116, %p117
    %s120 = sadd.s32 %s119, 1
    %p123 = scmp.eq.s32.totalorder %s11, 3
    %p124 = scmp.ne.s32.totalorder %s119, %s121
    %p125 = scmp.eq.s32.totalorder %s11, 0
    %p126 = por %p124, %p125
    %p127 = scmp.ne.s32.totalorder %s119, %s121
    %p128 = scmp.eq.s32.totalorder %s16, 3
    %p129 = por %p127, %p128
    %p130 = scmp.ne.s32.totalorder %s121, %s122
    %p131 = scmp.eq.s32.totalorder %s16, 0
    %p132 = por %p130, %p131
    %p133 = scmp.ne.s32.totalorder %s121, %s122
    %p134 = scmp.eq.s32.totalorder %s17, 3
    %p135 = por %p133, %p134
    %p137 = scmp.ne.s32.totalorder %s122, %s136
    %p138 = scmp.eq.s32.totalorder %s17, 0
    %p139 = por %p137, %p138
    %s141 = sadd.s32 %s140, 1
    %p144 = scmp.eq.s32.totalorder %s11, 3
    %p145 = scmp.ne.s32.totalorder %s140, %s142
    %p146 = scmp.eq.s32.totalorder %s11, 0
    %p147 = por %p145, %p146
    %p148 = scmp.ne.s32.totalorder %s140, %s142
    %p149 = scmp.eq.s32.totalorder %s16, 3
    %p150 = por %p148, %p149
    %p151 = scmp.ne.s32.totalorder %s142, %s143
    %p152 = scmp.eq.s32.totalorder %s16, 0
    %p153 = por %p151, %p152
    %p154 = scmp.ne.s32.totalorder %s142, %s143
    %p155 = scmp.eq.s32.totalorder %s17, 3
    %p156 = por %p154, %p155
    %p158 = scmp.ne.s32.totalorder %s143, %s157
    %p159 = scmp.eq.s32.totalorder %s17, 0
    %p160 = por %p158, %p159
    %s161 = ssub.s32 %s18, %s30
    %s162 = ssub.s32 %s19, %s26
    %s163 = sor.u32 %s161, %s162
    %p164 = scmp.eq.s32.totalorder %s163, 0
    %s166 = sadd.s32 %s165, 1
    %s167 = scalar_select %p164, %s165, %s166
    %p170 = pneg %p164
    %p171 = scmp.eq.s32.totalorder %s11, 3
    %p172 = por %p170, %p171
    %p173 = scmp.ne.s32.totalorder %s165, %s168
    %p174 = scmp.eq.s32.totalorder %s11, 0
    %p175 = por %p173, %p174
    %p176 = scmp.ne.s32.totalorder %s165, %s168
    %p177 = scmp.eq.s32.totalorder %s16, 3
    %p178 = por %p176, %p177
    %p179 = scmp.ne.s32.totalorder %s168, %s169
    %p180 = scmp.eq.s32.totalorder %s16, 0
    %p181 = por %p179, %p180
    %p182 = scmp.ne.s32.totalorder %s168, %s169
    %p183 = scmp.eq.s32.totalorder %s17, 3
    %p184 = por %p182, %p183
    %p186 = scmp.ne.s32.totalorder %s169, %s185
    %p187 = scmp.eq.s32.totalorder %s17, 0
    %p188 = por %p186, %p187
    %p189 = scmp.le.s32.totalorder 1, %s11
    %p190 = scmp.lt.s32.totalorder %s11, 5
    %p191 = pnand %p189, %p190
    %p192 = pneg %p191
    // Predicated region
    $region9: #{hovernet_fwd.11} parent=5 // pred_check
      _
    $region10: #{hovernet_fwd.11} parent=5 // pred_check_branch
      %194 = sbr.rel (%p191) target = $region12
    $region11: #{hovernet_fwd.11} parent=5 // pred_region
      %s195 = ssub.s32 %s11, 1
      // Predicated region
      $region13: #{hovernet_fwd.11} parent=11 // pred_check
        %p196 = pneg %p132
      $region14: #{hovernet_fwd.11} parent=11 // pred_check_branch
        %198 = sbr.rel (%p196) target = $region16
      $region15: #{hovernet_fwd.11} parent=11 // pred_region
        _
      $region16: #{hovernet_fwd.11} parent=11 // pred_fallthru
        _
      // Predicated region
      $region17: #{hovernet_fwd.11} parent=11 // pred_check
        %p199 = pneg %p153
      $region18: #{hovernet_fwd.11} parent=11 // pred_check_branch
        %201 = sbr.rel (%p199) target = $region20
      $region19: #{hovernet_fwd.11} parent=11 // pred_region
        _
      $region20: #{hovernet_fwd.11} parent=11 // pred_fallthru
        _
    $region12: #{hovernet_fwd.11} parent=5 // pred_fallthru
      _
    %p202 = scmp.lt.s32.totalorder %s11, 4
    // Predicated region
    $region21: #{hovernet_fwd.11} parent=5 // pred_check
      %p203 = pneg %p202
    $region22: #{hovernet_fwd.11} parent=5 // pred_check_branch
      %205 = sbr.rel (%p203) target = $region24
    $region23: #{hovernet_fwd.11} parent=5 // pred_region
      // Predicated region
      $region25: #{hovernet_fwd.11} parent=23 // pred_check
        %p206 = pneg %p45
      $region26: #{hovernet_fwd.11} parent=23 // pred_check_branch
        %208 = sbr.rel (%p206) target = $region28
      $region27: #{hovernet_fwd.11} parent=23 // pred_region
        %p209 = scmp.lt.s32.totalorder %s18, 1
        %s210 = scalar_select %p209, %s18, 1
        %p211 = scmp.lt.s32.totalorder %s19, 3
        %s212 = scalar_select %p211, %s19, 3
        %s213 = smul.addr %s210, 4
        %s214 = sadd.s32 %s212, %s213
        %s215 = smul.addr %s214, 2
        %s216 = scalar_lea.vmem %s0, %s215
      $region28: #{hovernet_fwd.11} parent=23 // pred_fallthru
        _
      // Predicated region
      $region29: #{hovernet_fwd.11} parent=23 // pred_check
        %p217 = pneg %p75
      $region30: #{hovernet_fwd.11} parent=23 // pred_check_branch
        %219 = sbr.rel (%p217) target = $region32
      $region31: #{hovernet_fwd.11} parent=23 // pred_region
        %s220 = sadd.s32 %s19, 1
        %p221 = scmp.lt.s32.totalorder %s18, 1
        %s222 = scalar_select %p221, %s18, 1
        %p223 = scmp.lt.s32.totalorder %s220, 3
        %s224 = scalar_select %p223, %s220, 3
        %s225 = smul.addr %s222, 4
        %s226 = sadd.s32 %s224, %s225
        %s227 = smul.addr %s226, 2
        %s228 = scalar_lea.vmem %s1, %s227
        %s229 = sadd.s32 %s19, 1
      $region32: #{hovernet_fwd.11} parent=23 // pred_fallthru
        _
      // Predicated region
      $region33: #{hovernet_fwd.11} parent=23 // pred_check
        %p230 = pneg %p105
      $region34: #{hovernet_fwd.11} parent=23 // pred_check_branch
        %232 = sbr.rel (%p230) target = $region36
      $region35: #{hovernet_fwd.11} parent=23 // pred_region
        %s233 = sadd.s32 %s19, 2
        %p234 = scmp.lt.s32.totalorder %s18, 1
        %s235 = scalar_select %p234, %s18, 1
        %p236 = scmp.lt.s32.totalorder %s233, 3
        %s237 = scalar_select %p236, %s233, 3
        %s238 = smul.addr %s235, 4
        %s239 = sadd.s32 %s237, %s238
        %s240 = smul.addr %s239, 2
        %s241 = scalar_lea.vmem %s2, %s240
        %s242 = sadd.s32 %s19, 2
      $region36: #{hovernet_fwd.11} parent=23 // pred_fallthru
        _
    $region24: #{hovernet_fwd.11} parent=5 // pred_fallthru
      _
    %p243 = scmp.le.s32.totalorder 1, %s11
    %p244 = scmp.lt.s32.totalorder %s11, 5
    %p245 = pnand %p243, %p244
    %p246 = pneg %p245
    // Predicated region
    $region37: #{hovernet_fwd.11} parent=5 // pred_check
      _
    $region38: #{hovernet_fwd.11} parent=5 // pred_check_branch
      %248 = sbr.rel (%p245) target = $region40
    $region39: #{hovernet_fwd.11} parent=5 // pred_region
      %s249 = ssub.s32 %s11, 1
      %p250 = scmp.lt.s32.totalorder %s20, 1
      %s251 = scalar_select %p250, %s20, 1
      %p252 = scmp.lt.s32.totalorder %s21, 3
      %s253 = scalar_select %p252, %s21, 3
      %s254 = smul.addr %s251, 4
      %s255 = sadd.s32 %s253, %s254
      %s256 = smul.addr %s255, 2
      %s257 = scalar_lea.vmem %s0, %s256
      %p258 = pneg %p51
      %p259 = pneg %p48
      %s260 = sadd.s32 %s21, 1
      %p261 = scmp.lt.s32.totalorder %s20, 1
      %s262 = scalar_select %p261, %s20, 1
      %p263 = scmp.lt.s32.totalorder %s260, 3
      %s264 = scalar_select %p263, %s260, 3
      %s265 = smul.addr %s262, 4
      %s266 = sadd.s32 %s264, %s265
      %s267 = smul.addr %s266, 2
      %s268 = scalar_lea.vmem %s1, %s267
      %p269 = pneg %p81
      %p270 = pneg %p78
      %s271 = sadd.s32 %s21, 2
      %p272 = scmp.lt.s32.totalorder %s20, 1
      %s273 = scalar_select %p272, %s20, 1
      %p274 = scmp.lt.s32.totalorder %s271, 3
      %s275 = scalar_select %p274, %s271, 3
      %s276 = smul.addr %s273, 4
      %s277 = sadd.s32 %s275, %s276
      %s278 = smul.addr %s277, 2
      %s279 = scalar_lea.vmem %s2, %s278
      %p280 = pneg %p111
      %p281 = pneg %p108
      %p282 = pneg %p132
      %p283 = pneg %p129
      %p284 = pneg %p153
      %p285 = pneg %p150
      %p286 = pneg %p181
      %p287 = pneg %p178
      %p288 = scmp.lt.s32.totalorder %s20, 1
      %s289 = scalar_select %p288, %s20, 1
      %p290 = scmp.lt.s32.totalorder %s21, 1
      %s291 = scalar_select %p290, %s21, 1
      %s292 = smul.addr %s289, 2
      %s293 = sadd.s32 %s291, %s292
      %s294 = scalar_lea.vmem %s5, %s293
      %p295 = scmp.lt.s32.totalorder %s20, 1
      %s296 = scalar_select %p295, %s20, 1
      %p297 = scmp.lt.s32.totalorder %s21, 3
      %s298 = scalar_select %p297, %s21, 3
      %s299 = smul.addr %s296, 4
      %s300 = sadd.s32 %s298, %s299
      %s301 = smul.addr %s300, 2
      %s302 = scalar_lea.vmem %s0, %s301
      %s303 = sadd.s32 %s21, 1
      %p304 = scmp.lt.s32.totalorder %s20, 1
      %s305 = scalar_select %p304, %s20, 1
      %p306 = scmp.lt.s32.totalorder %s303, 3
      %s307 = scalar_select %p306, %s303, 3
      %s308 = smul.addr %s305, 4
      %s309 = sadd.s32 %s307, %s308
      %s310 = smul.addr %s309, 2
      %s311 = scalar_lea.vmem %s1, %s310
      %s312 = sadd.s32 %s21, 1
      %s313 = sadd.s32 %s21, 2
      %p314 = scmp.lt.s32.totalorder %s20, 1
      %s315 = scalar_select %p314, %s20, 1
      %p316 = scmp.lt.s32.totalorder %s313, 3
      %s317 = scalar_select %p316, %s313, 3
      %s318 = smul.addr %s315, 4
      %s319 = sadd.s32 %s317, %s318
      %s320 = smul.addr %s319, 2
      %s321 = scalar_lea.vmem %s2, %s320
      %s322 = sadd.s32 %s21, 2
      %p323 = scmp.lt.s32.totalorder %s20, 1
      %s324 = scalar_select %p323, %s20, 1
      %p325 = scmp.lt.s32.totalorder %s21, 1
      %s326 = scalar_select %p325, %s21, 1
      %s327 = smul.addr %s324, 2
      %s328 = sadd.s32 %s326, %s327
      %s329 = scalar_lea.vmem %s5, %s328
      %v331 = vld [vmem:[%s302] sm:$0x3]
      %v332 = vld [vmem:[%s3] sm:$0xf]
      %v333 = vld [vmem:[%s3 + $0x4] sm:$0xf]
      %v334 = vld [vmem:[%s3 + $0x8] sm:$0xf]
      %v335 = vld [vmem:[%s3 + $0xc] sm:$0xf]
      %s336 = scalar_lea.vmem %s3, 16
      %v337 = vld [vmem:[%s336] sm:$0xf]
      %v338 = vld [vmem:[%s336 + $0x4] sm:$0xf]
      %v339 = vld [vmem:[%s336 + $0x8] sm:$0xf]
      %v340 = vld [vmem:[%s336 + $0xc] sm:$0xf]
      %342 = vst [vmem:[#allocation1] ss:$4 sm:$0xff] %v331
      %v343 = vld.sshfl [vmem:[#allocation1] sm:$0xff pattern:$0x73625140]
      %v344 = vshrl.u32 %v343, 16
      %v346 = vshll.u32 %v343, 16
      %v348 = vrot.slane %v346, 1
      %v349 = vor.u32 %v344, %v348
      %v354 = vunpack.c.l.b16 %v337
      %v355 = vunpack.c.l.b16 %v338
      %v356 = vunpack.c.l.b16 %v339
      %v357 = vunpack.c.l.b16 %v340
      %v358 = vpack.c.b16 %v355, %v354
      %v359 = vpack.c.b16 %v357, %v356
      %vm362 = vcmask 261120
      %v364 = vsel %vm362, %v349, 0
      %366 = vmatpush.bf16.msra.mxu0 0
      %367 = vmatpush.bf16.msra.mxu0 0
      %368 = vmatpush.bf16.msra.mxu0 0
      %369 = vmatpush.bf16.msra.mxu0 0
      %370 = vmatpush.bf16.msra.mxu0 0
      %371 = vmatpush.bf16.msra.mxu0 0
      %372 = vmatpush.bf16.msra.mxu0 %v359
      %373 = vmatpush.bf16.msra.mxu0 %v358
      %374 = vmatmul.bf16.gmra.mxu0 %v364
      %v375 = vpop.f32.mrf.mxu0
      %v376 = vadd.f32 0.0, %v375
      %v377 = vpop.f32.mrf.mxu0
      %378 = vdwg.mxu0
      %v383 = vunpack.c.l.b16 %v332
      %v384 = vunpack.c.l.b16 %v333
      %v385 = vunpack.c.l.b16 %v334
      %v386 = vunpack.c.l.b16 %v335
      %v387 = vpack.c.b16 %v384, %v383
      %v388 = vpack.c.b16 %v386, %v385
      %v391 = vsel %vm362, %v331, 0
      %393 = vmatpush.bf16.msra.mxu0 0
      %394 = vmatpush.bf16.msra.mxu0 0
      %395 = vmatpush.bf16.msra.mxu0 0
      %396 = vmatpush.bf16.msra.mxu0 0
      %397 = vmatpush.bf16.msra.mxu0 0
      %398 = vmatpush.bf16.msra.mxu0 0
      %399 = vmatpush.bf16.msra.mxu0 %v388
      %400 = vmatpush.bf16.msra.mxu0 %v387
      %401 = vmatmul.bf16.gmra.mxu0 %v391
      %v402 = vpop.f32.mrf.mxu0
      %v403 = vadd.f32 %v376, %v402
      %v404 = vpop.f32.mrf.mxu0
      %405 = vdwg.mxu0
      %s406 = scalar_lea.vmem %s3, 32
      %v407 = vld [vmem:[%s406] sm:$0xf]
      %v408 = vld [vmem:[%s406 + $0x4] sm:$0xf]
      %v409 = vld [vmem:[%s406 + $0x8] sm:$0xf]
      %v410 = vld [vmem:[%s406 + $0xc] sm:$0xf]
      %411 = vst [vmem:[#allocation1] ss:$4 sm:$0xff] %v331
      %v412 = vld.sshfl [vmem:[#allocation1] sm:$0xff pattern:$0x73625140]
      %v414 = vrot.slane %v412, 1
      %v419 = vunpack.c.l.b16 %v407
      %v420 = vunpack.c.l.b16 %v408
      %v421 = vunpack.c.l.b16 %v409
      %v422 = vunpack.c.l.b16 %v410
      %v423 = vpack.c.b16 %v420, %v419
      %v424 = vpack.c.b16 %v422, %v421
      %v428 = vsel %vm362, %v414, 0
      %430 = vmatpush.bf16.msra.mxu0 0
      %431 = vmatpush.bf16.msra.mxu0 0
      %432 = vmatpush.bf16.msra.mxu0 0
      %433 = vmatpush.bf16.msra.mxu0 0
      %434 = vmatpush.bf16.msra.mxu0 0
      %435 = vmatpush.bf16.msra.mxu0 0
      %436 = vmatpush.bf16.msra.mxu0 %v424
      %437 = vmatpush.bf16.msra.mxu0 %v423
      %438 = vmatmul.bf16.gmra.mxu0 %v428
      %v439 = vpop.f32.mrf.mxu0
      %v440 = vadd.f32 0.0, %v439
      %v441 = vpop.f32.mrf.mxu0
      %442 = vdwg.mxu0
      %v443 = vadd.f32 %v403, %v440
      %v444 = vld [vmem:[%s311] sm:$0x3]
      %s445 = scalar_lea.vmem %s3, 48
      %v446 = vld [vmem:[%s445] sm:$0xf]
      %v447 = vld [vmem:[%s445 + $0x4] sm:$0xf]
      %v448 = vld [vmem:[%s445 + $0x8] sm:$0xf]
      %v449 = vld [vmem:[%s445 + $0xc] sm:$0xf]
      %v454 = vunpack.c.l.b16 %v446
      %v455 = vunpack.c.l.b16 %v447
      %v456 = vunpack.c.l.b16 %v448
      %v457 = vunpack.c.l.b16 %v449
      %v458 = vpack.c.b16 %v455, %v454
      %v459 = vpack.c.b16 %v457, %v456
      %v463 = vsel %vm362, %v444, 0
      %465 = vmatpush.bf16.msra.mxu0 0
      %466 = vmatpush.bf16.msra.mxu0 0
      %467 = vmatpush.bf16.msra.mxu0 0
      %468 = vmatpush.bf16.msra.mxu0 0
      %469 = vmatpush.bf16.msra.mxu0 0
      %470 = vmatpush.bf16.msra.mxu0 0
      %471 = vmatpush.bf16.msra.mxu0 %v459
      %472 = vmatpush.bf16.msra.mxu0 %v458
      %473 = vmatmul.bf16.gmra.mxu0 %v463
      %v474 = vpop.f32.mrf.mxu0
      %v475 = vadd.f32 0.0, %v474
      %v476 = vpop.f32.mrf.mxu0
      %477 = vdwg.mxu0
      %v478 = vadd.f32 %v443, %v475
      %s479 = scalar_lea.vmem %s3, 64
      %v480 = vld [vmem:[%s479] sm:$0xf]
      %v481 = vld [vmem:[%s479 + $0x4] sm:$0xf]
      %v482 = vld [vmem:[%s479 + $0x8] sm:$0xf]
      %v483 = vld [vmem:[%s479 + $0xc] sm:$0xf]
      %484 = vst [vmem:[#allocation1] ss:$4 sm:$0xff] %v444
      %v485 = vld.sshfl [vmem:[#allocation1] sm:$0xff pattern:$0x73625140]
      %v486 = vshrl.u32 %v485, 16
      %v488 = vshll.u32 %v485, 16
      %v490 = vrot.slane %v488, 1
      %v491 = vor.u32 %v486, %v490
      %v496 = vunpack.c.l.b16 %v480
      %v497 = vunpack.c.l.b16 %v481
      %v498 = vunpack.c.l.b16 %v482
      %v499 = vunpack.c.l.b16 %v483
      %v500 = vpack.c.b16 %v497, %v496
      %v501 = vpack.c.b16 %v499, %v498
      %v505 = vsel %vm362, %v491, 0
      %507 = vmatpush.bf16.msra.mxu0 0
      %508 = vmatpush.bf16.msra.mxu0 0
      %509 = vmatpush.bf16.msra.mxu0 0
      %510 = vmatpush.bf16.msra.mxu0 0
      %511 = vmatpush.bf16.msra.mxu0 0
      %512 = vmatpush.bf16.msra.mxu0 0
      %513 = vmatpush.bf16.msra.mxu0 %v501
      %514 = vmatpush.bf16.msra.mxu0 %v500
      %515 = vmatmul.bf16.gmra.mxu0 %v505
      %v516 = vpop.f32.mrf.mxu0
      %v517 = vadd.f32 0.0, %v516
      %v518 = vpop.f32.mrf.mxu0
      %519 = vdwg.mxu0
      %v520 = vadd.f32 %v478, %v517
      %s521 = scalar_lea.vmem %s3, 80
      %v522 = vld [vmem:[%s521] sm:$0xf]
      %v523 = vld [vmem:[%s521 + $0x4] sm:$0xf]
      %v524 = vld [vmem:[%s521 + $0x8] sm:$0xf]
      %v525 = vld [vmem:[%s521 + $0xc] sm:$0xf]
      %526 = vst [vmem:[#allocation1] ss:$4 sm:$0xff] %v444
      %v527 = vld.sshfl [vmem:[#allocation1] sm:$0xff pattern:$0x73625140]
      %v529 = vrot.slane %v527, 1
      %v534 = vunpack.c.l.b16 %v522
      %v535 = vunpack.c.l.b16 %v523
      %v536 = vunpack.c.l.b16 %v524
      %v537 = vunpack.c.l.b16 %v525
      %v538 = vpack.c.b16 %v535, %v534
      %v539 = vpack.c.b16 %v537, %v536
      %v543 = vsel %vm362, %v529, 0
      %545 = vmatpush.bf16.msra.mxu0 0
      %546 = vmatpush.bf16.msra.mxu0 0
      %547 = vmatpush.bf16.msra.mxu0 0
      %548 = vmatpush.bf16.msra.mxu0 0
      %549 = vmatpush.bf16.msra.mxu0 0
      %550 = vmatpush.bf16.msra.mxu0 0
      %551 = vmatpush.bf16.msra.mxu0 %v539
      %552 = vmatpush.bf16.msra.mxu0 %v538
      %553 = vmatmul.bf16.gmra.mxu0 %v543
      %v554 = vpop.f32.mrf.mxu0
      %v555 = vadd.f32 0.0, %v554
      %v556 = vpop.f32.mrf.mxu0
      %557 = vdwg.mxu0
      %v558 = vadd.f32 %v520, %v555
      %v559 = vld [vmem:[%s321] sm:$0x3]
      %s560 = scalar_lea.vmem %s3, 96
      %v561 = vld [vmem:[%s560] sm:$0xf]
      %v562 = vld [vmem:[%s560 + $0x4] sm:$0xf]
      %v563 = vld [vmem:[%s560 + $0x8] sm:$0xf]
      %v564 = vld [vmem:[%s560 + $0xc] sm:$0xf]
      %v569 = vunpack.c.l.b16 %v561
      %v570 = vunpack.c.l.b16 %v562
      %v571 = vunpack.c.l.b16 %v563
      %v572 = vunpack.c.l.b16 %v564
      %v573 = vpack.c.b16 %v570, %v569
      %v574 = vpack.c.b16 %v572, %v571
      %v578 = vsel %vm362, %v559, 0
      %580 = vmatpush.bf16.msra.mxu0 0
      %581 = vmatpush.bf16.msra.mxu0 0
      %582 = vmatpush.bf16.msra.mxu0 0
      %583 = vmatpush.bf16.msra.mxu0 0
      %584 = vmatpush.bf16.msra.mxu0 0
      %585 = vmatpush.bf16.msra.mxu0 0
      %586 = vmatpush.bf16.msra.mxu0 %v574
      %587 = vmatpush.bf16.msra.mxu0 %v573
      %588 = vmatmul.bf16.gmra.mxu0 %v578
      %v589 = vpop.f32.mrf.mxu0
      %v590 = vadd.f32 0.0, %v589
      %v591 = vpop.f32.mrf.mxu0
      %592 = vdwg.mxu0
      %v593 = vadd.f32 %v558, %v590
      %s594 = scalar_lea.vmem %s3, 112
      %v595 = vld [vmem:[%s594] sm:$0xf]
      %v596 = vld [vmem:[%s594 + $0x4] sm:$0xf]
      %v597 = vld [vmem:[%s594 + $0x8] sm:$0xf]
      %v598 = vld [vmem:[%s594 + $0xc] sm:$0xf]
      %599 = vst [vmem:[#allocation1] ss:$4 sm:$0xff] %v559
      %v600 = vld.sshfl [vmem:[#allocation1] sm:$0xff pattern:$0x73625140]
      %v601 = vshrl.u32 %v600, 16
      %v603 = vshll.u32 %v600, 16
      %v605 = vrot.slane %v603, 1
      %v606 = vor.u32 %v601, %v605
      %v611 = vunpack.c.l.b16 %v595
      %v612 = vunpack.c.l.b16 %v596
      %v613 = vunpack.c.l.b16 %v597
      %v614 = vunpack.c.l.b16 %v598
      %v615 = vpack.c.b16 %v612, %v611
      %v616 = vpack.c.b16 %v614, %v613
      %v620 = vsel %vm362, %v606, 0
      %622 = vmatpush.bf16.msra.mxu0 0
      %623 = vmatpush.bf16.msra.mxu0 0
      %624 = vmatpush.bf16.msra.mxu0 0
      %625 = vmatpush.bf16.msra.mxu0 0
      %626 = vmatpush.bf16.msra.mxu0 0
      %627 = vmatpush.bf16.msra.mxu0 0
      %628 = vmatpush.bf16.msra.mxu0 %v616
      %629 = vmatpush.bf16.msra.mxu0 %v615
      %630 = vmatmul.bf16.gmra.mxu0 %v620
      %v631 = vpop.f32.mrf.mxu0
      %v632 = vadd.f32 0.0, %v631
      %v633 = vpop.f32.mrf.mxu0
      %634 = vdwg.mxu0
      %v635 = vadd.f32 %v593, %v632
      %s636 = scalar_lea.vmem %s3, 128
      %v637 = vld [vmem:[%s636] sm:$0xf]
      %v638 = vld [vmem:[%s636 + $0x4] sm:$0xf]
      %v639 = vld [vmem:[%s636 + $0x8] sm:$0xf]
      %v640 = vld [vmem:[%s636 + $0xc] sm:$0xf]
      %641 = vst [vmem:[#allocation1] ss:$4 sm:$0xff] %v559
      %v642 = vld.sshfl [vmem:[#allocation1] sm:$0xff pattern:$0x73625140]
      %v644 = vrot.slane %v642, 1
      %v649 = vunpack.c.l.b16 %v637
      %v650 = vunpack.c.l.b16 %v638
      %v651 = vunpack.c.l.b16 %v639
      %v652 = vunpack.c.l.b16 %v640
      %v653 = vpack.c.b16 %v650, %v649
      %v654 = vpack.c.b16 %v652, %v651
      %v658 = vsel %vm362, %v644, 0
      %660 = vmatpush.bf16.msra.mxu0 0
      %661 = vmatpush.bf16.msra.mxu0 0
      %662 = vmatpush.bf16.msra.mxu0 0
      %663 = vmatpush.bf16.msra.mxu0 0
      %664 = vmatpush.bf16.msra.mxu0 0
      %665 = vmatpush.bf16.msra.mxu0 0
      %666 = vmatpush.bf16.msra.mxu0 %v654
      %667 = vmatpush.bf16.msra.mxu0 %v653
      %668 = vmatmul.bf16.gmra.mxu0 %v658
      %v669 = vpop.f32.mrf.mxu0
      %v670 = vadd.f32 0.0, %v669
      %v671 = vpop.f32.mrf.mxu0
      %672 = vdwg.mxu0
      %v673 = vadd.f32 %v635, %v670
      %v674 = vld [vmem:[%s4] sm:$0x1]
      %v676 = vperm.slane %v674, 0
      %v678 = vadd.f32 %v673, %v676
      %v679 = vmax.f32 %v678, 0.0
      %v680 = vpack.c.bf16 %v679, %v679
      %vm681 = vcmask 516096
      %682 = vst.msk [vmem:[%s329] sm:$0x1] %vm681, %v680
      %p683 = scmp.lt.s32.totalorder %s20, 1
      %s684 = scalar_select %p683, %s20, 1
      %p685 = scmp.lt.s32.totalorder %s21, 1
      %s686 = scalar_select %p685, %s21, 1
      %s687 = smul.addr %s684, 2
      %s688 = sadd.s32 %s686, %s687
      %s689 = scalar_lea.vmem %s5, %s688
      // Predicated region
      $region41: #{hovernet_fwd.11} parent=39 // pred_check
        %p690 = pneg %p178
      $region42: #{hovernet_fwd.11} parent=39 // pred_check_branch
        %692 = sbr.rel (%p690) target = $region44
      $region43: #{hovernet_fwd.11} parent=39 // pred_region
        _
      $region44: #{hovernet_fwd.11} parent=39 // pred_fallthru
        _
    $region40: #{hovernet_fwd.11} parent=5 // pred_fallthru
      _
    %p693 = scmp.le.s32.totalorder 2, %s11
    // Predicated region
    $region45: #{hovernet_fwd.11} parent=5 // pred_check
      %p694 = pneg %p693
    $region46: #{hovernet_fwd.11} parent=5 // pred_check_branch
      %696 = sbr.rel (%p694) target = $region48
    $region47: #{hovernet_fwd.11} parent=5 // pred_region
      %s697 = ssub.s32 %s11, 2
      // Predicated region
      $region49: #{hovernet_fwd.11} parent=47 // pred_check
        %p698 = pneg %p184
      $region50: #{hovernet_fwd.11} parent=47 // pred_check_branch
        %700 = sbr.rel (%p698) target = $region52
      $region51: #{hovernet_fwd.11} parent=47 // pred_region
        %p701 = scmp.lt.s32.totalorder %s22, 1
        %s702 = scalar_select %p701, %s22, 1
        %p703 = scmp.lt.s32.totalorder %s23, 1
        %s704 = scalar_select %p703, %s23, 1
        %s705 = smul.addr %s702, 2
        %s706 = sadd.s32 %s704, %s705
        %s707 = scalar_lea.vmem %s5, %s706
      $region52: #{hovernet_fwd.11} parent=47 // pred_fallthru
        _
    $region48: #{hovernet_fwd.11} parent=5 // pred_fallthru
      _
  $region6: #{hovernet_fwd.11} parent=0 // loop_footer
    %s15 = sadd.s32 1, %s11
  $region7: #{hovernet_fwd.11} parent=0 // loop_footer_branch
    %10 = sbr.rel target = $region3
  $region8: #{hovernet_fwd.11} parent=0 // loop_exit
    _

// kernel: hovernet_fwd.12
$region0: #{hovernet_fwd.12}
  #allocation0 [shape = 'u32[]', space=smem, size = 0x4, offset = 0x4, fixed_abs, tag = 'smem constant byte address 0x4 - core index']
  #allocation1 [shape = 'u32[72,128]{1,0:T(1,128)}', space=vmem, size = 0x9000, scoped, tag = 'internal scratch']
  %s0 = inlined_call_operand.vmem [shape: bf16[2,6,6,96], index: 0, kind: input, shape index: {}, may-alias: {0,1,2}]
  %s1 = inlined_call_operand.vmem [shape: bf16[2,6,6,96], index: 1, kind: input, shape index: {}, may-alias: {0,1,2}]
  %s2 = inlined_call_operand.vmem [shape: bf16[2,6,6,96], index: 2, kind: input, shape index: {}, may-alias: {0,1,2}]
  %s3 = inlined_call_operand.vmem [shape: bf16[9,96,96], index: 3, kind: input, shape index: {}]
  %s4 = inlined_call_operand.vmem [shape: f32[1,96], index: 4, kind: input, shape index: {}]
  %s5 = inlined_call_operand.vmem [shape: bf16[2,4,4,96], index: 5, kind: output, shape index: {}]
  %s6 = sld [smem:[#allocation0]]
  $region53: #{hovernet_fwd.12} parent=0
    _
  %s8 = ssub.s32 1, %s6
  %s9 = scalar_select 0, %s8, %s6
  loop: start=0, step=1, limit=10
  $region2: #{hovernet_fwd.12} parent=0 // loop_pre_header
    _
  $region3: #{hovernet_fwd.12} parent=0 // loop_header
    %s11 = sphi 0, %s15
    %p12 = scmp.ge.s32.totalorder %s11, 10
    %s18 = sphi 0, %s30
    %s19 = sphi 0, %s26
    %s20 = sphi 0, %s18
    %s21 = sphi 0, %s19
    %s22 = sphi 0, %s20
    %s23 = sphi 0, %s21
    %s35 = sphi 0, %s37
    %s38 = sphi 0, %s35
    %s39 = sphi 0, %s38
    %s55 = sphi 0, %s39
    %s65 = sphi 0, %s67
    %s68 = sphi 0, %s65
    %s69 = sphi 0, %s68
    %s85 = sphi 0, %s69
    %s95 = sphi 0, %s97
    %s98 = sphi 0, %s95
    %s99 = sphi 0, %s98
    %s115 = sphi 0, %s99
    %s119 = sphi 0, %s119
    %s121 = sphi 0, %s119
    %s122 = sphi 0, %s121
    %s136 = sphi 0, %s122
    %s140 = sphi 0, %s140
    %s142 = sphi 0, %s140
    %s143 = sphi 0, %s142
    %s157 = sphi 0, %s143
    %s165 = sphi 0, %s167
    %s168 = sphi 0, %s165
    %s169 = sphi 0, %s168
    %s185 = sphi 0, %s169
  $region4: #{hovernet_fwd.12} parent=0 // loop_header_branch
    %14 = sbr.rel (%p12) target = $region8
  $region5: #{hovernet_fwd.12} parent=0 // loop_body
    %s16 = ssub.s32 %s11, 1
    %s17 = ssub.s32 %s11, 2
    %s24 = sadd.s32 1, %s19
    %p25 = scmp.ge.s32.totalorder %s24, 4
    %s26 = scalar_select %p25, 0, %s24
    %s27 = sadd.s32 1, %s18
    %s28 = scalar_select %p25, %s27, %s18
    %p29 = scmp.ge.s32.totalorder %s28, 2
    %s30 = scalar_select %p29, 0, %s28
    %s31 = ssub.s32 %s18, %s30
    %s32 = ssub.s32 %s19, %s26
    %s33 = sor.u32 %s31, %s32
    %p34 = scmp.eq.s32.totalorder %s33, 0
    %s36 = sadd.s32 %s35, 1
    %s37 = scalar_select %p34, %s35, %s36
    %p40 = pneg %p34
    %p41 = scmp.eq.s32.totalorder %s11, 7
    %p42 = por %p40, %p41
    %p43 = scmp.ne.s32.totalorder %s35, %s38
    %p44 = scmp.eq.s32.totalorder %s11, 0
    %p45 = por %p43, %p44
    %p46 = scmp.ne.s32.totalorder %s35, %s38
    %p47 = scmp.eq.s32.totalorder %s16, 7
    %p48 = por %p46, %p47
    %p49 = scmp.ne.s32.totalorder %s38, %s39
    %p50 = scmp.eq.s32.totalorder %s16, 0
    %p51 = por %p49, %p50
    %p52 = scmp.ne.s32.totalorder %s38, %s39
    %p53 = scmp.eq.s32.totalorder %s17, 7
    %p54 = por %p52, %p53
    %p56 = scmp.ne.s32.totalorder %s39, %s55
    %p57 = scmp.eq.s32.totalorder %s17, 0
    %p58 = por %p56, %p57
    %s59 = sadd.s32 %s19, 1
    %s60 = sadd.s32 %s26, 1
    %s61 = ssub.s32 %s18, %s30
    %s62 = ssub.s32 %s59, %s60
    %s63 = sor.u32 %s61, %s62
    %p64 = scmp.eq.s32.totalorder %s63, 0
    %s66 = sadd.s32 %s65, 1
    %s67 = scalar_select %p64, %s65, %s66
    %p70 = pneg %p64
    %p71 = scmp.eq.s32.totalorder %s11, 7
    %p72 = por %p70, %p71
    %p73 = scmp.ne.s32.totalorder %s65, %s68
    %p74 = scmp.eq.s32.totalorder %s11, 0
    %p75 = por %p73, %p74
    %p76 = scmp.ne.s32.totalorder %s65, %s68
    %p77 = scmp.eq.s32.totalorder %s16, 7
    %p78 = por %p76, %p77
    %p79 = scmp.ne.s32.totalorder %s68, %s69
    %p80 = scmp.eq.s32.totalorder %s16, 0
    %p81 = por %p79, %p80
    %p82 = scmp.ne.s32.totalorder %s68, %s69
    %p83 = scmp.eq.s32.totalorder %s17, 7
    %p84 = por %p82, %p83
    %p86 = scmp.ne.s32.totalorder %s69, %s85
    %p87 = scmp.eq.s32.totalorder %s17, 0
    %p88 = por %p86, %p87
    %s89 = sadd.s32 %s19, 2
    %s90 = sadd.s32 %s26, 2
    %s91 = ssub.s32 %s18, %s30
    %s92 = ssub.s32 %s89, %s90
    %s93 = sor.u32 %s91, %s92
    %p94 = scmp.eq.s32.totalorder %s93, 0
    %s96 = sadd.s32 %s95, 1
    %s97 = scalar_select %p94, %s95, %s96
    %p100 = pneg %p94
    %p101 = scmp.eq.s32.totalorder %s11, 7
    %p102 = por %p100, %p101
    %p103 = scmp.ne.s32.totalorder %s95, %s98
    %p104 = scmp.eq.s32.totalorder %s11, 0
    %p105 = por %p103, %p104
    %p106 = scmp.ne.s32.totalorder %s95, %s98
    %p107 = scmp.eq.s32.totalorder %s16, 7
    %p108 = por %p106, %p107
    %p109 = scmp.ne.s32.totalorder %s98, %s99
    %p110 = scmp.eq.s32.totalorder %s16, 0
    %p111 = por %p109, %p110
    %p112 = scmp.ne.s32.totalorder %s98, %s99
    %p113 = scmp.eq.s32.totalorder %s17, 7
    %p114 = por %p112, %p113
    %p116 = scmp.ne.s32.totalorder %s99, %s115
    %p117 = scmp.eq.s32.totalorder %s17, 0
    %p118 = por %p116, %p117
    %s120 = sadd.s32 %s119, 1
    %p123 = scmp.eq.s32.totalorder %s11, 7
    %p124 = scmp.ne.s32.totalorder %s119, %s121
    %p125 = scmp.eq.s32.totalorder %s11, 0
    %p126 = por %p124, %p125
    %p127 = scmp.ne.s32.totalorder %s119, %s121
    %p128 = scmp.eq.s32.totalorder %s16, 7
    %p129 = por %p127, %p128
    %p130 = scmp.ne.s32.totalorder %s121, %s122
    %p131 = scmp.eq.s32.totalorder %s16, 0
    %p132 = por %p130, %p131
    %p133 = scmp.ne.s32.totalorder %s121, %s122
    %p134 = scmp.eq.s32.totalorder %s17, 7
    %p135 = por %p133, %p134
    %p137 = scmp.ne.s32.totalorder %s122, %s136
    %p138 = scmp.eq.s32.totalorder %s17, 0
    %p139 = por %p137, %p138
    %s141 = sadd.s32 %s140, 1
    %p144 = scmp.eq.s32.totalorder %s11, 7
    %p145 = scmp.ne.s32.totalorder %s140, %s142
    %p146 = scmp.eq.s32.totalorder %s11, 0
    %p147 = por %p145, %p146
    %p148 = scmp.ne.s32.totalorder %s140, %s142
    %p149 = scmp.eq.s32.totalorder %s16, 7
    %p150 = por %p148, %p149
    %p151 = scmp.ne.s32.totalorder %s142, %s143
    %p152 = scmp.eq.s32.totalorder %s16, 0
    %p153 = por %p151, %p152
    %p154 = scmp.ne.s32.totalorder %s142, %s143
    %p155 = scmp.eq.s32.totalorder %s17, 7
    %p156 = por %p154, %p155
    %p158 = scmp.ne.s32.totalorder %s143, %s157
    %p159 = scmp.eq.s32.totalorder %s17, 0
    %p160 = por %p158, %p159
    %s161 = ssub.s32 %s18, %s30
    %s162 = ssub.s32 %s19, %s26
    %s163 = sor.u32 %s161, %s162
    %p164 = scmp.eq.s32.totalorder %s163, 0
    %s166 = sadd.s32 %s165, 1
    %s167 = scalar_select %p164, %s165, %s166
    %p170 = pneg %p164
    %p171 = scmp.eq.s32.totalorder %s11, 7
    %p172 = por %p170, %p171
    %p173 = scmp.ne.s32.totalorder %s165, %s168
    %p174 = scmp.eq.s32.totalorder %s11, 0
    %p175 = por %p173, %p174
    %p176 = scmp.ne.s32.totalorder %s165, %s168
    %p177 = scmp.eq.s32.totalorder %s16, 7
    %p178 = por %p176, %p177
    %p179 = scmp.ne.s32.totalorder %s168, %s169
    %p180 = scmp.eq.s32.totalorder %s16, 0
    %p181 = por %p179, %p180
    %p182 = scmp.ne.s32.totalorder %s168, %s169
    %p183 = scmp.eq.s32.totalorder %s17, 7
    %p184 = por %p182, %p183
    %p186 = scmp.ne.s32.totalorder %s169, %s185
    %p187 = scmp.eq.s32.totalorder %s17, 0
    %p188 = por %p186, %p187
    %p189 = scmp.le.s32.totalorder 1, %s11
    %p190 = scmp.lt.s32.totalorder %s11, 9
    %p191 = pnand %p189, %p190
    %p192 = pneg %p191
    // Predicated region
    $region9: #{hovernet_fwd.12} parent=5 // pred_check
      _
    $region10: #{hovernet_fwd.12} parent=5 // pred_check_branch
      %194 = sbr.rel (%p191) target = $region12
    $region11: #{hovernet_fwd.12} parent=5 // pred_region
      %s195 = ssub.s32 %s11, 1
      // Predicated region
      $region13: #{hovernet_fwd.12} parent=11 // pred_check
        %p196 = pneg %p132
      $region14: #{hovernet_fwd.12} parent=11 // pred_check_branch
        %198 = sbr.rel (%p196) target = $region16
      $region15: #{hovernet_fwd.12} parent=11 // pred_region
        _
      $region16: #{hovernet_fwd.12} parent=11 // pred_fallthru
        _
      // Predicated region
      $region17: #{hovernet_fwd.12} parent=11 // pred_check
        %p199 = pneg %p153
      $region18: #{hovernet_fwd.12} parent=11 // pred_check_branch
        %201 = sbr.rel (%p199) target = $region20
      $region19: #{hovernet_fwd.12} parent=11 // pred_region
        _
      $region20: #{hovernet_fwd.12} parent=11 // pred_fallthru
        _
    $region12: #{hovernet_fwd.12} parent=5 // pred_fallthru
      _
    %p202 = scmp.lt.s32.totalorder %s11, 8
    // Predicated region
    $region21: #{hovernet_fwd.12} parent=5 // pred_check
      %p203 = pneg %p202
    $region22: #{hovernet_fwd.12} parent=5 // pred_check_branch
      %205 = sbr.rel (%p203) target = $region24
    $region23: #{hovernet_fwd.12} parent=5 // pred_region
      // Predicated region
      $region25: #{hovernet_fwd.12} parent=23 // pred_check
        %p206 = pneg %p45
      $region26: #{hovernet_fwd.12} parent=23 // pred_check_branch
        %208 = sbr.rel (%p206) target = $region28
      $region27: #{hovernet_fwd.12} parent=23 // pred_region
        %p209 = scmp.lt.s32.totalorder %s18, 1
        %s210 = scalar_select %p209, %s18, 1
        %p211 = scmp.lt.s32.totalorder %s19, 5
        %s212 = scalar_select %p211, %s19, 5
        %s213 = smul.addr %s210, 6
        %s214 = sadd.s32 %s212, %s213
        %s215 = smul.addr %s214, 4
        %s216 = scalar_lea.vmem %s0, %s215
      $region28: #{hovernet_fwd.12} parent=23 // pred_fallthru
        _
      // Predicated region
      $region29: #{hovernet_fwd.12} parent=23 // pred_check
        %p217 = pneg %p75
      $region30: #{hovernet_fwd.12} parent=23 // pred_check_branch
        %219 = sbr.rel (%p217) target = $region32
      $region31: #{hovernet_fwd.12} parent=23 // pred_region
        %s220 = sadd.s32 %s19, 1
        %p221 = scmp.lt.s32.totalorder %s18, 1
        %s222 = scalar_select %p221, %s18, 1
        %p223 = scmp.lt.s32.totalorder %s220, 5
        %s224 = scalar_select %p223, %s220, 5
        %s225 = smul.addr %s222, 6
        %s226 = sadd.s32 %s224, %s225
        %s227 = smul.addr %s226, 4
        %s228 = scalar_lea.vmem %s1, %s227
        %s229 = sadd.s32 %s19, 1
      $region32: #{hovernet_fwd.12} parent=23 // pred_fallthru
        _
      // Predicated region
      $region33: #{hovernet_fwd.12} parent=23 // pred_check
        %p230 = pneg %p105
      $region34: #{hovernet_fwd.12} parent=23 // pred_check_branch
        %232 = sbr.rel (%p230) target = $region36
      $region35: #{hovernet_fwd.12} parent=23 // pred_region
        %s233 = sadd.s32 %s19, 2
        %p234 = scmp.lt.s32.totalorder %s18, 1
        %s235 = scalar_select %p234, %s18, 1
        %p236 = scmp.lt.s32.totalorder %s233, 5
        %s237 = scalar_select %p236, %s233, 5
        %s238 = smul.addr %s235, 6
        %s239 = sadd.s32 %s237, %s238
        %s240 = smul.addr %s239, 4
        %s241 = scalar_lea.vmem %s2, %s240
        %s242 = sadd.s32 %s19, 2
      $region36: #{hovernet_fwd.12} parent=23 // pred_fallthru
        _
    $region24: #{hovernet_fwd.12} parent=5 // pred_fallthru
      _
    %p243 = scmp.le.s32.totalorder 1, %s11
    %p244 = scmp.lt.s32.totalorder %s11, 9
    %p245 = pnand %p243, %p244
    %p246 = pneg %p245
    // Predicated region
    $region37: #{hovernet_fwd.12} parent=5 // pred_check
      _
    $region38: #{hovernet_fwd.12} parent=5 // pred_check_branch
      %248 = sbr.rel (%p245) target = $region40
    $region39: #{hovernet_fwd.12} parent=5 // pred_region
      %s249 = ssub.s32 %s11, 1
      %p250 = scmp.lt.s32.totalorder %s20, 1
      %s251 = scalar_select %p250, %s20, 1
      %p252 = scmp.lt.s32.totalorder %s21, 5
      %s253 = scalar_select %p252, %s21, 5
      %s254 = smul.addr %s251, 6
      %s255 = sadd.s32 %s253, %s254
      %s256 = smul.addr %s255, 4
      %s257 = scalar_lea.vmem %s0, %s256
      %p258 = pneg %p51
      %p259 = pneg %p48
      %s260 = sadd.s32 %s21, 1
      %p261 = scmp.lt.s32.totalorder %s20, 1
      %s262 = scalar_select %p261, %s20, 1
      %p263 = scmp.lt.s32.totalorder %s260, 5
      %s264 = scalar_select %p263, %s260, 5
      %s265 = smul.addr %s262, 6
      %s266 = sadd.s32 %s264, %s265
      %s267 = smul.addr %s266, 4
      %s268 = scalar_lea.vmem %s1, %s267
      %p269 = pneg %p81
      %p270 = pneg %p78
      %s271 = sadd.s32 %s21, 2
      %p272 = scmp.lt.s32.totalorder %s20, 1
      %s273 = scalar_select %p272, %s20, 1
      %p274 = scmp.lt.s32.totalorder %s271, 5
      %s275 = scalar_select %p274, %s271, 5
      %s276 = smul.addr %s273, 6
      %s277 = sadd.s32 %s275, %s276
      %s278 = smul.addr %s277, 4
      %s279 = scalar_lea.vmem %s2, %s278
      %p280 = pneg %p111
      %p281 = pneg %p108
      %p282 = pneg %p132
      %p283 = pneg %p129
      %p284 = pneg %p153
      %p285 = pneg %p150
      %p286 = pneg %p181
      %p287 = pneg %p178
      %p288 = scmp.lt.s32.totalorder %s20, 1
      %s289 = scalar_select %p288, %s20, 1
      %p290 = scmp.lt.s32.totalorder %s21, 3
      %s291 = scalar_select %p290, %s21, 3
      %s292 = smul.addr %s289, 4
      %s293 = sadd.s32 %s291, %s292
      %s294 = smul.addr %s293, 2
      %s295 = scalar_lea.vmem %s5, %s294
      %p296 = scmp.lt.s32.totalorder %s20, 1
      %s297 = scalar_select %p296, %s20, 1
      %p298 = scmp.lt.s32.totalorder %s21, 5
      %s299 = scalar_select %p298, %s21, 5
      %s300 = smul.addr %s297, 6
      %s301 = sadd.s32 %s299, %s300
      %s302 = smul.addr %s301, 4
      %s303 = scalar_lea.vmem %s0, %s302
      %s304 = sadd.s32 %s21, 1
      %p305 = scmp.lt.s32.totalorder %s20, 1
      %s306 = scalar_select %p305, %s20, 1
      %p307 = scmp.lt.s32.totalorder %s304, 5
      %s308 = scalar_select %p307, %s304, 5
      %s309 = smul.addr %s306, 6
      %s310 = sadd.s32 %s308, %s309
      %s311 = smul.addr %s310, 4
      %s312 = scalar_lea.vmem %s1, %s311
      %s313 = sadd.s32 %s21, 1
      %s314 = sadd.s32 %s21, 2
      %p315 = scmp.lt.s32.totalorder %s20, 1
      %s316 = scalar_select %p315, %s20, 1
      %p317 = scmp.lt.s32.totalorder %s314, 5
      %s318 = scalar_select %p317, %s314, 5
      %s319 = smul.addr %s316, 6
      %s320 = sadd.s32 %s318, %s319
      %s321 = smul.addr %s320, 4
      %s322 = scalar_lea.vmem %s2, %s321
      %s323 = sadd.s32 %s21, 2
      %p324 = scmp.lt.s32.totalorder %s20, 1
      %s325 = scalar_select %p324, %s20, 1
      %p326 = scmp.lt.s32.totalorder %s21, 3
      %s327 = scalar_select %p326, %s21, 3
      %s328 = smul.addr %s325, 4
      %s329 = sadd.s32 %s327, %s328
      %s330 = smul.addr %s329, 2
      %s331 = scalar_lea.vmem %s5, %s330
      %v333 = vld [vmem:[%s303] sm:$0x7]
      %v334 = vld [vmem:[%s3] sm:$0xf]
      %v335 = vld [vmem:[%s3 + $0x4] sm:$0xf]
      %v336 = vld [vmem:[%s3 + $0x8] sm:$0xf]
      %v337 = vld [vmem:[%s3 + $0xc] sm:$0xf]
      %v338 = vld [vmem:[%s3 + $0x10] sm:$0xf]
      %v339 = vld [vmem:[%s3 + $0x14] sm:$0xf]
      %v340 = vld [vmem:[%s3 + $0x18] sm:$0xf]
      %v341 = vld [vmem:[%s3 + $0x1c] sm:$0xf]
      %v342 = vld [vmem:[%s3 + $0x20] sm:$0xf]
      %v343 = vld [vmem:[%s3 + $0x24] sm:$0xf]
      %v344 = vld [vmem:[%s3 + $0x28] sm:$0xf]
      %v345 = vld [vmem:[%s3 + $0x2c] sm:$0xf]
      %s346 = scalar_lea.vmem %s3, 48
      %v347 = vld [vmem:[%s346] sm:$0xf]
      %v348 = vld [vmem:[%s346 + $0x4] sm:$0xf]
      %v349 = vld [vmem:[%s346 + $0x8] sm:$0xf]
      %v350 = vld [vmem:[%s346 + $0xc] sm:$0xf]
      %v351 = vld [vmem:[%s346 + $0x10] sm:$0xf]
      %v352 = vld [vmem:[%s346 + $0x14] sm:$0xf]
      %v353 = vld [vmem:[%s346 + $0x18] sm:$0xf]
      %v354 = vld [vmem:[%s346 + $0x1c] sm:$0xf]
      %v355 = vld [vmem:[%s346 + $0x20] sm:$0xf]
      %v356 = vld [vmem:[%s346 + $0x24] sm:$0xf]
      %v357 = vld [vmem:[%s346 + $0x28] sm:$0xf]
      %v358 = vld [vmem:[%s346 + $0x2c] sm:$0xf]
      %v360 = vunpack.c.l.b16 %v333
      %v361 = vpack.c.b16 %v360, %v360
      %v363 = vshrl.u32 %v361, 16
      %v365 = vshll.u32 %v361, 16
      %v367 = vrot.slane %v365, 1
      %v368 = vor.u32 %v363, %v367
      %v381 = vunpack.c.l.b16 %v347
      %v382 = vunpack.c.l.b16 %v348
      %v383 = vunpack.c.l.b16 %v349
      %v384 = vunpack.c.l.b16 %v350
      %v385 = vunpack.c.l.b16 %v351
      %v386 = vunpack.c.l.b16 %v352
      %v387 = vunpack.c.l.b16 %v353
      %v388 = vunpack.c.l.b16 %v354
      %v389 = vunpack.c.l.b16 %v355
      %v390 = vunpack.c.l.b16 %v356
      %v391 = vunpack.c.l.b16 %v357
      %v392 = vunpack.c.l.b16 %v358
      %v393 = vpack.c.b16 %v382, %v381
      %v394 = vpack.c.b16 %v384, %v383
      %v395 = vpack.c.b16 %v386, %v385
      %v396 = vpack.c.b16 %v388, %v387
      %v397 = vpack.c.b16 %v390, %v389
      %v398 = vpack.c.b16 %v392, %v391
      %vm405 = vcmask 785408
      %v407 = vsel %vm405, %v368, 0
      %409 = vmatpush.bf16.msra.mxu0 0
      %410 = vmatpush.bf16.msra.mxu0 0
      %411 = vmatpush.bf16.msra.mxu0 %v398
      %412 = vmatpush.bf16.msra.mxu0 %v397
      %413 = vmatpush.bf16.msra.mxu0 %v396
      %414 = vmatpush.bf16.msra.mxu0 %v395
      %415 = vmatpush.bf16.msra.mxu0 %v394
      %416 = vmatpush.bf16.msra.mxu0 %v393
      %417 = vmatmul.bf16.gmra.mxu0 %v407
      %v418 = vpop.f32.mrf.mxu0
      %v419 = vadd.f32 0.0, %v418
      %v420 = vpop.f32.mrf.mxu0
      %421 = vdwg.mxu0
      %v434 = vunpack.c.l.b16 %v334
      %v435 = vunpack.c.l.b16 %v335
      %v436 = vunpack.c.l.b16 %v336
      %v437 = vunpack.c.l.b16 %v337
      %v438 = vunpack.c.l.b16 %v338
      %v439 = vunpack.c.l.b16 %v339
      %v440 = vunpack.c.l.b16 %v340
      %v441 = vunpack.c.l.b16 %v341
      %v442 = vunpack.c.l.b16 %v342
      %v443 = vunpack.c.l.b16 %v343
      %v444 = vunpack.c.l.b16 %v344
      %v445 = vunpack.c.l.b16 %v345
      %v446 = vpack.c.b16 %v435, %v434
      %v447 = vpack.c.b16 %v437, %v436
      %v448 = vpack.c.b16 %v439, %v438
      %v449 = vpack.c.b16 %v441, %v440
      %v450 = vpack.c.b16 %v443, %v442
      %v451 = vpack.c.b16 %v445, %v444
      %v459 = vsel %vm405, %v333, 0
      %461 = vmatpush.bf16.msra.mxu0 0
      %462 = vmatpush.bf16.msra.mxu0 0
      %463 = vmatpush.bf16.msra.mxu0 %v451
      %464 = vmatpush.bf16.msra.mxu0 %v450
      %465 = vmatpush.bf16.msra.mxu0 %v449
      %466 = vmatpush.bf16.msra.mxu0 %v448
      %467 = vmatpush.bf16.msra.mxu0 %v447
      %468 = vmatpush.bf16.msra.mxu0 %v446
      %469 = vmatmul.bf16.gmra.mxu0 %v459
      %v470 = vpop.f32.mrf.mxu0
      %v471 = vadd.f32 %v419, %v470
      %v472 = vpop.f32.mrf.mxu0
      %473 = vdwg.mxu0
      %s474 = scalar_lea.vmem %s3, 96
      %v475 = vld [vmem:[%s474] sm:$0xf]
      %v476 = vld [vmem:[%s474 + $0x4] sm:$0xf]
      %v477 = vld [vmem:[%s474 + $0x8] sm:$0xf]
      %v478 = vld [vmem:[%s474 + $0xc] sm:$0xf]
      %v479 = vld [vmem:[%s474 + $0x10] sm:$0xf]
      %v480 = vld [vmem:[%s474 + $0x14] sm:$0xf]
      %v481 = vld [vmem:[%s474 + $0x18] sm:$0xf]
      %v482 = vld [vmem:[%s474 + $0x1c] sm:$0xf]
      %v483 = vld [vmem:[%s474 + $0x20] sm:$0xf]
      %v484 = vld [vmem:[%s474 + $0x24] sm:$0xf]
      %v485 = vld [vmem:[%s474 + $0x28] sm:$0xf]
      %v486 = vld [vmem:[%s474 + $0x2c] sm:$0xf]
      %v487 = vrot.slane %v361, 1
      %v500 = vunpack.c.l.b16 %v475
      %v501 = vunpack.c.l.b16 %v476
      %v502 = vunpack.c.l.b16 %v477
      %v503 = vunpack.c.l.b16 %v478
      %v504 = vunpack.c.l.b16 %v479
      %v505 = vunpack.c.l.b16 %v480
      %v506 = vunpack.c.l.b16 %v481
      %v507 = vunpack.c.l.b16 %v482
      %v508 = vunpack.c.l.b16 %v483
      %v509 = vunpack.c.l.b16 %v484
      %v510 = vunpack.c.l.b16 %v485
      %v511 = vunpack.c.l.b16 %v486
      %v512 = vpack.c.b16 %v501, %v500
      %v513 = vpack.c.b16 %v503, %v502
      %v514 = vpack.c.b16 %v505, %v504
      %v515 = vpack.c.b16 %v507, %v506
      %v516 = vpack.c.b16 %v509, %v508
      %v517 = vpack.c.b16 %v511, %v510
      %v525 = vsel %vm405, %v487, 0
      %527 = vmatpush.bf16.msra.mxu0 0
      %528 = vmatpush.bf16.msra.mxu0 0
      %529 = vmatpush.bf16.msra.mxu0 %v517
      %530 = vmatpush.bf16.msra.mxu0 %v516
      %531 = vmatpush.bf16.msra.mxu0 %v515
      %532 = vmatpush.bf16.msra.mxu0 %v514
      %533 = vmatpush.bf16.msra.mxu0 %v513
      %534 = vmatpush.bf16.msra.mxu0 %v512
      %535 = vmatmul.bf16.gmra.mxu0 %v525
      %v536 = vpop.f32.mrf.mxu0
      %v537 = vadd.f32 0.0, %v536
      %v538 = vpop.f32.mrf.mxu0
      %539 = vdwg.mxu0
      %v540 = vadd.f32 %v471, %v537
      %v541 = vld [vmem:[%s312] sm:$0x7]
      %s542 = scalar_lea.vmem %s3, 144
      %v543 = vld [vmem:[%s542] sm:$0xf]
      %v544 = vld [vmem:[%s542 + $0x4] sm:$0xf]
      %v545 = vld [vmem:[%s542 + $0x8] sm:$0xf]
      %v546 = vld [vmem:[%s542 + $0xc] sm:$0xf]
      %v547 = vld [vmem:[%s542 + $0x10] sm:$0xf]
      %v548 = vld [vmem:[%s542 + $0x14] sm:$0xf]
      %v549 = vld [vmem:[%s542 + $0x18] sm:$0xf]
      %v550 = vld [vmem:[%s542 + $0x1c] sm:$0xf]
      %v551 = vld [vmem:[%s542 + $0x20] sm:$0xf]
      %v552 = vld [vmem:[%s542 + $0x24] sm:$0xf]
      %v553 = vld [vmem:[%s542 + $0x28] sm:$0xf]
      %v554 = vld [vmem:[%s542 + $0x2c] sm:$0xf]
      %v567 = vunpack.c.l.b16 %v543
      %v568 = vunpack.c.l.b16 %v544
      %v569 = vunpack.c.l.b16 %v545
      %v570 = vunpack.c.l.b16 %v546
      %v571 = vunpack.c.l.b16 %v547
      %v572 = vunpack.c.l.b16 %v548
      %v573 = vunpack.c.l.b16 %v549
      %v574 = vunpack.c.l.b16 %v550
      %v575 = vunpack.c.l.b16 %v551
      %v576 = vunpack.c.l.b16 %v552
      %v577 = vunpack.c.l.b16 %v553
      %v578 = vunpack.c.l.b16 %v554
      %v579 = vpack.c.b16 %v568, %v567
      %v580 = vpack.c.b16 %v570, %v569
      %v581 = vpack.c.b16 %v572, %v571
      %v582 = vpack.c.b16 %v574, %v573
      %v583 = vpack.c.b16 %v576, %v575
      %v584 = vpack.c.b16 %v578, %v577
      %v592 = vsel %vm405, %v541, 0
      %594 = vmatpush.bf16.msra.mxu0 0
      %595 = vmatpush.bf16.msra.mxu0 0
      %596 = vmatpush.bf16.msra.mxu0 %v584
      %597 = vmatpush.bf16.msra.mxu0 %v583
      %598 = vmatpush.bf16.msra.mxu0 %v582
      %599 = vmatpush.bf16.msra.mxu0 %v581
      %600 = vmatpush.bf16.msra.mxu0 %v580
      %601 = vmatpush.bf16.msra.mxu0 %v579
      %602 = vmatmul.bf16.gmra.mxu0 %v592
      %v603 = vpop.f32.mrf.mxu0
      %v604 = vadd.f32 0.0, %v603
      %v605 = vpop.f32.mrf.mxu0
      %606 = vdwg.mxu0
      %v607 = vadd.f32 %v540, %v604
      %s608 = scalar_lea.vmem %s3, 192
      %v609 = vld [vmem:[%s608] sm:$0xf]
      %v610 = vld [vmem:[%s608 + $0x4] sm:$0xf]
      %v611 = vld [vmem:[%s608 + $0x8] sm:$0xf]
      %v612 = vld [vmem:[%s608 + $0xc] sm:$0xf]
      %v613 = vld [vmem:[%s608 + $0x10] sm:$0xf]
      %v614 = vld [vmem:[%s608 + $0x14] sm:$0xf]
      %v615 = vld [vmem:[%s608 + $0x18] sm:$0xf]
      %v616 = vld [vmem:[%s608 + $0x1c] sm:$0xf]
      %v617 = vld [vmem:[%s608 + $0x20] sm:$0xf]
      %v618 = vld [vmem:[%s608 + $0x24] sm:$0xf]
      %v619 = vld [vmem:[%s608 + $0x28] sm:$0xf]
      %v620 = vld [vmem:[%s608 + $0x2c] sm:$0xf]
      %v622 = vunpack.c.l.b16 %v541
      %v623 = vpack.c.b16 %v622, %v622
      %v625 = vshrl.u32 %v623, 16
      %v627 = vshll.u32 %v623, 16
      %v629 = vrot.slane %v627, 1
      %v630 = vor.u32 %v625, %v629
      %v643 = vunpack.c.l.b16 %v609
      %v644 = vunpack.c.l.b16 %v610
      %v645 = vunpack.c.l.b16 %v611
      %v646 = vunpack.c.l.b16 %v612
      %v647 = vunpack.c.l.b16 %v613
      %v648 = vunpack.c.l.b16 %v614
      %v649 = vunpack.c.l.b16 %v615
      %v650 = vunpack.c.l.b16 %v616
      %v651 = vunpack.c.l.b16 %v617
      %v652 = vunpack.c.l.b16 %v618
      %v653 = vunpack.c.l.b16 %v619
      %v654 = vunpack.c.l.b16 %v620
      %v655 = vpack.c.b16 %v644, %v643
      %v656 = vpack.c.b16 %v646, %v645
      %v657 = vpack.c.b16 %v648, %v647
      %v658 = vpack.c.b16 %v650, %v649
      %v659 = vpack.c.b16 %v652, %v651
      %v660 = vpack.c.b16 %v654, %v653
      %v668 = vsel %vm405, %v630, 0
      %670 = vmatpush.bf16.msra.mxu0 0
      %671 = vmatpush.bf16.msra.mxu0 0
      %672 = vmatpush.bf16.msra.mxu0 %v660
      %673 = vmatpush.bf16.msra.mxu0 %v659
      %674 = vmatpush.bf16.msra.mxu0 %v658
      %675 = vmatpush.bf16.msra.mxu0 %v657
      %676 = vmatpush.bf16.msra.mxu0 %v656
      %677 = vmatpush.bf16.msra.mxu0 %v655
      %678 = vmatmul.bf16.gmra.mxu0 %v668
      %v679 = vpop.f32.mrf.mxu0
      %v680 = vadd.f32 0.0, %v679
      %v681 = vpop.f32.mrf.mxu0
      %682 = vdwg.mxu0
      %v683 = vadd.f32 %v607, %v680
      %s684 = scalar_lea.vmem %s3, 240
      %v685 = vld [vmem:[%s684] sm:$0xf]
      %v686 = vld [vmem:[%s684 + $0x4] sm:$0xf]
      %v687 = vld [vmem:[%s684 + $0x8] sm:$0xf]
      %v688 = vld [vmem:[%s684 + $0xc] sm:$0xf]
      %v689 = vld [vmem:[%s684 + $0x10] sm:$0xf]
      %v690 = vld [vmem:[%s684 + $0x14] sm:$0xf]
      %v691 = vld [vmem:[%s684 + $0x18] sm:$0xf]
      %v692 = vld [vmem:[%s684 + $0x1c] sm:$0xf]
      %v693 = vld [vmem:[%s684 + $0x20] sm:$0xf]
      %v694 = vld [vmem:[%s684 + $0x24] sm:$0xf]
      %v695 = vld [vmem:[%s684 + $0x28] sm:$0xf]
      %v696 = vld [vmem:[%s684 + $0x2c] sm:$0xf]
      %v697 = vrot.slane %v623, 1
      %v710 = vunpack.c.l.b16 %v685
      %v711 = vunpack.c.l.b16 %v686
      %v712 = vunpack.c.l.b16 %v687
      %v713 = vunpack.c.l.b16 %v688
      %v714 = vunpack.c.l.b16 %v689
      %v715 = vunpack.c.l.b16 %v690
      %v716 = vunpack.c.l.b16 %v691
      %v717 = vunpack.c.l.b16 %v692
      %v718 = vunpack.c.l.b16 %v693
      %v719 = vunpack.c.l.b16 %v694
      %v720 = vunpack.c.l.b16 %v695
      %v721 = vunpack.c.l.b16 %v696
      %v722 = vpack.c.b16 %v711, %v710
      %v723 = vpack.c.b16 %v713, %v712
      %v724 = vpack.c.b16 %v715, %v714
      %v725 = vpack.c.b16 %v717, %v716
      %v726 = vpack.c.b16 %v719, %v718
      %v727 = vpack.c.b16 %v721, %v720
      %v735 = vsel %vm405, %v697, 0
      %737 = vmatpush.bf16.msra.mxu0 0
      %738 = vmatpush.bf16.msra.mxu0 0
      %739 = vmatpush.bf16.msra.mxu0 %v727
      %740 = vmatpush.bf16.msra.mxu0 %v726
      %741 = vmatpush.bf16.msra.mxu0 %v725
      %742 = vmatpush.bf16.msra.mxu0 %v724
      %743 = vmatpush.bf16.msra.mxu0 %v723
      %744 = vmatpush.bf16.msra.mxu0 %v722
      %745 = vmatmul.bf16.gmra.mxu0 %v735
      %v746 = vpop.f32.mrf.mxu0
      %v747 = vadd.f32 0.0, %v746
      %v748 = vpop.f32.mrf.mxu0
      %749 = vdwg.mxu0
      %v750 = vadd.f32 %v683, %v747
      %v751 = vld [vmem:[%s322] sm:$0x7]
      %s752 = scalar_lea.vmem %s3, 288
      %v753 = vld [vmem:[%s752] sm:$0xf]
      %v754 = vld [vmem:[%s752 + $0x4] sm:$0xf]
      %v755 = vld [vmem:[%s752 + $0x8] sm:$0xf]
      %v756 = vld [vmem:[%s752 + $0xc] sm:$0xf]
      %v757 = vld [vmem:[%s752 + $0x10] sm:$0xf]
      %v758 = vld [vmem:[%s752 + $0x14] sm:$0xf]
      %v759 = vld [vmem:[%s752 + $0x18] sm:$0xf]
      %v760 = vld [vmem:[%s752 + $0x1c] sm:$0xf]
      %v761 = vld [vmem:[%s752 + $0x20] sm:$0xf]
      %v762 = vld [vmem:[%s752 + $0x24] sm:$0xf]
      %v763 = vld [vmem:[%s752 + $0x28] sm:$0xf]
      %v764 = vld [vmem:[%s752 + $0x2c] sm:$0xf]
      %v777 = vunpack.c.l.b16 %v753
      %v778 = vunpack.c.l.b16 %v754
      %v779 = vunpack.c.l.b16 %v755
      %v780 = vunpack.c.l.b16 %v756
      %v781 = vunpack.c.l.b16 %v757
      %v782 = vunpack.c.l.b16 %v758
      %v783 = vunpack.c.l.b16 %v759
      %v784 = vunpack.c.l.b16 %v760
      %v785 = vunpack.c.l.b16 %v761
      %v786 = vunpack.c.l.b16 %v762
      %v787 = vunpack.c.l.b16 %v763
      %v788 = vunpack.c.l.b16 %v764
      %v789 = vpack.c.b16 %v778, %v777
      %v790 = vpack.c.b16 %v780, %v779
      %v791 = vpack.c.b16 %v782, %v781
      %v792 = vpack.c.b16 %v784, %v783
      %v793 = vpack.c.b16 %v786, %v785
      %v794 = vpack.c.b16 %v788, %v787
      %v802 = vsel %vm405, %v751, 0
      %804 = vmatpush.bf16.msra.mxu0 0
      %805 = vmatpush.bf16.msra.mxu0 0
      %806 = vmatpush.bf16.msra.mxu0 %v794
      %807 = vmatpush.bf16.msra.mxu0 %v793
      %808 = vmatpush.bf16.msra.mxu0 %v792
      %809 = vmatpush.bf16.msra.mxu0 %v791
      %810 = vmatpush.bf16.msra.mxu0 %v790
      %811 = vmatpush.bf16.msra.mxu0 %v789
      %812 = vmatmul.bf16.gmra.mxu0 %v802
      %v813 = vpop.f32.mrf.mxu0
      %v814 = vadd.f32 0.0, %v813
      %v815 = vpop.f32.mrf.mxu0
      %816 = vdwg.mxu0
      %v817 = vadd.f32 %v750, %v814
      %s818 = scalar_lea.vmem %s3, 336
      %v819 = vld [vmem:[%s818] sm:$0xf]
      %v820 = vld [vmem:[%s818 + $0x4] sm:$0xf]
      %v821 = vld [vmem:[%s818 + $0x8] sm:$0xf]
      %v822 = vld [vmem:[%s818 + $0xc] sm:$0xf]
      %v823 = vld [vmem:[%s818 + $0x10] sm:$0xf]
      %v824 = vld [vmem:[%s818 + $0x14] sm:$0xf]
      %v825 = vld [vmem:[%s818 + $0x18] sm:$0xf]
      %v826 = vld [vmem:[%s818 + $0x1c] sm:$0xf]
      %v827 = vld [vmem:[%s818 + $0x20] sm:$0xf]
      %v828 = vld [vmem:[%s818 + $0x24] sm:$0xf]
      %v829 = vld [vmem:[%s818 + $0x28] sm:$0xf]
      %v830 = vld [vmem:[%s818 + $0x2c] sm:$0xf]
      %v832 = vunpack.c.l.b16 %v751
      %v833 = vpack.c.b16 %v832, %v832
      %v835 = vshrl.u32 %v833, 16
      %v837 = vshll.u32 %v833, 16
      %v839 = vrot.slane %v837, 1
      %v840 = vor.u32 %v835, %v839
      %v853 = vunpack.c.l.b16 %v819
      %v854 = vunpack.c.l.b16 %v820
      %v855 = vunpack.c.l.b16 %v821
      %v856 = vunpack.c.l.b16 %v822
      %v857 = vunpack.c.l.b16 %v823
      %v858 = vunpack.c.l.b16 %v824
      %v859 = vunpack.c.l.b16 %v825
      %v860 = vunpack.c.l.b16 %v826
      %v861 = vunpack.c.l.b16 %v827
      %v862 = vunpack.c.l.b16 %v828
      %v863 = vunpack.c.l.b16 %v829
      %v864 = vunpack.c.l.b16 %v830
      %v865 = vpack.c.b16 %v854, %v853
      %v866 = vpack.c.b16 %v856, %v855
      %v867 = vpack.c.b16 %v858, %v857
      %v868 = vpack.c.b16 %v860, %v859
      %v869 = vpack.c.b16 %v862, %v861
      %v870 = vpack.c.b16 %v864, %v863
      %v878 = vsel %vm405, %v840, 0
      %880 = vmatpush.bf16.msra.mxu0 0
      %881 = vmatpush.bf16.msra.mxu0 0
      %882 = vmatpush.bf16.msra.mxu0 %v870
      %883 = vmatpush.bf16.msra.mxu0 %v869
      %884 = vmatpush.bf16.msra.mxu0 %v868
      %885 = vmatpush.bf16.msra.mxu0 %v867
      %886 = vmatpush.bf16.msra.mxu0 %v866
      %887 = vmatpush.bf16.msra.mxu0 %v865
      %888 = vmatmul.bf16.gmra.mxu0 %v878
      %v889 = vpop.f32.mrf.mxu0
      %v890 = vadd.f32 0.0, %v889
      %v891 = vpop.f32.mrf.mxu0
      %892 = vdwg.mxu0
      %v893 = vadd.f32 %v817, %v890
      %s894 = scalar_lea.vmem %s3, 384
      %v895 = vld [vmem:[%s894] sm:$0xf]
      %v896 = vld [vmem:[%s894 + $0x4] sm:$0xf]
      %v897 = vld [vmem:[%s894 + $0x8] sm:$0xf]
      %v898 = vld [vmem:[%s894 + $0xc] sm:$0xf]
      %v899 = vld [vmem:[%s894 + $0x10] sm:$0xf]
      %v900 = vld [vmem:[%s894 + $0x14] sm:$0xf]
      %v901 = vld [vmem:[%s894 + $0x18] sm:$0xf]
      %v902 = vld [vmem:[%s894 + $0x1c] sm:$0xf]
      %v903 = vld [vmem:[%s894 + $0x20] sm:$0xf]
      %v904 = vld [vmem:[%s894 + $0x24] sm:$0xf]
      %v905 = vld [vmem:[%s894 + $0x28] sm:$0xf]
      %v906 = vld [vmem:[%s894 + $0x2c] sm:$0xf]
      %v907 = vrot.slane %v833, 1
      %v920 = vunpack.c.l.b16 %v895
      %v921 = vunpack.c.l.b16 %v896
      %v922 = vunpack.c.l.b16 %v897
      %v923 = vunpack.c.l.b16 %v898
      %v924 = vunpack.c.l.b16 %v899
      %v925 = vunpack.c.l.b16 %v900
      %v926 = vunpack.c.l.b16 %v901
      %v927 = vunpack.c.l.b16 %v902
      %v928 = vunpack.c.l.b16 %v903
      %v929 = vunpack.c.l.b16 %v904
      %v930 = vunpack.c.l.b16 %v905
      %v931 = vunpack.c.l.b16 %v906
      %v932 = vpack.c.b16 %v921, %v920
      %v933 = vpack.c.b16 %v923, %v922
      %v934 = vpack.c.b16 %v925, %v924
      %v935 = vpack.c.b16 %v927, %v926
      %v936 = vpack.c.b16 %v929, %v928
      %v937 = vpack.c.b16 %v931, %v930
      %v945 = vsel %vm405, %v907, 0
      %947 = vmatpush.bf16.msra.mxu0 0
      %948 = vmatpush.bf16.msra.mxu0 0
      %949 = vmatpush.bf16.msra.mxu0 %v937
      %950 = vmatpush.bf16.msra.mxu0 %v936
      %951 = vmatpush.bf16.msra.mxu0 %v935
      %952 = vmatpush.bf16.msra.mxu0 %v934
      %953 = vmatpush.bf16.msra.mxu0 %v933
      %954 = vmatpush.bf16.msra.mxu0 %v932
      %955 = vmatmul.bf16.gmra.mxu0 %v945
      %v956 = vpop.f32.mrf.mxu0
      %v957 = vadd.f32 0.0, %v956
      %v958 = vpop.f32.mrf.mxu0
      %959 = vdwg.mxu0
      %v960 = vadd.f32 %v893, %v957
      %v961 = vld [vmem:[%s4] sm:$0x1]
      %v963 = vperm.slane %v961, 0
      %v965 = vadd.f32 %v960, %v963
      %v966 = vmax.f32 %v965, 0.0
      %v967 = vpack.c.bf16 %v966, %v966
      %vm968 = vcmask 779264
      %969 = vst.msk [vmem:[%s331] sm:$0x3] %vm968, %v967
      %p970 = scmp.lt.s32.totalorder %s20, 1
      %s971 = scalar_select %p970, %s20, 1
      %p972 = scmp.lt.s32.totalorder %s21, 3
      %s973 = scalar_select %p972, %s21, 3
      %s974 = smul.addr %s971, 4
      %s975 = sadd.s32 %s973, %s974
      %s976 = smul.addr %s975, 2
      %s977 = scalar_lea.vmem %s5, %s976
      // Predicated region
      $region41: #{hovernet_fwd.12} parent=39 // pred_check
        %p978 = pneg %p178
      $region42: #{hovernet_fwd.12} parent=39 // pred_check_branch
        %980 = sbr.rel (%p978) target = $region44
      $region43: #{hovernet_fwd.12} parent=39 // pred_region
        _
      $region44: #{hovernet_fwd.12} parent=39 // pred_fallthru
        _
    $region40: #{hovernet_fwd.12} parent=5 // pred_fallthru
      _
    %p981 = scmp.le.s32.totalorder 2, %s11
    // Predicated region
    $region45: #{hovernet_fwd.12} parent=5 // pred_check
      %p982 = pneg %p981
    $region46: #{hovernet_fwd.12} parent=5 // pred_check_branch
      %984 = sbr.rel (%p982) target = $region48
    $region47: #{hovernet_fwd.12} parent=5 // pred_region
      %s985 = ssub.s32 %s11, 2
      // Predicated region
      $region49: #{hovernet_fwd.12} parent=47 // pred_check
        %p986 = pneg %p184
      $region50: #{hovernet_fwd.12} parent=47 // pred_check_branch
        %988 = sbr.rel (%p986) target = $region52
      $region51: #{hovernet_fwd.12} parent=47 // pred_region
        %p989 = scmp.lt.s32.totalorder %s22, 1
        %s990 = scalar_select %p989, %s22, 1
        %p991 = scmp.lt.s32.totalorder %s23, 3
        %s992 = scalar_select %p991, %s23, 3
        %s993 = smul.addr %s990, 4
        %s994 = sadd.s32 %s992, %s993
        %s995 = smul.addr %s994, 2
        %s996 = scalar_lea.vmem %s5, %s995
      $region52: #{hovernet_fwd.12} parent=47 // pred_fallthru
        _
    $region48: #{hovernet_fwd.12} parent=5 // pred_fallthru
      _
  $region6: #{hovernet_fwd.12} parent=0 // loop_footer
    %s15 = sadd.s32 1, %s11
  $region7: #{hovernet_fwd.12} parent=0 // loop_footer_branch
    %10 = sbr.rel target = $region3
  $region8: #{hovernet_fwd.12} parent=0 // loop_exit
    _

// kernel: hovernet_fwd.13
$region0: #{hovernet_fwd.13}
  #allocation0 [shape = 'u32[]', space=smem, size = 0x4, offset = 0x4, fixed_abs, tag = 'smem constant byte address 0x4 - core index']
  #allocation1 [shape = 'u32[72,128]{1,0:T(1,128)}', space=vmem, size = 0x9000, scoped, tag = 'internal scratch']
  %s0 = inlined_call_operand.vmem [shape: bf16[2,10,10,112], index: 0, kind: input, shape index: {}, may-alias: {0,1,2}]
  %s1 = inlined_call_operand.vmem [shape: bf16[2,10,10,112], index: 1, kind: input, shape index: {}, may-alias: {0,1,2}]
  %s2 = inlined_call_operand.vmem [shape: bf16[2,10,10,112], index: 2, kind: input, shape index: {}, may-alias: {0,1,2}]
  %s3 = inlined_call_operand.vmem [shape: bf16[9,112,48], index: 3, kind: input, shape index: {}]
  %s4 = inlined_call_operand.vmem [shape: f32[1,48], index: 4, kind: input, shape index: {}]
  %s5 = inlined_call_operand.vmem [shape: bf16[2,8,8,48], index: 5, kind: output, shape index: {}]
  %s6 = sld [smem:[#allocation0]]
  $region53: #{hovernet_fwd.13} parent=0
    _
  %s8 = ssub.s32 1, %s6
  %s9 = scalar_select 0, %s8, %s6
  loop: start=0, step=1, limit=18
  $region2: #{hovernet_fwd.13} parent=0 // loop_pre_header
    _
  $region3: #{hovernet_fwd.13} parent=0 // loop_header
    %s11 = sphi 0, %s15
    %p12 = scmp.ge.s32.totalorder %s11, 18
    %s18 = sphi 0, %s30
    %s19 = sphi 0, %s26
    %s20 = sphi 0, %s18
    %s21 = sphi 0, %s19
    %s22 = sphi 0, %s20
    %s23 = sphi 0, %s21
    %s35 = sphi 0, %s37
    %s38 = sphi 0, %s35
    %s39 = sphi 0, %s38
    %s55 = sphi 0, %s39
    %s65 = sphi 0, %s67
    %s68 = sphi 0, %s65
    %s69 = sphi 0, %s68
    %s85 = sphi 0, %s69
    %s95 = sphi 0, %s97
    %s98 = sphi 0, %s95
    %s99 = sphi 0, %s98
    %s115 = sphi 0, %s99
    %s119 = sphi 0, %s119
    %s121 = sphi 0, %s119
    %s122 = sphi 0, %s121
    %s136 = sphi 0, %s122
    %s140 = sphi 0, %s140
    %s142 = sphi 0, %s140
    %s143 = sphi 0, %s142
    %s157 = sphi 0, %s143
    %s165 = sphi 0, %s167
    %s168 = sphi 0, %s165
    %s169 = sphi 0, %s168
    %s185 = sphi 0, %s169
  $region4: #{hovernet_fwd.13} parent=0 // loop_header_branch
    %14 = sbr.rel (%p12) target = $region8
  $region5: #{hovernet_fwd.13} parent=0 // loop_body
    %s16 = ssub.s32 %s11, 1
    %s17 = ssub.s32 %s11, 2
    %s24 = sadd.s32 1, %s19
    %p25 = scmp.ge.s32.totalorder %s24, 8
    %s26 = scalar_select %p25, 0, %s24
    %s27 = sadd.s32 1, %s18
    %s28 = scalar_select %p25, %s27, %s18
    %p29 = scmp.ge.s32.totalorder %s28, 2
    %s30 = scalar_select %p29, 0, %s28
    %s31 = ssub.s32 %s18, %s30
    %s32 = ssub.s32 %s19, %s26
    %s33 = sor.u32 %s31, %s32
    %p34 = scmp.eq.s32.totalorder %s33, 0
    %s36 = sadd.s32 %s35, 1
    %s37 = scalar_select %p34, %s35, %s36
    %p40 = pneg %p34
    %p41 = scmp.eq.s32.totalorder %s11, 15
    %p42 = por %p40, %p41
    %p43 = scmp.ne.s32.totalorder %s35, %s38
    %p44 = scmp.eq.s32.totalorder %s11, 0
    %p45 = por %p43, %p44
    %p46 = scmp.ne.s32.totalorder %s35, %s38
    %p47 = scmp.eq.s32.totalorder %s16, 15
    %p48 = por %p46, %p47
    %p49 = scmp.ne.s32.totalorder %s38, %s39
    %p50 = scmp.eq.s32.totalorder %s16, 0
    %p51 = por %p49, %p50
    %p52 = scmp.ne.s32.totalorder %s38, %s39
    %p53 = scmp.eq.s32.totalorder %s17, 15
    %p54 = por %p52, %p53
    %p56 = scmp.ne.s32.totalorder %s39, %s55
    %p57 = scmp.eq.s32.totalorder %s17, 0
    %p58 = por %p56, %p57
    %s59 = sadd.s32 %s19, 1
    %s60 = sadd.s32 %s26, 1
    %s61 = ssub.s32 %s18, %s30
    %s62 = ssub.s32 %s59, %s60
    %s63 = sor.u32 %s61, %s62
    %p64 = scmp.eq.s32.totalorder %s63, 0
    %s66 = sadd.s32 %s65, 1
    %s67 = scalar_select %p64, %s65, %s66
    %p70 = pneg %p64
    %p71 = scmp.eq.s32.totalorder %s11, 15
    %p72 = por %p70, %p71
    %p73 = scmp.ne.s32.totalorder %s65, %s68
    %p74 = scmp.eq.s32.totalorder %s11, 0
    %p75 = por %p73, %p74
    %p76 = scmp.ne.s32.totalorder %s65, %s68
    %p77 = scmp.eq.s32.totalorder %s16, 15
    %p78 = por %p76, %p77
    %p79 = scmp.ne.s32.totalorder %s68, %s69
    %p80 = scmp.eq.s32.totalorder %s16, 0
    %p81 = por %p79, %p80
    %p82 = scmp.ne.s32.totalorder %s68, %s69
    %p83 = scmp.eq.s32.totalorder %s17, 15
    %p84 = por %p82, %p83
    %p86 = scmp.ne.s32.totalorder %s69, %s85
    %p87 = scmp.eq.s32.totalorder %s17, 0
    %p88 = por %p86, %p87
    %s89 = sadd.s32 %s19, 2
    %s90 = sadd.s32 %s26, 2
    %s91 = ssub.s32 %s18, %s30
    %s92 = ssub.s32 %s89, %s90
    %s93 = sor.u32 %s91, %s92
    %p94 = scmp.eq.s32.totalorder %s93, 0
    %s96 = sadd.s32 %s95, 1
    %s97 = scalar_select %p94, %s95, %s96
    %p100 = pneg %p94
    %p101 = scmp.eq.s32.totalorder %s11, 15
    %p102 = por %p100, %p101
    %p103 = scmp.ne.s32.totalorder %s95, %s98
    %p104 = scmp.eq.s32.totalorder %s11, 0
    %p105 = por %p103, %p104
    %p106 = scmp.ne.s32.totalorder %s95, %s98
    %p107 = scmp.eq.s32.totalorder %s16, 15
    %p108 = por %p106, %p107
    %p109 = scmp.ne.s32.totalorder %s98, %s99
    %p110 = scmp.eq.s32.totalorder %s16, 0
    %p111 = por %p109, %p110
    %p112 = scmp.ne.s32.totalorder %s98, %s99
    %p113 = scmp.eq.s32.totalorder %s17, 15
    %p114 = por %p112, %p113
    %p116 = scmp.ne.s32.totalorder %s99, %s115
    %p117 = scmp.eq.s32.totalorder %s17, 0
    %p118 = por %p116, %p117
    %s120 = sadd.s32 %s119, 1
    %p123 = scmp.eq.s32.totalorder %s11, 15
    %p124 = scmp.ne.s32.totalorder %s119, %s121
    %p125 = scmp.eq.s32.totalorder %s11, 0
    %p126 = por %p124, %p125
    %p127 = scmp.ne.s32.totalorder %s119, %s121
    %p128 = scmp.eq.s32.totalorder %s16, 15
    %p129 = por %p127, %p128
    %p130 = scmp.ne.s32.totalorder %s121, %s122
    %p131 = scmp.eq.s32.totalorder %s16, 0
    %p132 = por %p130, %p131
    %p133 = scmp.ne.s32.totalorder %s121, %s122
    %p134 = scmp.eq.s32.totalorder %s17, 15
    %p135 = por %p133, %p134
    %p137 = scmp.ne.s32.totalorder %s122, %s136
    %p138 = scmp.eq.s32.totalorder %s17, 0
    %p139 = por %p137, %p138
    %s141 = sadd.s32 %s140, 1
    %p144 = scmp.eq.s32.totalorder %s11, 15
    %p145 = scmp.ne.s32.totalorder %s140, %s142
    %p146 = scmp.eq.s32.totalorder %s11, 0
    %p147 = por %p145, %p146
    %p148 = scmp.ne.s32.totalorder %s140, %s142
    %p149 = scmp.eq.s32.totalorder %s16, 15
    %p150 = por %p148, %p149
    %p151 = scmp.ne.s32.totalorder %s142, %s143
    %p152 = scmp.eq.s32.totalorder %s16, 0
    %p153 = por %p151, %p152
    %p154 = scmp.ne.s32.totalorder %s142, %s143
    %p155 = scmp.eq.s32.totalorder %s17, 15
    %p156 = por %p154, %p155
    %p158 = scmp.ne.s32.totalorder %s143, %s157
    %p159 = scmp.eq.s32.totalorder %s17, 0
    %p160 = por %p158, %p159
    %s161 = ssub.s32 %s18, %s30
    %s162 = ssub.s32 %s19, %s26
    %s163 = sor.u32 %s161, %s162
    %p164 = scmp.eq.s32.totalorder %s163, 0
    %s166 = sadd.s32 %s165, 1
    %s167 = scalar_select %p164, %s165, %s166
    %p170 = pneg %p164
    %p171 = scmp.eq.s32.totalorder %s11, 15
    %p172 = por %p170, %p171
    %p173 = scmp.ne.s32.totalorder %s165, %s168
    %p174 = scmp.eq.s32.totalorder %s11, 0
    %p175 = por %p173, %p174
    %p176 = scmp.ne.s32.totalorder %s165, %s168
    %p177 = scmp.eq.s32.totalorder %s16, 15
    %p178 = por %p176, %p177
    %p179 = scmp.ne.s32.totalorder %s168, %s169
    %p180 = scmp.eq.s32.totalorder %s16, 0
    %p181 = por %p179, %p180
    %p182 = scmp.ne.s32.totalorder %s168, %s169
    %p183 = scmp.eq.s32.totalorder %s17, 15
    %p184 = por %p182, %p183
    %p186 = scmp.ne.s32.totalorder %s169, %s185
    %p187 = scmp.eq.s32.totalorder %s17, 0
    %p188 = por %p186, %p187
    %p189 = scmp.le.s32.totalorder 1, %s11
    %p190 = scmp.lt.s32.totalorder %s11, 17
    %p191 = pnand %p189, %p190
    %p192 = pneg %p191
    // Predicated region
    $region9: #{hovernet_fwd.13} parent=5 // pred_check
      _
    $region10: #{hovernet_fwd.13} parent=5 // pred_check_branch
      %194 = sbr.rel (%p191) target = $region12
    $region11: #{hovernet_fwd.13} parent=5 // pred_region
      %s195 = ssub.s32 %s11, 1
      // Predicated region
      $region13: #{hovernet_fwd.13} parent=11 // pred_check
        %p196 = pneg %p132
      $region14: #{hovernet_fwd.13} parent=11 // pred_check_branch
        %198 = sbr.rel (%p196) target = $region16
      $region15: #{hovernet_fwd.13} parent=11 // pred_region
        _
      $region16: #{hovernet_fwd.13} parent=11 // pred_fallthru
        _
      // Predicated region
      $region17: #{hovernet_fwd.13} parent=11 // pred_check
        %p199 = pneg %p153
      $region18: #{hovernet_fwd.13} parent=11 // pred_check_branch
        %201 = sbr.rel (%p199) target = $region20
      $region19: #{hovernet_fwd.13} parent=11 // pred_region
        _
      $region20: #{hovernet_fwd.13} parent=11 // pred_fallthru
        _
    $region12: #{hovernet_fwd.13} parent=5 // pred_fallthru
      _
    %p202 = scmp.lt.s32.totalorder %s11, 16
    // Predicated region
    $region21: #{hovernet_fwd.13} parent=5 // pred_check
      %p203 = pneg %p202
    $region22: #{hovernet_fwd.13} parent=5 // pred_check_branch
      %205 = sbr.rel (%p203) target = $region24
    $region23: #{hovernet_fwd.13} parent=5 // pred_region
      // Predicated region
      $region25: #{hovernet_fwd.13} parent=23 // pred_check
        %p206 = pneg %p45
      $region26: #{hovernet_fwd.13} parent=23 // pred_check_branch
        %208 = sbr.rel (%p206) target = $region28
      $region27: #{hovernet_fwd.13} parent=23 // pred_region
        %p209 = scmp.lt.s32.totalorder %s18, 1
        %s210 = scalar_select %p209, %s18, 1
        %p211 = scmp.lt.s32.totalorder %s19, 9
        %s212 = scalar_select %p211, %s19, 9
        %s213 = smul.addr %s212, 2
        %s214 = smul.addr %s210, 20
        %s215 = sadd.s32 %s213, %s214
        %s216 = smul.addr %s215, 4
        %s217 = scalar_lea.vmem %s0, %s216
      $region28: #{hovernet_fwd.13} parent=23 // pred_fallthru
        _
      // Predicated region
      $region29: #{hovernet_fwd.13} parent=23 // pred_check
        %p218 = pneg %p75
      $region30: #{hovernet_fwd.13} parent=23 // pred_check_branch
        %220 = sbr.rel (%p218) target = $region32
      $region31: #{hovernet_fwd.13} parent=23 // pred_region
        %s221 = sadd.s32 %s19, 1
        %p222 = scmp.lt.s32.totalorder %s18, 1
        %s223 = scalar_select %p222, %s18, 1
        %p224 = scmp.lt.s32.totalorder %s221, 9
        %s225 = scalar_select %p224, %s221, 9
        %s226 = smul.addr %s225, 2
        %s227 = smul.addr %s223, 20
        %s228 = sadd.s32 %s226, %s227
        %s229 = smul.addr %s228, 4
        %s230 = scalar_lea.vmem %s1, %s229
        %s231 = sadd.s32 %s19, 1
      $region32: #{hovernet_fwd.13} parent=23 // pred_fallthru
        _
      // Predicated region
      $region33: #{hovernet_fwd.13} parent=23 // pred_check
        %p232 = pneg %p105
      $region34: #{hovernet_fwd.13} parent=23 // pred_check_branch
        %234 = sbr.rel (%p232) target = $region36
      $region35: #{hovernet_fwd.13} parent=23 // pred_region
        %s235 = sadd.s32 %s19, 2
        %p236 = scmp.lt.s32.totalorder %s18, 1
        %s237 = scalar_select %p236, %s18, 1
        %p238 = scmp.lt.s32.totalorder %s235, 9
        %s239 = scalar_select %p238, %s235, 9
        %s240 = smul.addr %s239, 2
        %s241 = smul.addr %s237, 20
        %s242 = sadd.s32 %s240, %s241
        %s243 = smul.addr %s242, 4
        %s244 = scalar_lea.vmem %s2, %s243
        %s245 = sadd.s32 %s19, 2
      $region36: #{hovernet_fwd.13} parent=23 // pred_fallthru
        _
    $region24: #{hovernet_fwd.13} parent=5 // pred_fallthru
      _
    %p246 = scmp.le.s32.totalorder 1, %s11
    %p247 = scmp.lt.s32.totalorder %s11, 17
    %p248 = pnand %p246, %p247
    %p249 = pneg %p248
    // Predicated region
    $region37: #{hovernet_fwd.13} parent=5 // pred_check
      _
    $region38: #{hovernet_fwd.13} parent=5 // pred_check_branch
      %251 = sbr.rel (%p248) target = $region40
    $region39: #{hovernet_fwd.13} parent=5 // pred_region
      %s252 = ssub.s32 %s11, 1
      %p253 = scmp.lt.s32.totalorder %s20, 1
      %s254 = scalar_select %p253, %s20, 1
      %p255 = scmp.lt.s32.totalorder %s21, 9
      %s256 = scalar_select %p255, %s21, 9
      %s257 = smul.addr %s256, 2
      %s258 = smul.addr %s254, 20
      %s259 = sadd.s32 %s257, %s258
      %s260 = smul.addr %s259, 4
      %s261 = scalar_lea.vmem %s0, %s260
      %p262 = pneg %p51
      %p263 = pneg %p48
      %s264 = sadd.s32 %s21, 1
      %p265 = scmp.lt.s32.totalorder %s20, 1
      %s266 = scalar_select %p265, %s20, 1
      %p267 = scmp.lt.s32.totalorder %s264, 9
      %s268 = scalar_select %p267, %s264, 9
      %s269 = smul.addr %s268, 2
      %s270 = smul.addr %s266, 20
      %s271 = sadd.s32 %s269, %s270
      %s272 = smul.addr %s271, 4
      %s273 = scalar_lea.vmem %s1, %s272
      %p274 = pneg %p81
      %p275 = pneg %p78
      %s276 = sadd.s32 %s21, 2
      %p277 = scmp.lt.s32.totalorder %s20, 1
      %s278 = scalar_select %p277, %s20, 1
      %p279 = scmp.lt.s32.totalorder %s276, 9
      %s280 = scalar_select %p279, %s276, 9
      %s281 = smul.addr %s280, 2
      %s282 = smul.addr %s278, 20
      %s283 = sadd.s32 %s281, %s282
      %s284 = smul.addr %s283, 4
      %s285 = scalar_lea.vmem %s2, %s284
      %p286 = pneg %p111
      %p287 = pneg %p108
      %p288 = pneg %p132
      %p289 = pneg %p129
      %p290 = pneg %p153
      %p291 = pneg %p150
      %p292 = pneg %p181
      %p293 = pneg %p178
      %p294 = scmp.lt.s32.totalorder %s20, 1
      %s295 = scalar_select %p294, %s20, 1
      %p296 = scmp.lt.s32.totalorder %s21, 7
      %s297 = scalar_select %p296, %s21, 7
      %s298 = smul.addr %s295, 8
      %s299 = sadd.s32 %s297, %s298
      %s300 = smul.addr %s299, 4
      %s301 = scalar_lea.vmem %s5, %s300
      %p302 = scmp.lt.s32.totalorder %s20, 1
      %s303 = scalar_select %p302, %s20, 1
      %p304 = scmp.lt.s32.totalorder %s21, 9
      %s305 = scalar_select %p304, %s21, 9
      %s306 = smul.addr %s305, 2
      %s307 = smul.addr %s303, 20
      %s308 = sadd.s32 %s306, %s307
      %s309 = smul.addr %s308, 4
      %s310 = scalar_lea.vmem %s0, %s309
      %s311 = sadd.s32 %s21, 1
      %p312 = scmp.lt.s32.totalorder %s20, 1
      %s313 = scalar_select %p312, %s20, 1
      %p314 = scmp.lt.s32.totalorder %s311, 9
      %s315 = scalar_select %p314, %s311, 9
      %s316 = smul.addr %s315, 2
      %s317 = smul.addr %s313, 20
      %s318 = sadd.s32 %s316, %s317
      %s319 = smul.addr %s318, 4
      %s320 = scalar_lea.vmem %s1, %s319
      %s321 = sadd.s32 %s21, 1
      %s322 = sadd.s32 %s21, 2
      %p323 = scmp.lt.s32.totalorder %s20, 1
      %s324 = scalar_select %p323, %s20, 1
      %p325 = scmp.lt.s32.totalorder %s322, 9
      %s326 = scalar_select %p325, %s322, 9
      %s327 = smul.addr %s326, 2
      %s328 = smul.addr %s324, 20
      %s329 = sadd.s32 %s327, %s328
      %s330 = smul.addr %s329, 4
      %s331 = scalar_lea.vmem %s2, %s330
      %s332 = sadd.s32 %s21, 2
      %p333 = scmp.lt.s32.totalorder %s20, 1
      %s334 = scalar_select %p333, %s20, 1
      %p335 = scmp.lt.s32.totalorder %s21, 7
      %s336 = scalar_select %p335, %s21, 7
      %s337 = smul.addr %s334, 8
      %s338 = sadd.s32 %s336, %s337
      %s339 = smul.addr %s338, 4
      %s340 = scalar_lea.vmem %s5, %s339
      %v342 = vld [vmem:[%s310] sm:$0xf]
      %v343 = vld [vmem:[%s310 + $0x4] sm:$0x1]
      %v344 = vld [vmem:[%s3] sm:$0xf]
      %v345 = vld [vmem:[%s3 + $0x4] sm:$0xf]
      %v346 = vld [vmem:[%s3 + $0x8] sm:$0xf]
      %v347 = vld [vmem:[%s3 + $0xc] sm:$0xf]
      %v348 = vld [vmem:[%s3 + $0x10] sm:$0xf]
      %v349 = vld [vmem:[%s3 + $0x14] sm:$0xf]
      %v350 = vld [vmem:[%s3 + $0x18] sm:$0xf]
      %v351 = vld [vmem:[%s3 + $0x1c] sm:$0xf]
      %v352 = vld [vmem:[%s3 + $0x20] sm:$0xf]
      %v353 = vld [vmem:[%s3 + $0x24] sm:$0xf]
      %v354 = vld [vmem:[%s3 + $0x28] sm:$0xf]
      %v355 = vld [vmem:[%s3 + $0x2c] sm:$0xf]
      %v356 = vld [vmem:[%s3 + $0x30] sm:$0xf]
      %v357 = vld [vmem:[%s3 + $0x34] sm:$0xf]
      %s358 = scalar_lea.vmem %s3, 56
      %v359 = vld [vmem:[%s358] sm:$0xf]
      %v360 = vld [vmem:[%s358 + $0x4] sm:$0xf]
      %v361 = vld [vmem:[%s358 + $0x8] sm:$0xf]
      %v362 = vld [vmem:[%s358 + $0xc] sm:$0xf]
      %v363 = vld [vmem:[%s358 + $0x10] sm:$0xf]
      %v364 = vld [vmem:[%s358 + $0x14] sm:$0xf]
      %v365 = vld [vmem:[%s358 + $0x18] sm:$0xf]
      %v366 = vld [vmem:[%s358 + $0x1c] sm:$0xf]
      %v367 = vld [vmem:[%s358 + $0x20] sm:$0xf]
      %v368 = vld [vmem:[%s358 + $0x24] sm:$0xf]
      %v369 = vld [vmem:[%s358 + $0x28] sm:$0xf]
      %v370 = vld [vmem:[%s358 + $0x2c] sm:$0xf]
      %v371 = vld [vmem:[%s358 + $0x30] sm:$0xf]
      %v372 = vld [vmem:[%s358 + $0x34] sm:$0xf]
      %v375 = vunpack.c.l.b16 %v342
      %v376 = vunpack.c.l.b16 %v343
      %v377 = vpack.c.b16 %v376, %v375
      %v379 = vshrl.u32 %v377, 16
      %v381 = vshll.u32 %v377, 16
      %v383 = vrot.slane %v381, 1
      %v384 = vor.u32 %v379, %v383
      %v399 = vunpack.c.l.b16 %v359
      %v400 = vunpack.c.l.b16 %v360
      %v401 = vunpack.c.l.b16 %v361
      %v402 = vunpack.c.l.b16 %v362
      %v403 = vunpack.c.l.b16 %v363
      %v404 = vunpack.c.l.b16 %v364
      %v405 = vunpack.c.l.b16 %v365
      %v406 = vunpack.c.l.b16 %v366
      %v407 = vunpack.c.l.b16 %v367
      %v408 = vunpack.c.l.b16 %v368
      %v409 = vunpack.c.l.b16 %v369
      %v410 = vunpack.c.l.b16 %v370
      %v411 = vunpack.c.l.b16 %v371
      %v412 = vunpack.c.l.b16 %v372
      %v413 = vpack.c.b16 %v400, %v399
      %v414 = vpack.c.b16 %v402, %v401
      %v415 = vpack.c.b16 %v404, %v403
      %v416 = vpack.c.b16 %v406, %v405
      %v417 = vpack.c.b16 %v408, %v407
      %v418 = vpack.c.b16 %v410, %v409
      %v419 = vpack.c.b16 %v412, %v411
      %vm427 = vcmask 916480
      %v429 = vsel %vm427, %v384, 0
      %431 = vmatpush.bf16.msra.mxu0 0
      %432 = vmatpush.bf16.msra.mxu0 %v419
      %433 = vmatpush.bf16.msra.mxu0 %v418
      %434 = vmatpush.bf16.msra.mxu0 %v417
      %435 = vmatpush.bf16.msra.mxu0 %v416
      %436 = vmatpush.bf16.msra.mxu0 %v415
      %437 = vmatpush.bf16.msra.mxu0 %v414
      %438 = vmatpush.bf16.msra.mxu0 %v413
      %439 = vmatmul.bf16.gmra.mxu0 %v429
      %v440 = vpop.f32.mrf.mxu0
      %v441 = vadd.f32 0.0, %v440
      %v442 = vpop.f32.mrf.mxu0
      %443 = vdwg.mxu0
      %v458 = vunpack.c.l.b16 %v344
      %v459 = vunpack.c.l.b16 %v345
      %v460 = vunpack.c.l.b16 %v346
      %v461 = vunpack.c.l.b16 %v347
      %v462 = vunpack.c.l.b16 %v348
      %v463 = vunpack.c.l.b16 %v349
      %v464 = vunpack.c.l.b16 %v350
      %v465 = vunpack.c.l.b16 %v351
      %v466 = vunpack.c.l.b16 %v352
      %v467 = vunpack.c.l.b16 %v353
      %v468 = vunpack.c.l.b16 %v354
      %v469 = vunpack.c.l.b16 %v355
      %v470 = vunpack.c.l.b16 %v356
      %v471 = vunpack.c.l.b16 %v357
      %v472 = vpack.c.b16 %v459, %v458
      %v473 = vpack.c.b16 %v461, %v460
      %v474 = vpack.c.b16 %v463, %v462
      %v475 = vpack.c.b16 %v465, %v464
      %v476 = vpack.c.b16 %v467, %v466
      %v477 = vpack.c.b16 %v469, %v468
      %v478 = vpack.c.b16 %v471, %v470
      %v487 = vsel %vm427, %v342, 0
      %489 = vmatpush.bf16.msra.mxu0 0
      %490 = vmatpush.bf16.msra.mxu0 %v478
      %491 = vmatpush.bf16.msra.mxu0 %v477
      %492 = vmatpush.bf16.msra.mxu0 %v476
      %493 = vmatpush.bf16.msra.mxu0 %v475
      %494 = vmatpush.bf16.msra.mxu0 %v474
      %495 = vmatpush.bf16.msra.mxu0 %v473
      %496 = vmatpush.bf16.msra.mxu0 %v472
      %497 = vmatmul.bf16.gmra.mxu0 %v487
      %v498 = vpop.f32.mrf.mxu0
      %v499 = vadd.f32 %v441, %v498
      %v500 = vpop.f32.mrf.mxu0
      %501 = vdwg.mxu0
      %s502 = scalar_lea.vmem %s3, 112
      %v503 = vld [vmem:[%s502] sm:$0xf]
      %v504 = vld [vmem:[%s502 + $0x4] sm:$0xf]
      %v505 = vld [vmem:[%s502 + $0x8] sm:$0xf]
      %v506 = vld [vmem:[%s502 + $0xc] sm:$0xf]
      %v507 = vld [vmem:[%s502 + $0x10] sm:$0xf]
      %v508 = vld [vmem:[%s502 + $0x14] sm:$0xf]
      %v509 = vld [vmem:[%s502 + $0x18] sm:$0xf]
      %v510 = vld [vmem:[%s502 + $0x1c] sm:$0xf]
      %v511 = vld [vmem:[%s502 + $0x20] sm:$0xf]
      %v512 = vld [vmem:[%s502 + $0x24] sm:$0xf]
      %v513 = vld [vmem:[%s502 + $0x28] sm:$0xf]
      %v514 = vld [vmem:[%s502 + $0x2c] sm:$0xf]
      %v515 = vld [vmem:[%s502 + $0x30] sm:$0xf]
      %v516 = vld [vmem:[%s502 + $0x34] sm:$0xf]
      %v517 = vrot.slane %v377, 1
      %v532 = vunpack.c.l.b16 %v503
      %v533 = vunpack.c.l.b16 %v504
      %v534 = vunpack.c.l.b16 %v505
      %v535 = vunpack.c.l.b16 %v506
      %v536 = vunpack.c.l.b16 %v507
      %v537 = vunpack.c.l.b16 %v508
      %v538 = vunpack.c.l.b16 %v509
      %v539 = vunpack.c.l.b16 %v510
      %v540 = vunpack.c.l.b16 %v511
      %v541 = vunpack.c.l.b16 %v512
      %v542 = vunpack.c.l.b16 %v513
      %v543 = vunpack.c.l.b16 %v514
      %v544 = vunpack.c.l.b16 %v515
      %v545 = vunpack.c.l.b16 %v516
      %v546 = vpack.c.b16 %v533, %v532
      %v547 = vpack.c.b16 %v535, %v534
      %v548 = vpack.c.b16 %v537, %v536
      %v549 = vpack.c.b16 %v539, %v538
      %v550 = vpack.c.b16 %v541, %v540
      %v551 = vpack.c.b16 %v543, %v542
      %v552 = vpack.c.b16 %v545, %v544
      %v561 = vsel %vm427, %v517, 0
      %563 = vmatpush.bf16.msra.mxu0 0
      %564 = vmatpush.bf16.msra.mxu0 %v552
      %565 = vmatpush.bf16.msra.mxu0 %v551
      %566 = vmatpush.bf16.msra.mxu0 %v550
      %567 = vmatpush.bf16.msra.mxu0 %v549
      %568 = vmatpush.bf16.msra.mxu0 %v548
      %569 = vmatpush.bf16.msra.mxu0 %v547
      %570 = vmatpush.bf16.msra.mxu0 %v546
      %571 = vmatmul.bf16.gmra.mxu0 %v561
      %v572 = vpop.f32.mrf.mxu0
      %v573 = vadd.f32 0.0, %v572
      %v574 = vpop.f32.mrf.mxu0
      %575 = vdwg.mxu0
      %v576 = vadd.f32 %v499, %v573
      %v577 = vld [vmem:[%s320] sm:$0xf]
      %v578 = vld [vmem:[%s320 + $0x4] sm:$0x1]
      %s579 = scalar_lea.vmem %s3, 168
      %v580 = vld [vmem:[%s579] sm:$0xf]
      %v581 = vld [vmem:[%s579 + $0x4] sm:$0xf]
      %v582 = vld [vmem:[%s579 + $0x8] sm:$0xf]
      %v583 = vld [vmem:[%s579 + $0xc] sm:$0xf]
      %v584 = vld [vmem:[%s579 + $0x10] sm:$0xf]
      %v585 = vld [vmem:[%s579 + $0x14] sm:$0xf]
      %v586 = vld [vmem:[%s579 + $0x18] sm:$0xf]
      %v587 = vld [vmem:[%s579 + $0x1c] sm:$0xf]
      %v588 = vld [vmem:[%s579 + $0x20] sm:$0xf]
      %v589 = vld [vmem:[%s579 + $0x24] sm:$0xf]
      %v590 = vld [vmem:[%s579 + $0x28] sm:$0xf]
      %v591 = vld [vmem:[%s579 + $0x2c] sm:$0xf]
      %v592 = vld [vmem:[%s579 + $0x30] sm:$0xf]
      %v593 = vld [vmem:[%s579 + $0x34] sm:$0xf]
      %v608 = vunpack.c.l.b16 %v580
      %v609 = vunpack.c.l.b16 %v581
      %v610 = vunpack.c.l.b16 %v582
      %v611 = vunpack.c.l.b16 %v583
      %v612 = vunpack.c.l.b16 %v584
      %v613 = vunpack.c.l.b16 %v585
      %v614 = vunpack.c.l.b16 %v586
      %v615 = vunpack.c.l.b16 %v587
      %v616 = vunpack.c.l.b16 %v588
      %v617 = vunpack.c.l.b16 %v589
      %v618 = vunpack.c.l.b16 %v590
      %v619 = vunpack.c.l.b16 %v591
      %v620 = vunpack.c.l.b16 %v592
      %v621 = vunpack.c.l.b16 %v593
      %v622 = vpack.c.b16 %v609, %v608
      %v623 = vpack.c.b16 %v611, %v610
      %v624 = vpack.c.b16 %v613, %v612
      %v625 = vpack.c.b16 %v615, %v614
      %v626 = vpack.c.b16 %v617, %v616
      %v627 = vpack.c.b16 %v619, %v618
      %v628 = vpack.c.b16 %v621, %v620
      %v637 = vsel %vm427, %v577, 0
      %639 = vmatpush.bf16.msra.mxu0 0
      %640 = vmatpush.bf16.msra.mxu0 %v628
      %641 = vmatpush.bf16.msra.mxu0 %v627
      %642 = vmatpush.bf16.msra.mxu0 %v626
      %643 = vmatpush.bf16.msra.mxu0 %v625
      %644 = vmatpush.bf16.msra.mxu0 %v624
      %645 = vmatpush.bf16.msra.mxu0 %v623
      %646 = vmatpush.bf16.msra.mxu0 %v622
      %647 = vmatmul.bf16.gmra.mxu0 %v637
      %v648 = vpop.f32.mrf.mxu0
      %v649 = vadd.f32 0.0, %v648
      %v650 = vpop.f32.mrf.mxu0
      %651 = vdwg.mxu0
      %v652 = vadd.f32 %v576, %v649
      %s653 = scalar_lea.vmem %s3, 224
      %v654 = vld [vmem:[%s653] sm:$0xf]
      %v655 = vld [vmem:[%s653 + $0x4] sm:$0xf]
      %v656 = vld [vmem:[%s653 + $0x8] sm:$0xf]
      %v657 = vld [vmem:[%s653 + $0xc] sm:$0xf]
      %v658 = vld [vmem:[%s653 + $0x10] sm:$0xf]
      %v659 = vld [vmem:[%s653 + $0x14] sm:$0xf]
      %v660 = vld [vmem:[%s653 + $0x18] sm:$0xf]
      %v661 = vld [vmem:[%s653 + $0x1c] sm:$0xf]
      %v662 = vld [vmem:[%s653 + $0x20] sm:$0xf]
      %v663 = vld [vmem:[%s653 + $0x24] sm:$0xf]
      %v664 = vld [vmem:[%s653 + $0x28] sm:$0xf]
      %v665 = vld [vmem:[%s653 + $0x2c] sm:$0xf]
      %v666 = vld [vmem:[%s653 + $0x30] sm:$0xf]
      %v667 = vld [vmem:[%s653 + $0x34] sm:$0xf]
      %v670 = vunpack.c.l.b16 %v577
      %v671 = vunpack.c.l.b16 %v578
      %v672 = vpack.c.b16 %v671, %v670
      %v674 = vshrl.u32 %v672, 16
      %v676 = vshll.u32 %v672, 16
      %v678 = vrot.slane %v676, 1
      %v679 = vor.u32 %v674, %v678
      %v694 = vunpack.c.l.b16 %v654
      %v695 = vunpack.c.l.b16 %v655
      %v696 = vunpack.c.l.b16 %v656
      %v697 = vunpack.c.l.b16 %v657
      %v698 = vunpack.c.l.b16 %v658
      %v699 = vunpack.c.l.b16 %v659
      %v700 = vunpack.c.l.b16 %v660
      %v701 = vunpack.c.l.b16 %v661
      %v702 = vunpack.c.l.b16 %v662
      %v703 = vunpack.c.l.b16 %v663
      %v704 = vunpack.c.l.b16 %v664
      %v705 = vunpack.c.l.b16 %v665
      %v706 = vunpack.c.l.b16 %v666
      %v707 = vunpack.c.l.b16 %v667
      %v708 = vpack.c.b16 %v695, %v694
      %v709 = vpack.c.b16 %v697, %v696
      %v710 = vpack.c.b16 %v699, %v698
      %v711 = vpack.c.b16 %v701, %v700
      %v712 = vpack.c.b16 %v703, %v702
      %v713 = vpack.c.b16 %v705, %v704
      %v714 = vpack.c.b16 %v707, %v706
      %v723 = vsel %vm427, %v679, 0
      %725 = vmatpush.bf16.msra.mxu0 0
      %726 = vmatpush.bf16.msra.mxu0 %v714
      %727 = vmatpush.bf16.msra.mxu0 %v713
      %728 = vmatpush.bf16.msra.mxu0 %v712
      %729 = vmatpush.bf16.msra.mxu0 %v711
      %730 = vmatpush.bf16.msra.mxu0 %v710
      %731 = vmatpush.bf16.msra.mxu0 %v709
      %732 = vmatpush.bf16.msra.mxu0 %v708
      %733 = vmatmul.bf16.gmra.mxu0 %v723
      %v734 = vpop.f32.mrf.mxu0
      %v735 = vadd.f32 0.0, %v734
      %v736 = vpop.f32.mrf.mxu0
      %737 = vdwg.mxu0
      %v738 = vadd.f32 %v652, %v735
      %s739 = scalar_lea.vmem %s3, 280
      %v740 = vld [vmem:[%s739] sm:$0xf]
      %v741 = vld [vmem:[%s739 + $0x4] sm:$0xf]
      %v742 = vld [vmem:[%s739 + $0x8] sm:$0xf]
      %v743 = vld [vmem:[%s739 + $0xc] sm:$0xf]
      %v744 = vld [vmem:[%s739 + $0x10] sm:$0xf]
      %v745 = vld [vmem:[%s739 + $0x14] sm:$0xf]
      %v746 = vld [vmem:[%s739 + $0x18] sm:$0xf]
      %v747 = vld [vmem:[%s739 + $0x1c] sm:$0xf]
      %v748 = vld [vmem:[%s739 + $0x20] sm:$0xf]
      %v749 = vld [vmem:[%s739 + $0x24] sm:$0xf]
      %v750 = vld [vmem:[%s739 + $0x28] sm:$0xf]
      %v751 = vld [vmem:[%s739 + $0x2c] sm:$0xf]
      %v752 = vld [vmem:[%s739 + $0x30] sm:$0xf]
      %v753 = vld [vmem:[%s739 + $0x34] sm:$0xf]
      %v754 = vrot.slane %v672, 1
      %v769 = vunpack.c.l.b16 %v740
      %v770 = vunpack.c.l.b16 %v741
      %v771 = vunpack.c.l.b16 %v742
      %v772 = vunpack.c.l.b16 %v743
      %v773 = vunpack.c.l.b16 %v744
      %v774 = vunpack.c.l.b16 %v745
      %v775 = vunpack.c.l.b16 %v746
      %v776 = vunpack.c.l.b16 %v747
      %v777 = vunpack.c.l.b16 %v748
      %v778 = vunpack.c.l.b16 %v749
      %v779 = vunpack.c.l.b16 %v750
      %v780 = vunpack.c.l.b16 %v751
      %v781 = vunpack.c.l.b16 %v752
      %v782 = vunpack.c.l.b16 %v753
      %v783 = vpack.c.b16 %v770, %v769
      %v784 = vpack.c.b16 %v772, %v771
      %v785 = vpack.c.b16 %v774, %v773
      %v786 = vpack.c.b16 %v776, %v775
      %v787 = vpack.c.b16 %v778, %v777
      %v788 = vpack.c.b16 %v780, %v779
      %v789 = vpack.c.b16 %v782, %v781
      %v798 = vsel %vm427, %v754, 0
      %800 = vmatpush.bf16.msra.mxu0 0
      %801 = vmatpush.bf16.msra.mxu0 %v789
      %802 = vmatpush.bf16.msra.mxu0 %v788
      %803 = vmatpush.bf16.msra.mxu0 %v787
      %804 = vmatpush.bf16.msra.mxu0 %v786
      %805 = vmatpush.bf16.msra.mxu0 %v785
      %806 = vmatpush.bf16.msra.mxu0 %v784
      %807 = vmatpush.bf16.msra.mxu0 %v783
      %808 = vmatmul.bf16.gmra.mxu0 %v798
      %v809 = vpop.f32.mrf.mxu0
      %v810 = vadd.f32 0.0, %v809
      %v811 = vpop.f32.mrf.mxu0
      %812 = vdwg.mxu0
      %v813 = vadd.f32 %v738, %v810
      %v814 = vld [vmem:[%s331] sm:$0xf]
      %v815 = vld [vmem:[%s331 + $0x4] sm:$0x1]
      %s816 = scalar_lea.vmem %s3, 336
      %v817 = vld [vmem:[%s816] sm:$0xf]
      %v818 = vld [vmem:[%s816 + $0x4] sm:$0xf]
      %v819 = vld [vmem:[%s816 + $0x8] sm:$0xf]
      %v820 = vld [vmem:[%s816 + $0xc] sm:$0xf]
      %v821 = vld [vmem:[%s816 + $0x10] sm:$0xf]
      %v822 = vld [vmem:[%s816 + $0x14] sm:$0xf]
      %v823 = vld [vmem:[%s816 + $0x18] sm:$0xf]
      %v824 = vld [vmem:[%s816 + $0x1c] sm:$0xf]
      %v825 = vld [vmem:[%s816 + $0x20] sm:$0xf]
      %v826 = vld [vmem:[%s816 + $0x24] sm:$0xf]
      %v827 = vld [vmem:[%s816 + $0x28] sm:$0xf]
      %v828 = vld [vmem:[%s816 + $0x2c] sm:$0xf]
      %v829 = vld [vmem:[%s816 + $0x30] sm:$0xf]
      %v830 = vld [vmem:[%s816 + $0x34] sm:$0xf]
      %v845 = vunpack.c.l.b16 %v817
      %v846 = vunpack.c.l.b16 %v818
      %v847 = vunpack.c.l.b16 %v819
      %v848 = vunpack.c.l.b16 %v820
      %v849 = vunpack.c.l.b16 %v821
      %v850 = vunpack.c.l.b16 %v822
      %v851 = vunpack.c.l.b16 %v823
      %v852 = vunpack.c.l.b16 %v824
      %v853 = vunpack.c.l.b16 %v825
      %v854 = vunpack.c.l.b16 %v826
      %v855 = vunpack.c.l.b16 %v827
      %v856 = vunpack.c.l.b16 %v828
      %v857 = vunpack.c.l.b16 %v829
      %v858 = vunpack.c.l.b16 %v830
      %v859 = vpack.c.b16 %v846, %v845
      %v860 = vpack.c.b16 %v848, %v847
      %v861 = vpack.c.b16 %v850, %v849
      %v862 = vpack.c.b16 %v852, %v851
      %v863 = vpack.c.b16 %v854, %v853
      %v864 = vpack.c.b16 %v856, %v855
      %v865 = vpack.c.b16 %v858, %v857
      %v874 = vsel %vm427, %v814, 0
      %876 = vmatpush.bf16.msra.mxu0 0
      %877 = vmatpush.bf16.msra.mxu0 %v865
      %878 = vmatpush.bf16.msra.mxu0 %v864
      %879 = vmatpush.bf16.msra.mxu0 %v863
      %880 = vmatpush.bf16.msra.mxu0 %v862
      %881 = vmatpush.bf16.msra.mxu0 %v861
      %882 = vmatpush.bf16.msra.mxu0 %v860
      %883 = vmatpush.bf16.msra.mxu0 %v859
      %884 = vmatmul.bf16.gmra.mxu0 %v874
      %v885 = vpop.f32.mrf.mxu0
      %v886 = vadd.f32 0.0, %v885
      %v887 = vpop.f32.mrf.mxu0
      %888 = vdwg.mxu0
      %v889 = vadd.f32 %v813, %v886
      %s890 = scalar_lea.vmem %s3, 392
      %v891 = vld [vmem:[%s890] sm:$0xf]
      %v892 = vld [vmem:[%s890 + $0x4] sm:$0xf]
      %v893 = vld [vmem:[%s890 + $0x8] sm:$0xf]
      %v894 = vld [vmem:[%s890 + $0xc] sm:$0xf]
      %v895 = vld [vmem:[%s890 + $0x10] sm:$0xf]
      %v896 = vld [vmem:[%s890 + $0x14] sm:$0xf]
      %v897 = vld [vmem:[%s890 + $0x18] sm:$0xf]
      %v898 = vld [vmem:[%s890 + $0x1c] sm:$0xf]
      %v899 = vld [vmem:[%s890 + $0x20] sm:$0xf]
      %v900 = vld [vmem:[%s890 + $0x24] sm:$0xf]
      %v901 = vld [vmem:[%s890 + $0x28] sm:$0xf]
      %v902 = vld [vmem:[%s890 + $0x2c] sm:$0xf]
      %v903 = vld [vmem:[%s890 + $0x30] sm:$0xf]
      %v904 = vld [vmem:[%s890 + $0x34] sm:$0xf]
      %v907 = vunpack.c.l.b16 %v814
      %v908 = vunpack.c.l.b16 %v815
      %v909 = vpack.c.b16 %v908, %v907
      %v911 = vshrl.u32 %v909, 16
      %v913 = vshll.u32 %v909, 16
      %v915 = vrot.slane %v913, 1
      %v916 = vor.u32 %v911, %v915
      %v931 = vunpack.c.l.b16 %v891
      %v932 = vunpack.c.l.b16 %v892
      %v933 = vunpack.c.l.b16 %v893
      %v934 = vunpack.c.l.b16 %v894
      %v935 = vunpack.c.l.b16 %v895
      %v936 = vunpack.c.l.b16 %v896
      %v937 = vunpack.c.l.b16 %v897
      %v938 = vunpack.c.l.b16 %v898
      %v939 = vunpack.c.l.b16 %v899
      %v940 = vunpack.c.l.b16 %v900
      %v941 = vunpack.c.l.b16 %v901
      %v942 = vunpack.c.l.b16 %v902
      %v943 = vunpack.c.l.b16 %v903
      %v944 = vunpack.c.l.b16 %v904
      %v945 = vpack.c.b16 %v932, %v931
      %v946 = vpack.c.b16 %v934, %v933
      %v947 = vpack.c.b16 %v936, %v935
      %v948 = vpack.c.b16 %v938, %v937
      %v949 = vpack.c.b16 %v940, %v939
      %v950 = vpack.c.b16 %v942, %v941
      %v951 = vpack.c.b16 %v944, %v943
      %v960 = vsel %vm427, %v916, 0
      %962 = vmatpush.bf16.msra.mxu0 0
      %963 = vmatpush.bf16.msra.mxu0 %v951
      %964 = vmatpush.bf16.msra.mxu0 %v950
      %965 = vmatpush.bf16.msra.mxu0 %v949
      %966 = vmatpush.bf16.msra.mxu0 %v948
      %967 = vmatpush.bf16.msra.mxu0 %v947
      %968 = vmatpush.bf16.msra.mxu0 %v946
      %969 = vmatpush.bf16.msra.mxu0 %v945
      %970 = vmatmul.bf16.gmra.mxu0 %v960
      %v971 = vpop.f32.mrf.mxu0
      %v972 = vadd.f32 0.0, %v971
      %v973 = vpop.f32.mrf.mxu0
      %974 = vdwg.mxu0
      %v975 = vadd.f32 %v889, %v972
      %s976 = scalar_lea.vmem %s3, 448
      %v977 = vld [vmem:[%s976] sm:$0xf]
      %v978 = vld [vmem:[%s976 + $0x4] sm:$0xf]
      %v979 = vld [vmem:[%s976 + $0x8] sm:$0xf]
      %v980 = vld [vmem:[%s976 + $0xc] sm:$0xf]
      %v981 = vld [vmem:[%s976 + $0x10] sm:$0xf]
      %v982 = vld [vmem:[%s976 + $0x14] sm:$0xf]
      %v983 = vld [vmem:[%s976 + $0x18] sm:$0xf]
      %v984 = vld [vmem:[%s976 + $0x1c] sm:$0xf]
      %v985 = vld [vmem:[%s976 + $0x20] sm:$0xf]
      %v986 = vld [vmem:[%s976 + $0x24] sm:$0xf]
      %v987 = vld [vmem:[%s976 + $0x28] sm:$0xf]
      %v988 = vld [vmem:[%s976 + $0x2c] sm:$0xf]
      %v989 = vld [vmem:[%s976 + $0x30] sm:$0xf]
      %v990 = vld [vmem:[%s976 + $0x34] sm:$0xf]
      %v991 = vrot.slane %v909, 1
      %v1006 = vunpack.c.l.b16 %v977
      %v1007 = vunpack.c.l.b16 %v978
      %v1008 = vunpack.c.l.b16 %v979
      %v1009 = vunpack.c.l.b16 %v980
      %v1010 = vunpack.c.l.b16 %v981
      %v1011 = vunpack.c.l.b16 %v982
      %v1012 = vunpack.c.l.b16 %v983
      %v1013 = vunpack.c.l.b16 %v984
      %v1014 = vunpack.c.l.b16 %v985
      %v1015 = vunpack.c.l.b16 %v986
      %v1016 = vunpack.c.l.b16 %v987
      %v1017 = vunpack.c.l.b16 %v988
      %v1018 = vunpack.c.l.b16 %v989
      %v1019 = vunpack.c.l.b16 %v990
      %v1020 = vpack.c.b16 %v1007, %v1006
      %v1021 = vpack.c.b16 %v1009, %v1008
      %v1022 = vpack.c.b16 %v1011, %v1010
      %v1023 = vpack.c.b16 %v1013, %v1012
      %v1024 = vpack.c.b16 %v1015, %v1014
      %v1025 = vpack.c.b16 %v1017, %v1016
      %v1026 = vpack.c.b16 %v1019, %v1018
      %v1035 = vsel %vm427, %v991, 0
      %1037 = vmatpush.bf16.msra.mxu0 0
      %1038 = vmatpush.bf16.msra.mxu0 %v1026
      %1039 = vmatpush.bf16.msra.mxu0 %v1025
      %1040 = vmatpush.bf16.msra.mxu0 %v1024
      %1041 = vmatpush.bf16.msra.mxu0 %v1023
      %1042 = vmatpush.bf16.msra.mxu0 %v1022
      %1043 = vmatpush.bf16.msra.mxu0 %v1021
      %1044 = vmatpush.bf16.msra.mxu0 %v1020
      %1045 = vmatmul.bf16.gmra.mxu0 %v1035
      %v1046 = vpop.f32.mrf.mxu0
      %v1047 = vadd.f32 0.0, %v1046
      %v1048 = vpop.f32.mrf.mxu0
      %1049 = vdwg.mxu0
      %v1050 = vadd.f32 %v975, %v1047
      %v1051 = vld [vmem:[%s4] sm:$0x1]
      %v1053 = vperm.slane %v1051, 0
      %v1055 = vadd.f32 %v1050, %v1053
      %v1056 = vmax.f32 %v1055, 0.0
      %v1057 = vpack.c.bf16 %v1056, %v1056
      %vm1058 = vcmask 388096
      %1059 = vst.msk [vmem:[%s340] sm:$0xf] %vm1058, %v1057
      %p1060 = scmp.lt.s32.totalorder %s20, 1
      %s1061 = scalar_select %p1060, %s20, 1
      %p1062 = scmp.lt.s32.totalorder %s21, 7
      %s1063 = scalar_select %p1062, %s21, 7
      %s1064 = smul.addr %s1061, 8
      %s1065 = sadd.s32 %s1063, %s1064
      %s1066 = smul.addr %s1065, 4
      %s1067 = scalar_lea.vmem %s5, %s1066
      // Predicated region
      $region41: #{hovernet_fwd.13} parent=39 // pred_check
        %p1068 = pneg %p178
      $region42: #{hovernet_fwd.13} parent=39 // pred_check_branch
        %1070 = sbr.rel (%p1068) target = $region44
      $region43: #{hovernet_fwd.13} parent=39 // pred_region
        _
      $region44: #{hovernet_fwd.13} parent=39 // pred_fallthru
        _
    $region40: #{hovernet_fwd.13} parent=5 // pred_fallthru
      _
    %p1071 = scmp.le.s32.totalorder 2, %s11
    // Predicated region
    $region45: #{hovernet_fwd.13} parent=5 // pred_check
      %p1072 = pneg %p1071
    $region46: #{hovernet_fwd.13} parent=5 // pred_check_branch
      %1074 = sbr.rel (%p1072) target = $region48
    $region47: #{hovernet_fwd.13} parent=5 // pred_region
      %s1075 = ssub.s32 %s11, 2
      // Predicated region
      $region49: #{hovernet_fwd.13} parent=47 // pred_check
        %p1076 = pneg %p184
      $region50: #{hovernet_fwd.13} parent=47 // pred_check_branch
        %1078 = sbr.rel (%p1076) target = $region52
      $region51: #{hovernet_fwd.13} parent=47 // pred_region
        %p1079 = scmp.lt.s32.totalorder %s22, 1
        %s1080 = scalar_select %p1079, %s22, 1
        %p1081 = scmp.lt.s32.totalorder %s23, 7
        %s1082 = scalar_select %p1081, %s23, 7
        %s1083 = smul.addr %s1080, 8
        %s1084 = sadd.s32 %s1082, %s1083
        %s1085 = smul.addr %s1084, 4
        %s1086 = scalar_lea.vmem %s5, %s1085
      $region52: #{hovernet_fwd.13} parent=47 // pred_fallthru
        _
    $region48: #{hovernet_fwd.13} parent=5 // pred_fallthru
      _
  $region6: #{hovernet_fwd.13} parent=0 // loop_footer
    %s15 = sadd.s32 1, %s11
  $region7: #{hovernet_fwd.13} parent=0 // loop_footer_branch
    %10 = sbr.rel target = $region3
  $region8: #{hovernet_fwd.13} parent=0 // loop_exit
    _

// kernel: hovernet_fwd.14
$region0: #{hovernet_fwd.14}
  #allocation0 [shape = 'u32[]', space=smem, size = 0x4, offset = 0x4, fixed_abs, tag = 'smem constant byte address 0x4 - core index']
  #allocation1 [shape = 'u32[72,128]{1,0:T(1,128)}', space=vmem, size = 0x9000, scoped, tag = 'internal scratch']
  %s0 = inlined_call_operand.vmem [shape: bf16[2,18,18,56], index: 0, kind: input, shape index: {}, may-alias: {0,1,2}]
  %s1 = inlined_call_operand.vmem [shape: bf16[2,18,18,56], index: 1, kind: input, shape index: {}, may-alias: {0,1,2}]
  %s2 = inlined_call_operand.vmem [shape: bf16[2,18,18,56], index: 2, kind: input, shape index: {}, may-alias: {0,1,2}]
  %s3 = inlined_call_operand.vmem [shape: bf16[9,56,24], index: 3, kind: input, shape index: {}]
  %s4 = inlined_call_operand.vmem [shape: f32[1,24], index: 4, kind: input, shape index: {}]
  %s5 = inlined_call_operand.vmem [shape: bf16[2,16,16,24], index: 5, kind: output, shape index: {}]
  %s6 = sld [smem:[#allocation0]]
  $region53: #{hovernet_fwd.14} parent=0
    _
  %s8 = ssub.s32 1, %s6
  %s9 = scalar_select 0, %s8, %s6
  loop: start=0, step=1, limit=34
  $region2: #{hovernet_fwd.14} parent=0 // loop_pre_header
    _
  $region3: #{hovernet_fwd.14} parent=0 // loop_header
    %s11 = sphi 0, %s15
    %p12 = scmp.ge.s32.totalorder %s11, 34
    %s18 = sphi 0, %s30
    %s19 = sphi 0, %s26
    %s20 = sphi 0, %s18
    %s21 = sphi 0, %s19
    %s22 = sphi 0, %s20
    %s23 = sphi 0, %s21
    %s35 = sphi 0, %s37
    %s38 = sphi 0, %s35
    %s39 = sphi 0, %s38
    %s55 = sphi 0, %s39
    %s65 = sphi 0, %s67
    %s68 = sphi 0, %s65
    %s69 = sphi 0, %s68
    %s85 = sphi 0, %s69
    %s95 = sphi 0, %s97
    %s98 = sphi 0, %s95
    %s99 = sphi 0, %s98
    %s115 = sphi 0, %s99
    %s119 = sphi 0, %s119
    %s121 = sphi 0, %s119
    %s122 = sphi 0, %s121
    %s136 = sphi 0, %s122
    %s140 = sphi 0, %s140
    %s142 = sphi 0, %s140
    %s143 = sphi 0, %s142
    %s157 = sphi 0, %s143
    %s165 = sphi 0, %s167
    %s168 = sphi 0, %s165
    %s169 = sphi 0, %s168
    %s185 = sphi 0, %s169
  $region4: #{hovernet_fwd.14} parent=0 // loop_header_branch
    %14 = sbr.rel (%p12) target = $region8
  $region5: #{hovernet_fwd.14} parent=0 // loop_body
    %s16 = ssub.s32 %s11, 1
    %s17 = ssub.s32 %s11, 2
    %s24 = sadd.s32 1, %s19
    %p25 = scmp.ge.s32.totalorder %s24, 16
    %s26 = scalar_select %p25, 0, %s24
    %s27 = sadd.s32 1, %s18
    %s28 = scalar_select %p25, %s27, %s18
    %p29 = scmp.ge.s32.totalorder %s28, 2
    %s30 = scalar_select %p29, 0, %s28
    %s31 = ssub.s32 %s18, %s30
    %s32 = ssub.s32 %s19, %s26
    %s33 = sor.u32 %s31, %s32
    %p34 = scmp.eq.s32.totalorder %s33, 0
    %s36 = sadd.s32 %s35, 1
    %s37 = scalar_select %p34, %s35, %s36
    %p40 = pneg %p34
    %p41 = scmp.eq.s32.totalorder %s11, 31
    %p42 = por %p40, %p41
    %p43 = scmp.ne.s32.totalorder %s35, %s38
    %p44 = scmp.eq.s32.totalorder %s11, 0
    %p45 = por %p43, %p44
    %p46 = scmp.ne.s32.totalorder %s35, %s38
    %p47 = scmp.eq.s32.totalorder %s16, 31
    %p48 = por %p46, %p47
    %p49 = scmp.ne.s32.totalorder %s38, %s39
    %p50 = scmp.eq.s32.totalorder %s16, 0
    %p51 = por %p49, %p50
    %p52 = scmp.ne.s32.totalorder %s38, %s39
    %p53 = scmp.eq.s32.totalorder %s17, 31
    %p54 = por %p52, %p53
    %p56 = scmp.ne.s32.totalorder %s39, %s55
    %p57 = scmp.eq.s32.totalorder %s17, 0
    %p58 = por %p56, %p57
    %s59 = sadd.s32 %s19, 1
    %s60 = sadd.s32 %s26, 1
    %s61 = ssub.s32 %s18, %s30
    %s62 = ssub.s32 %s59, %s60
    %s63 = sor.u32 %s61, %s62
    %p64 = scmp.eq.s32.totalorder %s63, 0
    %s66 = sadd.s32 %s65, 1
    %s67 = scalar_select %p64, %s65, %s66
    %p70 = pneg %p64
    %p71 = scmp.eq.s32.totalorder %s11, 31
    %p72 = por %p70, %p71
    %p73 = scmp.ne.s32.totalorder %s65, %s68
    %p74 = scmp.eq.s32.totalorder %s11, 0
    %p75 = por %p73, %p74
    %p76 = scmp.ne.s32.totalorder %s65, %s68
    %p77 = scmp.eq.s32.totalorder %s16, 31
    %p78 = por %p76, %p77
    %p79 = scmp.ne.s32.totalorder %s68, %s69
    %p80 = scmp.eq.s32.totalorder %s16, 0
    %p81 = por %p79, %p80
    %p82 = scmp.ne.s32.totalorder %s68, %s69
    %p83 = scmp.eq.s32.totalorder %s17, 31
    %p84 = por %p82, %p83
    %p86 = scmp.ne.s32.totalorder %s69, %s85
    %p87 = scmp.eq.s32.totalorder %s17, 0
    %p88 = por %p86, %p87
    %s89 = sadd.s32 %s19, 2
    %s90 = sadd.s32 %s26, 2
    %s91 = ssub.s32 %s18, %s30
    %s92 = ssub.s32 %s89, %s90
    %s93 = sor.u32 %s91, %s92
    %p94 = scmp.eq.s32.totalorder %s93, 0
    %s96 = sadd.s32 %s95, 1
    %s97 = scalar_select %p94, %s95, %s96
    %p100 = pneg %p94
    %p101 = scmp.eq.s32.totalorder %s11, 31
    %p102 = por %p100, %p101
    %p103 = scmp.ne.s32.totalorder %s95, %s98
    %p104 = scmp.eq.s32.totalorder %s11, 0
    %p105 = por %p103, %p104
    %p106 = scmp.ne.s32.totalorder %s95, %s98
    %p107 = scmp.eq.s32.totalorder %s16, 31
    %p108 = por %p106, %p107
    %p109 = scmp.ne.s32.totalorder %s98, %s99
    %p110 = scmp.eq.s32.totalorder %s16, 0
    %p111 = por %p109, %p110
    %p112 = scmp.ne.s32.totalorder %s98, %s99
    %p113 = scmp.eq.s32.totalorder %s17, 31
    %p114 = por %p112, %p113
    %p116 = scmp.ne.s32.totalorder %s99, %s115
    %p117 = scmp.eq.s32.totalorder %s17, 0
    %p118 = por %p116, %p117
    %s120 = sadd.s32 %s119, 1
    %p123 = scmp.eq.s32.totalorder %s11, 31
    %p124 = scmp.ne.s32.totalorder %s119, %s121
    %p125 = scmp.eq.s32.totalorder %s11, 0
    %p126 = por %p124, %p125
    %p127 = scmp.ne.s32.totalorder %s119, %s121
    %p128 = scmp.eq.s32.totalorder %s16, 31
    %p129 = por %p127, %p128
    %p130 = scmp.ne.s32.totalorder %s121, %s122
    %p131 = scmp.eq.s32.totalorder %s16, 0
    %p132 = por %p130, %p131
    %p133 = scmp.ne.s32.totalorder %s121, %s122
    %p134 = scmp.eq.s32.totalorder %s17, 31
    %p135 = por %p133, %p134
    %p137 = scmp.ne.s32.totalorder %s122, %s136
    %p138 = scmp.eq.s32.totalorder %s17, 0
    %p139 = por %p137, %p138
    %s141 = sadd.s32 %s140, 1
    %p144 = scmp.eq.s32.totalorder %s11, 31
    %p145 = scmp.ne.s32.totalorder %s140, %s142
    %p146 = scmp.eq.s32.totalorder %s11, 0
    %p147 = por %p145, %p146
    %p148 = scmp.ne.s32.totalorder %s140, %s142
    %p149 = scmp.eq.s32.totalorder %s16, 31
    %p150 = por %p148, %p149
    %p151 = scmp.ne.s32.totalorder %s142, %s143
    %p152 = scmp.eq.s32.totalorder %s16, 0
    %p153 = por %p151, %p152
    %p154 = scmp.ne.s32.totalorder %s142, %s143
    %p155 = scmp.eq.s32.totalorder %s17, 31
    %p156 = por %p154, %p155
    %p158 = scmp.ne.s32.totalorder %s143, %s157
    %p159 = scmp.eq.s32.totalorder %s17, 0
    %p160 = por %p158, %p159
    %s161 = ssub.s32 %s18, %s30
    %s162 = ssub.s32 %s19, %s26
    %s163 = sor.u32 %s161, %s162
    %p164 = scmp.eq.s32.totalorder %s163, 0
    %s166 = sadd.s32 %s165, 1
    %s167 = scalar_select %p164, %s165, %s166
    %p170 = pneg %p164
    %p171 = scmp.eq.s32.totalorder %s11, 31
    %p172 = por %p170, %p171
    %p173 = scmp.ne.s32.totalorder %s165, %s168
    %p174 = scmp.eq.s32.totalorder %s11, 0
    %p175 = por %p173, %p174
    %p176 = scmp.ne.s32.totalorder %s165, %s168
    %p177 = scmp.eq.s32.totalorder %s16, 31
    %p178 = por %p176, %p177
    %p179 = scmp.ne.s32.totalorder %s168, %s169
    %p180 = scmp.eq.s32.totalorder %s16, 0
    %p181 = por %p179, %p180
    %p182 = scmp.ne.s32.totalorder %s168, %s169
    %p183 = scmp.eq.s32.totalorder %s17, 31
    %p184 = por %p182, %p183
    %p186 = scmp.ne.s32.totalorder %s169, %s185
    %p187 = scmp.eq.s32.totalorder %s17, 0
    %p188 = por %p186, %p187
    %p189 = scmp.le.s32.totalorder 1, %s11
    %p190 = scmp.lt.s32.totalorder %s11, 33
    %p191 = pnand %p189, %p190
    %p192 = pneg %p191
    // Predicated region
    $region9: #{hovernet_fwd.14} parent=5 // pred_check
      _
    $region10: #{hovernet_fwd.14} parent=5 // pred_check_branch
      %194 = sbr.rel (%p191) target = $region12
    $region11: #{hovernet_fwd.14} parent=5 // pred_region
      %s195 = ssub.s32 %s11, 1
      // Predicated region
      $region13: #{hovernet_fwd.14} parent=11 // pred_check
        %p196 = pneg %p132
      $region14: #{hovernet_fwd.14} parent=11 // pred_check_branch
        %198 = sbr.rel (%p196) target = $region16
      $region15: #{hovernet_fwd.14} parent=11 // pred_region
        _
      $region16: #{hovernet_fwd.14} parent=11 // pred_fallthru
        _
      // Predicated region
      $region17: #{hovernet_fwd.14} parent=11 // pred_check
        %p199 = pneg %p153
      $region18: #{hovernet_fwd.14} parent=11 // pred_check_branch
        %201 = sbr.rel (%p199) target = $region20
      $region19: #{hovernet_fwd.14} parent=11 // pred_region
        _
      $region20: #{hovernet_fwd.14} parent=11 // pred_fallthru
        _
    $region12: #{hovernet_fwd.14} parent=5 // pred_fallthru
      _
    %p202 = scmp.lt.s32.totalorder %s11, 32
    // Predicated region
    $region21: #{hovernet_fwd.14} parent=5 // pred_check
      %p203 = pneg %p202
    $region22: #{hovernet_fwd.14} parent=5 // pred_check_branch
      %205 = sbr.rel (%p203) target = $region24
    $region23: #{hovernet_fwd.14} parent=5 // pred_region
      // Predicated region
      $region25: #{hovernet_fwd.14} parent=23 // pred_check
        %p206 = pneg %p45
      $region26: #{hovernet_fwd.14} parent=23 // pred_check_branch
        %208 = sbr.rel (%p206) target = $region28
      $region27: #{hovernet_fwd.14} parent=23 // pred_region
        %p209 = scmp.lt.s32.totalorder %s18, 1
        %s210 = scalar_select %p209, %s18, 1
        %p211 = scmp.lt.s32.totalorder %s19, 17
        %s212 = scalar_select %p211, %s19, 17
        %s213 = smul.addr %s212, 3
        %s214 = smul.addr %s210, 54
        %s215 = sadd.s32 %s213, %s214
        %s216 = smul.addr %s215, 4
        %s217 = scalar_lea.vmem %s0, %s216
      $region28: #{hovernet_fwd.14} parent=23 // pred_fallthru
        _
      // Predicated region
      $region29: #{hovernet_fwd.14} parent=23 // pred_check
        %p218 = pneg %p75
      $region30: #{hovernet_fwd.14} parent=23 // pred_check_branch
        %220 = sbr.rel (%p218) target = $region32
      $region31: #{hovernet_fwd.14} parent=23 // pred_region
        %s221 = sadd.s32 %s19, 1
        %p222 = scmp.lt.s32.totalorder %s18, 1
        %s223 = scalar_select %p222, %s18, 1
        %p224 = scmp.lt.s32.totalorder %s221, 17
        %s225 = scalar_select %p224, %s221, 17
        %s226 = smul.addr %s225, 3
        %s227 = smul.addr %s223, 54
        %s228 = sadd.s32 %s226, %s227
        %s229 = smul.addr %s228, 4
        %s230 = scalar_lea.vmem %s1, %s229
        %s231 = sadd.s32 %s19, 1
      $region32: #{hovernet_fwd.14} parent=23 // pred_fallthru
        _
      // Predicated region
      $region33: #{hovernet_fwd.14} parent=23 // pred_check
        %p232 = pneg %p105
      $region34: #{hovernet_fwd.14} parent=23 // pred_check_branch
        %234 = sbr.rel (%p232) target = $region36
      $region35: #{hovernet_fwd.14} parent=23 // pred_region
        %s235 = sadd.s32 %s19, 2
        %p236 = scmp.lt.s32.totalorder %s18, 1
        %s237 = scalar_select %p236, %s18, 1
        %p238 = scmp.lt.s32.totalorder %s235, 17
        %s239 = scalar_select %p238, %s235, 17
        %s240 = smul.addr %s239, 3
        %s241 = smul.addr %s237, 54
        %s242 = sadd.s32 %s240, %s241
        %s243 = smul.addr %s242, 4
        %s244 = scalar_lea.vmem %s2, %s243
        %s245 = sadd.s32 %s19, 2
      $region36: #{hovernet_fwd.14} parent=23 // pred_fallthru
        _
    $region24: #{hovernet_fwd.14} parent=5 // pred_fallthru
      _
    %p246 = scmp.le.s32.totalorder 1, %s11
    %p247 = scmp.lt.s32.totalorder %s11, 33
    %p248 = pnand %p246, %p247
    %p249 = pneg %p248
    // Predicated region
    $region37: #{hovernet_fwd.14} parent=5 // pred_check
      _
    $region38: #{hovernet_fwd.14} parent=5 // pred_check_branch
      %251 = sbr.rel (%p248) target = $region40
    $region39: #{hovernet_fwd.14} parent=5 // pred_region
      %s252 = ssub.s32 %s11, 1
      %p253 = scmp.lt.s32.totalorder %s20, 1
      %s254 = scalar_select %p253, %s20, 1
      %p255 = scmp.lt.s32.totalorder %s21, 17
      %s256 = scalar_select %p255, %s21, 17
      %s257 = smul.addr %s256, 3
      %s258 = smul.addr %s254, 54
      %s259 = sadd.s32 %s257, %s258
      %s260 = smul.addr %s259, 4
      %s261 = scalar_lea.vmem %s0, %s260
      %p262 = pneg %p51
      %p263 = pneg %p48
      %s264 = sadd.s32 %s21, 1
      %p265 = scmp.lt.s32.totalorder %s20, 1
      %s266 = scalar_select %p265, %s20, 1
      %p267 = scmp.lt.s32.totalorder %s264, 17
      %s268 = scalar_select %p267, %s264, 17
      %s269 = smul.addr %s268, 3
      %s270 = smul.addr %s266, 54
      %s271 = sadd.s32 %s269, %s270
      %s272 = smul.addr %s271, 4
      %s273 = scalar_lea.vmem %s1, %s272
      %p274 = pneg %p81
      %p275 = pneg %p78
      %s276 = sadd.s32 %s21, 2
      %p277 = scmp.lt.s32.totalorder %s20, 1
      %s278 = scalar_select %p277, %s20, 1
      %p279 = scmp.lt.s32.totalorder %s276, 17
      %s280 = scalar_select %p279, %s276, 17
      %s281 = smul.addr %s280, 3
      %s282 = smul.addr %s278, 54
      %s283 = sadd.s32 %s281, %s282
      %s284 = smul.addr %s283, 4
      %s285 = scalar_lea.vmem %s2, %s284
      %p286 = pneg %p111
      %p287 = pneg %p108
      %p288 = pneg %p132
      %p289 = pneg %p129
      %p290 = pneg %p153
      %p291 = pneg %p150
      %p292 = pneg %p181
      %p293 = pneg %p178
      %p294 = scmp.lt.s32.totalorder %s20, 1
      %s295 = scalar_select %p294, %s20, 1
      %p296 = scmp.lt.s32.totalorder %s21, 15
      %s297 = scalar_select %p296, %s21, 15
      %s298 = smul.addr %s297, 2
      %s299 = smul.addr %s295, 32
      %s300 = sadd.s32 %s298, %s299
      %s301 = smul.addr %s300, 4
      %s302 = scalar_lea.vmem %s5, %s301
      %p303 = scmp.lt.s32.totalorder %s20, 1
      %s304 = scalar_select %p303, %s20, 1
      %p305 = scmp.lt.s32.totalorder %s21, 17
      %s306 = scalar_select %p305, %s21, 17
      %s307 = smul.addr %s306, 3
      %s308 = smul.addr %s304, 54
      %s309 = sadd.s32 %s307, %s308
      %s310 = smul.addr %s309, 4
      %s311 = scalar_lea.vmem %s0, %s310
      %s312 = sadd.s32 %s21, 1
      %p313 = scmp.lt.s32.totalorder %s20, 1
      %s314 = scalar_select %p313, %s20, 1
      %p315 = scmp.lt.s32.totalorder %s312, 17
      %s316 = scalar_select %p315, %s312, 17
      %s317 = smul.addr %s316, 3
      %s318 = smul.addr %s314, 54
      %s319 = sadd.s32 %s317, %s318
      %s320 = smul.addr %s319, 4
      %s321 = scalar_lea.vmem %s1, %s320
      %s322 = sadd.s32 %s21, 1
      %s323 = sadd.s32 %s21, 2
      %p324 = scmp.lt.s32.totalorder %s20, 1
      %s325 = scalar_select %p324, %s20, 1
      %p326 = scmp.lt.s32.totalorder %s323, 17
      %s327 = scalar_select %p326, %s323, 17
      %s328 = smul.addr %s327, 3
      %s329 = smul.addr %s325, 54
      %s330 = sadd.s32 %s328, %s329
      %s331 = smul.addr %s330, 4
      %s332 = scalar_lea.vmem %s2, %s331
      %s333 = sadd.s32 %s21, 2
      %p334 = scmp.lt.s32.totalorder %s20, 1
      %s335 = scalar_select %p334, %s20, 1
      %p336 = scmp.lt.s32.totalorder %s21, 15
      %s337 = scalar_select %p336, %s21, 15
      %s338 = smul.addr %s337, 2
      %s339 = smul.addr %s335, 32
      %s340 = sadd.s32 %s338, %s339
      %s341 = smul.addr %s340, 4
      %s342 = scalar_lea.vmem %s5, %s341
      %v344 = vld [vmem:[%s311] sm:$0xf]
      %v345 = vld [vmem:[%s311 + $0x4] sm:$0xf]
      %v346 = vld [vmem:[%s311 + $0x8] sm:$0x1]
      %v347 = vld [vmem:[%s3] sm:$0xf]
      %v348 = vld [vmem:[%s3 + $0x4] sm:$0xf]
      %v349 = vld [vmem:[%s3 + $0x8] sm:$0xf]
      %v350 = vld [vmem:[%s3 + $0xc] sm:$0xf]
      %v351 = vld [vmem:[%s3 + $0x10] sm:$0xf]
      %v352 = vld [vmem:[%s3 + $0x14] sm:$0xf]
      %v353 = vld [vmem:[%s3 + $0x18] sm:$0xf]
      %s354 = scalar_lea.vmem %s3, 28
      %v355 = vld [vmem:[%s354] sm:$0xf]
      %v356 = vld [vmem:[%s354 + $0x4] sm:$0xf]
      %v357 = vld [vmem:[%s354 + $0x8] sm:$0xf]
      %v358 = vld [vmem:[%s354 + $0xc] sm:$0xf]
      %v359 = vld [vmem:[%s354 + $0x10] sm:$0xf]
      %v360 = vld [vmem:[%s354 + $0x14] sm:$0xf]
      %v361 = vld [vmem:[%s354 + $0x18] sm:$0xf]
      %v365 = vunpack.c.l.b16 %v344
      %v366 = vunpack.c.l.b16 %v345
      %v367 = vunpack.c.l.b16 %v346
      %v368 = vpack.c.b16 %v366, %v365
      %v369 = vpack.c.b16 %v367, %v367
      %vm370 = vsmask.f32 7424
      %v372 = vshrl.u32 %v368, 16
      %v374 = vshll.u32 %v368, 16
      %v376 = vrot.slane %v374, 1
      %v377 = vor.u32 %v372, %v376
      %v379 = vshll.u32 %v369, 16
      %v381 = vrot.slane %v379, 1
      %v382 = vsel %vm370, %v377, %v381
      %v390 = vunpack.c.l.b16 %v355
      %v391 = vunpack.c.l.b16 %v356
      %v392 = vunpack.c.l.b16 %v357
      %v393 = vunpack.c.l.b16 %v358
      %v394 = vunpack.c.l.b16 %v359
      %v395 = vunpack.c.l.b16 %v360
      %v396 = vunpack.c.l.b16 %v361
      %v397 = vpack.c.b16 %v391, %v390
      %v398 = vpack.c.b16 %v393, %v392
      %v399 = vpack.c.b16 %v395, %v394
      %v400 = vpack.c.b16 %v396, %v396
      %vm404 = vcmask 457728
      %v406 = vsel %vm404, %v382, 0
      %vm408 = vcmask 1043456
      %v410 = vsel %vm408, %v400, 0
      %412 = vmatpush.bf16.msra.mxu0 0
      %413 = vmatpush.bf16.msra.mxu0 0
      %414 = vmatpush.bf16.msra.mxu0 0
      %415 = vmatpush.bf16.msra.mxu0 0
      %416 = vmatpush.bf16.msra.mxu0 %v410
      %417 = vmatpush.bf16.msra.mxu0 %v399
      %418 = vmatpush.bf16.msra.mxu0 %v398
      %419 = vmatpush.bf16.msra.mxu0 %v397
      %420 = vmatmul.bf16.gmra.mxu0 %v406
      %v421 = vpop.f32.mrf.mxu0
      %v422 = vadd.f32 0.0, %v421
      %v423 = vpop.f32.mrf.mxu0
      %v424 = vadd.f32 0.0, %v423
      %425 = vdwg.mxu0
      %v433 = vunpack.c.l.b16 %v347
      %v434 = vunpack.c.l.b16 %v348
      %v435 = vunpack.c.l.b16 %v349
      %v436 = vunpack.c.l.b16 %v350
      %v437 = vunpack.c.l.b16 %v351
      %v438 = vunpack.c.l.b16 %v352
      %v439 = vunpack.c.l.b16 %v353
      %v440 = vpack.c.b16 %v434, %v433
      %v441 = vpack.c.b16 %v436, %v435
      %v442 = vpack.c.b16 %v438, %v437
      %v443 = vpack.c.b16 %v439, %v439
      %v447 = vsel %vm404, %v368, 0
      %v450 = vsel %vm408, %v443, 0
      %452 = vmatpush.bf16.msra.mxu0 0
      %453 = vmatpush.bf16.msra.mxu0 0
      %454 = vmatpush.bf16.msra.mxu0 0
      %455 = vmatpush.bf16.msra.mxu0 0
      %456 = vmatpush.bf16.msra.mxu0 %v450
      %457 = vmatpush.bf16.msra.mxu0 %v442
      %458 = vmatpush.bf16.msra.mxu0 %v441
      %459 = vmatpush.bf16.msra.mxu0 %v440
      %460 = vmatmul.bf16.gmra.mxu0 %v447
      %v461 = vpop.f32.mrf.mxu0
      %v462 = vadd.f32 %v422, %v461
      %v463 = vpop.f32.mrf.mxu0
      %v464 = vadd.f32 %v424, %v463
      %465 = vdwg.mxu0
      %s466 = scalar_lea.vmem %s3, 56
      %v467 = vld [vmem:[%s466] sm:$0xf]
      %v468 = vld [vmem:[%s466 + $0x4] sm:$0xf]
      %v469 = vld [vmem:[%s466 + $0x8] sm:$0xf]
      %v470 = vld [vmem:[%s466 + $0xc] sm:$0xf]
      %v471 = vld [vmem:[%s466 + $0x10] sm:$0xf]
      %v472 = vld [vmem:[%s466 + $0x14] sm:$0xf]
      %v473 = vld [vmem:[%s466 + $0x18] sm:$0xf]
      %vm474 = vcmask 1046528
      %v475 = vrot.slane %v368, 1
      %v476 = vrot.slane %v369, 1
      %v477 = vsel %vm474, %v475, %v476
      %v485 = vunpack.c.l.b16 %v467
      %v486 = vunpack.c.l.b16 %v468
      %v487 = vunpack.c.l.b16 %v469
      %v488 = vunpack.c.l.b16 %v470
      %v489 = vunpack.c.l.b16 %v471
      %v490 = vunpack.c.l.b16 %v472
      %v491 = vunpack.c.l.b16 %v473
      %v492 = vpack.c.b16 %v486, %v485
      %v493 = vpack.c.b16 %v488, %v487
      %v494 = vpack.c.b16 %v490, %v489
      %v495 = vpack.c.b16 %v491, %v491
      %v500 = vsel %vm404, %v477, 0
      %v503 = vsel %vm408, %v495, 0
      %505 = vmatpush.bf16.msra.mxu0 0
      %506 = vmatpush.bf16.msra.mxu0 0
      %507 = vmatpush.bf16.msra.mxu0 0
      %508 = vmatpush.bf16.msra.mxu0 0
      %509 = vmatpush.bf16.msra.mxu0 %v503
      %510 = vmatpush.bf16.msra.mxu0 %v494
      %511 = vmatpush.bf16.msra.mxu0 %v493
      %512 = vmatpush.bf16.msra.mxu0 %v492
      %513 = vmatmul.bf16.gmra.mxu0 %v500
      %v514 = vpop.f32.mrf.mxu0
      %v515 = vadd.f32 0.0, %v514
      %v516 = vpop.f32.mrf.mxu0
      %v517 = vadd.f32 0.0, %v516
      %518 = vdwg.mxu0
      %v519 = vadd.f32 %v462, %v515
      %v520 = vadd.f32 %v464, %v517
      %v521 = vld [vmem:[%s321] sm:$0xf]
      %v522 = vld [vmem:[%s321 + $0x4] sm:$0xf]
      %v523 = vld [vmem:[%s321 + $0x8] sm:$0x1]
      %s524 = scalar_lea.vmem %s3, 84
      %v525 = vld [vmem:[%s524] sm:$0xf]
      %v526 = vld [vmem:[%s524 + $0x4] sm:$0xf]
      %v527 = vld [vmem:[%s524 + $0x8] sm:$0xf]
      %v528 = vld [vmem:[%s524 + $0xc] sm:$0xf]
      %v529 = vld [vmem:[%s524 + $0x10] sm:$0xf]
      %v530 = vld [vmem:[%s524 + $0x14] sm:$0xf]
      %v531 = vld [vmem:[%s524 + $0x18] sm:$0xf]
      %v534 = vunpack.c.l.b16 %v521
      %v535 = vunpack.c.l.b16 %v522
      %v536 = vpack.c.b16 %v535, %v534
      %v544 = vunpack.c.l.b16 %v525
      %v545 = vunpack.c.l.b16 %v526
      %v546 = vunpack.c.l.b16 %v527
      %v547 = vunpack.c.l.b16 %v528
      %v548 = vunpack.c.l.b16 %v529
      %v549 = vunpack.c.l.b16 %v530
      %v550 = vunpack.c.l.b16 %v531
      %v551 = vpack.c.b16 %v545, %v544
      %v552 = vpack.c.b16 %v547, %v546
      %v553 = vpack.c.b16 %v549, %v548
      %v554 = vpack.c.b16 %v550, %v550
      %v559 = vsel %vm404, %v536, 0
      %v562 = vsel %vm408, %v554, 0
      %564 = vmatpush.bf16.msra.mxu0 0
      %565 = vmatpush.bf16.msra.mxu0 0
      %566 = vmatpush.bf16.msra.mxu0 0
      %567 = vmatpush.bf16.msra.mxu0 0
      %568 = vmatpush.bf16.msra.mxu0 %v562
      %569 = vmatpush.bf16.msra.mxu0 %v553
      %570 = vmatpush.bf16.msra.mxu0 %v552
      %571 = vmatpush.bf16.msra.mxu0 %v551
      %572 = vmatmul.bf16.gmra.mxu0 %v559
      %v573 = vpop.f32.mrf.mxu0
      %v574 = vadd.f32 0.0, %v573
      %v575 = vpop.f32.mrf.mxu0
      %v576 = vadd.f32 0.0, %v575
      %577 = vdwg.mxu0
      %v578 = vadd.f32 %v519, %v574
      %v579 = vadd.f32 %v520, %v576
      %s580 = scalar_lea.vmem %s3, 112
      %v581 = vld [vmem:[%s580] sm:$0xf]
      %v582 = vld [vmem:[%s580 + $0x4] sm:$0xf]
      %v583 = vld [vmem:[%s580 + $0x8] sm:$0xf]
      %v584 = vld [vmem:[%s580 + $0xc] sm:$0xf]
      %v585 = vld [vmem:[%s580 + $0x10] sm:$0xf]
      %v586 = vld [vmem:[%s580 + $0x14] sm:$0xf]
      %v587 = vld [vmem:[%s580 + $0x18] sm:$0xf]
      %v589 = vunpack.c.l.b16 %v523
      %v590 = vpack.c.b16 %v589, %v589
      %v591 = vshrl.u32 %v536, 16
      %v593 = vshll.u32 %v536, 16
      %v595 = vrot.slane %v593, 1
      %v596 = vor.u32 %v591, %v595
      %v598 = vshll.u32 %v590, 16
      %v600 = vrot.slane %v598, 1
      %v601 = vsel %vm370, %v596, %v600
      %v609 = vunpack.c.l.b16 %v581
      %v610 = vunpack.c.l.b16 %v582
      %v611 = vunpack.c.l.b16 %v583
      %v612 = vunpack.c.l.b16 %v584
      %v613 = vunpack.c.l.b16 %v585
      %v614 = vunpack.c.l.b16 %v586
      %v615 = vunpack.c.l.b16 %v587
      %v616 = vpack.c.b16 %v610, %v609
      %v617 = vpack.c.b16 %v612, %v611
      %v618 = vpack.c.b16 %v614, %v613
      %v619 = vpack.c.b16 %v615, %v615
      %v624 = vsel %vm404, %v601, 0
      %v627 = vsel %vm408, %v619, 0
      %629 = vmatpush.bf16.msra.mxu0 0
      %630 = vmatpush.bf16.msra.mxu0 0
      %631 = vmatpush.bf16.msra.mxu0 0
      %632 = vmatpush.bf16.msra.mxu0 0
      %633 = vmatpush.bf16.msra.mxu0 %v627
      %634 = vmatpush.bf16.msra.mxu0 %v618
      %635 = vmatpush.bf16.msra.mxu0 %v617
      %636 = vmatpush.bf16.msra.mxu0 %v616
      %637 = vmatmul.bf16.gmra.mxu0 %v624
      %v638 = vpop.f32.mrf.mxu0
      %v639 = vadd.f32 0.0, %v638
      %v640 = vpop.f32.mrf.mxu0
      %v641 = vadd.f32 0.0, %v640
      %642 = vdwg.mxu0
      %v643 = vadd.f32 %v578, %v639
      %v644 = vadd.f32 %v579, %v641
      %s645 = scalar_lea.vmem %s3, 140
      %v646 = vld [vmem:[%s645] sm:$0xf]
      %v647 = vld [vmem:[%s645 + $0x4] sm:$0xf]
      %v648 = vld [vmem:[%s645 + $0x8] sm:$0xf]
      %v649 = vld [vmem:[%s645 + $0xc] sm:$0xf]
      %v650 = vld [vmem:[%s645 + $0x10] sm:$0xf]
      %v651 = vld [vmem:[%s645 + $0x14] sm:$0xf]
      %v652 = vld [vmem:[%s645 + $0x18] sm:$0xf]
      %v653 = vrot.slane %v536, 1
      %v654 = vrot.slane %v590, 1
      %v655 = vsel %vm474, %v653, %v654
      %v663 = vunpack.c.l.b16 %v646
      %v664 = vunpack.c.l.b16 %v647
      %v665 = vunpack.c.l.b16 %v648
      %v666 = vunpack.c.l.b16 %v649
      %v667 = vunpack.c.l.b16 %v650
      %v668 = vunpack.c.l.b16 %v651
      %v669 = vunpack.c.l.b16 %v652
      %v670 = vpack.c.b16 %v664, %v663
      %v671 = vpack.c.b16 %v666, %v665
      %v672 = vpack.c.b16 %v668, %v667
      %v673 = vpack.c.b16 %v669, %v669
      %v678 = vsel %vm404, %v655, 0
      %v681 = vsel %vm408, %v673, 0
      %683 = vmatpush.bf16.msra.mxu0 0
      %684 = vmatpush.bf16.msra.mxu0 0
      %685 = vmatpush.bf16.msra.mxu0 0
      %686 = vmatpush.bf16.msra.mxu0 0
      %687 = vmatpush.bf16.msra.mxu0 %v681
      %688 = vmatpush.bf16.msra.mxu0 %v672
      %689 = vmatpush.bf16.msra.mxu0 %v671
      %690 = vmatpush.bf16.msra.mxu0 %v670
      %691 = vmatmul.bf16.gmra.mxu0 %v678
      %v692 = vpop.f32.mrf.mxu0
      %v693 = vadd.f32 0.0, %v692
      %v694 = vpop.f32.mrf.mxu0
      %v695 = vadd.f32 0.0, %v694
      %696 = vdwg.mxu0
      %v697 = vadd.f32 %v643, %v693
      %v698 = vadd.f32 %v644, %v695
      %v699 = vld [vmem:[%s332] sm:$0xf]
      %v700 = vld [vmem:[%s332 + $0x4] sm:$0xf]
      %v701 = vld [vmem:[%s332 + $0x8] sm:$0x1]
      %s702 = scalar_lea.vmem %s3, 168
      %v703 = vld [vmem:[%s702] sm:$0xf]
      %v704 = vld [vmem:[%s702 + $0x4] sm:$0xf]
      %v705 = vld [vmem:[%s702 + $0x8] sm:$0xf]
      %v706 = vld [vmem:[%s702 + $0xc] sm:$0xf]
      %v707 = vld [vmem:[%s702 + $0x10] sm:$0xf]
      %v708 = vld [vmem:[%s702 + $0x14] sm:$0xf]
      %v709 = vld [vmem:[%s702 + $0x18] sm:$0xf]
      %v712 = vunpack.c.l.b16 %v699
      %v713 = vunpack.c.l.b16 %v700
      %v714 = vpack.c.b16 %v713, %v712
      %v722 = vunpack.c.l.b16 %v703
      %v723 = vunpack.c.l.b16 %v704
      %v724 = vunpack.c.l.b16 %v705
      %v725 = vunpack.c.l.b16 %v706
      %v726 = vunpack.c.l.b16 %v707
      %v727 = vunpack.c.l.b16 %v708
      %v728 = vunpack.c.l.b16 %v709
      %v729 = vpack.c.b16 %v723, %v722
      %v730 = vpack.c.b16 %v725, %v724
      %v731 = vpack.c.b16 %v727, %v726
      %v732 = vpack.c.b16 %v728, %v728
      %v737 = vsel %vm404, %v714, 0
      %v740 = vsel %vm408, %v732, 0
      %742 = vmatpush.bf16.msra.mxu0 0
      %743 = vmatpush.bf16.msra.mxu0 0
      %744 = vmatpush.bf16.msra.mxu0 0
      %745 = vmatpush.bf16.msra.mxu0 0
      %746 = vmatpush.bf16.msra.mxu0 %v740
      %747 = vmatpush.bf16.msra.mxu0 %v731
      %748 = vmatpush.bf16.msra.mxu0 %v730
      %749 = vmatpush.bf16.msra.mxu0 %v729
      %750 = vmatmul.bf16.gmra.mxu0 %v737
      %v751 = vpop.f32.mrf.mxu0
      %v752 = vadd.f32 0.0, %v751
      %v753 = vpop.f32.mrf.mxu0
      %v754 = vadd.f32 0.0, %v753
      %755 = vdwg.mxu0
      %v756 = vadd.f32 %v697, %v752
      %v757 = vadd.f32 %v698, %v754
      %s758 = scalar_lea.vmem %s3, 196
      %v759 = vld [vmem:[%s758] sm:$0xf]
      %v760 = vld [vmem:[%s758 + $0x4] sm:$0xf]
      %v761 = vld [vmem:[%s758 + $0x8] sm:$0xf]
      %v762 = vld [vmem:[%s758 + $0xc] sm:$0xf]
      %v763 = vld [vmem:[%s758 + $0x10] sm:$0xf]
      %v764 = vld [vmem:[%s758 + $0x14] sm:$0xf]
      %v765 = vld [vmem:[%s758 + $0x18] sm:$0xf]
      %v767 = vunpack.c.l.b16 %v701
      %v768 = vpack.c.b16 %v767, %v767
      %v769 = vshrl.u32 %v714, 16
      %v771 = vshll.u32 %v714, 16
      %v773 = vrot.slane %v771, 1
      %v774 = vor.u32 %v769, %v773
      %v776 = vshll.u32 %v768, 16
      %v778 = vrot.slane %v776, 1
      %v779 = vsel %vm370, %v774, %v778
      %v787 = vunpack.c.l.b16 %v759
      %v788 = vunpack.c.l.b16 %v760
      %v789 = vunpack.c.l.b16 %v761
      %v790 = vunpack.c.l.b16 %v762
      %v791 = vunpack.c.l.b16 %v763
      %v792 = vunpack.c.l.b16 %v764
      %v793 = vunpack.c.l.b16 %v765
      %v794 = vpack.c.b16 %v788, %v787
      %v795 = vpack.c.b16 %v790, %v789
      %v796 = vpack.c.b16 %v792, %v791
      %v797 = vpack.c.b16 %v793, %v793
      %v802 = vsel %vm404, %v779, 0
      %v805 = vsel %vm408, %v797, 0
      %807 = vmatpush.bf16.msra.mxu0 0
      %808 = vmatpush.bf16.msra.mxu0 0
      %809 = vmatpush.bf16.msra.mxu0 0
      %810 = vmatpush.bf16.msra.mxu0 0
      %811 = vmatpush.bf16.msra.mxu0 %v805
      %812 = vmatpush.bf16.msra.mxu0 %v796
      %813 = vmatpush.bf16.msra.mxu0 %v795
      %814 = vmatpush.bf16.msra.mxu0 %v794
      %815 = vmatmul.bf16.gmra.mxu0 %v802
      %v816 = vpop.f32.mrf.mxu0
      %v817 = vadd.f32 0.0, %v816
      %v818 = vpop.f32.mrf.mxu0
      %v819 = vadd.f32 0.0, %v818
      %820 = vdwg.mxu0
      %v821 = vadd.f32 %v756, %v817
      %v822 = vadd.f32 %v757, %v819
      %s823 = scalar_lea.vmem %s3, 224
      %v824 = vld [vmem:[%s823] sm:$0xf]
      %v825 = vld [vmem:[%s823 + $0x4] sm:$0xf]
      %v826 = vld [vmem:[%s823 + $0x8] sm:$0xf]
      %v827 = vld [vmem:[%s823 + $0xc] sm:$0xf]
      %v828 = vld [vmem:[%s823 + $0x10] sm:$0xf]
      %v829 = vld [vmem:[%s823 + $0x14] sm:$0xf]
      %v830 = vld [vmem:[%s823 + $0x18] sm:$0xf]
      %v831 = vrot.slane %v714, 1
      %v832 = vrot.slane %v768, 1
      %v833 = vsel %vm474, %v831, %v832
      %v841 = vunpack.c.l.b16 %v824
      %v842 = vunpack.c.l.b16 %v825
      %v843 = vunpack.c.l.b16 %v826
      %v844 = vunpack.c.l.b16 %v827
      %v845 = vunpack.c.l.b16 %v828
      %v846 = vunpack.c.l.b16 %v829
      %v847 = vunpack.c.l.b16 %v830
      %v848 = vpack.c.b16 %v842, %v841
      %v849 = vpack.c.b16 %v844, %v843
      %v850 = vpack.c.b16 %v846, %v845
      %v851 = vpack.c.b16 %v847, %v847
      %v856 = vsel %vm404, %v833, 0
      %v859 = vsel %vm408, %v851, 0
      %861 = vmatpush.bf16.msra.mxu0 0
      %862 = vmatpush.bf16.msra.mxu0 0
      %863 = vmatpush.bf16.msra.mxu0 0
      %864 = vmatpush.bf16.msra.mxu0 0
      %865 = vmatpush.bf16.msra.mxu0 %v859
      %866 = vmatpush.bf16.msra.mxu0 %v850
      %867 = vmatpush.bf16.msra.mxu0 %v849
      %868 = vmatpush.bf16.msra.mxu0 %v848
      %869 = vmatmul.bf16.gmra.mxu0 %v856
      %v870 = vpop.f32.mrf.mxu0
      %v871 = vadd.f32 0.0, %v870
      %v872 = vpop.f32.mrf.mxu0
      %v873 = vadd.f32 0.0, %v872
      %874 = vdwg.mxu0
      %v875 = vadd.f32 %v821, %v871
      %v876 = vadd.f32 %v822, %v873
      %v877 = vld [vmem:[%s4] sm:$0x1]
      %v879 = vperm.slane %v877, 0
      %v881 = vadd.f32 %v875, %v879
      %v882 = vadd.f32 %v876, %v879
      %v883 = vmax.f32 %v881, 0.0
      %v884 = vmax.f32 %v882, 0.0
      %v885 = vpack.c.bf16 %v883, %v883
      %v886 = vpack.c.bf16 %v884, %v884
      %vm887 = vcmask 191488
      %888 = vst.msk [vmem:[%s342] sm:$0xf] %vm887, %v885
      %889 = vst.msk [vmem:[%s342 + $0x4] sm:$0xf] %vm887, %v886
      %p890 = scmp.lt.s32.totalorder %s20, 1
      %s891 = scalar_select %p890, %s20, 1
      %p892 = scmp.lt.s32.totalorder %s21, 15
      %s893 = scalar_select %p892, %s21, 15
      %s894 = smul.addr %s893, 2
      %s895 = smul.addr %s891, 32
      %s896 = sadd.s32 %s894, %s895
      %s897 = smul.addr %s896, 4
      %s898 = scalar_lea.vmem %s5, %s897
      // Predicated region
      $region41: #{hovernet_fwd.14} parent=39 // pred_check
        %p899 = pneg %p178
      $region42: #{hovernet_fwd.14} parent=39 // pred_check_branch
        %901 = sbr.rel (%p899) target = $region44
      $region43: #{hovernet_fwd.14} parent=39 // pred_region
        _
      $region44: #{hovernet_fwd.14} parent=39 // pred_fallthru
        _
    $region40: #{hovernet_fwd.14} parent=5 // pred_fallthru
      _
    %p902 = scmp.le.s32.totalorder 2, %s11
    // Predicated region
    $region45: #{hovernet_fwd.14} parent=5 // pred_check
      %p903 = pneg %p902
    $region46: #{hovernet_fwd.14} parent=5 // pred_check_branch
      %905 = sbr.rel (%p903) target = $region48
    $region47: #{hovernet_fwd.14} parent=5 // pred_region
      %s906 = ssub.s32 %s11, 2
      // Predicated region
      $region49: #{hovernet_fwd.14} parent=47 // pred_check
        %p907 = pneg %p184
      $region50: #{hovernet_fwd.14} parent=47 // pred_check_branch
        %909 = sbr.rel (%p907) target = $region52
      $region51: #{hovernet_fwd.14} parent=47 // pred_region
        %p910 = scmp.lt.s32.totalorder %s22, 1
        %s911 = scalar_select %p910, %s22, 1
        %p912 = scmp.lt.s32.totalorder %s23, 15
        %s913 = scalar_select %p912, %s23, 15
        %s914 = smul.addr %s913, 2
        %s915 = smul.addr %s911, 32
        %s916 = sadd.s32 %s914, %s915
        %s917 = smul.addr %s916, 4
        %s918 = scalar_lea.vmem %s5, %s917
      $region52: #{hovernet_fwd.14} parent=47 // pred_fallthru
        _
    $region48: #{hovernet_fwd.14} parent=5 // pred_fallthru
      _
  $region6: #{hovernet_fwd.14} parent=0 // loop_footer
    %s15 = sadd.s32 1, %s11
  $region7: #{hovernet_fwd.14} parent=0 // loop_footer_branch
    %10 = sbr.rel target = $region3
  $region8: #{hovernet_fwd.14} parent=0 // loop_exit
    _

// kernel: hovernet_fwd.15
$region0: #{hovernet_fwd.15}
  #allocation0 [shape = 'u32[]', space=smem, size = 0x4, offset = 0x4, fixed_abs, tag = 'smem constant byte address 0x4 - core index']
  #allocation1 [shape = 'u32[72,128]{1,0:T(1,128)}', space=vmem, size = 0x9000, scoped, tag = 'internal scratch']
  %s0 = inlined_call_operand.vmem [shape: bf16[512,96], index: 0, kind: input, shape index: {}]
  %s1 = inlined_call_operand.vmem [shape: bf16[512,48], index: 1, kind: input, shape index: {}]
  %s2 = inlined_call_operand.vmem [shape: bf16[512,24], index: 2, kind: input, shape index: {}]
  %s3 = inlined_call_operand.vmem [shape: bf16[96,24], index: 3, kind: input, shape index: {}]
  %s4 = inlined_call_operand.vmem [shape: bf16[48,24], index: 4, kind: input, shape index: {}]
  %s5 = inlined_call_operand.vmem [shape: bf16[24,24], index: 5, kind: input, shape index: {}]
  %s6 = inlined_call_operand.vmem [shape: f32[3,1,24], index: 6, kind: input, shape index: {}]
  %s7 = inlined_call_operand.vmem [shape: bf16[3,24,24], index: 7, kind: input, shape index: {}]
  %s8 = inlined_call_operand.vmem [shape: f32[3,1,24], index: 8, kind: input, shape index: {}]
  %s9 = inlined_call_operand.vmem [shape: bf16[24,9], index: 9, kind: input, shape index: {}]
  %s10 = inlined_call_operand.vmem [shape: f32[1,9], index: 10, kind: input, shape index: {}]
  %s11 = inlined_call_operand.vmem [shape: f32[512,9], index: 11, kind: output, shape index: {}]
  %s12 = sld [smem:[#allocation0]]
  $region77: #{hovernet_fwd.15} parent=0
    _
  %s14 = ssub.s32 1, %s12
  %s15 = scalar_select 0, %s14, %s12
  loop: start=0, step=1, limit=4
  $region2: #{hovernet_fwd.15} parent=0 // loop_pre_header
    _
  $region3: #{hovernet_fwd.15} parent=0 // loop_header
    %s17 = sphi 0, %s21
    %p18 = scmp.ge.s32.totalorder %s17, 4
    %s27 = sphi 0, %s29
    %s30 = sphi 0, %s27
    %s31 = sphi 0, %s30
    %s47 = sphi 0, %s31
    %s53 = sphi 0, %s55
    %s56 = sphi 0, %s53
    %s57 = sphi 0, %s56
    %s73 = sphi 0, %s57
    %s79 = sphi 0, %s81
    %s82 = sphi 0, %s79
    %s83 = sphi 0, %s82
    %s99 = sphi 0, %s83
    %s103 = sphi 0, %s103
    %s105 = sphi 0, %s103
    %s106 = sphi 0, %s105
    %s120 = sphi 0, %s106
    %s124 = sphi 0, %s124
    %s126 = sphi 0, %s124
    %s127 = sphi 0, %s126
    %s141 = sphi 0, %s127
    %s145 = sphi 0, %s145
    %s147 = sphi 0, %s145
    %s148 = sphi 0, %s147
    %s162 = sphi 0, %s148
    %s166 = sphi 0, %s166
    %s168 = sphi 0, %s166
    %s169 = sphi 0, %s168
    %s183 = sphi 0, %s169
    %s187 = sphi 0, %s187
    %s189 = sphi 0, %s187
    %s190 = sphi 0, %s189
    %s204 = sphi 0, %s190
    %s208 = sphi 0, %s208
    %s210 = sphi 0, %s208
    %s211 = sphi 0, %s210
    %s225 = sphi 0, %s211
    %s229 = sphi 0, %s229
    %s231 = sphi 0, %s229
    %s232 = sphi 0, %s231
    %s246 = sphi 0, %s232
    %s250 = sphi 0, %s250
    %s252 = sphi 0, %s250
    %s253 = sphi 0, %s252
    %s267 = sphi 0, %s253
    %s273 = sphi 0, %s275
    %s276 = sphi 0, %s273
    %s277 = sphi 0, %s276
    %s293 = sphi 0, %s277
  $region4: #{hovernet_fwd.15} parent=0 // loop_header_branch
    %20 = sbr.rel (%p18) target = $region8
  $region5: #{hovernet_fwd.15} parent=0 // loop_body
    %s22 = ssub.s32 %s17, 1
    %s23 = ssub.s32 %s17, 2
    %s24 = sadd.s32 %s17, 1
    %s25 = ssub.s32 %s17, %s24
    %p26 = scmp.eq.s32.totalorder %s25, 0
    %s28 = sadd.s32 %s27, 1
    %s29 = scalar_select %p26, %s27, %s28
    %p32 = pneg %p26
    %p33 = scmp.eq.s32.totalorder %s17, 1
    %p34 = por %p32, %p33
    %p35 = scmp.ne.s32.totalorder %s27, %s30
    %p36 = scmp.eq.s32.totalorder %s17, 0
    %p37 = por %p35, %p36
    %p38 = scmp.ne.s32.totalorder %s27, %s30
    %p39 = scmp.eq.s32.totalorder %s22, 1
    %p40 = por %p38, %p39
    %p41 = scmp.ne.s32.totalorder %s30, %s31
    %p42 = scmp.eq.s32.totalorder %s22, 0
    %p43 = por %p41, %p42
    %p44 = scmp.ne.s32.totalorder %s30, %s31
    %p45 = scmp.eq.s32.totalorder %s23, 1
    %p46 = por %p44, %p45
    %p48 = scmp.ne.s32.totalorder %s31, %s47
    %p49 = scmp.eq.s32.totalorder %s23, 0
    %p50 = por %p48, %p49
    %s51 = ssub.s32 %s17, %s24
    %p52 = scmp.eq.s32.totalorder %s51, 0
    %s54 = sadd.s32 %s53, 1
    %s55 = scalar_select %p52, %s53, %s54
    %p58 = pneg %p52
    %p59 = scmp.eq.s32.totalorder %s17, 1
    %p60 = por %p58, %p59
    %p61 = scmp.ne.s32.totalorder %s53, %s56
    %p62 = scmp.eq.s32.totalorder %s17, 0
    %p63 = por %p61, %p62
    %p64 = scmp.ne.s32.totalorder %s53, %s56
    %p65 = scmp.eq.s32.totalorder %s22, 1
    %p66 = por %p64, %p65
    %p67 = scmp.ne.s32.totalorder %s56, %s57
    %p68 = scmp.eq.s32.totalorder %s22, 0
    %p69 = por %p67, %p68
    %p70 = scmp.ne.s32.totalorder %s56, %s57
    %p71 = scmp.eq.s32.totalorder %s23, 1
    %p72 = por %p70, %p71
    %p74 = scmp.ne.s32.totalorder %s57, %s73
    %p75 = scmp.eq.s32.totalorder %s23, 0
    %p76 = por %p74, %p75
    %s77 = ssub.s32 %s17, %s24
    %p78 = scmp.eq.s32.totalorder %s77, 0
    %s80 = sadd.s32 %s79, 1
    %s81 = scalar_select %p78, %s79, %s80
    %p84 = pneg %p78
    %p85 = scmp.eq.s32.totalorder %s17, 1
    %p86 = por %p84, %p85
    %p87 = scmp.ne.s32.totalorder %s79, %s82
    %p88 = scmp.eq.s32.totalorder %s17, 0
    %p89 = por %p87, %p88
    %p90 = scmp.ne.s32.totalorder %s79, %s82
    %p91 = scmp.eq.s32.totalorder %s22, 1
    %p92 = por %p90, %p91
    %p93 = scmp.ne.s32.totalorder %s82, %s83
    %p94 = scmp.eq.s32.totalorder %s22, 0
    %p95 = por %p93, %p94
    %p96 = scmp.ne.s32.totalorder %s82, %s83
    %p97 = scmp.eq.s32.totalorder %s23, 1
    %p98 = por %p96, %p97
    %p100 = scmp.ne.s32.totalorder %s83, %s99
    %p101 = scmp.eq.s32.totalorder %s23, 0
    %p102 = por %p100, %p101
    %s104 = sadd.s32 %s103, 1
    %p107 = scmp.eq.s32.totalorder %s17, 1
    %p108 = scmp.ne.s32.totalorder %s103, %s105
    %p109 = scmp.eq.s32.totalorder %s17, 0
    %p110 = por %p108, %p109
    %p111 = scmp.ne.s32.totalorder %s103, %s105
    %p112 = scmp.eq.s32.totalorder %s22, 1
    %p113 = por %p111, %p112
    %p114 = scmp.ne.s32.totalorder %s105, %s106
    %p115 = scmp.eq.s32.totalorder %s22, 0
    %p116 = por %p114, %p115
    %p117 = scmp.ne.s32.totalorder %s105, %s106
    %p118 = scmp.eq.s32.totalorder %s23, 1
    %p119 = por %p117, %p118
    %p121 = scmp.ne.s32.totalorder %s106, %s120
    %p122 = scmp.eq.s32.totalorder %s23, 0
    %p123 = por %p121, %p122
    %s125 = sadd.s32 %s124, 1
    %p128 = scmp.eq.s32.totalorder %s17, 1
    %p129 = scmp.ne.s32.totalorder %s124, %s126
    %p130 = scmp.eq.s32.totalorder %s17, 0
    %p131 = por %p129, %p130
    %p132 = scmp.ne.s32.totalorder %s124, %s126
    %p133 = scmp.eq.s32.totalorder %s22, 1
    %p134 = por %p132, %p133
    %p135 = scmp.ne.s32.totalorder %s126, %s127
    %p136 = scmp.eq.s32.totalorder %s22, 0
    %p137 = por %p135, %p136
    %p138 = scmp.ne.s32.totalorder %s126, %s127
    %p139 = scmp.eq.s32.totalorder %s23, 1
    %p140 = por %p138, %p139
    %p142 = scmp.ne.s32.totalorder %s127, %s141
    %p143 = scmp.eq.s32.totalorder %s23, 0
    %p144 = por %p142, %p143
    %s146 = sadd.s32 %s145, 1
    %p149 = scmp.eq.s32.totalorder %s17, 1
    %p150 = scmp.ne.s32.totalorder %s145, %s147
    %p151 = scmp.eq.s32.totalorder %s17, 0
    %p152 = por %p150, %p151
    %p153 = scmp.ne.s32.totalorder %s145, %s147
    %p154 = scmp.eq.s32.totalorder %s22, 1
    %p155 = por %p153, %p154
    %p156 = scmp.ne.s32.totalorder %s147, %s148
    %p157 = scmp.eq.s32.totalorder %s22, 0
    %p158 = por %p156, %p157
    %p159 = scmp.ne.s32.totalorder %s147, %s148
    %p160 = scmp.eq.s32.totalorder %s23, 1
    %p161 = por %p159, %p160
    %p163 = scmp.ne.s32.totalorder %s148, %s162
    %p164 = scmp.eq.s32.totalorder %s23, 0
    %p165 = por %p163, %p164
    %s167 = sadd.s32 %s166, 1
    %p170 = scmp.eq.s32.totalorder %s17, 1
    %p171 = scmp.ne.s32.totalorder %s166, %s168
    %p172 = scmp.eq.s32.totalorder %s17, 0
    %p173 = por %p171, %p172
    %p174 = scmp.ne.s32.totalorder %s166, %s168
    %p175 = scmp.eq.s32.totalorder %s22, 1
    %p176 = por %p174, %p175
    %p177 = scmp.ne.s32.totalorder %s168, %s169
    %p178 = scmp.eq.s32.totalorder %s22, 0
    %p179 = por %p177, %p178
    %p180 = scmp.ne.s32.totalorder %s168, %s169
    %p181 = scmp.eq.s32.totalorder %s23, 1
    %p182 = por %p180, %p181
    %p184 = scmp.ne.s32.totalorder %s169, %s183
    %p185 = scmp.eq.s32.totalorder %s23, 0
    %p186 = por %p184, %p185
    %s188 = sadd.s32 %s187, 1
    %p191 = scmp.eq.s32.totalorder %s17, 1
    %p192 = scmp.ne.s32.totalorder %s187, %s189
    %p193 = scmp.eq.s32.totalorder %s17, 0
    %p194 = por %p192, %p193
    %p195 = scmp.ne.s32.totalorder %s187, %s189
    %p196 = scmp.eq.s32.totalorder %s22, 1
    %p197 = por %p195, %p196
    %p198 = scmp.ne.s32.totalorder %s189, %s190
    %p199 = scmp.eq.s32.totalorder %s22, 0
    %p200 = por %p198, %p199
    %p201 = scmp.ne.s32.totalorder %s189, %s190
    %p202 = scmp.eq.s32.totalorder %s23, 1
    %p203 = por %p201, %p202
    %p205 = scmp.ne.s32.totalorder %s190, %s204
    %p206 = scmp.eq.s32.totalorder %s23, 0
    %p207 = por %p205, %p206
    %s209 = sadd.s32 %s208, 1
    %p212 = scmp.eq.s32.totalorder %s17, 1
    %p213 = scmp.ne.s32.totalorder %s208, %s210
    %p214 = scmp.eq.s32.totalorder %s17, 0
    %p215 = por %p213, %p214
    %p216 = scmp.ne.s32.totalorder %s208, %s210
    %p217 = scmp.eq.s32.totalorder %s22, 1
    %p218 = por %p216, %p217
    %p219 = scmp.ne.s32.totalorder %s210, %s211
    %p220 = scmp.eq.s32.totalorder %s22, 0
    %p221 = por %p219, %p220
    %p222 = scmp.ne.s32.totalorder %s210, %s211
    %p223 = scmp.eq.s32.totalorder %s23, 1
    %p224 = por %p222, %p223
    %p226 = scmp.ne.s32.totalorder %s211, %s225
    %p227 = scmp.eq.s32.totalorder %s23, 0
    %p228 = por %p226, %p227
    %s230 = sadd.s32 %s229, 1
    %p233 = scmp.eq.s32.totalorder %s17, 1
    %p234 = scmp.ne.s32.totalorder %s229, %s231
    %p235 = scmp.eq.s32.totalorder %s17, 0
    %p236 = por %p234, %p235
    %p237 = scmp.ne.s32.totalorder %s229, %s231
    %p238 = scmp.eq.s32.totalorder %s22, 1
    %p239 = por %p237, %p238
    %p240 = scmp.ne.s32.totalorder %s231, %s232
    %p241 = scmp.eq.s32.totalorder %s22, 0
    %p242 = por %p240, %p241
    %p243 = scmp.ne.s32.totalorder %s231, %s232
    %p244 = scmp.eq.s32.totalorder %s23, 1
    %p245 = por %p243, %p244
    %p247 = scmp.ne.s32.totalorder %s232, %s246
    %p248 = scmp.eq.s32.totalorder %s23, 0
    %p249 = por %p247, %p248
    %s251 = sadd.s32 %s250, 1
    %p254 = scmp.eq.s32.totalorder %s17, 1
    %p255 = scmp.ne.s32.totalorder %s250, %s252
    %p256 = scmp.eq.s32.totalorder %s17, 0
    %p257 = por %p255, %p256
    %p258 = scmp.ne.s32.totalorder %s250, %s252
    %p259 = scmp.eq.s32.totalorder %s22, 1
    %p260 = por %p258, %p259
    %p261 = scmp.ne.s32.totalorder %s252, %s253
    %p262 = scmp.eq.s32.totalorder %s22, 0
    %p263 = por %p261, %p262
    %p264 = scmp.ne.s32.totalorder %s252, %s253
    %p265 = scmp.eq.s32.totalorder %s23, 1
    %p266 = por %p264, %p265
    %p268 = scmp.ne.s32.totalorder %s253, %s267
    %p269 = scmp.eq.s32.totalorder %s23, 0
    %p270 = por %p268, %p269
    %s271 = ssub.s32 %s17, %s24
    %p272 = scmp.eq.s32.totalorder %s271, 0
    %s274 = sadd.s32 %s273, 1
    %s275 = scalar_select %p272, %s273, %s274
    %p278 = pneg %p272
    %p279 = scmp.eq.s32.totalorder %s17, 1
    %p280 = por %p278, %p279
    %p281 = scmp.ne.s32.totalorder %s273, %s276
    %p282 = scmp.eq.s32.totalorder %s17, 0
    %p283 = por %p281, %p282
    %p284 = scmp.ne.s32.totalorder %s273, %s276
    %p285 = scmp.eq.s32.totalorder %s22, 1
    %p286 = por %p284, %p285
    %p287 = scmp.ne.s32.totalorder %s276, %s277
    %p288 = scmp.eq.s32.totalorder %s22, 0
    %p289 = por %p287, %p288
    %p290 = scmp.ne.s32.totalorder %s276, %s277
    %p291 = scmp.eq.s32.totalorder %s23, 1
    %p292 = por %p290, %p291
    %p294 = scmp.ne.s32.totalorder %s277, %s293
    %p295 = scmp.eq.s32.totalorder %s23, 0
    %p296 = por %p294, %p295
    %p297 = scmp.le.s32.totalorder 1, %s17
    %p298 = scmp.lt.s32.totalorder %s17, 3
    %p299 = pnand %p297, %p298
    %p300 = pneg %p299
    // Predicated region
    $region9: #{hovernet_fwd.15} parent=5 // pred_check
      _
    $region10: #{hovernet_fwd.15} parent=5 // pred_check_branch
      %302 = sbr.rel (%p299) target = $region12
    $region11: #{hovernet_fwd.15} parent=5 // pred_region
      %s303 = ssub.s32 %s17, 1
      // Predicated region
      $region13: #{hovernet_fwd.15} parent=11 // pred_check
        %p304 = pneg %p116
      $region14: #{hovernet_fwd.15} parent=11 // pred_check_branch
        %306 = sbr.rel (%p304) target = $region16
      $region15: #{hovernet_fwd.15} parent=11 // pred_region
        _
      $region16: #{hovernet_fwd.15} parent=11 // pred_fallthru
        _
      // Predicated region
      $region17: #{hovernet_fwd.15} parent=11 // pred_check
        %p307 = pneg %p137
      $region18: #{hovernet_fwd.15} parent=11 // pred_check_branch
        %309 = sbr.rel (%p307) target = $region20
      $region19: #{hovernet_fwd.15} parent=11 // pred_region
        _
      $region20: #{hovernet_fwd.15} parent=11 // pred_fallthru
        _
      // Predicated region
      $region21: #{hovernet_fwd.15} parent=11 // pred_check
        %p310 = pneg %p158
      $region22: #{hovernet_fwd.15} parent=11 // pred_check_branch
        %312 = sbr.rel (%p310) target = $region24
      $region23: #{hovernet_fwd.15} parent=11 // pred_region
        _
      $region24: #{hovernet_fwd.15} parent=11 // pred_fallthru
        _
      // Predicated region
      $region25: #{hovernet_fwd.15} parent=11 // pred_check
        %p313 = pneg %p179
      $region26: #{hovernet_fwd.15} parent=11 // pred_check_branch
        %315 = sbr.rel (%p313) target = $region28
      $region27: #{hovernet_fwd.15} parent=11 // pred_region
        _
      $region28: #{hovernet_fwd.15} parent=11 // pred_fallthru
        _
      // Predicated region
      $region29: #{hovernet_fwd.15} parent=11 // pred_check
        %p316 = pneg %p200
      $region30: #{hovernet_fwd.15} parent=11 // pred_check_branch
        %318 = sbr.rel (%p316) target = $region32
      $region31: #{hovernet_fwd.15} parent=11 // pred_region
        _
      $region32: #{hovernet_fwd.15} parent=11 // pred_fallthru
        _
      // Predicated region
      $region33: #{hovernet_fwd.15} parent=11 // pred_check
        %p319 = pneg %p221
      $region34: #{hovernet_fwd.15} parent=11 // pred_check_branch
        %321 = sbr.rel (%p319) target = $region36
      $region35: #{hovernet_fwd.15} parent=11 // pred_region
        _
      $region36: #{hovernet_fwd.15} parent=11 // pred_fallthru
        _
      // Predicated region
      $region37: #{hovernet_fwd.15} parent=11 // pred_check
        %p322 = pneg %p242
      $region38: #{hovernet_fwd.15} parent=11 // pred_check_branch
        %324 = sbr.rel (%p322) target = $region40
      $region39: #{hovernet_fwd.15} parent=11 // pred_region
        _
      $region40: #{hovernet_fwd.15} parent=11 // pred_fallthru
        _
      // Predicated region
      $region41: #{hovernet_fwd.15} parent=11 // pred_check
        %p325 = pneg %p263
      $region42: #{hovernet_fwd.15} parent=11 // pred_check_branch
        %327 = sbr.rel (%p325) target = $region44
      $region43: #{hovernet_fwd.15} parent=11 // pred_region
        _
      $region44: #{hovernet_fwd.15} parent=11 // pred_fallthru
        _
    $region12: #{hovernet_fwd.15} parent=5 // pred_fallthru
      _
    %p328 = scmp.lt.s32.totalorder %s17, 2
    // Predicated region
    $region45: #{hovernet_fwd.15} parent=5 // pred_check
      %p329 = pneg %p328
    $region46: #{hovernet_fwd.15} parent=5 // pred_check_branch
      %331 = sbr.rel (%p329) target = $region48
    $region47: #{hovernet_fwd.15} parent=5 // pred_region
      // Predicated region
      $region49: #{hovernet_fwd.15} parent=47 // pred_check
        %p332 = pneg %p37
      $region50: #{hovernet_fwd.15} parent=47 // pred_check_branch
        %334 = sbr.rel (%p332) target = $region52
      $region51: #{hovernet_fwd.15} parent=47 // pred_region
        %s335 = smul.u32 32, %s17
        %p336 = scmp.lt.s32.totalorder %s335, 63
        %s337 = scalar_select %p336, %s335, 63
        %s338 = smul.addr %s337, 4
        %s339 = scalar_lea.vmem %s0, %s338
        %s340 = smul.u32 32, %s17
      $region52: #{hovernet_fwd.15} parent=47 // pred_fallthru
        _
      // Predicated region
      $region53: #{hovernet_fwd.15} parent=47 // pred_check
        %p341 = pneg %p63
      $region54: #{hovernet_fwd.15} parent=47 // pred_check_branch
        %343 = sbr.rel (%p341) target = $region56
      $region55: #{hovernet_fwd.15} parent=47 // pred_region
        %s344 = smul.u32 32, %s17
        %p345 = scmp.lt.s32.totalorder %s344, 63
        %s346 = scalar_select %p345, %s344, 63
        %s347 = smul.addr %s346, 4
        %s348 = scalar_lea.vmem %s1, %s347
        %s349 = smul.u32 32, %s17
      $region56: #{hovernet_fwd.15} parent=47 // pred_fallthru
        _
      // Predicated region
      $region57: #{hovernet_fwd.15} parent=47 // pred_check
        %p350 = pneg %p89
      $region58: #{hovernet_fwd.15} parent=47 // pred_check_branch
        %352 = sbr.rel (%p350) target = $region60
      $region59: #{hovernet_fwd.15} parent=47 // pred_region
        %s353 = smul.u32 32, %s17
        %p354 = scmp.lt.s32.totalorder %s353, 63
        %s355 = scalar_select %p354, %s353, 63
        %s356 = smul.addr %s355, 4
        %s357 = scalar_lea.vmem %s2, %s356
        %s358 = smul.u32 32, %s17
      $region60: #{hovernet_fwd.15} parent=47 // pred_fallthru
        _
    $region48: #{hovernet_fwd.15} parent=5 // pred_fallthru
      _
    %p359 = scmp.le.s32.totalorder 1, %s17
    %p360 = scmp.lt.s32.totalorder %s17, 3
    %p361 = pnand %p359, %p360
    %p362 = pneg %p361
    // Predicated region
    $region61: #{hovernet_fwd.15} parent=5 // pred_check
      _
    $region62: #{hovernet_fwd.15} parent=5 // pred_check_branch
      %364 = sbr.rel (%p361) target = $region64
    $region63: #{hovernet_fwd.15} parent=5 // pred_region
      %s365 = ssub.s32 %s17, 1
      %s366 = smul.u32 32, %s22
      %p367 = scmp.lt.s32.totalorder %s366, 63
      %s368 = scalar_select %p367, %s366, 63
      %s369 = smul.addr %s368, 4
      %s370 = scalar_lea.vmem %s0, %s369
      %p371 = pneg %p43
      %p372 = pneg %p40
      %s373 = smul.u32 32, %s22
      %p374 = scmp.lt.s32.totalorder %s373, 63
      %s375 = scalar_select %p374, %s373, 63
      %s376 = smul.addr %s375, 4
      %s377 = scalar_lea.vmem %s1, %s376
      %p378 = pneg %p69
      %p379 = pneg %p66
      %s380 = smul.u32 32, %s22
      %p381 = scmp.lt.s32.totalorder %s380, 63
      %s382 = scalar_select %p381, %s380, 63
      %s383 = smul.addr %s382, 4
      %s384 = scalar_lea.vmem %s2, %s383
      %p385 = pneg %p95
      %p386 = pneg %p92
      %p387 = pneg %p116
      %p388 = pneg %p113
      %p389 = pneg %p137
      %p390 = pneg %p134
      %p391 = pneg %p158
      %p392 = pneg %p155
      %p393 = pneg %p179
      %p394 = pneg %p176
      %p395 = pneg %p200
      %p396 = pneg %p197
      %p397 = pneg %p221
      %p398 = pneg %p218
      %p399 = pneg %p242
      %p400 = pneg %p239
      %p401 = pneg %p263
      %p402 = pneg %p260
      %p403 = pneg %p289
      %p404 = pneg %p286
      %s405 = smul.u32 32, %s22
      %p406 = scmp.lt.s32.totalorder %s405, 63
      %s407 = scalar_select %p406, %s405, 63
      %s408 = smul.addr %s407, 8
      %s409 = scalar_lea.vmem %s11, %s408
      %s410 = smul.u32 32, %s22
      %p411 = scmp.lt.s32.totalorder %s410, 63
      %s412 = scalar_select %p411, %s410, 63
      %s413 = smul.addr %s412, 4
      %s414 = scalar_lea.vmem %s0, %s413
      %s415 = smul.u32 32, %s22
      %s416 = smul.u32 32, %s22
      %p417 = scmp.lt.s32.totalorder %s416, 63
      %s418 = scalar_select %p417, %s416, 63
      %s419 = smul.addr %s418, 4
      %s420 = scalar_lea.vmem %s1, %s419
      %s421 = smul.u32 32, %s22
      %s422 = smul.u32 32, %s22
      %p423 = scmp.lt.s32.totalorder %s422, 63
      %s424 = scalar_select %p423, %s422, 63
      %s425 = smul.addr %s424, 4
      %s426 = scalar_lea.vmem %s2, %s425
      %s427 = smul.u32 32, %s22
      %s428 = smul.u32 32, %s22
      %p429 = scmp.lt.s32.totalorder %s428, 63
      %s430 = scalar_select %p429, %s428, 63
      %s431 = smul.addr %s430, 8
      %s432 = scalar_lea.vmem %s11, %s431
      %s433 = smul.u32 32, %s22
      %v435 = vld [vmem:[%s414] sm:$0xf]
      %v436 = vld [vmem:[%s414 + $0x4] sm:$0xf]
      %v437 = vld [vmem:[%s414 + $0x8] sm:$0xf]
      %v438 = vld [vmem:[%s414 + $0xc] sm:$0xf]
      %v439 = vld [vmem:[%s414 + $0x10] sm:$0xf]
      %v440 = vld [vmem:[%s414 + $0x14] sm:$0xf]
      %v441 = vld [vmem:[%s414 + $0x18] sm:$0xf]
      %v442 = vld [vmem:[%s414 + $0x1c] sm:$0xf]
      %v443 = vld [vmem:[%s414 + $0x20] sm:$0xf]
      %v444 = vld [vmem:[%s414 + $0x24] sm:$0xf]
      %v445 = vld [vmem:[%s414 + $0x28] sm:$0xf]
      %v446 = vld [vmem:[%s414 + $0x2c] sm:$0xf]
      %v447 = vld [vmem:[%s414 + $0x30] sm:$0xf]
      %v448 = vld [vmem:[%s414 + $0x34] sm:$0xf]
      %v449 = vld [vmem:[%s414 + $0x38] sm:$0xf]
      %v450 = vld [vmem:[%s414 + $0x3c] sm:$0xf]
      %v451 = vld [vmem:[%s414 + $0x40] sm:$0xf]
      %v452 = vld [vmem:[%s414 + $0x44] sm:$0xf]
      %v453 = vld [vmem:[%s414 + $0x48] sm:$0xf]
      %v454 = vld [vmem:[%s414 + $0x4c] sm:$0xf]
      %v455 = vld [vmem:[%s414 + $0x50] sm:$0xf]
      %v456 = vld [vmem:[%s414 + $0x54] sm:$0xf]
      %v457 = vld [vmem:[%s414 + $0x58] sm:$0xf]
      %v458 = vld [vmem:[%s414 + $0x5c] sm:$0xf]
      %v459 = vld [vmem:[%s414 + $0x60] sm:$0xf]
      %v460 = vld [vmem:[%s414 + $0x64] sm:$0xf]
      %v461 = vld [vmem:[%s414 + $0x68] sm:$0xf]
      %v462 = vld [vmem:[%s414 + $0x6c] sm:$0xf]
      %v463 = vld [vmem:[%s414 + $0x70] sm:$0xf]
      %v464 = vld [vmem:[%s414 + $0x74] sm:$0xf]
      %v465 = vld [vmem:[%s414 + $0x78] sm:$0xf]
      %v466 = vld [vmem:[%s414 + $0x7c] sm:$0xf]
      %v467 = vld [vmem:[%s3] sm:$0xf]
      %v468 = vld [vmem:[%s3 + $0x4] sm:$0xf]
      %v469 = vld [vmem:[%s3 + $0x8] sm:$0xf]
      %v470 = vld [vmem:[%s3 + $0xc] sm:$0xf]
      %v471 = vld [vmem:[%s3 + $0x10] sm:$0xf]
      %v472 = vld [vmem:[%s3 + $0x14] sm:$0xf]
      %v473 = vld [vmem:[%s3 + $0x18] sm:$0xf]
      %v474 = vld [vmem:[%s3 + $0x1c] sm:$0xf]
      %v475 = vld [vmem:[%s3 + $0x20] sm:$0xf]
      %v476 = vld [vmem:[%s3 + $0x24] sm:$0xf]
      %v477 = vld [vmem:[%s3 + $0x28] sm:$0xf]
      %v478 = vld [vmem:[%s3 + $0x2c] sm:$0xf]
      %v479 = vld [vmem:[%s6] sm:$0x1]
      %v481 = vperm.slane %v479, 0
      %v515 = vunpack.c.l.b16 %v435
      %v516 = vunpack.c.l.b16 %v436
      %v517 = vunpack.c.l.b16 %v437
      %v518 = vunpack.c.l.b16 %v438
      %v519 = vunpack.c.l.b16 %v439
      %v520 = vunpack.c.l.b16 %v440
      %v521 = vunpack.c.l.b16 %v441
      %v522 = vunpack.c.l.b16 %v442
      %v523 = vunpack.c.l.b16 %v443
      %v524 = vunpack.c.l.b16 %v444
      %v525 = vunpack.c.l.b16 %v445
      %v526 = vunpack.c.l.b16 %v446
      %v527 = vunpack.c.l.b16 %v447
      %v528 = vunpack.c.l.b16 %v448
      %v529 = vunpack.c.l.b16 %v449
      %v530 = vunpack.c.l.b16 %v450
      %v531 = vunpack.c.l.b16 %v451
      %v532 = vunpack.c.l.b16 %v452
      %v533 = vunpack.c.l.b16 %v453
      %v534 = vunpack.c.l.b16 %v454
      %v535 = vunpack.c.l.b16 %v455
      %v536 = vunpack.c.l.b16 %v456
      %v537 = vunpack.c.l.b16 %v457
      %v538 = vunpack.c.l.b16 %v458
      %v539 = vunpack.c.l.b16 %v459
      %v540 = vunpack.c.l.b16 %v460
      %v541 = vunpack.c.l.b16 %v461
      %v542 = vunpack.c.l.b16 %v462
      %v543 = vunpack.c.l.b16 %v463
      %v544 = vunpack.c.l.b16 %v464
      %v545 = vunpack.c.l.b16 %v465
      %v546 = vunpack.c.l.b16 %v466
      %v547 = vpack.c.b16 %v516, %v515
      %v548 = vpack.c.b16 %v518, %v517
      %v549 = vpack.c.b16 %v520, %v519
      %v550 = vpack.c.b16 %v522, %v521
      %v551 = vpack.c.b16 %v524, %v523
      %v552 = vpack.c.b16 %v526, %v525
      %v553 = vpack.c.b16 %v528, %v527
      %v554 = vpack.c.b16 %v530, %v529
      %v555 = vpack.c.b16 %v532, %v531
      %v556 = vpack.c.b16 %v534, %v533
      %v557 = vpack.c.b16 %v536, %v535
      %v558 = vpack.c.b16 %v538, %v537
      %v559 = vpack.c.b16 %v540, %v539
      %v560 = vpack.c.b16 %v542, %v541
      %v561 = vpack.c.b16 %v544, %v543
      %v562 = vpack.c.b16 %v546, %v545
      %v575 = vunpack.c.l.b16 %v467
      %v576 = vunpack.c.l.b16 %v468
      %v577 = vunpack.c.l.b16 %v469
      %v578 = vunpack.c.l.b16 %v470
      %v579 = vunpack.c.l.b16 %v471
      %v580 = vunpack.c.l.b16 %v472
      %v581 = vunpack.c.l.b16 %v473
      %v582 = vunpack.c.l.b16 %v474
      %v583 = vunpack.c.l.b16 %v475
      %v584 = vunpack.c.l.b16 %v476
      %v585 = vunpack.c.l.b16 %v477
      %v586 = vunpack.c.l.b16 %v478
      %v587 = vpack.c.b16 %v576, %v575
      %v588 = vpack.c.b16 %v578, %v577
      %v589 = vpack.c.b16 %v580, %v579
      %v590 = vpack.c.b16 %v582, %v581
      %v591 = vpack.c.b16 %v584, %v583
      %v592 = vpack.c.b16 %v586, %v585
      %vm599 = vcmask 785408
      %v601 = vsel %vm599, %v547, 0
      %v604 = vsel %vm599, %v548, 0
      %v607 = vsel %vm599, %v549, 0
      %v610 = vsel %vm599, %v550, 0
      %v613 = vsel %vm599, %v551, 0
      %v616 = vsel %vm599, %v552, 0
      %v619 = vsel %vm599, %v553, 0
      %v622 = vsel %vm599, %v554, 0
      %v625 = vsel %vm599, %v555, 0
      %v628 = vsel %vm599, %v556, 0
      %v631 = vsel %vm599, %v557, 0
      %v634 = vsel %vm599, %v558, 0
      %v637 = vsel %vm599, %v559, 0
      %v640 = vsel %vm599, %v560, 0
      %v643 = vsel %vm599, %v561, 0
      %v646 = vsel %vm599, %v562, 0
      %648 = vmatpush.bf16.msra.mxu0 0
      %649 = vmatpush.bf16.msra.mxu0 0
      %650 = vmatpush.bf16.msra.mxu0 %v592
      %651 = vmatpush.bf16.msra.mxu0 %v591
      %652 = vmatpush.bf16.msra.mxu0 %v590
      %653 = vmatpush.bf16.msra.mxu0 %v589
      %654 = vmatpush.bf16.msra.mxu0 %v588
      %655 = vmatpush.bf16.msra.mxu0 %v587
      %656 = vmatmul.bf16.gmra.mxu0 %v601
      %v657 = vpop.f32.mrf.mxu0
      %v658 = vadd.f32 %v481, %v657
      %v659 = vpop.f32.mrf.mxu0
      %v660 = vadd.f32 %v481, %v659
      %661 = vmatmul.bf16.gmra.mxu0 %v604
      %v662 = vpop.f32.mrf.mxu0
      %v663 = vadd.f32 %v481, %v662
      %v664 = vpop.f32.mrf.mxu0
      %v665 = vadd.f32 %v481, %v664
      %666 = vmatmul.bf16.gmra.mxu0 %v607
      %v667 = vpop.f32.mrf.mxu0
      %v668 = vadd.f32 %v481, %v667
      %v669 = vpop.f32.mrf.mxu0
      %v670 = vadd.f32 %v481, %v669
      %671 = vmatmul.bf16.gmra.mxu0 %v610
      %v672 = vpop.f32.mrf.mxu0
      %v673 = vadd.f32 %v481, %v672
      %v674 = vpop.f32.mrf.mxu0
      %v675 = vadd.f32 %v481, %v674
      %676 = vmatmul.bf16.gmra.mxu0 %v613
      %v677 = vpop.f32.mrf.mxu0
      %v678 = vadd.f32 %v481, %v677
      %v679 = vpop.f32.mrf.mxu0
      %v680 = vadd.f32 %v481, %v679
      %681 = vmatmul.bf16.gmra.mxu0 %v616
      %v682 = vpop.f32.mrf.mxu0
      %v683 = vadd.f32 %v481, %v682
      %v684 = vpop.f32.mrf.mxu0
      %v685 = vadd.f32 %v481, %v684
      %686 = vmatmul.bf16.gmra.mxu0 %v619
      %v687 = vpop.f32.mrf.mxu0
      %v688 = vadd.f32 %v481, %v687
      %v689 = vpop.f32.mrf.mxu0
      %v690 = vadd.f32 %v481, %v689
      %691 = vmatmul.bf16.gmra.mxu0 %v622
      %v692 = vpop.f32.mrf.mxu0
      %v693 = vadd.f32 %v481, %v692
      %v694 = vpop.f32.mrf.mxu0
      %v695 = vadd.f32 %v481, %v694
      %696 = vmatmul.bf16.gmra.mxu0 %v625
      %v697 = vpop.f32.mrf.mxu0
      %v698 = vadd.f32 %v481, %v697
      %v699 = vpop.f32.mrf.mxu0
      %v700 = vadd.f32 %v481, %v699
      %701 = vmatmul.bf16.gmra.mxu0 %v628
      %v702 = vpop.f32.mrf.mxu0
      %v703 = vadd.f32 %v481, %v702
      %v704 = vpop.f32.mrf.mxu0
      %v705 = vadd.f32 %v481, %v704
      %706 = vmatmul.bf16.gmra.mxu0 %v631
      %v707 = vpop.f32.mrf.mxu0
      %v708 = vadd.f32 %v481, %v707
      %v709 = vpop.f32.mrf.mxu0
      %v710 = vadd.f32 %v481, %v709
      %711 = vmatmul.bf16.gmra.mxu0 %v634
      %v712 = vpop.f32.mrf.mxu0
      %v713 = vadd.f32 %v481, %v712
      %v714 = vpop.f32.mrf.mxu0
      %v715 = vadd.f32 %v481, %v714
      %716 = vmatmul.bf16.gmra.mxu0 %v637
      %v717 = vpop.f32.mrf.mxu0
      %v718 = vadd.f32 %v481, %v717
      %v719 = vpop.f32.mrf.mxu0
      %v720 = vadd.f32 %v481, %v719
      %721 = vmatmul.bf16.gmra.mxu0 %v640
      %v722 = vpop.f32.mrf.mxu0
      %v723 = vadd.f32 %v481, %v722
      %v724 = vpop.f32.mrf.mxu0
      %v725 = vadd.f32 %v481, %v724
      %726 = vmatmul.bf16.gmra.mxu0 %v643
      %v727 = vpop.f32.mrf.mxu0
      %v728 = vadd.f32 %v481, %v727
      %v729 = vpop.f32.mrf.mxu0
      %v730 = vadd.f32 %v481, %v729
      %731 = vmatmul.bf16.gmra.mxu0 %v646
      %v732 = vpop.f32.mrf.mxu0
      %v733 = vadd.f32 %v481, %v732
      %v734 = vpop.f32.mrf.mxu0
      %v735 = vadd.f32 %v481, %v734
      %736 = vdwg.mxu0
      %v737 = vmax.f32 %v658, 0.0
      %v738 = vmax.f32 %v660, 0.0
      %v739 = vmax.f32 %v663, 0.0
      %v740 = vmax.f32 %v665, 0.0
      %v741 = vmax.f32 %v668, 0.0
      %v742 = vmax.f32 %v670, 0.0
      %v743 = vmax.f32 %v673, 0.0
      %v744 = vmax.f32 %v675, 0.0
      %v745 = vmax.f32 %v678, 0.0
      %v746 = vmax.f32 %v680, 0.0
      %v747 = vmax.f32 %v683, 0.0
      %v748 = vmax.f32 %v685, 0.0
      %v749 = vmax.f32 %v688, 0.0
      %v750 = vmax.f32 %v690, 0.0
      %v751 = vmax.f32 %v693, 0.0
      %v752 = vmax.f32 %v695, 0.0
      %v753 = vmax.f32 %v698, 0.0
      %v754 = vmax.f32 %v700, 0.0
      %v755 = vmax.f32 %v703, 0.0
      %v756 = vmax.f32 %v705, 0.0
      %v757 = vmax.f32 %v708, 0.0
      %v758 = vmax.f32 %v710, 0.0
      %v759 = vmax.f32 %v713, 0.0
      %v760 = vmax.f32 %v715, 0.0
      %v761 = vmax.f32 %v718, 0.0
      %v762 = vmax.f32 %v720, 0.0
      %v763 = vmax.f32 %v723, 0.0
      %v764 = vmax.f32 %v725, 0.0
      %v765 = vmax.f32 %v728, 0.0
      %v766 = vmax.f32 %v730, 0.0
      %v767 = vmax.f32 %v733, 0.0
      %v768 = vmax.f32 %v735, 0.0
      %v769 = vld [vmem:[%s420] sm:$0xf]
      %v770 = vld [vmem:[%s420 + $0x4] sm:$0xf]
      %v771 = vld [vmem:[%s420 + $0x8] sm:$0xf]
      %v772 = vld [vmem:[%s420 + $0xc] sm:$0xf]
      %v773 = vld [vmem:[%s420 + $0x10] sm:$0xf]
      %v774 = vld [vmem:[%s420 + $0x14] sm:$0xf]
      %v775 = vld [vmem:[%s420 + $0x18] sm:$0xf]
      %v776 = vld [vmem:[%s420 + $0x1c] sm:$0xf]
      %v777 = vld [vmem:[%s420 + $0x20] sm:$0xf]
      %v778 = vld [vmem:[%s420 + $0x24] sm:$0xf]
      %v779 = vld [vmem:[%s420 + $0x28] sm:$0xf]
      %v780 = vld [vmem:[%s420 + $0x2c] sm:$0xf]
      %v781 = vld [vmem:[%s420 + $0x30] sm:$0xf]
      %v782 = vld [vmem:[%s420 + $0x34] sm:$0xf]
      %v783 = vld [vmem:[%s420 + $0x38] sm:$0xf]
      %v784 = vld [vmem:[%s420 + $0x3c] sm:$0xf]
      %v785 = vld [vmem:[%s420 + $0x40] sm:$0xf]
      %v786 = vld [vmem:[%s420 + $0x44] sm:$0xf]
      %v787 = vld [vmem:[%s420 + $0x48] sm:$0xf]
      %v788 = vld [vmem:[%s420 + $0x4c] sm:$0xf]
      %v789 = vld [vmem:[%s420 + $0x50] sm:$0xf]
      %v790 = vld [vmem:[%s420 + $0x54] sm:$0xf]
      %v791 = vld [vmem:[%s420 + $0x58] sm:$0xf]
      %v792 = vld [vmem:[%s420 + $0x5c] sm:$0xf]
      %v793 = vld [vmem:[%s420 + $0x60] sm:$0xf]
      %v794 = vld [vmem:[%s420 + $0x64] sm:$0xf]
      %v795 = vld [vmem:[%s420 + $0x68] sm:$0xf]
      %v796 = vld [vmem:[%s420 + $0x6c] sm:$0xf]
      %v797 = vld [vmem:[%s420 + $0x70] sm:$0xf]
      %v798 = vld [vmem:[%s420 + $0x74] sm:$0xf]
      %v799 = vld [vmem:[%s420 + $0x78] sm:$0xf]
      %v800 = vld [vmem:[%s420 + $0x7c] sm:$0xf]
      %v801 = vld [vmem:[%s4] sm:$0xf]
      %v802 = vld [vmem:[%s4 + $0x4] sm:$0xf]
      %v803 = vld [vmem:[%s4 + $0x8] sm:$0xf]
      %v804 = vld [vmem:[%s4 + $0xc] sm:$0xf]
      %v805 = vld [vmem:[%s4 + $0x10] sm:$0xf]
      %v806 = vld [vmem:[%s4 + $0x14] sm:$0xf]
      %s807 = scalar_lea.vmem %s6, 1
      %v808 = vld [vmem:[%s807] sm:$0x1]
      %v810 = vperm.slane %v808, 0
      %v844 = vunpack.c.l.b16 %v769
      %v845 = vunpack.c.l.b16 %v770
      %v846 = vunpack.c.l.b16 %v771
      %v847 = vunpack.c.l.b16 %v772
      %v848 = vunpack.c.l.b16 %v773
      %v849 = vunpack.c.l.b16 %v774
      %v850 = vunpack.c.l.b16 %v775
      %v851 = vunpack.c.l.b16 %v776
      %v852 = vunpack.c.l.b16 %v777
      %v853 = vunpack.c.l.b16 %v778
      %v854 = vunpack.c.l.b16 %v779
      %v855 = vunpack.c.l.b16 %v780
      %v856 = vunpack.c.l.b16 %v781
      %v857 = vunpack.c.l.b16 %v782
      %v858 = vunpack.c.l.b16 %v783
      %v859 = vunpack.c.l.b16 %v784
      %v860 = vunpack.c.l.b16 %v785
      %v861 = vunpack.c.l.b16 %v786
      %v862 = vunpack.c.l.b16 %v787
      %v863 = vunpack.c.l.b16 %v788
      %v864 = vunpack.c.l.b16 %v789
      %v865 = vunpack.c.l.b16 %v790
      %v866 = vunpack.c.l.b16 %v791
      %v867 = vunpack.c.l.b16 %v792
      %v868 = vunpack.c.l.b16 %v793
      %v869 = vunpack.c.l.b16 %v794
      %v870 = vunpack.c.l.b16 %v795
      %v871 = vunpack.c.l.b16 %v796
      %v872 = vunpack.c.l.b16 %v797
      %v873 = vunpack.c.l.b16 %v798
      %v874 = vunpack.c.l.b16 %v799
      %v875 = vunpack.c.l.b16 %v800
      %v876 = vpack.c.b16 %v845, %v844
      %v877 = vpack.c.b16 %v847, %v846
      %v878 = vpack.c.b16 %v849, %v848
      %v879 = vpack.c.b16 %v851, %v850
      %v880 = vpack.c.b16 %v853, %v852
      %v881 = vpack.c.b16 %v855, %v854
      %v882 = vpack.c.b16 %v857, %v856
      %v883 = vpack.c.b16 %v859, %v858
      %v884 = vpack.c.b16 %v861, %v860
      %v885 = vpack.c.b16 %v863, %v862
      %v886 = vpack.c.b16 %v865, %v864
      %v887 = vpack.c.b16 %v867, %v866
      %v888 = vpack.c.b16 %v869, %v868
      %v889 = vpack.c.b16 %v871, %v870
      %v890 = vpack.c.b16 %v873, %v872
      %v891 = vpack.c.b16 %v875, %v874
      %v898 = vunpack.c.l.b16 %v801
      %v899 = vunpack.c.l.b16 %v802
      %v900 = vunpack.c.l.b16 %v803
      %v901 = vunpack.c.l.b16 %v804
      %v902 = vunpack.c.l.b16 %v805
      %v903 = vunpack.c.l.b16 %v806
      %v904 = vpack.c.b16 %v899, %v898
      %v905 = vpack.c.b16 %v901, %v900
      %v906 = vpack.c.b16 %v903, %v902
      %vm910 = vcmask 392192
      %v912 = vsel %vm910, %v876, 0
      %v915 = vsel %vm910, %v877, 0
      %v918 = vsel %vm910, %v878, 0
      %v921 = vsel %vm910, %v879, 0
      %v924 = vsel %vm910, %v880, 0
      %v927 = vsel %vm910, %v881, 0
      %v930 = vsel %vm910, %v882, 0
      %v933 = vsel %vm910, %v883, 0
      %v936 = vsel %vm910, %v884, 0
      %v939 = vsel %vm910, %v885, 0
      %v942 = vsel %vm910, %v886, 0
      %v945 = vsel %vm910, %v887, 0
      %v948 = vsel %vm910, %v888, 0
      %v951 = vsel %vm910, %v889, 0
      %v954 = vsel %vm910, %v890, 0
      %v957 = vsel %vm910, %v891, 0
      %959 = vmatpush.bf16.msra.mxu0 0
      %960 = vmatpush.bf16.msra.mxu0 0
      %961 = vmatpush.bf16.msra.mxu0 0
      %962 = vmatpush.bf16.msra.mxu0 0
      %963 = vmatpush.bf16.msra.mxu0 0
      %964 = vmatpush.bf16.msra.mxu0 %v906
      %965 = vmatpush.bf16.msra.mxu0 %v905
      %966 = vmatpush.bf16.msra.mxu0 %v904
      %967 = vmatmul.bf16.gmra.mxu0 %v912
      %v968 = vpop.f32.mrf.mxu0
      %v969 = vadd.f32 %v810, %v968
      %v970 = vpop.f32.mrf.mxu0
      %v971 = vadd.f32 %v810, %v970
      %972 = vmatmul.bf16.gmra.mxu0 %v915
      %v973 = vpop.f32.mrf.mxu0
      %v974 = vadd.f32 %v810, %v973
      %v975 = vpop.f32.mrf.mxu0
      %v976 = vadd.f32 %v810, %v975
      %977 = vmatmul.bf16.gmra.mxu0 %v918
      %v978 = vpop.f32.mrf.mxu0
      %v979 = vadd.f32 %v810, %v978
      %v980 = vpop.f32.mrf.mxu0
      %v981 = vadd.f32 %v810, %v980
      %982 = vmatmul.bf16.gmra.mxu0 %v921
      %v983 = vpop.f32.mrf.mxu0
      %v984 = vadd.f32 %v810, %v983
      %v985 = vpop.f32.mrf.mxu0
      %v986 = vadd.f32 %v810, %v985
      %987 = vmatmul.bf16.gmra.mxu0 %v924
      %v988 = vpop.f32.mrf.mxu0
      %v989 = vadd.f32 %v810, %v988
      %v990 = vpop.f32.mrf.mxu0
      %v991 = vadd.f32 %v810, %v990
      %992 = vmatmul.bf16.gmra.mxu0 %v927
      %v993 = vpop.f32.mrf.mxu0
      %v994 = vadd.f32 %v810, %v993
      %v995 = vpop.f32.mrf.mxu0
      %v996 = vadd.f32 %v810, %v995
      %997 = vmatmul.bf16.gmra.mxu0 %v930
      %v998 = vpop.f32.mrf.mxu0
      %v999 = vadd.f32 %v810, %v998
      %v1000 = vpop.f32.mrf.mxu0
      %v1001 = vadd.f32 %v810, %v1000
      %1002 = vmatmul.bf16.gmra.mxu0 %v933
      %v1003 = vpop.f32.mrf.mxu0
      %v1004 = vadd.f32 %v810, %v1003
      %v1005 = vpop.f32.mrf.mxu0
      %v1006 = vadd.f32 %v810, %v1005
      %1007 = vmatmul.bf16.gmra.mxu0 %v936
      %v1008 = vpop.f32.mrf.mxu0
      %v1009 = vadd.f32 %v810, %v1008
      %v1010 = vpop.f32.mrf.mxu0
      %v1011 = vadd.f32 %v810, %v1010
      %1012 = vmatmul.bf16.gmra.mxu0 %v939
      %v1013 = vpop.f32.mrf.mxu0
      %v1014 = vadd.f32 %v810, %v1013
      %v1015 = vpop.f32.mrf.mxu0
      %v1016 = vadd.f32 %v810, %v1015
      %1017 = vmatmul.bf16.gmra.mxu0 %v942
      %v1018 = vpop.f32.mrf.mxu0
      %v1019 = vadd.f32 %v810, %v1018
      %v1020 = vpop.f32.mrf.mxu0
      %v1021 = vadd.f32 %v810, %v1020
      %1022 = vmatmul.bf16.gmra.mxu0 %v945
      %v1023 = vpop.f32.mrf.mxu0
      %v1024 = vadd.f32 %v810, %v1023
      %v1025 = vpop.f32.mrf.mxu0
      %v1026 = vadd.f32 %v810, %v1025
      %1027 = vmatmul.bf16.gmra.mxu0 %v948
      %v1028 = vpop.f32.mrf.mxu0
      %v1029 = vadd.f32 %v810, %v1028
      %v1030 = vpop.f32.mrf.mxu0
      %v1031 = vadd.f32 %v810, %v1030
      %1032 = vmatmul.bf16.gmra.mxu0 %v951
      %v1033 = vpop.f32.mrf.mxu0
      %v1034 = vadd.f32 %v810, %v1033
      %v1035 = vpop.f32.mrf.mxu0
      %v1036 = vadd.f32 %v810, %v1035
      %1037 = vmatmul.bf16.gmra.mxu0 %v954
      %v1038 = vpop.f32.mrf.mxu0
      %v1039 = vadd.f32 %v810, %v1038
      %v1040 = vpop.f32.mrf.mxu0
      %v1041 = vadd.f32 %v810, %v1040
      %1042 = vmatmul.bf16.gmra.mxu0 %v957
      %v1043 = vpop.f32.mrf.mxu0
      %v1044 = vadd.f32 %v810, %v1043
      %v1045 = vpop.f32.mrf.mxu0
      %v1046 = vadd.f32 %v810, %v1045
      %1047 = vdwg.mxu0
      %v1048 = vmax.f32 %v969, 0.0
      %v1049 = vmax.f32 %v971, 0.0
      %v1050 = vmax.f32 %v974, 0.0
      %v1051 = vmax.f32 %v976, 0.0
      %v1052 = vmax.f32 %v979, 0.0
      %v1053 = vmax.f32 %v981, 0.0
      %v1054 = vmax.f32 %v984, 0.0
      %v1055 = vmax.f32 %v986, 0.0
      %v1056 = vmax.f32 %v989, 0.0
      %v1057 = vmax.f32 %v991, 0.0
      %v1058 = vmax.f32 %v994, 0.0
      %v1059 = vmax.f32 %v996, 0.0
      %v1060 = vmax.f32 %v999, 0.0
      %v1061 = vmax.f32 %v1001, 0.0
      %v1062 = vmax.f32 %v1004, 0.0
      %v1063 = vmax.f32 %v1006, 0.0
      %v1064 = vmax.f32 %v1009, 0.0
      %v1065 = vmax.f32 %v1011, 0.0
      %v1066 = vmax.f32 %v1014, 0.0
      %v1067 = vmax.f32 %v1016, 0.0
      %v1068 = vmax.f32 %v1019, 0.0
      %v1069 = vmax.f32 %v1021, 0.0
      %v1070 = vmax.f32 %v1024, 0.0
      %v1071 = vmax.f32 %v1026, 0.0
      %v1072 = vmax.f32 %v1029, 0.0
      %v1073 = vmax.f32 %v1031, 0.0
      %v1074 = vmax.f32 %v1034, 0.0
      %v1075 = vmax.f32 %v1036, 0.0
      %v1076 = vmax.f32 %v1039, 0.0
      %v1077 = vmax.f32 %v1041, 0.0
      %v1078 = vmax.f32 %v1044, 0.0
      %v1079 = vmax.f32 %v1046, 0.0
      %v1080 = vld [vmem:[%s426] sm:$0xf]
      %v1081 = vld [vmem:[%s426 + $0x4] sm:$0xf]
      %v1082 = vld [vmem:[%s426 + $0x8] sm:$0xf]
      %v1083 = vld [vmem:[%s426 + $0xc] sm:$0xf]
      %v1084 = vld [vmem:[%s426 + $0x10] sm:$0xf]
      %v1085 = vld [vmem:[%s426 + $0x14] sm:$0xf]
      %v1086 = vld [vmem:[%s426 + $0x18] sm:$0xf]
      %v1087 = vld [vmem:[%s426 + $0x1c] sm:$0xf]
      %v1088 = vld [vmem:[%s426 + $0x20] sm:$0xf]
      %v1089 = vld [vmem:[%s426 + $0x24] sm:$0xf]
      %v1090 = vld [vmem:[%s426 + $0x28] sm:$0xf]
      %v1091 = vld [vmem:[%s426 + $0x2c] sm:$0xf]
      %v1092 = vld [vmem:[%s426 + $0x30] sm:$0xf]
      %v1093 = vld [vmem:[%s426 + $0x34] sm:$0xf]
      %v1094 = vld [vmem:[%s426 + $0x38] sm:$0xf]
      %v1095 = vld [vmem:[%s426 + $0x3c] sm:$0xf]
      %v1096 = vld [vmem:[%s426 + $0x40] sm:$0xf]
      %v1097 = vld [vmem:[%s426 + $0x44] sm:$0xf]
      %v1098 = vld [vmem:[%s426 + $0x48] sm:$0xf]
      %v1099 = vld [vmem:[%s426 + $0x4c] sm:$0xf]
      %v1100 = vld [vmem:[%s426 + $0x50] sm:$0xf]
      %v1101 = vld [vmem:[%s426 + $0x54] sm:$0xf]
      %v1102 = vld [vmem:[%s426 + $0x58] sm:$0xf]
      %v1103 = vld [vmem:[%s426 + $0x5c] sm:$0xf]
      %v1104 = vld [vmem:[%s426 + $0x60] sm:$0xf]
      %v1105 = vld [vmem:[%s426 + $0x64] sm:$0xf]
      %v1106 = vld [vmem:[%s426 + $0x68] sm:$0xf]
      %v1107 = vld [vmem:[%s426 + $0x6c] sm:$0xf]
      %v1108 = vld [vmem:[%s426 + $0x70] sm:$0xf]
      %v1109 = vld [vmem:[%s426 + $0x74] sm:$0xf]
      %v1110 = vld [vmem:[%s426 + $0x78] sm:$0xf]
      %v1111 = vld [vmem:[%s426 + $0x7c] sm:$0xf]
      %v1112 = vld [vmem:[%s5] sm:$0xf]
      %v1113 = vld [vmem:[%s5 + $0x4] sm:$0xf]
      %v1114 = vld [vmem:[%s5 + $0x8] sm:$0xf]
      %s1115 = scalar_lea.vmem %s6, 2
      %v1116 = vld [vmem:[%s1115] sm:$0x1]
      %v1118 = vperm.slane %v1116, 0
      %v1152 = vunpack.c.l.b16 %v1080
      %v1153 = vunpack.c.l.b16 %v1081
      %v1154 = vunpack.c.l.b16 %v1082
      %v1155 = vunpack.c.l.b16 %v1083
      %v1156 = vunpack.c.l.b16 %v1084
      %v1157 = vunpack.c.l.b16 %v1085
      %v1158 = vunpack.c.l.b16 %v1086
      %v1159 = vunpack.c.l.b16 %v1087
      %v1160 = vunpack.c.l.b16 %v1088
      %v1161 = vunpack.c.l.b16 %v1089
      %v1162 = vunpack.c.l.b16 %v1090
      %v1163 = vunpack.c.l.b16 %v1091
      %v1164 = vunpack.c.l.b16 %v1092
      %v1165 = vunpack.c.l.b16 %v1093
      %v1166 = vunpack.c.l.b16 %v1094
      %v1167 = vunpack.c.l.b16 %v1095
      %v1168 = vunpack.c.l.b16 %v1096
      %v1169 = vunpack.c.l.b16 %v1097
      %v1170 = vunpack.c.l.b16 %v1098
      %v1171 = vunpack.c.l.b16 %v1099
      %v1172 = vunpack.c.l.b16 %v1100
      %v1173 = vunpack.c.l.b16 %v1101
      %v1174 = vunpack.c.l.b16 %v1102
      %v1175 = vunpack.c.l.b16 %v1103
      %v1176 = vunpack.c.l.b16 %v1104
      %v1177 = vunpack.c.l.b16 %v1105
      %v1178 = vunpack.c.l.b16 %v1106
      %v1179 = vunpack.c.l.b16 %v1107
      %v1180 = vunpack.c.l.b16 %v1108
      %v1181 = vunpack.c.l.b16 %v1109
      %v1182 = vunpack.c.l.b16 %v1110
      %v1183 = vunpack.c.l.b16 %v1111
      %v1184 = vpack.c.b16 %v1153, %v1152
      %v1185 = vpack.c.b16 %v1155, %v1154
      %v1186 = vpack.c.b16 %v1157, %v1156
      %v1187 = vpack.c.b16 %v1159, %v1158
      %v1188 = vpack.c.b16 %v1161, %v1160
      %v1189 = vpack.c.b16 %v1163, %v1162
      %v1190 = vpack.c.b16 %v1165, %v1164
      %v1191 = vpack.c.b16 %v1167, %v1166
      %v1192 = vpack.c.b16 %v1169, %v1168
      %v1193 = vpack.c.b16 %v1171, %v1170
      %v1194 = vpack.c.b16 %v1173, %v1172
      %v1195 = vpack.c.b16 %v1175, %v1174
      %v1196 = vpack.c.b16 %v1177, %v1176
      %v1197 = vpack.c.b16 %v1179, %v1178
      %v1198 = vpack.c.b16 %v1181, %v1180
      %v1199 = vpack.c.b16 %v1183, %v1182
      %v1203 = vunpack.c.l.b16 %v1112
      %v1204 = vunpack.c.l.b16 %v1113
      %v1205 = vunpack.c.l.b16 %v1114
      %v1206 = vpack.c.b16 %v1204, %v1203
      %v1207 = vpack.c.b16 %v1205, %v1205
      %vm1209 = vcmask 195584
      %v1211 = vsel %vm1209, %v1184, 0
      %v1214 = vsel %vm1209, %v1185, 0
      %v1217 = vsel %vm1209, %v1186, 0
      %v1220 = vsel %vm1209, %v1187, 0
      %v1223 = vsel %vm1209, %v1188, 0
      %v1226 = vsel %vm1209, %v1189, 0
      %v1229 = vsel %vm1209, %v1190, 0
      %v1232 = vsel %vm1209, %v1191, 0
      %v1235 = vsel %vm1209, %v1192, 0
      %v1238 = vsel %vm1209, %v1193, 0
      %v1241 = vsel %vm1209, %v1194, 0
      %v1244 = vsel %vm1209, %v1195, 0
      %v1247 = vsel %vm1209, %v1196, 0
      %v1250 = vsel %vm1209, %v1197, 0
      %v1253 = vsel %vm1209, %v1198, 0
      %v1256 = vsel %vm1209, %v1199, 0
      %vm1258 = vcmask 1043456
      %v1260 = vsel %vm1258, %v1207, 0
      %1262 = vmatpush.bf16.msra.mxu0 0
      %1263 = vmatpush.bf16.msra.mxu0 0
      %1264 = vmatpush.bf16.msra.mxu0 0
      %1265 = vmatpush.bf16.msra.mxu0 0
      %1266 = vmatpush.bf16.msra.mxu0 0
      %1267 = vmatpush.bf16.msra.mxu0 0
      %1268 = vmatpush.bf16.msra.mxu0 %v1260
      %1269 = vmatpush.bf16.msra.mxu0 %v1206
      %1270 = vmatmul.bf16.gmra.mxu0 %v1211
      %v1271 = vpop.f32.mrf.mxu0
      %v1272 = vadd.f32 %v1118, %v1271
      %v1273 = vpop.f32.mrf.mxu0
      %v1274 = vadd.f32 %v1118, %v1273
      %1275 = vmatmul.bf16.gmra.mxu0 %v1214
      %v1276 = vpop.f32.mrf.mxu0
      %v1277 = vadd.f32 %v1118, %v1276
      %v1278 = vpop.f32.mrf.mxu0
      %v1279 = vadd.f32 %v1118, %v1278
      %1280 = vmatmul.bf16.gmra.mxu0 %v1217
      %v1281 = vpop.f32.mrf.mxu0
      %v1282 = vadd.f32 %v1118, %v1281
      %v1283 = vpop.f32.mrf.mxu0
      %v1284 = vadd.f32 %v1118, %v1283
      %1285 = vmatmul.bf16.gmra.mxu0 %v1220
      %v1286 = vpop.f32.mrf.mxu0
      %v1287 = vadd.f32 %v1118, %v1286
      %v1288 = vpop.f32.mrf.mxu0
      %v1289 = vadd.f32 %v1118, %v1288
      %1290 = vmatmul.bf16.gmra.mxu0 %v1223
      %v1291 = vpop.f32.mrf.mxu0
      %v1292 = vadd.f32 %v1118, %v1291
      %v1293 = vpop.f32.mrf.mxu0
      %v1294 = vadd.f32 %v1118, %v1293
      %1295 = vmatmul.bf16.gmra.mxu0 %v1226
      %v1296 = vpop.f32.mrf.mxu0
      %v1297 = vadd.f32 %v1118, %v1296
      %v1298 = vpop.f32.mrf.mxu0
      %v1299 = vadd.f32 %v1118, %v1298
      %1300 = vmatmul.bf16.gmra.mxu0 %v1229
      %v1301 = vpop.f32.mrf.mxu0
      %v1302 = vadd.f32 %v1118, %v1301
      %v1303 = vpop.f32.mrf.mxu0
      %v1304 = vadd.f32 %v1118, %v1303
      %1305 = vmatmul.bf16.gmra.mxu0 %v1232
      %v1306 = vpop.f32.mrf.mxu0
      %v1307 = vadd.f32 %v1118, %v1306
      %v1308 = vpop.f32.mrf.mxu0
      %v1309 = vadd.f32 %v1118, %v1308
      %1310 = vmatmul.bf16.gmra.mxu0 %v1235
      %v1311 = vpop.f32.mrf.mxu0
      %v1312 = vadd.f32 %v1118, %v1311
      %v1313 = vpop.f32.mrf.mxu0
      %v1314 = vadd.f32 %v1118, %v1313
      %1315 = vmatmul.bf16.gmra.mxu0 %v1238
      %v1316 = vpop.f32.mrf.mxu0
      %v1317 = vadd.f32 %v1118, %v1316
      %v1318 = vpop.f32.mrf.mxu0
      %v1319 = vadd.f32 %v1118, %v1318
      %1320 = vmatmul.bf16.gmra.mxu0 %v1241
      %v1321 = vpop.f32.mrf.mxu0
      %v1322 = vadd.f32 %v1118, %v1321
      %v1323 = vpop.f32.mrf.mxu0
      %v1324 = vadd.f32 %v1118, %v1323
      %1325 = vmatmul.bf16.gmra.mxu0 %v1244
      %v1326 = vpop.f32.mrf.mxu0
      %v1327 = vadd.f32 %v1118, %v1326
      %v1328 = vpop.f32.mrf.mxu0
      %v1329 = vadd.f32 %v1118, %v1328
      %1330 = vmatmul.bf16.gmra.mxu0 %v1247
      %v1331 = vpop.f32.mrf.mxu0
      %v1332 = vadd.f32 %v1118, %v1331
      %v1333 = vpop.f32.mrf.mxu0
      %v1334 = vadd.f32 %v1118, %v1333
      %1335 = vmatmul.bf16.gmra.mxu0 %v1250
      %v1336 = vpop.f32.mrf.mxu0
      %v1337 = vadd.f32 %v1118, %v1336
      %v1338 = vpop.f32.mrf.mxu0
      %v1339 = vadd.f32 %v1118, %v1338
      %1340 = vmatmul.bf16.gmra.mxu0 %v1253
      %v1341 = vpop.f32.mrf.mxu0
      %v1342 = vadd.f32 %v1118, %v1341
      %v1343 = vpop.f32.mrf.mxu0
      %v1344 = vadd.f32 %v1118, %v1343
      %1345 = vmatmul.bf16.gmra.mxu0 %v1256
      %v1346 = vpop.f32.mrf.mxu0
      %v1347 = vadd.f32 %v1118, %v1346
      %v1348 = vpop.f32.mrf.mxu0
      %v1349 = vadd.f32 %v1118, %v1348
      %1350 = vdwg.mxu0
      %v1351 = vmax.f32 %v1272, 0.0
      %v1352 = vmax.f32 %v1274, 0.0
      %v1353 = vmax.f32 %v1277, 0.0
      %v1354 = vmax.f32 %v1279, 0.0
      %v1355 = vmax.f32 %v1282, 0.0
      %v1356 = vmax.f32 %v1284, 0.0
      %v1357 = vmax.f32 %v1287, 0.0
      %v1358 = vmax.f32 %v1289, 0.0
      %v1359 = vmax.f32 %v1292, 0.0
      %v1360 = vmax.f32 %v1294, 0.0
      %v1361 = vmax.f32 %v1297, 0.0
      %v1362 = vmax.f32 %v1299, 0.0
      %v1363 = vmax.f32 %v1302, 0.0
      %v1364 = vmax.f32 %v1304, 0.0
      %v1365 = vmax.f32 %v1307, 0.0
      %v1366 = vmax.f32 %v1309, 0.0
      %v1367 = vmax.f32 %v1312, 0.0
      %v1368 = vmax.f32 %v1314, 0.0
      %v1369 = vmax.f32 %v1317, 0.0
      %v1370 = vmax.f32 %v1319, 0.0
      %v1371 = vmax.f32 %v1322, 0.0
      %v1372 = vmax.f32 %v1324, 0.0
      %v1373 = vmax.f32 %v1327, 0.0
      %v1374 = vmax.f32 %v1329, 0.0
      %v1375 = vmax.f32 %v1332, 0.0
      %v1376 = vmax.f32 %v1334, 0.0
      %v1377 = vmax.f32 %v1337, 0.0
      %v1378 = vmax.f32 %v1339, 0.0
      %v1379 = vmax.f32 %v1342, 0.0
      %v1380 = vmax.f32 %v1344, 0.0
      %v1381 = vmax.f32 %v1347, 0.0
      %v1382 = vmax.f32 %v1349, 0.0
      %v1383 = vpack.c.bf16 %v738, %v737
      %v1384 = vpack.c.bf16 %v740, %v739
      %v1385 = vpack.c.bf16 %v742, %v741
      %v1386 = vpack.c.bf16 %v744, %v743
      %v1387 = vpack.c.bf16 %v746, %v745
      %v1388 = vpack.c.bf16 %v748, %v747
      %v1389 = vpack.c.bf16 %v750, %v749
      %v1390 = vpack.c.bf16 %v752, %v751
      %v1391 = vpack.c.bf16 %v754, %v753
      %v1392 = vpack.c.bf16 %v756, %v755
      %v1393 = vpack.c.bf16 %v758, %v757
      %v1394 = vpack.c.bf16 %v760, %v759
      %v1395 = vpack.c.bf16 %v762, %v761
      %v1396 = vpack.c.bf16 %v764, %v763
      %v1397 = vpack.c.bf16 %v766, %v765
      %v1398 = vpack.c.bf16 %v768, %v767
      %v1399 = vld [vmem:[%s7] sm:$0xf]
      %v1400 = vld [vmem:[%s7 + $0x4] sm:$0xf]
      %v1401 = vld [vmem:[%s7 + $0x8] sm:$0xf]
      %v1402 = vld [vmem:[%s8] sm:$0x1]
      %v1404 = vperm.slane %v1402, 0
      %v1409 = vunpack.c.l.b16 %v1399
      %v1410 = vunpack.c.l.b16 %v1400
      %v1411 = vunpack.c.l.b16 %v1401
      %v1412 = vpack.c.b16 %v1410, %v1409
      %v1413 = vpack.c.b16 %v1411, %v1411
      %v1416 = vsel %vm1209, %v1383, 0
      %v1419 = vsel %vm1209, %v1384, 0
      %v1422 = vsel %vm1209, %v1385, 0
      %v1425 = vsel %vm1209, %v1386, 0
      %v1428 = vsel %vm1209, %v1387, 0
      %v1431 = vsel %vm1209, %v1388, 0
      %v1434 = vsel %vm1209, %v1389, 0
      %v1437 = vsel %vm1209, %v1390, 0
      %v1440 = vsel %vm1209, %v1391, 0
      %v1443 = vsel %vm1209, %v1392, 0
      %v1446 = vsel %vm1209, %v1393, 0
      %v1449 = vsel %vm1209, %v1394, 0
      %v1452 = vsel %vm1209, %v1395, 0
      %v1455 = vsel %vm1209, %v1396, 0
      %v1458 = vsel %vm1209, %v1397, 0
      %v1461 = vsel %vm1209, %v1398, 0
      %v1464 = vsel %vm1258, %v1413, 0
      %1466 = vmatpush.bf16.msra.mxu0 0
      %1467 = vmatpush.bf16.msra.mxu0 0
      %1468 = vmatpush.bf16.msra.mxu0 0
      %1469 = vmatpush.bf16.msra.mxu0 0
      %1470 = vmatpush.bf16.msra.mxu0 0
      %1471 = vmatpush.bf16.msra.mxu0 0
      %1472 = vmatpush.bf16.msra.mxu0 %v1464
      %1473 = vmatpush.bf16.msra.mxu0 %v1412
      %1474 = vmatmul.bf16.gmra.mxu0 %v1416
      %v1475 = vpop.f32.mrf.mxu0
      %v1476 = vadd.f32 %v1404, %v1475
      %v1477 = vpop.f32.mrf.mxu0
      %v1478 = vadd.f32 %v1404, %v1477
      %1479 = vmatmul.bf16.gmra.mxu0 %v1419
      %v1480 = vpop.f32.mrf.mxu0
      %v1481 = vadd.f32 %v1404, %v1480
      %v1482 = vpop.f32.mrf.mxu0
      %v1483 = vadd.f32 %v1404, %v1482
      %1484 = vmatmul.bf16.gmra.mxu0 %v1422
      %v1485 = vpop.f32.mrf.mxu0
      %v1486 = vadd.f32 %v1404, %v1485
      %v1487 = vpop.f32.mrf.mxu0
      %v1488 = vadd.f32 %v1404, %v1487
      %1489 = vmatmul.bf16.gmra.mxu0 %v1425
      %v1490 = vpop.f32.mrf.mxu0
      %v1491 = vadd.f32 %v1404, %v1490
      %v1492 = vpop.f32.mrf.mxu0
      %v1493 = vadd.f32 %v1404, %v1492
      %1494 = vmatmul.bf16.gmra.mxu0 %v1428
      %v1495 = vpop.f32.mrf.mxu0
      %v1496 = vadd.f32 %v1404, %v1495
      %v1497 = vpop.f32.mrf.mxu0
      %v1498 = vadd.f32 %v1404, %v1497
      %1499 = vmatmul.bf16.gmra.mxu0 %v1431
      %v1500 = vpop.f32.mrf.mxu0
      %v1501 = vadd.f32 %v1404, %v1500
      %v1502 = vpop.f32.mrf.mxu0
      %v1503 = vadd.f32 %v1404, %v1502
      %1504 = vmatmul.bf16.gmra.mxu0 %v1434
      %v1505 = vpop.f32.mrf.mxu0
      %v1506 = vadd.f32 %v1404, %v1505
      %v1507 = vpop.f32.mrf.mxu0
      %v1508 = vadd.f32 %v1404, %v1507
      %1509 = vmatmul.bf16.gmra.mxu0 %v1437
      %v1510 = vpop.f32.mrf.mxu0
      %v1511 = vadd.f32 %v1404, %v1510
      %v1512 = vpop.f32.mrf.mxu0
      %v1513 = vadd.f32 %v1404, %v1512
      %1514 = vmatmul.bf16.gmra.mxu0 %v1440
      %v1515 = vpop.f32.mrf.mxu0
      %v1516 = vadd.f32 %v1404, %v1515
      %v1517 = vpop.f32.mrf.mxu0
      %v1518 = vadd.f32 %v1404, %v1517
      %1519 = vmatmul.bf16.gmra.mxu0 %v1443
      %v1520 = vpop.f32.mrf.mxu0
      %v1521 = vadd.f32 %v1404, %v1520
      %v1522 = vpop.f32.mrf.mxu0
      %v1523 = vadd.f32 %v1404, %v1522
      %1524 = vmatmul.bf16.gmra.mxu0 %v1446
      %v1525 = vpop.f32.mrf.mxu0
      %v1526 = vadd.f32 %v1404, %v1525
      %v1527 = vpop.f32.mrf.mxu0
      %v1528 = vadd.f32 %v1404, %v1527
      %1529 = vmatmul.bf16.gmra.mxu0 %v1449
      %v1530 = vpop.f32.mrf.mxu0
      %v1531 = vadd.f32 %v1404, %v1530
      %v1532 = vpop.f32.mrf.mxu0
      %v1533 = vadd.f32 %v1404, %v1532
      %1534 = vmatmul.bf16.gmra.mxu0 %v1452
      %v1535 = vpop.f32.mrf.mxu0
      %v1536 = vadd.f32 %v1404, %v1535
      %v1537 = vpop.f32.mrf.mxu0
      %v1538 = vadd.f32 %v1404, %v1537
      %1539 = vmatmul.bf16.gmra.mxu0 %v1455
      %v1540 = vpop.f32.mrf.mxu0
      %v1541 = vadd.f32 %v1404, %v1540
      %v1542 = vpop.f32.mrf.mxu0
      %v1543 = vadd.f32 %v1404, %v1542
      %1544 = vmatmul.bf16.gmra.mxu0 %v1458
      %v1545 = vpop.f32.mrf.mxu0
      %v1546 = vadd.f32 %v1404, %v1545
      %v1547 = vpop.f32.mrf.mxu0
      %v1548 = vadd.f32 %v1404, %v1547
      %1549 = vmatmul.bf16.gmra.mxu0 %v1461
      %v1550 = vpop.f32.mrf.mxu0
      %v1551 = vadd.f32 %v1404, %v1550
      %v1552 = vpop.f32.mrf.mxu0
      %v1553 = vadd.f32 %v1404, %v1552
      %1554 = vdwg.mxu0
      %v1555 = vpack.c.bf16 %v1049, %v1048
      %v1556 = vpack.c.bf16 %v1051, %v1050
      %v1557 = vpack.c.bf16 %v1053, %v1052
      %v1558 = vpack.c.bf16 %v1055, %v1054
      %v1559 = vpack.c.bf16 %v1057, %v1056
      %v1560 = vpack.c.bf16 %v1059, %v1058
      %v1561 = vpack.c.bf16 %v1061, %v1060
      %v1562 = vpack.c.bf16 %v1063, %v1062
      %v1563 = vpack.c.bf16 %v1065, %v1064
      %v1564 = vpack.c.bf16 %v1067, %v1066
      %v1565 = vpack.c.bf16 %v1069, %v1068
      %v1566 = vpack.c.bf16 %v1071, %v1070
      %v1567 = vpack.c.bf16 %v1073, %v1072
      %v1568 = vpack.c.bf16 %v1075, %v1074
      %v1569 = vpack.c.bf16 %v1077, %v1076
      %v1570 = vpack.c.bf16 %v1079, %v1078
      %s1571 = scalar_lea.vmem %s7, 12
      %v1572 = vld [vmem:[%s1571] sm:$0xf]
      %v1573 = vld [vmem:[%s1571 + $0x4] sm:$0xf]
      %v1574 = vld [vmem:[%s1571 + $0x8] sm:$0xf]
      %s1575 = scalar_lea.vmem %s8, 1
      %v1576 = vld [vmem:[%s1575] sm:$0x1]
      %v1578 = vperm.slane %v1576, 0
      %v1583 = vunpack.c.l.b16 %v1572
      %v1584 = vunpack.c.l.b16 %v1573
      %v1585 = vunpack.c.l.b16 %v1574
      %v1586 = vpack.c.b16 %v1584, %v1583
      %v1587 = vpack.c.b16 %v1585, %v1585
      %v1590 = vsel %vm1209, %v1555, 0
      %v1593 = vsel %vm1209, %v1556, 0
      %v1596 = vsel %vm1209, %v1557, 0
      %v1599 = vsel %vm1209, %v1558, 0
      %v1602 = vsel %vm1209, %v1559, 0
      %v1605 = vsel %vm1209, %v1560, 0
      %v1608 = vsel %vm1209, %v1561, 0
      %v1611 = vsel %vm1209, %v1562, 0
      %v1614 = vsel %vm1209, %v1563, 0
      %v1617 = vsel %vm1209, %v1564, 0
      %v1620 = vsel %vm1209, %v1565, 0
      %v1623 = vsel %vm1209, %v1566, 0
      %v1626 = vsel %vm1209, %v1567, 0
      %v1629 = vsel %vm1209, %v1568, 0
      %v1632 = vsel %vm1209, %v1569, 0
      %v1635 = vsel %vm1209, %v1570, 0
      %v1638 = vsel %vm1258, %v1587, 0
      %1640 = vmatpush.bf16.msra.mxu0 0
      %1641 = vmatpush.bf16.msra.mxu0 0
      %1642 = vmatpush.bf16.msra.mxu0 0
      %1643 = vmatpush.bf16.msra.mxu0 0
      %1644 = vmatpush.bf16.msra.mxu0 0
      %1645 = vmatpush.bf16.msra.mxu0 0
      %1646 = vmatpush.bf16.msra.mxu0 %v1638
      %1647 = vmatpush.bf16.msra.mxu0 %v1586
      %1648 = vmatmul.bf16.gmra.mxu0 %v1590
      %v1649 = vpop.f32.mrf.mxu0
      %v1650 = vadd.f32 %v1578, %v1649
      %v1651 = vpop.f32.mrf.mxu0
      %v1652 = vadd.f32 %v1578, %v1651
      %1653 = vmatmul.bf16.gmra.mxu0 %v1593
      %v1654 = vpop.f32.mrf.mxu0
      %v1655 = vadd.f32 %v1578, %v1654
      %v1656 = vpop.f32.mrf.mxu0
      %v1657 = vadd.f32 %v1578, %v1656
      %1658 = vmatmul.bf16.gmra.mxu0 %v1596
      %v1659 = vpop.f32.mrf.mxu0
      %v1660 = vadd.f32 %v1578, %v1659
      %v1661 = vpop.f32.mrf.mxu0
      %v1662 = vadd.f32 %v1578, %v1661
      %1663 = vmatmul.bf16.gmra.mxu0 %v1599
      %v1664 = vpop.f32.mrf.mxu0
      %v1665 = vadd.f32 %v1578, %v1664
      %v1666 = vpop.f32.mrf.mxu0
      %v1667 = vadd.f32 %v1578, %v1666
      %1668 = vmatmul.bf16.gmra.mxu0 %v1602
      %v1669 = vpop.f32.mrf.mxu0
      %v1670 = vadd.f32 %v1578, %v1669
      %v1671 = vpop.f32.mrf.mxu0
      %v1672 = vadd.f32 %v1578, %v1671
      %1673 = vmatmul.bf16.gmra.mxu0 %v1605
      %v1674 = vpop.f32.mrf.mxu0
      %v1675 = vadd.f32 %v1578, %v1674
      %v1676 = vpop.f32.mrf.mxu0
      %v1677 = vadd.f32 %v1578, %v1676
      %1678 = vmatmul.bf16.gmra.mxu0 %v1608
      %v1679 = vpop.f32.mrf.mxu0
      %v1680 = vadd.f32 %v1578, %v1679
      %v1681 = vpop.f32.mrf.mxu0
      %v1682 = vadd.f32 %v1578, %v1681
      %1683 = vmatmul.bf16.gmra.mxu0 %v1611
      %v1684 = vpop.f32.mrf.mxu0
      %v1685 = vadd.f32 %v1578, %v1684
      %v1686 = vpop.f32.mrf.mxu0
      %v1687 = vadd.f32 %v1578, %v1686
      %1688 = vmatmul.bf16.gmra.mxu0 %v1614
      %v1689 = vpop.f32.mrf.mxu0
      %v1690 = vadd.f32 %v1578, %v1689
      %v1691 = vpop.f32.mrf.mxu0
      %v1692 = vadd.f32 %v1578, %v1691
      %1693 = vmatmul.bf16.gmra.mxu0 %v1617
      %v1694 = vpop.f32.mrf.mxu0
      %v1695 = vadd.f32 %v1578, %v1694
      %v1696 = vpop.f32.mrf.mxu0
      %v1697 = vadd.f32 %v1578, %v1696
      %1698 = vmatmul.bf16.gmra.mxu0 %v1620
      %v1699 = vpop.f32.mrf.mxu0
      %v1700 = vadd.f32 %v1578, %v1699
      %v1701 = vpop.f32.mrf.mxu0
      %v1702 = vadd.f32 %v1578, %v1701
      %1703 = vmatmul.bf16.gmra.mxu0 %v1623
      %v1704 = vpop.f32.mrf.mxu0
      %v1705 = vadd.f32 %v1578, %v1704
      %v1706 = vpop.f32.mrf.mxu0
      %v1707 = vadd.f32 %v1578, %v1706
      %1708 = vmatmul.bf16.gmra.mxu0 %v1626
      %v1709 = vpop.f32.mrf.mxu0
      %v1710 = vadd.f32 %v1578, %v1709
      %v1711 = vpop.f32.mrf.mxu0
      %v1712 = vadd.f32 %v1578, %v1711
      %1713 = vmatmul.bf16.gmra.mxu0 %v1629
      %v1714 = vpop.f32.mrf.mxu0
      %v1715 = vadd.f32 %v1578, %v1714
      %v1716 = vpop.f32.mrf.mxu0
      %v1717 = vadd.f32 %v1578, %v1716
      %1718 = vmatmul.bf16.gmra.mxu0 %v1632
      %v1719 = vpop.f32.mrf.mxu0
      %v1720 = vadd.f32 %v1578, %v1719
      %v1721 = vpop.f32.mrf.mxu0
      %v1722 = vadd.f32 %v1578, %v1721
      %1723 = vmatmul.bf16.gmra.mxu0 %v1635
      %v1724 = vpop.f32.mrf.mxu0
      %v1725 = vadd.f32 %v1578, %v1724
      %v1726 = vpop.f32.mrf.mxu0
      %v1727 = vadd.f32 %v1578, %v1726
      %1728 = vdwg.mxu0
      %v1729 = vpack.c.bf16 %v1352, %v1351
      %v1730 = vpack.c.bf16 %v1354, %v1353
      %v1731 = vpack.c.bf16 %v1356, %v1355
      %v1732 = vpack.c.bf16 %v1358, %v1357
      %v1733 = vpack.c.bf16 %v1360, %v1359
      %v1734 = vpack.c.bf16 %v1362, %v1361
      %v1735 = vpack.c.bf16 %v1364, %v1363
      %v1736 = vpack.c.bf16 %v1366, %v1365
      %v1737 = vpack.c.bf16 %v1368, %v1367
      %v1738 = vpack.c.bf16 %v1370, %v1369
      %v1739 = vpack.c.bf16 %v1372, %v1371
      %v1740 = vpack.c.bf16 %v1374, %v1373
      %v1741 = vpack.c.bf16 %v1376, %v1375
      %v1742 = vpack.c.bf16 %v1378, %v1377
      %v1743 = vpack.c.bf16 %v1380, %v1379
      %v1744 = vpack.c.bf16 %v1382, %v1381
      %s1745 = scalar_lea.vmem %s7, 24
      %v1746 = vld [vmem:[%s1745] sm:$0xf]
      %v1747 = vld [vmem:[%s1745 + $0x4] sm:$0xf]
      %v1748 = vld [vmem:[%s1745 + $0x8] sm:$0xf]
      %s1749 = scalar_lea.vmem %s8, 2
      %v1750 = vld [vmem:[%s1749] sm:$0x1]
      %v1752 = vperm.slane %v1750, 0
      %v1757 = vunpack.c.l.b16 %v1746
      %v1758 = vunpack.c.l.b16 %v1747
      %v1759 = vunpack.c.l.b16 %v1748
      %v1760 = vpack.c.b16 %v1758, %v1757
      %v1761 = vpack.c.b16 %v1759, %v1759
      %v1764 = vsel %vm1209, %v1729, 0
      %v1767 = vsel %vm1209, %v1730, 0
      %v1770 = vsel %vm1209, %v1731, 0
      %v1773 = vsel %vm1209, %v1732, 0
      %v1776 = vsel %vm1209, %v1733, 0
      %v1779 = vsel %vm1209, %v1734, 0
      %v1782 = vsel %vm1209, %v1735, 0
      %v1785 = vsel %vm1209, %v1736, 0
      %v1788 = vsel %vm1209, %v1737, 0
      %v1791 = vsel %vm1209, %v1738, 0
      %v1794 = vsel %vm1209, %v1739, 0
      %v1797 = vsel %vm1209, %v1740, 0
      %v1800 = vsel %vm1209, %v1741, 0
      %v1803 = vsel %vm1209, %v1742, 0
      %v1806 = vsel %vm1209, %v1743, 0
      %v1809 = vsel %vm1209, %v1744, 0
      %v1812 = vsel %vm1258, %v1761, 0
      %1814 = vmatpush.bf16.msra.mxu0 0
      %1815 = vmatpush.bf16.msra.mxu0 0
      %1816 = vmatpush.bf16.msra.mxu0 0
      %1817 = vmatpush.bf16.msra.mxu0 0
      %1818 = vmatpush.bf16.msra.mxu0 0
      %1819 = vmatpush.bf16.msra.mxu0 0
      %1820 = vmatpush.bf16.msra.mxu0 %v1812
      %1821 = vmatpush.bf16.msra.mxu0 %v1760
      %1822 = vmatmul.bf16.gmra.mxu0 %v1764
      %v1823 = vpop.f32.mrf.mxu0
      %v1824 = vadd.f32 %v1752, %v1823
      %v1825 = vpop.f32.mrf.mxu0
      %v1826 = vadd.f32 %v1752, %v1825
      %1827 = vmatmul.bf16.gmra.mxu0 %v1767
      %v1828 = vpop.f32.mrf.mxu0
      %v1829 = vadd.f32 %v1752, %v1828
      %v1830 = vpop.f32.mrf.mxu0
      %v1831 = vadd.f32 %v1752, %v1830
      %1832 = vmatmul.bf16.gmra.mxu0 %v1770
      %v1833 = vpop.f32.mrf.mxu0
      %v1834 = vadd.f32 %v1752, %v1833
      %v1835 = vpop.f32.mrf.mxu0
      %v1836 = vadd.f32 %v1752, %v1835
      %1837 = vmatmul.bf16.gmra.mxu0 %v1773
      %v1838 = vpop.f32.mrf.mxu0
      %v1839 = vadd.f32 %v1752, %v1838
      %v1840 = vpop.f32.mrf.mxu0
      %v1841 = vadd.f32 %v1752, %v1840
      %1842 = vmatmul.bf16.gmra.mxu0 %v1776
      %v1843 = vpop.f32.mrf.mxu0
      %v1844 = vadd.f32 %v1752, %v1843
      %v1845 = vpop.f32.mrf.mxu0
      %v1846 = vadd.f32 %v1752, %v1845
      %1847 = vmatmul.bf16.gmra.mxu0 %v1779
      %v1848 = vpop.f32.mrf.mxu0
      %v1849 = vadd.f32 %v1752, %v1848
      %v1850 = vpop.f32.mrf.mxu0
      %v1851 = vadd.f32 %v1752, %v1850
      %1852 = vmatmul.bf16.gmra.mxu0 %v1782
      %v1853 = vpop.f32.mrf.mxu0
      %v1854 = vadd.f32 %v1752, %v1853
      %v1855 = vpop.f32.mrf.mxu0
      %v1856 = vadd.f32 %v1752, %v1855
      %1857 = vmatmul.bf16.gmra.mxu0 %v1785
      %v1858 = vpop.f32.mrf.mxu0
      %v1859 = vadd.f32 %v1752, %v1858
      %v1860 = vpop.f32.mrf.mxu0
      %v1861 = vadd.f32 %v1752, %v1860
      %1862 = vmatmul.bf16.gmra.mxu0 %v1788
      %v1863 = vpop.f32.mrf.mxu0
      %v1864 = vadd.f32 %v1752, %v1863
      %v1865 = vpop.f32.mrf.mxu0
      %v1866 = vadd.f32 %v1752, %v1865
      %1867 = vmatmul.bf16.gmra.mxu0 %v1791
      %v1868 = vpop.f32.mrf.mxu0
      %v1869 = vadd.f32 %v1752, %v1868
      %v1870 = vpop.f32.mrf.mxu0
      %v1871 = vadd.f32 %v1752, %v1870
      %1872 = vmatmul.bf16.gmra.mxu0 %v1794
      %v1873 = vpop.f32.mrf.mxu0
      %v1874 = vadd.f32 %v1752, %v1873
      %v1875 = vpop.f32.mrf.mxu0
      %v1876 = vadd.f32 %v1752, %v1875
      %1877 = vmatmul.bf16.gmra.mxu0 %v1797
      %v1878 = vpop.f32.mrf.mxu0
      %v1879 = vadd.f32 %v1752, %v1878
      %v1880 = vpop.f32.mrf.mxu0
      %v1881 = vadd.f32 %v1752, %v1880
      %1882 = vmatmul.bf16.gmra.mxu0 %v1800
      %v1883 = vpop.f32.mrf.mxu0
      %v1884 = vadd.f32 %v1752, %v1883
      %v1885 = vpop.f32.mrf.mxu0
      %v1886 = vadd.f32 %v1752, %v1885
      %1887 = vmatmul.bf16.gmra.mxu0 %v1803
      %v1888 = vpop.f32.mrf.mxu0
      %v1889 = vadd.f32 %v1752, %v1888
      %v1890 = vpop.f32.mrf.mxu0
      %v1891 = vadd.f32 %v1752, %v1890
      %1892 = vmatmul.bf16.gmra.mxu0 %v1806
      %v1893 = vpop.f32.mrf.mxu0
      %v1894 = vadd.f32 %v1752, %v1893
      %v1895 = vpop.f32.mrf.mxu0
      %v1896 = vadd.f32 %v1752, %v1895
      %1897 = vmatmul.bf16.gmra.mxu0 %v1809
      %v1898 = vpop.f32.mrf.mxu0
      %v1899 = vadd.f32 %v1752, %v1898
      %v1900 = vpop.f32.mrf.mxu0
      %v1901 = vadd.f32 %v1752, %v1900
      %1902 = vdwg.mxu0
      %v1903 = vmax.f32 %v1476, %v1650
      %v1904 = vmax.f32 %v1478, %v1652
      %v1905 = vmax.f32 %v1481, %v1655
      %v1906 = vmax.f32 %v1483, %v1657
      %v1907 = vmax.f32 %v1486, %v1660
      %v1908 = vmax.f32 %v1488, %v1662
      %v1909 = vmax.f32 %v1491, %v1665
      %v1910 = vmax.f32 %v1493, %v1667
      %v1911 = vmax.f32 %v1496, %v1670
      %v1912 = vmax.f32 %v1498, %v1672
      %v1913 = vmax.f32 %v1501, %v1675
      %v1914 = vmax.f32 %v1503, %v1677
      %v1915 = vmax.f32 %v1506, %v1680
      %v1916 = vmax.f32 %v1508, %v1682
      %v1917 = vmax.f32 %v1511, %v1685
      %v1918 = vmax.f32 %v1513, %v1687
      %v1919 = vmax.f32 %v1516, %v1690
      %v1920 = vmax.f32 %v1518, %v1692
      %v1921 = vmax.f32 %v1521, %v1695
      %v1922 = vmax.f32 %v1523, %v1697
      %v1923 = vmax.f32 %v1526, %v1700
      %v1924 = vmax.f32 %v1528, %v1702
      %v1925 = vmax.f32 %v1531, %v1705
      %v1926 = vmax.f32 %v1533, %v1707
      %v1927 = vmax.f32 %v1536, %v1710
      %v1928 = vmax.f32 %v1538, %v1712
      %v1929 = vmax.f32 %v1541, %v1715
      %v1930 = vmax.f32 %v1543, %v1717
      %v1931 = vmax.f32 %v1546, %v1720
      %v1932 = vmax.f32 %v1548, %v1722
      %v1933 = vmax.f32 %v1551, %v1725
      %v1934 = vmax.f32 %v1553, %v1727
      %v1935 = vmax.f32 %v1903, %v1824
      %v1936 = vmax.f32 %v1904, %v1826
      %v1937 = vmax.f32 %v1905, %v1829
      %v1938 = vmax.f32 %v1906, %v1831
      %v1939 = vmax.f32 %v1907, %v1834
      %v1940 = vmax.f32 %v1908, %v1836
      %v1941 = vmax.f32 %v1909, %v1839
      %v1942 = vmax.f32 %v1910, %v1841
      %v1943 = vmax.f32 %v1911, %v1844
      %v1944 = vmax.f32 %v1912, %v1846
      %v1945 = vmax.f32 %v1913, %v1849
      %v1946 = vmax.f32 %v1914, %v1851
      %v1947 = vmax.f32 %v1915, %v1854
      %v1948 = vmax.f32 %v1916, %v1856
      %v1949 = vmax.f32 %v1917, %v1859
      %v1950 = vmax.f32 %v1918, %v1861
      %v1951 = vmax.f32 %v1919, %v1864
      %v1952 = vmax.f32 %v1920, %v1866
      %v1953 = vmax.f32 %v1921, %v1869
      %v1954 = vmax.f32 %v1922, %v1871
      %v1955 = vmax.f32 %v1923, %v1874
      %v1956 = vmax.f32 %v1924, %v1876
      %v1957 = vmax.f32 %v1925, %v1879
      %v1958 = vmax.f32 %v1926, %v1881
      %v1959 = vmax.f32 %v1927, %v1884
      %v1960 = vmax.f32 %v1928, %v1886
      %v1961 = vmax.f32 %v1929, %v1889
      %v1962 = vmax.f32 %v1930, %v1891
      %v1963 = vmax.f32 %v1931, %v1894
      %v1964 = vmax.f32 %v1932, %v1896
      %v1965 = vmax.f32 %v1933, %v1899
      %v1966 = vmax.f32 %v1934, %v1901
      %v1967 = vsub.f32 %v1476, %v1935
      %v1968 = vsub.f32 %v1478, %v1936
      %v1969 = vsub.f32 %v1481, %v1937
      %v1970 = vsub.f32 %v1483, %v1938
      %v1971 = vsub.f32 %v1486, %v1939
      %v1972 = vsub.f32 %v1488, %v1940
      %v1973 = vsub.f32 %v1491, %v1941
      %v1974 = vsub.f32 %v1493, %v1942
      %v1975 = vsub.f32 %v1496, %v1943
      %v1976 = vsub.f32 %v1498, %v1944
      %v1977 = vsub.f32 %v1501, %v1945
      %v1978 = vsub.f32 %v1503, %v1946
      %v1979 = vsub.f32 %v1506, %v1947
      %v1980 = vsub.f32 %v1508, %v1948
      %v1981 = vsub.f32 %v1511, %v1949
      %v1982 = vsub.f32 %v1513, %v1950
      %v1983 = vsub.f32 %v1516, %v1951
      %v1984 = vsub.f32 %v1518, %v1952
      %v1985 = vsub.f32 %v1521, %v1953
      %v1986 = vsub.f32 %v1523, %v1954
      %v1987 = vsub.f32 %v1526, %v1955
      %v1988 = vsub.f32 %v1528, %v1956
      %v1989 = vsub.f32 %v1531, %v1957
      %v1990 = vsub.f32 %v1533, %v1958
      %v1991 = vsub.f32 %v1536, %v1959
      %v1992 = vsub.f32 %v1538, %v1960
      %v1993 = vsub.f32 %v1541, %v1961
      %v1994 = vsub.f32 %v1543, %v1962
      %v1995 = vsub.f32 %v1546, %v1963
      %v1996 = vsub.f32 %v1548, %v1964
      %v1997 = vsub.f32 %v1551, %v1965
      %v1998 = vsub.f32 %v1553, %v1966
      %v1999 = vmul.f32 %v1967, 1.442695
      %v2000 = vpow.pop %v1999
      %v2001 = vmul.f32 %v1968, 1.442695
      %v2002 = vpow.pop %v2001
      %v2003 = vmul.f32 %v1969, 1.442695
      %v2004 = vpow.pop %v2003
      %v2005 = vmul.f32 %v1970, 1.442695
      %v2006 = vpow.pop %v2005
      %v2007 = vmul.f32 %v1971, 1.442695
      %v2008 = vpow.pop %v2007
      %v2009 = vmul.f32 %v1972, 1.442695
      %v2010 = vpow.pop %v2009
      %v2011 = vmul.f32 %v1973, 1.442695
      %v2012 = vpow.pop %v2011
      %v2013 = vmul.f32 %v1974, 1.442695
      %v2014 = vpow.pop %v2013
      %v2015 = vmul.f32 %v1975, 1.442695
      %v2016 = vpow.pop %v2015
      %v2017 = vmul.f32 %v1976, 1.442695
      %v2018 = vpow.pop %v2017
      %v2019 = vmul.f32 %v1977, 1.442695
      %v2020 = vpow.pop %v2019
      %v2021 = vmul.f32 %v1978, 1.442695
      %v2022 = vpow.pop %v2021
      %v2023 = vmul.f32 %v1979, 1.442695
      %v2024 = vpow.pop %v2023
      %v2025 = vmul.f32 %v1980, 1.442695
      %v2026 = vpow.pop %v2025
      %v2027 = vmul.f32 %v1981, 1.442695
      %v2028 = vpow.pop %v2027
      %v2029 = vmul.f32 %v1982, 1.442695
      %v2030 = vpow.pop %v2029
      %v2031 = vmul.f32 %v1983, 1.442695
      %v2032 = vpow.pop %v2031
      %v2033 = vmul.f32 %v1984, 1.442695
      %v2034 = vpow.pop %v2033
      %v2035 = vmul.f32 %v1985, 1.442695
      %v2036 = vpow.pop %v2035
      %v2037 = vmul.f32 %v1986, 1.442695
      %v2038 = vpow.pop %v2037
      %v2039 = vmul.f32 %v1987, 1.442695
      %v2040 = vpow.pop %v2039
      %v2041 = vmul.f32 %v1988, 1.442695
      %v2042 = vpow.pop %v2041
      %v2043 = vmul.f32 %v1989, 1.442695
      %v2044 = vpow.pop %v2043
      %v2045 = vmul.f32 %v1990, 1.442695
      %v2046 = vpow.pop %v2045
      %v2047 = vmul.f32 %v1991, 1.442695
      %v2048 = vpow.pop %v2047
      %v2049 = vmul.f32 %v1992, 1.442695
      %v2050 = vpow.pop %v2049
      %v2051 = vmul.f32 %v1993, 1.442695
      %v2052 = vpow.pop %v2051
      %v2053 = vmul.f32 %v1994, 1.442695
      %v2054 = vpow.pop %v2053
      %v2055 = vmul.f32 %v1995, 1.442695
      %v2056 = vpow.pop %v2055
      %v2057 = vmul.f32 %v1996, 1.442695
      %v2058 = vpow.pop %v2057
      %v2059 = vmul.f32 %v1997, 1.442695
      %v2060 = vpow.pop %v2059
      %v2061 = vmul.f32 %v1998, 1.442695
      %v2062 = vpow.pop %v2061
      %v2063 = vsub.f32 %v1650, %v1935
      %v2064 = vsub.f32 %v1652, %v1936
      %v2065 = vsub.f32 %v1655, %v1937
      %v2066 = vsub.f32 %v1657, %v1938
      %v2067 = vsub.f32 %v1660, %v1939
      %v2068 = vsub.f32 %v1662, %v1940
      %v2069 = vsub.f32 %v1665, %v1941
      %v2070 = vsub.f32 %v1667, %v1942
      %v2071 = vsub.f32 %v1670, %v1943
      %v2072 = vsub.f32 %v1672, %v1944
      %v2073 = vsub.f32 %v1675, %v1945
      %v2074 = vsub.f32 %v1677, %v1946
      %v2075 = vsub.f32 %v1680, %v1947
      %v2076 = vsub.f32 %v1682, %v1948
      %v2077 = vsub.f32 %v1685, %v1949
      %v2078 = vsub.f32 %v1687, %v1950
      %v2079 = vsub.f32 %v1690, %v1951
      %v2080 = vsub.f32 %v1692, %v1952
      %v2081 = vsub.f32 %v1695, %v1953
      %v2082 = vsub.f32 %v1697, %v1954
      %v2083 = vsub.f32 %v1700, %v1955
      %v2084 = vsub.f32 %v1702, %v1956
      %v2085 = vsub.f32 %v1705, %v1957
      %v2086 = vsub.f32 %v1707, %v1958
      %v2087 = vsub.f32 %v1710, %v1959
      %v2088 = vsub.f32 %v1712, %v1960
      %v2089 = vsub.f32 %v1715, %v1961
      %v2090 = vsub.f32 %v1717, %v1962
      %v2091 = vsub.f32 %v1720, %v1963
      %v2092 = vsub.f32 %v1722, %v1964
      %v2093 = vsub.f32 %v1725, %v1965
      %v2094 = vsub.f32 %v1727, %v1966
      %v2095 = vmul.f32 %v2063, 1.442695
      %v2096 = vpow.pop %v2095
      %v2097 = vmul.f32 %v2064, 1.442695
      %v2098 = vpow.pop %v2097
      %v2099 = vmul.f32 %v2065, 1.442695
      %v2100 = vpow.pop %v2099
      %v2101 = vmul.f32 %v2066, 1.442695
      %v2102 = vpow.pop %v2101
      %v2103 = vmul.f32 %v2067, 1.442695
      %v2104 = vpow.pop %v2103
      %v2105 = vmul.f32 %v2068, 1.442695
      %v2106 = vpow.pop %v2105
      %v2107 = vmul.f32 %v2069, 1.442695
      %v2108 = vpow.pop %v2107
      %v2109 = vmul.f32 %v2070, 1.442695
      %v2110 = vpow.pop %v2109
      %v2111 = vmul.f32 %v2071, 1.442695
      %v2112 = vpow.pop %v2111
      %v2113 = vmul.f32 %v2072, 1.442695
      %v2114 = vpow.pop %v2113
      %v2115 = vmul.f32 %v2073, 1.442695
      %v2116 = vpow.pop %v2115
      %v2117 = vmul.f32 %v2074, 1.442695
      %v2118 = vpow.pop %v2117
      %v2119 = vmul.f32 %v2075, 1.442695
      %v2120 = vpow.pop %v2119
      %v2121 = vmul.f32 %v2076, 1.442695
      %v2122 = vpow.pop %v2121
      %v2123 = vmul.f32 %v2077, 1.442695
      %v2124 = vpow.pop %v2123
      %v2125 = vmul.f32 %v2078, 1.442695
      %v2126 = vpow.pop %v2125
      %v2127 = vmul.f32 %v2079, 1.442695
      %v2128 = vpow.pop %v2127
      %v2129 = vmul.f32 %v2080, 1.442695
      %v2130 = vpow.pop %v2129
      %v2131 = vmul.f32 %v2081, 1.442695
      %v2132 = vpow.pop %v2131
      %v2133 = vmul.f32 %v2082, 1.442695
      %v2134 = vpow.pop %v2133
      %v2135 = vmul.f32 %v2083, 1.442695
      %v2136 = vpow.pop %v2135
      %v2137 = vmul.f32 %v2084, 1.442695
      %v2138 = vpow.pop %v2137
      %v2139 = vmul.f32 %v2085, 1.442695
      %v2140 = vpow.pop %v2139
      %v2141 = vmul.f32 %v2086, 1.442695
      %v2142 = vpow.pop %v2141
      %v2143 = vmul.f32 %v2087, 1.442695
      %v2144 = vpow.pop %v2143
      %v2145 = vmul.f32 %v2088, 1.442695
      %v2146 = vpow.pop %v2145
      %v2147 = vmul.f32 %v2089, 1.442695
      %v2148 = vpow.pop %v2147
      %v2149 = vmul.f32 %v2090, 1.442695
      %v2150 = vpow.pop %v2149
      %v2151 = vmul.f32 %v2091, 1.442695
      %v2152 = vpow.pop %v2151
      %v2153 = vmul.f32 %v2092, 1.442695
      %v2154 = vpow.pop %v2153
      %v2155 = vmul.f32 %v2093, 1.442695
      %v2156 = vpow.pop %v2155
      %v2157 = vmul.f32 %v2094, 1.442695
      %v2158 = vpow.pop %v2157
      %v2159 = vsub.f32 %v1824, %v1935
      %v2160 = vsub.f32 %v1826, %v1936
      %v2161 = vsub.f32 %v1829, %v1937
      %v2162 = vsub.f32 %v1831, %v1938
      %v2163 = vsub.f32 %v1834, %v1939
      %v2164 = vsub.f32 %v1836, %v1940
      %v2165 = vsub.f32 %v1839, %v1941
      %v2166 = vsub.f32 %v1841, %v1942
      %v2167 = vsub.f32 %v1844, %v1943
      %v2168 = vsub.f32 %v1846, %v1944
      %v2169 = vsub.f32 %v1849, %v1945
      %v2170 = vsub.f32 %v1851, %v1946
      %v2171 = vsub.f32 %v1854, %v1947
      %v2172 = vsub.f32 %v1856, %v1948
      %v2173 = vsub.f32 %v1859, %v1949
      %v2174 = vsub.f32 %v1861, %v1950
      %v2175 = vsub.f32 %v1864, %v1951
      %v2176 = vsub.f32 %v1866, %v1952
      %v2177 = vsub.f32 %v1869, %v1953
      %v2178 = vsub.f32 %v1871, %v1954
      %v2179 = vsub.f32 %v1874, %v1955
      %v2180 = vsub.f32 %v1876, %v1956
      %v2181 = vsub.f32 %v1879, %v1957
      %v2182 = vsub.f32 %v1881, %v1958
      %v2183 = vsub.f32 %v1884, %v1959
      %v2184 = vsub.f32 %v1886, %v1960
      %v2185 = vsub.f32 %v1889, %v1961
      %v2186 = vsub.f32 %v1891, %v1962
      %v2187 = vsub.f32 %v1894, %v1963
      %v2188 = vsub.f32 %v1896, %v1964
      %v2189 = vsub.f32 %v1899, %v1965
      %v2190 = vsub.f32 %v1901, %v1966
      %v2191 = vmul.f32 %v2159, 1.442695
      %v2192 = vpow.pop %v2191
      %v2193 = vmul.f32 %v2160, 1.442695
      %v2194 = vpow.pop %v2193
      %v2195 = vmul.f32 %v2161, 1.442695
      %v2196 = vpow.pop %v2195
      %v2197 = vmul.f32 %v2162, 1.442695
      %v2198 = vpow.pop %v2197
      %v2199 = vmul.f32 %v2163, 1.442695
      %v2200 = vpow.pop %v2199
      %v2201 = vmul.f32 %v2164, 1.442695
      %v2202 = vpow.pop %v2201
      %v2203 = vmul.f32 %v2165, 1.442695
      %v2204 = vpow.pop %v2203
      %v2205 = vmul.f32 %v2166, 1.442695
      %v2206 = vpow.pop %v2205
      %v2207 = vmul.f32 %v2167, 1.442695
      %v2208 = vpow.pop %v2207
      %v2209 = vmul.f32 %v2168, 1.442695
      %v2210 = vpow.pop %v2209
      %v2211 = vmul.f32 %v2169, 1.442695
      %v2212 = vpow.pop %v2211
      %v2213 = vmul.f32 %v2170, 1.442695
      %v2214 = vpow.pop %v2213
      %v2215 = vmul.f32 %v2171, 1.442695
      %v2216 = vpow.pop %v2215
      %v2217 = vmul.f32 %v2172, 1.442695
      %v2218 = vpow.pop %v2217
      %v2219 = vmul.f32 %v2173, 1.442695
      %v2220 = vpow.pop %v2219
      %v2221 = vmul.f32 %v2174, 1.442695
      %v2222 = vpow.pop %v2221
      %v2223 = vmul.f32 %v2175, 1.442695
      %v2224 = vpow.pop %v2223
      %v2225 = vmul.f32 %v2176, 1.442695
      %v2226 = vpow.pop %v2225
      %v2227 = vmul.f32 %v2177, 1.442695
      %v2228 = vpow.pop %v2227
      %v2229 = vmul.f32 %v2178, 1.442695
      %v2230 = vpow.pop %v2229
      %v2231 = vmul.f32 %v2179, 1.442695
      %v2232 = vpow.pop %v2231
      %v2233 = vmul.f32 %v2180, 1.442695
      %v2234 = vpow.pop %v2233
      %v2235 = vmul.f32 %v2181, 1.442695
      %v2236 = vpow.pop %v2235
      %v2237 = vmul.f32 %v2182, 1.442695
      %v2238 = vpow.pop %v2237
      %v2239 = vmul.f32 %v2183, 1.442695
      %v2240 = vpow.pop %v2239
      %v2241 = vmul.f32 %v2184, 1.442695
      %v2242 = vpow.pop %v2241
      %v2243 = vmul.f32 %v2185, 1.442695
      %v2244 = vpow.pop %v2243
      %v2245 = vmul.f32 %v2186, 1.442695
      %v2246 = vpow.pop %v2245
      %v2247 = vmul.f32 %v2187, 1.442695
      %v2248 = vpow.pop %v2247
      %v2249 = vmul.f32 %v2188, 1.442695
      %v2250 = vpow.pop %v2249
      %v2251 = vmul.f32 %v2189, 1.442695
      %v2252 = vpow.pop %v2251
      %v2253 = vmul.f32 %v2190, 1.442695
      %v2254 = vpow.pop %v2253
      %v2255 = vadd.f32 %v2000, %v2096
      %v2256 = vadd.f32 %v2002, %v2098
      %v2257 = vadd.f32 %v2004, %v2100
      %v2258 = vadd.f32 %v2006, %v2102
      %v2259 = vadd.f32 %v2008, %v2104
      %v2260 = vadd.f32 %v2010, %v2106
      %v2261 = vadd.f32 %v2012, %v2108
      %v2262 = vadd.f32 %v2014, %v2110
      %v2263 = vadd.f32 %v2016, %v2112
      %v2264 = vadd.f32 %v2018, %v2114
      %v2265 = vadd.f32 %v2020, %v2116
      %v2266 = vadd.f32 %v2022, %v2118
      %v2267 = vadd.f32 %v2024, %v2120
      %v2268 = vadd.f32 %v2026, %v2122
      %v2269 = vadd.f32 %v2028, %v2124
      %v2270 = vadd.f32 %v2030, %v2126
      %v2271 = vadd.f32 %v2032, %v2128
      %v2272 = vadd.f32 %v2034, %v2130
      %v2273 = vadd.f32 %v2036, %v2132
      %v2274 = vadd.f32 %v2038, %v2134
      %v2275 = vadd.f32 %v2040, %v2136
      %v2276 = vadd.f32 %v2042, %v2138
      %v2277 = vadd.f32 %v2044, %v2140
      %v2278 = vadd.f32 %v2046, %v2142
      %v2279 = vadd.f32 %v2048, %v2144
      %v2280 = vadd.f32 %v2050, %v2146
      %v2281 = vadd.f32 %v2052, %v2148
      %v2282 = vadd.f32 %v2054, %v2150
      %v2283 = vadd.f32 %v2056, %v2152
      %v2284 = vadd.f32 %v2058, %v2154
      %v2285 = vadd.f32 %v2060, %v2156
      %v2286 = vadd.f32 %v2062, %v2158
      %v2287 = vadd.f32 %v2255, %v2192
      %v2288 = vadd.f32 %v2256, %v2194
      %v2289 = vadd.f32 %v2257, %v2196
      %v2290 = vadd.f32 %v2258, %v2198
      %v2291 = vadd.f32 %v2259, %v2200
      %v2292 = vadd.f32 %v2260, %v2202
      %v2293 = vadd.f32 %v2261, %v2204
      %v2294 = vadd.f32 %v2262, %v2206
      %v2295 = vadd.f32 %v2263, %v2208
      %v2296 = vadd.f32 %v2264, %v2210
      %v2297 = vadd.f32 %v2265, %v2212
      %v2298 = vadd.f32 %v2266, %v2214
      %v2299 = vadd.f32 %v2267, %v2216
      %v2300 = vadd.f32 %v2268, %v2218
      %v2301 = vadd.f32 %v2269, %v2220
      %v2302 = vadd.f32 %v2270, %v2222
      %v2303 = vadd.f32 %v2271, %v2224
      %v2304 = vadd.f32 %v2272, %v2226
      %v2305 = vadd.f32 %v2273, %v2228
      %v2306 = vadd.f32 %v2274, %v2230
      %v2307 = vadd.f32 %v2275, %v2232
      %v2308 = vadd.f32 %v2276, %v2234
      %v2309 = vadd.f32 %v2277, %v2236
      %v2310 = vadd.f32 %v2278, %v2238
      %v2311 = vadd.f32 %v2279, %v2240
      %v2312 = vadd.f32 %v2280, %v2242
      %v2313 = vadd.f32 %v2281, %v2244
      %v2314 = vadd.f32 %v2282, %v2246
      %v2315 = vadd.f32 %v2283, %v2248
      %v2316 = vadd.f32 %v2284, %v2250
      %v2317 = vadd.f32 %v2285, %v2252
      %v2318 = vadd.f32 %v2286, %v2254
      %v2319 = vrcp.pop %v2287
      %v2320 = vrcp.pop %v2288
      %v2321 = vrcp.pop %v2289
      %v2322 = vrcp.pop %v2290
      %v2323 = vrcp.pop %v2291
      %v2324 = vrcp.pop %v2292
      %v2325 = vrcp.pop %v2293
      %v2326 = vrcp.pop %v2294
      %v2327 = vrcp.pop %v2295
      %v2328 = vrcp.pop %v2296
      %v2329 = vrcp.pop %v2297
      %v2330 = vrcp.pop %v2298
      %v2331 = vrcp.pop %v2299
      %v2332 = vrcp.pop %v2300
      %v2333 = vrcp.pop %v2301
      %v2334 = vrcp.pop %v2302
      %v2335 = vrcp.pop %v2303
      %v2336 = vrcp.pop %v2304
      %v2337 = vrcp.pop %v2305
      %v2338 = vrcp.pop %v2306
      %v2339 = vrcp.pop %v2307
      %v2340 = vrcp.pop %v2308
      %v2341 = vrcp.pop %v2309
      %v2342 = vrcp.pop %v2310
      %v2343 = vrcp.pop %v2311
      %v2344 = vrcp.pop %v2312
      %v2345 = vrcp.pop %v2313
      %v2346 = vrcp.pop %v2314
      %v2347 = vrcp.pop %v2315
      %v2348 = vrcp.pop %v2316
      %v2349 = vrcp.pop %v2317
      %v2350 = vrcp.pop %v2318
      %v2351 = vmul.f32 %v737, %v2000
      %v2352 = vmul.f32 %v738, %v2002
      %v2353 = vmul.f32 %v739, %v2004
      %v2354 = vmul.f32 %v740, %v2006
      %v2355 = vmul.f32 %v741, %v2008
      %v2356 = vmul.f32 %v742, %v2010
      %v2357 = vmul.f32 %v743, %v2012
      %v2358 = vmul.f32 %v744, %v2014
      %v2359 = vmul.f32 %v745, %v2016
      %v2360 = vmul.f32 %v746, %v2018
      %v2361 = vmul.f32 %v747, %v2020
      %v2362 = vmul.f32 %v748, %v2022
      %v2363 = vmul.f32 %v749, %v2024
      %v2364 = vmul.f32 %v750, %v2026
      %v2365 = vmul.f32 %v751, %v2028
      %v2366 = vmul.f32 %v752, %v2030
      %v2367 = vmul.f32 %v753, %v2032
      %v2368 = vmul.f32 %v754, %v2034
      %v2369 = vmul.f32 %v755, %v2036
      %v2370 = vmul.f32 %v756, %v2038
      %v2371 = vmul.f32 %v757, %v2040
      %v2372 = vmul.f32 %v758, %v2042
      %v2373 = vmul.f32 %v759, %v2044
      %v2374 = vmul.f32 %v760, %v2046
      %v2375 = vmul.f32 %v761, %v2048
      %v2376 = vmul.f32 %v762, %v2050
      %v2377 = vmul.f32 %v763, %v2052
      %v2378 = vmul.f32 %v764, %v2054
      %v2379 = vmul.f32 %v765, %v2056
      %v2380 = vmul.f32 %v766, %v2058
      %v2381 = vmul.f32 %v767, %v2060
      %v2382 = vmul.f32 %v768, %v2062
      %v2383 = vmul.f32 %v1048, %v2096
      %v2384 = vmul.f32 %v1049, %v2098
      %v2385 = vmul.f32 %v1050, %v2100
      %v2386 = vmul.f32 %v1051, %v2102
      %v2387 = vmul.f32 %v1052, %v2104
      %v2388 = vmul.f32 %v1053, %v2106
      %v2389 = vmul.f32 %v1054, %v2108
      %v2390 = vmul.f32 %v1055, %v2110
      %v2391 = vmul.f32 %v1056, %v2112
      %v2392 = vmul.f32 %v1057, %v2114
      %v2393 = vmul.f32 %v1058, %v2116
      %v2394 = vmul.f32 %v1059, %v2118
      %v2395 = vmul.f32 %v1060, %v2120
      %v2396 = vmul.f32 %v1061, %v2122
      %v2397 = vmul.f32 %v1062, %v2124
      %v2398 = vmul.f32 %v1063, %v2126
      %v2399 = vmul.f32 %v1064, %v2128
      %v2400 = vmul.f32 %v1065, %v2130
      %v2401 = vmul.f32 %v1066, %v2132
      %v2402 = vmul.f32 %v1067, %v2134
      %v2403 = vmul.f32 %v1068, %v2136
      %v2404 = vmul.f32 %v1069, %v2138
      %v2405 = vmul.f32 %v1070, %v2140
      %v2406 = vmul.f32 %v1071, %v2142
      %v2407 = vmul.f32 %v1072, %v2144
      %v2408 = vmul.f32 %v1073, %v2146
      %v2409 = vmul.f32 %v1074, %v2148
      %v2410 = vmul.f32 %v1075, %v2150
      %v2411 = vmul.f32 %v1076, %v2152
      %v2412 = vmul.f32 %v1077, %v2154
      %v2413 = vmul.f32 %v1078, %v2156
      %v2414 = vmul.f32 %v1079, %v2158
      %v2415 = vadd.f32 %v2351, %v2383
      %v2416 = vadd.f32 %v2352, %v2384
      %v2417 = vadd.f32 %v2353, %v2385
      %v2418 = vadd.f32 %v2354, %v2386
      %v2419 = vadd.f32 %v2355, %v2387
      %v2420 = vadd.f32 %v2356, %v2388
      %v2421 = vadd.f32 %v2357, %v2389
      %v2422 = vadd.f32 %v2358, %v2390
      %v2423 = vadd.f32 %v2359, %v2391
      %v2424 = vadd.f32 %v2360, %v2392
      %v2425 = vadd.f32 %v2361, %v2393
      %v2426 = vadd.f32 %v2362, %v2394
      %v2427 = vadd.f32 %v2363, %v2395
      %v2428 = vadd.f32 %v2364, %v2396
      %v2429 = vadd.f32 %v2365, %v2397
      %v2430 = vadd.f32 %v2366, %v2398
      %v2431 = vadd.f32 %v2367, %v2399
      %v2432 = vadd.f32 %v2368, %v2400
      %v2433 = vadd.f32 %v2369, %v2401
      %v2434 = vadd.f32 %v2370, %v2402
      %v2435 = vadd.f32 %v2371, %v2403
      %v2436 = vadd.f32 %v2372, %v2404
      %v2437 = vadd.f32 %v2373, %v2405
      %v2438 = vadd.f32 %v2374, %v2406
      %v2439 = vadd.f32 %v2375, %v2407
      %v2440 = vadd.f32 %v2376, %v2408
      %v2441 = vadd.f32 %v2377, %v2409
      %v2442 = vadd.f32 %v2378, %v2410
      %v2443 = vadd.f32 %v2379, %v2411
      %v2444 = vadd.f32 %v2380, %v2412
      %v2445 = vadd.f32 %v2381, %v2413
      %v2446 = vadd.f32 %v2382, %v2414
      %v2447 = vmul.f32 %v1351, %v2192
      %v2448 = vmul.f32 %v1352, %v2194
      %v2449 = vmul.f32 %v1353, %v2196
      %v2450 = vmul.f32 %v1354, %v2198
      %v2451 = vmul.f32 %v1355, %v2200
      %v2452 = vmul.f32 %v1356, %v2202
      %v2453 = vmul.f32 %v1357, %v2204
      %v2454 = vmul.f32 %v1358, %v2206
      %v2455 = vmul.f32 %v1359, %v2208
      %v2456 = vmul.f32 %v1360, %v2210
      %v2457 = vmul.f32 %v1361, %v2212
      %v2458 = vmul.f32 %v1362, %v2214
      %v2459 = vmul.f32 %v1363, %v2216
      %v2460 = vmul.f32 %v1364, %v2218
      %v2461 = vmul.f32 %v1365, %v2220
      %v2462 = vmul.f32 %v1366, %v2222
      %v2463 = vmul.f32 %v1367, %v2224
      %v2464 = vmul.f32 %v1368, %v2226
      %v2465 = vmul.f32 %v1369, %v2228
      %v2466 = vmul.f32 %v1370, %v2230
      %v2467 = vmul.f32 %v1371, %v2232
      %v2468 = vmul.f32 %v1372, %v2234
      %v2469 = vmul.f32 %v1373, %v2236
      %v2470 = vmul.f32 %v1374, %v2238
      %v2471 = vmul.f32 %v1375, %v2240
      %v2472 = vmul.f32 %v1376, %v2242
      %v2473 = vmul.f32 %v1377, %v2244
      %v2474 = vmul.f32 %v1378, %v2246
      %v2475 = vmul.f32 %v1379, %v2248
      %v2476 = vmul.f32 %v1380, %v2250
      %v2477 = vmul.f32 %v1381, %v2252
      %v2478 = vmul.f32 %v1382, %v2254
      %v2479 = vadd.f32 %v2415, %v2447
      %v2480 = vadd.f32 %v2416, %v2448
      %v2481 = vadd.f32 %v2417, %v2449
      %v2482 = vadd.f32 %v2418, %v2450
      %v2483 = vadd.f32 %v2419, %v2451
      %v2484 = vadd.f32 %v2420, %v2452
      %v2485 = vadd.f32 %v2421, %v2453
      %v2486 = vadd.f32 %v2422, %v2454
      %v2487 = vadd.f32 %v2423, %v2455
      %v2488 = vadd.f32 %v2424, %v2456
      %v2489 = vadd.f32 %v2425, %v2457
      %v2490 = vadd.f32 %v2426, %v2458
      %v2491 = vadd.f32 %v2427, %v2459
      %v2492 = vadd.f32 %v2428, %v2460
      %v2493 = vadd.f32 %v2429, %v2461
      %v2494 = vadd.f32 %v2430, %v2462
      %v2495 = vadd.f32 %v2431, %v2463
      %v2496 = vadd.f32 %v2432, %v2464
      %v2497 = vadd.f32 %v2433, %v2465
      %v2498 = vadd.f32 %v2434, %v2466
      %v2499 = vadd.f32 %v2435, %v2467
      %v2500 = vadd.f32 %v2436, %v2468
      %v2501 = vadd.f32 %v2437, %v2469
      %v2502 = vadd.f32 %v2438, %v2470
      %v2503 = vadd.f32 %v2439, %v2471
      %v2504 = vadd.f32 %v2440, %v2472
      %v2505 = vadd.f32 %v2441, %v2473
      %v2506 = vadd.f32 %v2442, %v2474
      %v2507 = vadd.f32 %v2443, %v2475
      %v2508 = vadd.f32 %v2444, %v2476
      %v2509 = vadd.f32 %v2445, %v2477
      %v2510 = vadd.f32 %v2446, %v2478
      %v2511 = vmul.f32 %v2479, %v2319
      %v2512 = vmul.f32 %v2480, %v2320
      %v2513 = vmul.f32 %v2481, %v2321
      %v2514 = vmul.f32 %v2482, %v2322
      %v2515 = vmul.f32 %v2483, %v2323
      %v2516 = vmul.f32 %v2484, %v2324
      %v2517 = vmul.f32 %v2485, %v2325
      %v2518 = vmul.f32 %v2486, %v2326
      %v2519 = vmul.f32 %v2487, %v2327
      %v2520 = vmul.f32 %v2488, %v2328
      %v2521 = vmul.f32 %v2489, %v2329
      %v2522 = vmul.f32 %v2490, %v2330
      %v2523 = vmul.f32 %v2491, %v2331
      %v2524 = vmul.f32 %v2492, %v2332
      %v2525 = vmul.f32 %v2493, %v2333
      %v2526 = vmul.f32 %v2494, %v2334
      %v2527 = vmul.f32 %v2495, %v2335
      %v2528 = vmul.f32 %v2496, %v2336
      %v2529 = vmul.f32 %v2497, %v2337
      %v2530 = vmul.f32 %v2498, %v2338
      %v2531 = vmul.f32 %v2499, %v2339
      %v2532 = vmul.f32 %v2500, %v2340
      %v2533 = vmul.f32 %v2501, %v2341
      %v2534 = vmul.f32 %v2502, %v2342
      %v2535 = vmul.f32 %v2503, %v2343
      %v2536 = vmul.f32 %v2504, %v2344
      %v2537 = vmul.f32 %v2505, %v2345
      %v2538 = vmul.f32 %v2506, %v2346
      %v2539 = vmul.f32 %v2507, %v2347
      %v2540 = vmul.f32 %v2508, %v2348
      %v2541 = vmul.f32 %v2509, %v2349
      %v2542 = vmul.f32 %v2510, %v2350
      %v2543 = vpack.c.bf16 %v2512, %v2511
      %v2544 = vpack.c.bf16 %v2514, %v2513
      %v2545 = vpack.c.bf16 %v2516, %v2515
      %v2546 = vpack.c.bf16 %v2518, %v2517
      %v2547 = vpack.c.bf16 %v2520, %v2519
      %v2548 = vpack.c.bf16 %v2522, %v2521
      %v2549 = vpack.c.bf16 %v2524, %v2523
      %v2550 = vpack.c.bf16 %v2526, %v2525
      %v2551 = vpack.c.bf16 %v2528, %v2527
      %v2552 = vpack.c.bf16 %v2530, %v2529
      %v2553 = vpack.c.bf16 %v2532, %v2531
      %v2554 = vpack.c.bf16 %v2534, %v2533
      %v2555 = vpack.c.bf16 %v2536, %v2535
      %v2556 = vpack.c.bf16 %v2538, %v2537
      %v2557 = vpack.c.bf16 %v2540, %v2539
      %v2558 = vpack.c.bf16 %v2542, %v2541
      %v2559 = vld [vmem:[%s9] sm:$0xf]
      %v2560 = vld [vmem:[%s9 + $0x4] sm:$0xf]
      %v2561 = vld [vmem:[%s9 + $0x8] sm:$0xf]
      %v2562 = vld [vmem:[%s10] sm:$0x1]
      %v2564 = vperm.slane %v2562, 0
      %v2569 = vunpack.c.l.b16 %v2559
      %v2570 = vunpack.c.l.b16 %v2560
      %v2571 = vunpack.c.l.b16 %v2561
      %v2572 = vpack.c.b16 %v2570, %v2569
      %v2573 = vpack.c.b16 %v2571, %v2571
      %v2576 = vsel %vm1209, %v2543, 0
      %v2579 = vsel %vm1209, %v2544, 0
      %v2582 = vsel %vm1209, %v2545, 0
      %v2585 = vsel %vm1209, %v2546, 0
      %v2588 = vsel %vm1209, %v2547, 0
      %v2591 = vsel %vm1209, %v2548, 0
      %v2594 = vsel %vm1209, %v2549, 0
      %v2597 = vsel %vm1209, %v2550, 0
      %v2600 = vsel %vm1209, %v2551, 0
      %v2603 = vsel %vm1209, %v2552, 0
      %v2606 = vsel %vm1209, %v2553, 0
      %v2609 = vsel %vm1209, %v2554, 0
      %v2612 = vsel %vm1209, %v2555, 0
      %v2615 = vsel %vm1209, %v2556, 0
      %v2618 = vsel %vm1209, %v2557, 0
      %v2621 = vsel %vm1209, %v2558, 0
      %v2624 = vsel %vm1258, %v2573, 0
      %2626 = vmatpush.bf16.msra.mxu0 0
      %2627 = vmatpush.bf16.msra.mxu0 0
      %2628 = vmatpush.bf16.msra.mxu0 0
      %2629 = vmatpush.bf16.msra.mxu0 0
      %2630 = vmatpush.bf16.msra.mxu0 0
      %2631 = vmatpush.bf16.msra.mxu0 0
      %2632 = vmatpush.bf16.msra.mxu0 %v2624
      %2633 = vmatpush.bf16.msra.mxu0 %v2572
      %2634 = vmatmul.bf16.gmra.mxu0 %v2576
      %v2635 = vpop.f32.mrf.mxu0
      %v2636 = vadd.f32 %v2564, %v2635
      %v2637 = vpop.f32.mrf.mxu0
      %v2638 = vadd.f32 %v2564, %v2637
      %2639 = vmatmul.bf16.gmra.mxu0 %v2579
      %v2640 = vpop.f32.mrf.mxu0
      %v2641 = vadd.f32 %v2564, %v2640
      %v2642 = vpop.f32.mrf.mxu0
      %v2643 = vadd.f32 %v2564, %v2642
      %2644 = vmatmul.bf16.gmra.mxu0 %v2582
      %v2645 = vpop.f32.mrf.mxu0
      %v2646 = vadd.f32 %v2564, %v2645
      %v2647 = vpop.f32.mrf.mxu0
      %v2648 = vadd.f32 %v2564, %v2647
      %2649 = vmatmul.bf16.gmra.mxu0 %v2585
      %v2650 = vpop.f32.mrf.mxu0
      %v2651 = vadd.f32 %v2564, %v2650
      %v2652 = vpop.f32.mrf.mxu0
      %v2653 = vadd.f32 %v2564, %v2652
      %2654 = vmatmul.bf16.gmra.mxu0 %v2588
      %v2655 = vpop.f32.mrf.mxu0
      %v2656 = vadd.f32 %v2564, %v2655
      %v2657 = vpop.f32.mrf.mxu0
      %v2658 = vadd.f32 %v2564, %v2657
      %2659 = vmatmul.bf16.gmra.mxu0 %v2591
      %v2660 = vpop.f32.mrf.mxu0
      %v2661 = vadd.f32 %v2564, %v2660
      %v2662 = vpop.f32.mrf.mxu0
      %v2663 = vadd.f32 %v2564, %v2662
      %2664 = vmatmul.bf16.gmra.mxu0 %v2594
      %v2665 = vpop.f32.mrf.mxu0
      %v2666 = vadd.f32 %v2564, %v2665
      %v2667 = vpop.f32.mrf.mxu0
      %v2668 = vadd.f32 %v2564, %v2667
      %2669 = vmatmul.bf16.gmra.mxu0 %v2597
      %v2670 = vpop.f32.mrf.mxu0
      %v2671 = vadd.f32 %v2564, %v2670
      %v2672 = vpop.f32.mrf.mxu0
      %v2673 = vadd.f32 %v2564, %v2672
      %2674 = vmatmul.bf16.gmra.mxu0 %v2600
      %v2675 = vpop.f32.mrf.mxu0
      %v2676 = vadd.f32 %v2564, %v2675
      %v2677 = vpop.f32.mrf.mxu0
      %v2678 = vadd.f32 %v2564, %v2677
      %2679 = vmatmul.bf16.gmra.mxu0 %v2603
      %v2680 = vpop.f32.mrf.mxu0
      %v2681 = vadd.f32 %v2564, %v2680
      %v2682 = vpop.f32.mrf.mxu0
      %v2683 = vadd.f32 %v2564, %v2682
      %2684 = vmatmul.bf16.gmra.mxu0 %v2606
      %v2685 = vpop.f32.mrf.mxu0
      %v2686 = vadd.f32 %v2564, %v2685
      %v2687 = vpop.f32.mrf.mxu0
      %v2688 = vadd.f32 %v2564, %v2687
      %2689 = vmatmul.bf16.gmra.mxu0 %v2609
      %v2690 = vpop.f32.mrf.mxu0
      %v2691 = vadd.f32 %v2564, %v2690
      %v2692 = vpop.f32.mrf.mxu0
      %v2693 = vadd.f32 %v2564, %v2692
      %2694 = vmatmul.bf16.gmra.mxu0 %v2612
      %v2695 = vpop.f32.mrf.mxu0
      %v2696 = vadd.f32 %v2564, %v2695
      %v2697 = vpop.f32.mrf.mxu0
      %v2698 = vadd.f32 %v2564, %v2697
      %2699 = vmatmul.bf16.gmra.mxu0 %v2615
      %v2700 = vpop.f32.mrf.mxu0
      %v2701 = vadd.f32 %v2564, %v2700
      %v2702 = vpop.f32.mrf.mxu0
      %v2703 = vadd.f32 %v2564, %v2702
      %2704 = vmatmul.bf16.gmra.mxu0 %v2618
      %v2705 = vpop.f32.mrf.mxu0
      %v2706 = vadd.f32 %v2564, %v2705
      %v2707 = vpop.f32.mrf.mxu0
      %v2708 = vadd.f32 %v2564, %v2707
      %2709 = vmatmul.bf16.gmra.mxu0 %v2621
      %v2710 = vpop.f32.mrf.mxu0
      %v2711 = vadd.f32 %v2564, %v2710
      %v2712 = vpop.f32.mrf.mxu0
      %v2713 = vadd.f32 %v2564, %v2712
      %2714 = vdwg.mxu0
      %vm2715 = vcmask 72704
      %2716 = vst.msk [vmem:[%s432] sm:$0xff] %vm2715, %v2636
      %2717 = vst.msk [vmem:[%s432 + $0x8] sm:$0xff] %vm2715, %v2638
      %2718 = vst.msk [vmem:[%s432 + $0x10] sm:$0xff] %vm2715, %v2641
      %2719 = vst.msk [vmem:[%s432 + $0x18] sm:$0xff] %vm2715, %v2643
      %2720 = vst.msk [vmem:[%s432 + $0x20] sm:$0xff] %vm2715, %v2646
      %2721 = vst.msk [vmem:[%s432 + $0x28] sm:$0xff] %vm2715, %v2648
      %2722 = vst.msk [vmem:[%s432 + $0x30] sm:$0xff] %vm2715, %v2651
      %2723 = vst.msk [vmem:[%s432 + $0x38] sm:$0xff] %vm2715, %v2653
      %2724 = vst.msk [vmem:[%s432 + $0x40] sm:$0xff] %vm2715, %v2656
      %2725 = vst.msk [vmem:[%s432 + $0x48] sm:$0xff] %vm2715, %v2658
      %2726 = vst.msk [vmem:[%s432 + $0x50] sm:$0xff] %vm2715, %v2661
      %2727 = vst.msk [vmem:[%s432 + $0x58] sm:$0xff] %vm2715, %v2663
      %2728 = vst.msk [vmem:[%s432 + $0x60] sm:$0xff] %vm2715, %v2666
      %2729 = vst.msk [vmem:[%s432 + $0x68] sm:$0xff] %vm2715, %v2668
      %2730 = vst.msk [vmem:[%s432 + $0x70] sm:$0xff] %vm2715, %v2671
      %2731 = vst.msk [vmem:[%s432 + $0x78] sm:$0xff] %vm2715, %v2673
      %2732 = vst.msk [vmem:[%s432 + $0x80] sm:$0xff] %vm2715, %v2676
      %2733 = vst.msk [vmem:[%s432 + $0x88] sm:$0xff] %vm2715, %v2678
      %2734 = vst.msk [vmem:[%s432 + $0x90] sm:$0xff] %vm2715, %v2681
      %2735 = vst.msk [vmem:[%s432 + $0x98] sm:$0xff] %vm2715, %v2683
      %2736 = vst.msk [vmem:[%s432 + $0xa0] sm:$0xff] %vm2715, %v2686
      %2737 = vst.msk [vmem:[%s432 + $0xa8] sm:$0xff] %vm2715, %v2688
      %2738 = vst.msk [vmem:[%s432 + $0xb0] sm:$0xff] %vm2715, %v2691
      %2739 = vst.msk [vmem:[%s432 + $0xb8] sm:$0xff] %vm2715, %v2693
      %2740 = vst.msk [vmem:[%s432 + $0xc0] sm:$0xff] %vm2715, %v2696
      %2741 = vst.msk [vmem:[%s432 + $0xc8] sm:$0xff] %vm2715, %v2698
      %2742 = vst.msk [vmem:[%s432 + $0xd0] sm:$0xff] %vm2715, %v2701
      %2743 = vst.msk [vmem:[%s432 + $0xd8] sm:$0xff] %vm2715, %v2703
      %2744 = vst.msk [vmem:[%s432 + $0xe0] sm:$0xff] %vm2715, %v2706
      %2745 = vst.msk [vmem:[%s432 + $0xe8] sm:$0xff] %vm2715, %v2708
      %2746 = vst.msk [vmem:[%s432 + $0xf0] sm:$0xff] %vm2715, %v2711
      %2747 = vst.msk [vmem:[%s432 + $0xf8] sm:$0xff] %vm2715, %v2713
      %s2748 = smul.u32 32, %s22
      %p2749 = scmp.lt.s32.totalorder %s2748, 63
      %s2750 = scalar_select %p2749, %s2748, 63
      %s2751 = smul.addr %s2750, 8
      %s2752 = scalar_lea.vmem %s11, %s2751
      // Predicated region
      $region65: #{hovernet_fwd.15} parent=63 // pred_check
        %p2753 = pneg %p286
      $region66: #{hovernet_fwd.15} parent=63 // pred_check_branch
        %2755 = sbr.rel (%p2753) target = $region68
      $region67: #{hovernet_fwd.15} parent=63 // pred_region
        %s2756 = smul.u32 32, %s22
      $region68: #{hovernet_fwd.15} parent=63 // pred_fallthru
        _
    $region64: #{hovernet_fwd.15} parent=5 // pred_fallthru
      _
    %p2757 = scmp.le.s32.totalorder 2, %s17
    // Predicated region
    $region69: #{hovernet_fwd.15} parent=5 // pred_check
      %p2758 = pneg %p2757
    $region70: #{hovernet_fwd.15} parent=5 // pred_check_branch
      %2760 = sbr.rel (%p2758) target = $region72
    $region71: #{hovernet_fwd.15} parent=5 // pred_region
      %s2761 = ssub.s32 %s17, 2
      // Predicated region
      $region73: #{hovernet_fwd.15} parent=71 // pred_check
        %p2762 = pneg %p292
      $region74: #{hovernet_fwd.15} parent=71 // pred_check_branch
        %2764 = sbr.rel (%p2762) target = $region76
      $region75: #{hovernet_fwd.15} parent=71 // pred_region
        %s2765 = smul.u32 32, %s23
        %p2766 = scmp.lt.s32.totalorder %s2765, 63
        %s2767 = scalar_select %p2766, %s2765, 63
        %s2768 = smul.addr %s2767, 8
        %s2769 = scalar_lea.vmem %s11, %s2768
      $region76: #{hovernet_fwd.15} parent=71 // pred_fallthru
        _
    $region72: #{hovernet_fwd.15} parent=5 // pred_fallthru
      _
  $region6: #{hovernet_fwd.15} parent=0 // loop_footer
    %s21 = sadd.s32 1, %s17
  $region7: #{hovernet_fwd.15} parent=0 // loop_footer_branch
    %16 = sbr.rel target = $region3
  $region8: #{hovernet_fwd.15} parent=0 // loop_exit
    _

</llo_original>
